<compile_context>
chip_gen: v6e
topology: v6e:2x2x1
jax: 0.10.0
libtpu: 0.0.40
codegen_flags: <defaults>
</compile_context>

<pallas_src>
import jax
import jax.numpy as jnp
from jax import lax
from jax.experimental import pallas as pl
from jax.experimental.pallas import tpu as pltpu

_PADL = 8  # left pad in the dx-shift staging buffer so the interior store is sublane-aligned


def _make_kernel(H, W, Ci, Co, G, eps, has_proj):
    HW = H * W
    n1_inv = 1.0 / float(HW * (Ci // G))
    n2_inv = 1.0 / float(HW * (Co // G))
    f32 = jnp.float32
    bf16 = jnp.bfloat16
    HI = lax.Precision.HIGHEST  # only for the tiny (1,C)x(C,G) group-stat dots

    def group_norm_silu(h, m, mt, gamma, beta, n_inv):
        # h: (HW, C) f32. Group reduce / broadcast-back via tiny one-hot matmuls,
        # affine folded into a single scale/shift so the big pass is 2 VPU ops/element.
        s = jnp.sum(h, axis=0, keepdims=True)                                    # (1, C)
        ss = jnp.sum(h * h, axis=0, keepdims=True)                               # (1, C)
        gs = jnp.dot(s, m, precision=HI, preferred_element_type=f32)             # (1, G)
        gss = jnp.dot(ss, m, precision=HI, preferred_element_type=f32)           # (1, G)
        mean_g = gs * n_inv
        var_g = gss * n_inv - mean_g * mean_g                                    # biased var (PyTorch)
        inv_g = lax.rsqrt(var_g + eps)
        mean_c = jnp.dot(mean_g, mt, precision=HI, preferred_element_type=f32)   # (1, C)
        inv_c = jnp.dot(inv_g, mt, precision=HI, preferred_element_type=f32)     # (1, C)
        scale = inv_c * gamma
        shift = beta - mean_c * scale
        y = h * scale + shift
        # SiLU: exp and approx reciprocal both run on the EUP slot.
        return y * pl.reciprocal(1.0 + jnp.exp(-y), approx=True)

    def conv3x3(wpad_ref, col_ref, h3, w_ref, bias, Cin, Cout):
        # "same" zero-padded 3x3 conv as 3 matmuls (one per dy) with K = 3*Cin
        # (the dx taps are folded into the lane/contraction axis).
        # h3: (H, W, Cin) f32 activation; matmul inputs are cast to bf16, f32 accumulation.
        wpad_ref[:, _PADL:_PADL + W, :] = h3                                      # aligned store
        lmask = lax.broadcasted_iota(jnp.int32, (H, W, Cin), 1)
        left = jnp.where(lmask >= 1,
                         wpad_ref[:, _PADL - 1:_PADL - 1 + W, :], 0.0)            # h[:, x-1, :]
        right = jnp.where(lmask <= W - 2,
                          wpad_ref[:, _PADL + 1:_PADL + 1 + W, :], 0.0)           # h[:, x+1, :]
        body = jnp.concatenate([left, h3, right], axis=-1).astype(bf16)           # (H, W, 3*Cin)
        col_ref[0:1] = jnp.zeros((1, W, 3 * Cin), bf16)                           # y = -1 halo row
        col_ref[H + 1:H + 2] = jnp.zeros((1, W, 3 * Cin), bf16)                   # y = H halo row
        col_ref[1:H + 1] = body
        acc = jnp.zeros((HW, Cout), f32)
        for dy in range(3):                                                       # 3 MXU matmuls
            patch = col_ref[dy:dy + H].reshape(HW, 3 * Cin)
            acc = acc + jnp.dot(patch, w_ref[dy], preferred_element_type=f32)
        return acc + bias

    def body(x_ref, g1_ref, b1_ref, m1_ref, m1t_ref, w1_ref, c1b_ref,
             g2_ref, b2_ref, m2_ref, m2t_ref, w2_ref, c2b_ref,
             rw_ref, rb_ref, o_ref, wpad1, col1, wpad2, col2):
        x = x_ref[0].astype(f32)                                                  # (H, W, Ci)
        x2 = x.reshape(HW, Ci)

        h1 = group_norm_silu(x2, m1_ref[...], m1t_ref[...], g1_ref[...], b1_ref[...], n1_inv)
        c1 = conv3x3(wpad1, col1, h1.reshape(H, W, Ci), w1_ref, c1b_ref[...], Ci, Co)

        h2 = group_norm_silu(c1, m2_ref[...], m2t_ref[...], g2_ref[...], b2_ref[...], n2_inv)
        c2 = conv3x3(wpad2, col2, h2.reshape(H, W, Co), w2_ref, c2b_ref[...], Co, Co)

        if has_proj:   # 1x1 conv residual projection (ci != co): bf16 inputs, f32 accumulation
            res = jnp.dot(x2.astype(bf16), rw_ref[...], preferred_element_type=f32) + rb_ref[...]
        else:          # nn.Identity(): exact f32 add, no MXU pass
            res = x2

        o_ref[0] = (c2 + res).reshape(H, W, Co).astype(o_ref.dtype)

    if has_proj:
        def kernel(x_ref, g1, b1, m1, m1t, w1, c1b, g2, b2, m2, m2t, w2, c2b,
                   rw, rb, o_ref, wpad1, col1, wpad2, col2):
            body(x_ref, g1, b1, m1, m1t, w1, c1b, g2, b2, m2, m2t, w2, c2b,
                 rw, rb, o_ref, wpad1, col1, wpad2, col2)
    else:
        def kernel(x_ref, g1, b1, m1, m1t, w1, c1b, g2, b2, m2, m2t, w2, c2b,
                   o_ref, wpad1, col1, wpad2, col2):
            body(x_ref, g1, b1, m1, m1t, w1, c1b, g2, b2, m2, m2t, w2, c2b,
                 None, None, o_ref, wpad1, col1, wpad2, col2)
    return kernel


def vae_residual_block(x_nchw, params, groups=32, eps=1e-5):
    """Pallas forward of VAE_ResidualBlock. x_nchw: (N, Ci, H, W) -> (N, Co, H, W)."""
    N, Ci, H, W = x_nchw.shape
    Co = params["w1"].shape[0]
    G = groups
    has_proj = Ci != Co
    f32, bf16 = jnp.float32, jnp.bfloat16

    x = jnp.transpose(x_nchw, (0, 2, 3, 1)).astype(f32)                 # NCHW -> NHWC

    def group_map(C):
        cg = C // G
        m = (jnp.arange(C)[:, None] // cg == jnp.arange(G)[None, :]).astype(f32)
        return m, m.T

    M1, M1t = group_map(Ci)
    M2, M2t = group_map(Co)

    # PyTorch OIHW -> (kh, kw*Cin, Cout); contraction index = dx*Cin + c matches im2col lanes.
    w1 = jnp.transpose(params["w1"], (2, 3, 1, 0)).reshape(3, 3 * Ci, Co).astype(bf16)
    w2 = jnp.transpose(params["w2"], (2, 3, 1, 0)).reshape(3, 3 * Co, Co).astype(bf16)

    g1 = params["g1"].reshape(1, Ci).astype(f32)
    b1 = params["b1"].reshape(1, Ci).astype(f32)
    g2 = params["g2"].reshape(1, Co).astype(f32)
    b2 = params["b2"].reshape(1, Co).astype(f32)
    c1b = params["c1b"].reshape(1, Co).astype(f32)
    c2b = params["c2b"].reshape(1, Co).astype(f32)

    inputs = [x, g1, b1, M1, M1t, w1, c1b, g2, b2, M2, M2t, w2, c2b]
    # NOTE: constant-index parameter specs would ideally be single-buffered
    # (pipeline_mode=pl.Buffered(1)); left at default buffering here for portability.
    in_specs = [
        pl.BlockSpec((1, H, W, Ci), lambda b: (b, 0, 0, 0)),            # x (per-batch tile)
        pl.BlockSpec((1, Ci), lambda b: (0, 0)),                        # gn1 gamma
        pl.BlockSpec((1, Ci), lambda b: (0, 0)),                        # gn1 beta
        pl.BlockSpec((Ci, G), lambda b: (0, 0)),                        # group map 1
        pl.BlockSpec((G, Ci), lambda b: (0, 0)),                        # group map 1^T
        pl.BlockSpec((3, 3 * Ci, Co), lambda b: (0, 0, 0)),             # conv1 weight (bf16)
        pl.BlockSpec((1, Co), lambda b: (0, 0)),                        # conv1 bias
        pl.BlockSpec((1, Co), lambda b: (0, 0)),                        # gn2 gamma
        pl.BlockSpec((1, Co), lambda b: (0, 0)),                        # gn2 beta
        pl.BlockSpec((Co, G), lambda b: (0, 0)),                        # group map 2
        pl.BlockSpec((G, Co), lambda b: (0, 0)),                        # group map 2^T
        pl.BlockSpec((3, 3 * Co, Co), lambda b: (0, 0, 0)),             # conv2 weight (bf16)
        pl.BlockSpec((1, Co), lambda b: (0, 0)),                        # conv2 bias
    ]
    if has_proj:
        rw = jnp.transpose(params["rw"][:, :, 0, 0]).astype(bf16)       # (Ci, Co)
        rb = params["rb"].reshape(1, Co).astype(f32)
        inputs += [rw, rb]
        in_specs += [pl.BlockSpec((Ci, Co), lambda b: (0, 0)),          # residual 1x1 weight
                     pl.BlockSpec((1, Co), lambda b: (0, 0))]           # residual bias

    kernel = _make_kernel(H, W, Ci, Co, G, eps, has_proj)

    out_nhwc = pl.pallas_call(
        kernel,
        out_shape=jax.ShapeDtypeStruct((N, H, W, Co), f32),
        grid_spec=pltpu.PrefetchScalarGridSpec(
            num_scalar_prefetch=0,
            grid=(N,),
            in_specs=in_specs,
            out_specs=pl.BlockSpec((1, H, W, Co), lambda b: (b, 0, 0, 0)),
            scratch_shapes=[
                pltpu.VMEM((H, W + _PADL + 1, Ci), f32),      # dx-shift staging, conv1
                pltpu.VMEM((H + 2, W, 3 * Ci), bf16),         # im2col rows, conv1
                pltpu.VMEM((H, W + _PADL + 1, Co), f32),      # dx-shift staging, conv2
                pltpu.VMEM((H + 2, W, 3 * Co), bf16),         # im2col rows, conv2
            ],
        ),
        compiler_params=pltpu.CompilerParams(
            dimension_semantics=("parallel",),                # batch elements independent (v7x megacore)
            vmem_limit_bytes=32 * 1024 * 1024,
        ),
    )(*inputs)
    # TODO(synk): for production VAE shapes (e.g. C=512, H=W=64) add spatial row tiling with a
    # halo (two-pass GroupNorm statistics) so VMEM stays bounded on v7x / under v5e's scoped limit.
    return jnp.transpose(out_nhwc, (0, 3, 1, 2))              # NHWC -> NCHW


def _ref_forward(x, params, groups=32, eps=1e-5):
    """Plain-JAX reference matching the PyTorch module semantics (NCHW)."""
    def gn(h, gamma, beta):
        n, c, hh, ww = h.shape
        hg = h.reshape(n, groups, c // groups, hh, ww)
        mean = hg.mean(axis=(2, 3, 4), keepdims=True)
        var = hg.var(axis=(2, 3, 4), keepdims=True)
        hn = ((hg - mean) / jnp.sqrt(var + eps)).reshape(n, c, hh, ww)
        return hn * gamma[None, :, None, None] + beta[None, :, None, None]

    def silu(h):
        return h * jax.nn.sigmoid(h)

    def conv(h, w, b, pad):
        y = lax.conv_general_dilated(h, w, (1, 1), [(pad, pad), (pad, pad)],
                                     dimension_numbers=("NCHW", "OIHW", "NCHW"))
        return y + b[None, :, None, None]

    ci = x.shape[1]
    co = params["w1"].shape[0]
    h = conv(silu(gn(x, params["g1"], params["b1"])), params["w1"], params["c1b"], 1)
    h = conv(silu(gn(h, params["g2"], params["b2"])), params["w2"], params["c2b"], 1)
    resid = x if ci == co else conv(x, params["rw"], params["rb"], 0)
    return h + resid


def _make_params(key, ci, co, with_proj):
    ks = jax.random.split(key, 10)
    p = dict(
        g1=1.0 + 0.1 * jax.random.normal(ks[0], (ci,), jnp.float32),
        b1=0.1 * jax.random.normal(ks[1], (ci,), jnp.float32),
        w1=0.05 * jax.random.normal(ks[2], (co, ci, 3, 3), jnp.float32),
        c1b=0.05 * jax.random.normal(ks[3], (co,), jnp.float32),
        g2=1.0 + 0.1 * jax.random.normal(ks[4], (co,), jnp.float32),
        b2=0.1 * jax.random.normal(ks[5], (co,), jnp.float32),
        w2=0.05 * jax.random.normal(ks[6], (co, co, 3, 3), jnp.float32),
        c2b=0.05 * jax.random.normal(ks[7], (co,), jnp.float32),
    )
    if with_proj:
        p["rw"] = 0.05 * jax.random.normal(ks[8], (co, ci, 1, 1), jnp.float32)
        p["rb"] = 0.05 * jax.random.normal(ks[9], (co,), jnp.float32)
    return p


if __name__ == "__main__":
    key = jax.random.PRNGKey(0)
    k_x1, k_p1, k_x2, k_p2 = jax.random.split(key, 4)
    N, H, W = 2, 16, 16

    # Case 1: ci != co -> 1x1-conv residual projection. (GroupNorm(32, .) needs C % 32 == 0.)
    Ci, Co = 32, 64
    x1 = jax.random.normal(k_x1, (N, Ci, H, W), jnp.float32)
    p1 = _make_params(k_p1, Ci, Co, with_proj=True)
    out1 = jax.block_until_ready(vae_residual_block(x1, p1))
    ref1 = _ref_forward(x1, p1)
    assert out1.shape == (N, Co, H, W), out1.shape
    err1 = float(jnp.max(jnp.abs(out1 - ref1)))
    assert err1 < 5e-2, f"ci!=co max abs error vs reference: {err1}"

    # Case 2: ci == co -> identity residual (exact f32 add inside the kernel).
    C = 64
    x2 = jax.random.normal(k_x2, (N, C, H, W), jnp.float32)
    p2 = _make_params(k_p2, C, C, with_proj=False)
    out2 = jax.block_until_ready(vae_residual_block(x2, p2))
    ref2 = _ref_forward(x2, p2)
    assert out2.shape == (N, C, H, W), out2.shape
    err2 = float(jnp.max(jnp.abs(out2 - ref2)))
    assert err2 < 5e-2, f"ci==co max abs error vs reference: {err2}"

    print("KERNEL_OK")
</pallas_src>

<mosaic_0001>
module attributes {stable_mosaic.version = 11 : i64} {
  func.func @kernel(%arg0: i32, %arg1: memref<1x16x16x32xf32, #tpu.memory_space<vmem>>, %arg2: memref<1x32xf32, #tpu.memory_space<vmem>>, %arg3: memref<1x32xf32, #tpu.memory_space<vmem>>, %arg4: memref<32x32xf32, #tpu.memory_space<vmem>>, %arg5: memref<32x32xf32, #tpu.memory_space<vmem>>, %arg6: memref<3x96x64xbf16, #tpu.memory_space<vmem>>, %arg7: memref<1x64xf32, #tpu.memory_space<vmem>>, %arg8: memref<1x64xf32, #tpu.memory_space<vmem>>, %arg9: memref<1x64xf32, #tpu.memory_space<vmem>>, %arg10: memref<64x32xf32, #tpu.memory_space<vmem>>, %arg11: memref<32x64xf32, #tpu.memory_space<vmem>>, %arg12: memref<3x192x64xbf16, #tpu.memory_space<vmem>>, %arg13: memref<1x64xf32, #tpu.memory_space<vmem>>, %arg14: memref<32x64xbf16, #tpu.memory_space<vmem>>, %arg15: memref<1x64xf32, #tpu.memory_space<vmem>>, %arg16: memref<1x16x16x64xf32, #tpu.memory_space<vmem>>, %arg17: memref<16x25x32xf32, #tpu.memory_space<vmem>>, %arg18: memref<18x16x96xbf16, #tpu.memory_space<vmem>>, %arg19: memref<16x25x64xf32, #tpu.memory_space<vmem>>, %arg20: memref<18x16x192xbf16, #tpu.memory_space<vmem>>) attributes {dimension_semantics = [#tpu.dimension_semantics<parallel>], iteration_bounds = array<i64: 2>, scalar_prefetch = 0 : i64, scratch_operands = 4 : i64, tpu.core_type = #tpu.core_type<tc>, window_params = [{transform_indices = @transform_0, window_bounds = array<i64: 1, 16, 16, 32>}, {pipeline_mode = #tpu.pipeline_mode<synchronous>, transform_indices = @transform_1, window_bounds = array<i64: 1, 32>}, {pipeline_mode = #tpu.pipeline_mode<synchronous>, transform_indices = @transform_2, window_bounds = array<i64: 1, 32>}, {pipeline_mode = #tpu.pipeline_mode<synchronous>, transform_indices = @transform_3, window_bounds = array<i64: 32, 32>}, {pipeline_mode = #tpu.pipeline_mode<synchronous>, transform_indices = @transform_4, window_bounds = array<i64: 32, 32>}, {pipeline_mode = #tpu.pipeline_mode<synchronous>, transform_indices = @transform_5, window_bounds = array<i64: 3, 96, 64>}, {pipeline_mode = #tpu.pipeline_mode<synchronous>, transform_indices = @transform_6, window_bounds = array<i64: 1, 64>}, {pipeline_mode = #tpu.pipeline_mode<synchronous>, transform_indices = @transform_7, window_bounds = array<i64: 1, 64>}, {pipeline_mode = #tpu.pipeline_mode<synchronous>, transform_indices = @transform_8, window_bounds = array<i64: 1, 64>}, {pipeline_mode = #tpu.pipeline_mode<synchronous>, transform_indices = @transform_9, window_bounds = array<i64: 64, 32>}, {pipeline_mode = #tpu.pipeline_mode<synchronous>, transform_indices = @transform_10, window_bounds = array<i64: 32, 64>}, {pipeline_mode = #tpu.pipeline_mode<synchronous>, transform_indices = @transform_11, window_bounds = array<i64: 3, 192, 64>}, {pipeline_mode = #tpu.pipeline_mode<synchronous>, transform_indices = @transform_12, window_bounds = array<i64: 1, 64>}, {pipeline_mode = #tpu.pipeline_mode<synchronous>, transform_indices = @transform_13, window_bounds = array<i64: 32, 64>}, {pipeline_mode = #tpu.pipeline_mode<synchronous>, transform_indices = @transform_14, window_bounds = array<i64: 1, 64>}, {transform_indices = @transform_15, window_bounds = array<i64: 1, 16, 16, 64>}]} {
    %c0 = arith.constant 0 : index
    %c0_0 = arith.constant 0 : index
    %c0_1 = arith.constant 0 : index
    %c0_2 = arith.constant 0 : index
    %0 = vector.load %arg1[%c0, %c0_0, %c0_1, %c0_2] : memref<1x16x16x32xf32, #tpu.memory_space<vmem>>, vector<1x16x16x32xf32>
    %1 = vector.shape_cast %0 : vector<1x16x16x32xf32> to vector<16x16x32xf32>
    %2 = vector.shape_cast %1 : vector<16x16x32xf32> to vector<256x32xf32>
    %c0_3 = arith.constant 0 : index
    %c0_4 = arith.constant 0 : index
    %3 = vector.load %arg4[%c0_3, %c0_4] : memref<32x32xf32, #tpu.memory_space<vmem>>, vector<32x32xf32>
    %c0_5 = arith.constant 0 : index
    %c0_6 = arith.constant 0 : index
    %4 = vector.load %arg5[%c0_5, %c0_6] : memref<32x32xf32, #tpu.memory_space<vmem>>, vector<32x32xf32>
    %c0_7 = arith.constant 0 : index
    %c0_8 = arith.constant 0 : index
    %5 = vector.load %arg2[%c0_7, %c0_8] : memref<1x32xf32, #tpu.memory_space<vmem>>, vector<1x32xf32>
    %c0_9 = arith.constant 0 : index
    %c0_10 = arith.constant 0 : index
    %6 = vector.load %arg3[%c0_9, %c0_10] : memref<1x32xf32, #tpu.memory_space<vmem>>, vector<1x32xf32>
    %cst = arith.constant dense<0.000000e+00> : vector<32xf32>
    %7 = vector.multi_reduction <add>, %2, %cst [0] : vector<256x32xf32> to vector<32xf32>
    %8 = vector.shape_cast %7 : vector<32xf32> to vector<1x32xf32>
    %9 = arith.mulf %2, %2 : vector<256x32xf32>
    %cst_11 = arith.constant dense<0.000000e+00> : vector<32xf32>
    %10 = vector.multi_reduction <add>, %9, %cst_11 [0] : vector<256x32xf32> to vector<32xf32>
    %11 = vector.shape_cast %10 : vector<32xf32> to vector<1x32xf32>
    %cst_12 = arith.constant dense<0.000000e+00> : vector<1x32xf32>
    %12 = tpu.matmul %8, %3, %cst_12 {dimension_numbers = #tpu.dot_dimension_numbers<[1], [0], [0], [1], [0, 0, 1, 1], [], []>, precision = #tpu.contract_precision<fp32>} : vector<1x32xf32>, vector<32x32xf32>, vector<1x32xf32> -> vector<1x32xf32>
    %cst_13 = arith.constant dense<0.000000e+00> : vector<1x32xf32>
    %13 = tpu.matmul %11, %3, %cst_13 {dimension_numbers = #tpu.dot_dimension_numbers<[1], [0], [0], [1], [0, 0, 1, 1], [], []>, precision = #tpu.contract_precision<fp32>} : vector<1x32xf32>, vector<32x32xf32>, vector<1x32xf32> -> vector<1x32xf32>
    %cst_14 = arith.constant 3.906250e-03 : f32
    %14 = vector.broadcast %cst_14 : f32 to vector<1x32xf32>
    %15 = arith.mulf %12, %14 : vector<1x32xf32>
    %cst_15 = arith.constant 3.906250e-03 : f32
    %16 = vector.broadcast %cst_15 : f32 to vector<1x32xf32>
    %17 = arith.mulf %13, %16 : vector<1x32xf32>
    %18 = arith.mulf %15, %15 : vector<1x32xf32>
    %19 = arith.subf %17, %18 : vector<1x32xf32>
    %cst_16 = arith.constant 9.99999974E-6 : f32
    %20 = vector.broadcast %cst_16 : f32 to vector<1x32xf32>
    %21 = arith.addf %19, %20 : vector<1x32xf32>
    %22 = math.rsqrt %21 : vector<1x32xf32>
    %cst_17 = arith.constant dense<0.000000e+00> : vector<1x32xf32>
    %23 = tpu.matmul %15, %4, %cst_17 {dimension_numbers = #tpu.dot_dimension_numbers<[1], [0], [0], [1], [0, 0, 1, 1], [], []>, precision = #tpu.contract_precision<fp32>} : vector<1x32xf32>, vector<32x32xf32>, vector<1x32xf32> -> vector<1x32xf32>
    %cst_18 = arith.constant dense<0.000000e+00> : vector<1x32xf32>
    %24 = tpu.matmul %22, %4, %cst_18 {dimension_numbers = #tpu.dot_dimension_numbers<[1], [0], [0], [1], [0, 0, 1, 1], [], []>, precision = #tpu.contract_precision<fp32>} : vector<1x32xf32>, vector<32x32xf32>, vector<1x32xf32> -> vector<1x32xf32>
    %25 = arith.mulf %24, %5 : vector<1x32xf32>
    %26 = arith.mulf %23, %25 : vector<1x32xf32>
    %27 = arith.subf %6, %26 : vector<1x32xf32>
    %28 = vector.broadcast %25 : vector<1x32xf32> to vector<256x32xf32>
    %29 = arith.mulf %2, %28 : vector<256x32xf32>
    %30 = vector.broadcast %27 : vector<1x32xf32> to vector<256x32xf32>
    %31 = arith.addf %29, %30 : vector<256x32xf32>
    %cst_19 = arith.constant 0.000000e+00 : f32
    %32 = vector.broadcast %cst_19 : f32 to vector<256x32xf32>
    %33 = arith.subf %32, %31 : vector<256x32xf32>
    %34 = math.exp %33 : vector<256x32xf32>
    %cst_20 = arith.constant 1.000000e+00 : f32
    %35 = vector.broadcast %cst_20 : f32 to vector<256x32xf32>
    %36 = arith.addf %35, %34 : vector<256x32xf32>
    %37 = tpu.reciprocal %36 {approx = true} : vector<256x32xf32> -> vector<256x32xf32>
    %38 = arith.mulf %31, %37 : vector<256x32xf32>
    %39 = vector.shape_cast %38 : vector<256x32xf32> to vector<16x16x32xf32>
    %c0_21 = arith.constant 0 : index
    %c0_22 = arith.constant 0 : index
    %40 = vector.load %arg7[%c0_21, %c0_22] : memref<1x64xf32, #tpu.memory_space<vmem>>, vector<1x64xf32>
    %c0_23 = arith.constant 0 : index
    %c8 = arith.constant 8 : index
    %c0_24 = arith.constant 0 : index
    %41 = vector.load %arg17[%c0_23, %c8, %c0_24] : memref<16x25x32xf32, #tpu.memory_space<vmem>>, vector<16x16x32xf32>
    tpu.vector_store %arg17[%c0_23, %c8, %c0_24], %39 {strides = array<i32>} : memref<16x25x32xf32, #tpu.memory_space<vmem>>, vector<16x16x32xf32>,
    %42 = tpu.iota {dimensions = array<i32: 1>} : vector<16x16x32xi32>
    %c1_i32 = arith.constant 1 : i32
    %43 = vector.broadcast %c1_i32 : i32 to vector<16x16x32xi32>
    %44 = arith.cmpi sge, %42, %43 : vector<16x16x32xi32>
    %c0_25 = arith.constant 0 : index
    %c7 = arith.constant 7 : index
    %c0_26 = arith.constant 0 : index
    %45 = vector.load %arg17[%c0_25, %c7, %c0_26] : memref<16x25x32xf32, #tpu.memory_space<vmem>>, vector<16x16x32xf32>
    %cst_27 = arith.constant 0.000000e+00 : f32
    %46 = vector.broadcast %cst_27 : f32 to vector<16x16x32xf32>
    %47 = arith.select %44, %45, %46 : vector<16x16x32xi1>, vector<16x16x32xf32>
    %c14_i32 = arith.constant 14 : i32
    %48 = vector.broadcast %c14_i32 : i32 to vector<16x16x32xi32>
    %49 = arith.cmpi sle, %42, %48 : vector<16x16x32xi32>
    %c0_28 = arith.constant 0 : index
    %c9 = arith.constant 9 : index
    %c0_29 = arith.constant 0 : index
    %50 = vector.load %arg17[%c0_28, %c9, %c0_29] : memref<16x25x32xf32, #tpu.memory_space<vmem>>, vector<16x16x32xf32>
    %cst_30 = arith.constant 0.000000e+00 : f32
    %51 = vector.broadcast %cst_30 : f32 to vector<16x16x32xf32>
    %52 = arith.select %49, %50, %51 : vector<16x16x32xi1>, vector<16x16x32xf32>
    %53 = tpu.concatenate %47, %39, %52 in 2 : vector<16x16x32xf32>, vector<16x16x32xf32>, vector<16x16x32xf32> -> vector<16x16x96xf32>
    %54 = arith.truncf %53 : vector<16x16x96xf32> to vector<16x16x96xbf16>
    %cst_31 = arith.constant 0.000000e+00 : bf16
    %55 = vector.broadcast %cst_31 : bf16 to vector<1x16x96xbf16>
    %c0_32 = arith.constant 0 : index
    %c0_33 = arith.constant 0 : index
    %c0_34 = arith.constant 0 : index
    %56 = vector.load %arg18[%c0_32, %c0_33, %c0_34] : memref<18x16x96xbf16, #tpu.memory_space<vmem>>, vector<1x16x96xbf16>
    tpu.vector_store %arg18[%c0_32, %c0_33, %c0_34], %55 {strides = array<i32>} : memref<18x16x96xbf16, #tpu.memory_space<vmem>>, vector<1x16x96xbf16>,
    %cst_35 = arith.constant 0.000000e+00 : bf16
    %57 = vector.broadcast %cst_35 : bf16 to vector<1x16x96xbf16>
    %c17 = arith.constant 17 : index
    %c0_36 = arith.constant 0 : index
    %c0_37 = arith.constant 0 : index
    %58 = vector.load %arg18[%c17, %c0_36, %c0_37] : memref<18x16x96xbf16, #tpu.memory_space<vmem>>, vector<1x16x96xbf16>
    tpu.vector_store %arg18[%c17, %c0_36, %c0_37], %57 {strides = array<i32>} : memref<18x16x96xbf16, #tpu.memory_space<vmem>>, vector<1x16x96xbf16>,
    %c1 = arith.constant 1 : index
    %c0_38 = arith.constant 0 : index
    %c0_39 = arith.constant 0 : index
    %59 = vector.load %arg18[%c1, %c0_38, %c0_39] : memref<18x16x96xbf16, #tpu.memory_space<vmem>>, vector<16x16x96xbf16>
    tpu.vector_store %arg18[%c1, %c0_38, %c0_39], %54 {strides = array<i32>} : memref<18x16x96xbf16, #tpu.memory_space<vmem>>, vector<16x16x96xbf16>,
    %cst_40 = arith.constant 0.000000e+00 : f32
    %60 = vector.broadcast %cst_40 : f32 to vector<256x64xf32>
    %c0_41 = arith.constant 0 : index
    %c0_42 = arith.constant 0 : index
    %c0_43 = arith.constant 0 : index
    %61 = vector.load %arg18[%c0_41, %c0_42, %c0_43] : memref<18x16x96xbf16, #tpu.memory_space<vmem>>, vector<16x16x96xbf16>
    %62 = vector.shape_cast %61 : vector<16x16x96xbf16> to vector<256x96xbf16>
    %c0_44 = arith.constant 0 : index
    %c0_45 = arith.constant 0 : index
    %c0_46 = arith.constant 0 : index
    %63 = vector.load %arg6[%c0_44, %c0_45, %c0_46] : memref<3x96x64xbf16, #tpu.memory_space<vmem>>, vector<1x96x64xbf16>
    %64 = vector.shape_cast %63 : vector<1x96x64xbf16> to vector<96x64xbf16>
    %cst_47 = arith.constant dense<0.000000e+00> : vector<256x64xf32>
    %65 = tpu.matmul %62, %64, %cst_47 {dimension_numbers = #tpu.dot_dimension_numbers<[1], [0], [0], [1], [0, 0, 1, 1], [], []>} : vector<256x96xbf16>, vector<96x64xbf16>, vector<256x64xf32> -> vector<256x64xf32>
    %66 = arith.addf %60, %65 : vector<256x64xf32>
    %c1_48 = arith.constant 1 : index
    %c0_49 = arith.constant 0 : index
    %c0_50 = arith.constant 0 : index
    %67 = vector.load %arg18[%c1_48, %c0_49, %c0_50] : memref<18x16x96xbf16, #tpu.memory_space<vmem>>, vector<16x16x96xbf16>
    %68 = vector.shape_cast %67 : vector<16x16x96xbf16> to vector<256x96xbf16>
    %c1_51 = arith.constant 1 : index
    %c0_52 = arith.constant 0 : index
    %c0_53 = arith.constant 0 : index
    %69 = vector.load %arg6[%c1_51, %c0_52, %c0_53] : memref<3x96x64xbf16, #tpu.memory_space<vmem>>, vector<1x96x64xbf16>
    %70 = vector.shape_cast %69 : vector<1x96x64xbf16> to vector<96x64xbf16>
    %cst_54 = arith.constant dense<0.000000e+00> : vector<256x64xf32>
    %71 = tpu.matmul %68, %70, %cst_54 {dimension_numbers = #tpu.dot_dimension_numbers<[1], [0], [0], [1], [0, 0, 1, 1], [], []>} : vector<256x96xbf16>, vector<96x64xbf16>, vector<256x64xf32> -> vector<256x64xf32>
    %72 = arith.addf %66, %71 : vector<256x64xf32>
    %c2 = arith.constant 2 : index
    %c0_55 = arith.constant 0 : index
    %c0_56 = arith.constant 0 : index
    %73 = vector.load %arg18[%c2, %c0_55, %c0_56] : memref<18x16x96xbf16, #tpu.memory_space<vmem>>, vector<16x16x96xbf16>
    %74 = vector.shape_cast %73 : vector<16x16x96xbf16> to vector<256x96xbf16>
    %c2_57 = arith.constant 2 : index
    %c0_58 = arith.constant 0 : index
    %c0_59 = arith.constant 0 : index
    %75 = vector.load %arg6[%c2_57, %c0_58, %c0_59] : memref<3x96x64xbf16, #tpu.memory_space<vmem>>, vector<1x96x64xbf16>
    %76 = vector.shape_cast %75 : vector<1x96x64xbf16> to vector<96x64xbf16>
    %cst_60 = arith.constant dense<0.000000e+00> : vector<256x64xf32>
    %77 = tpu.matmul %74, %76, %cst_60 {dimension_numbers = #tpu.dot_dimension_numbers<[1], [0], [0], [1], [0, 0, 1, 1], [], []>} : vector<256x96xbf16>, vector<96x64xbf16>, vector<256x64xf32> -> vector<256x64xf32>
    %78 = arith.addf %72, %77 : vector<256x64xf32>
    %79 = vector.broadcast %40 : vector<1x64xf32> to vector<256x64xf32>
    %80 = arith.addf %78, %79 : vector<256x64xf32>
    %c0_61 = arith.constant 0 : index
    %c0_62 = arith.constant 0 : index
    %81 = vector.load %arg10[%c0_61, %c0_62] : memref<64x32xf32, #tpu.memory_space<vmem>>, vector<64x32xf32>
    %c0_63 = arith.constant 0 : index
    %c0_64 = arith.constant 0 : index
    %82 = vector.load %arg11[%c0_63, %c0_64] : memref<32x64xf32, #tpu.memory_space<vmem>>, vector<32x64xf32>
    %c0_65 = arith.constant 0 : index
    %c0_66 = arith.constant 0 : index
    %83 = vector.load %arg8[%c0_65, %c0_66] : memref<1x64xf32, #tpu.memory_space<vmem>>, vector<1x64xf32>
    %c0_67 = arith.constant 0 : index
    %c0_68 = arith.constant 0 : index
    %84 = vector.load %arg9[%c0_67, %c0_68] : memref<1x64xf32, #tpu.memory_space<vmem>>, vector<1x64xf32>
    %cst_69 = arith.constant dense<0.000000e+00> : vector<64xf32>
    %85 = vector.multi_reduction <add>, %80, %cst_69 [0] : vector<256x64xf32> to vector<64xf32>
    %86 = vector.shape_cast %85 : vector<64xf32> to vector<1x64xf32>
    %87 = arith.mulf %80, %80 : vector<256x64xf32>
    %cst_70 = arith.constant dense<0.000000e+00> : vector<64xf32>
    %88 = vector.multi_reduction <add>, %87, %cst_70 [0] : vector<256x64xf32> to vector<64xf32>
    %89 = vector.shape_cast %88 : vector<64xf32> to vector<1x64xf32>
    %cst_71 = arith.constant dense<0.000000e+00> : vector<1x32xf32>
    %90 = tpu.matmul %86, %81, %cst_71 {dimension_numbers = #tpu.dot_dimension_numbers<[1], [0], [0], [1], [0, 0, 1, 1], [], []>, precision = #tpu.contract_precision<fp32>} : vector<1x64xf32>, vector<64x32xf32>, vector<1x32xf32> -> vector<1x32xf32>
    %cst_72 = arith.constant dense<0.000000e+00> : vector<1x32xf32>
    %91 = tpu.matmul %89, %81, %cst_72 {dimension_numbers = #tpu.dot_dimension_numbers<[1], [0], [0], [1], [0, 0, 1, 1], [], []>, precision = #tpu.contract_precision<fp32>} : vector<1x64xf32>, vector<64x32xf32>, vector<1x32xf32> -> vector<1x32xf32>
    %cst_73 = arith.constant 0.001953125 : f32
    %92 = vector.broadcast %cst_73 : f32 to vector<1x32xf32>
    %93 = arith.mulf %90, %92 : vector<1x32xf32>
    %cst_74 = arith.constant 0.001953125 : f32
    %94 = vector.broadcast %cst_74 : f32 to vector<1x32xf32>
    %95 = arith.mulf %91, %94 : vector<1x32xf32>
    %96 = arith.mulf %93, %93 : vector<1x32xf32>
    %97 = arith.subf %95, %96 : vector<1x32xf32>
    %cst_75 = arith.constant 9.99999974E-6 : f32
    %98 = vector.broadcast %cst_75 : f32 to vector<1x32xf32>
    %99 = arith.addf %97, %98 : vector<1x32xf32>
    %100 = math.rsqrt %99 : vector<1x32xf32>
    %cst_76 = arith.constant dense<0.000000e+00> : vector<1x64xf32>
    %101 = tpu.matmul %93, %82, %cst_76 {dimension_numbers = #tpu.dot_dimension_numbers<[1], [0], [0], [1], [0, 0, 1, 1], [], []>, precision = #tpu.contract_precision<fp32>} : vector<1x32xf32>, vector<32x64xf32>, vector<1x64xf32> -> vector<1x64xf32>
    %cst_77 = arith.constant dense<0.000000e+00> : vector<1x64xf32>
    %102 = tpu.matmul %100, %82, %cst_77 {dimension_numbers = #tpu.dot_dimension_numbers<[1], [0], [0], [1], [0, 0, 1, 1], [], []>, precision = #tpu.contract_precision<fp32>} : vector<1x32xf32>, vector<32x64xf32>, vector<1x64xf32> -> vector<1x64xf32>
    %103 = arith.mulf %102, %83 : vector<1x64xf32>
    %104 = arith.mulf %101, %103 : vector<1x64xf32>
    %105 = arith.subf %84, %104 : vector<1x64xf32>
    %106 = vector.broadcast %103 : vector<1x64xf32> to vector<256x64xf32>
    %107 = arith.mulf %80, %106 : vector<256x64xf32>
    %108 = vector.broadcast %105 : vector<1x64xf32> to vector<256x64xf32>
    %109 = arith.addf %107, %108 : vector<256x64xf32>
    %cst_78 = arith.constant 0.000000e+00 : f32
    %110 = vector.broadcast %cst_78 : f32 to vector<256x64xf32>
    %111 = arith.subf %110, %109 : vector<256x64xf32>
    %112 = math.exp %111 : vector<256x64xf32>
    %cst_79 = arith.constant 1.000000e+00 : f32
    %113 = vector.broadcast %cst_79 : f32 to vector<256x64xf32>
    %114 = arith.addf %113, %112 : vector<256x64xf32>
    %115 = tpu.reciprocal %114 {approx = true} : vector<256x64xf32> -> vector<256x64xf32>
    %116 = arith.mulf %109, %115 : vector<256x64xf32>
    %117 = vector.shape_cast %116 : vector<256x64xf32> to vector<16x16x64xf32>
    %c0_80 = arith.constant 0 : index
    %c0_81 = arith.constant 0 : index
    %118 = vector.load %arg13[%c0_80, %c0_81] : memref<1x64xf32, #tpu.memory_space<vmem>>, vector<1x64xf32>
    %c0_82 = arith.constant 0 : index
    %c8_83 = arith.constant 8 : index
    %c0_84 = arith.constant 0 : index
    %119 = vector.load %arg19[%c0_82, %c8_83, %c0_84] : memref<16x25x64xf32, #tpu.memory_space<vmem>>, vector<16x16x64xf32>
    tpu.vector_store %arg19[%c0_82, %c8_83, %c0_84], %117 {strides = array<i32>} : memref<16x25x64xf32, #tpu.memory_space<vmem>>, vector<16x16x64xf32>,
    %120 = tpu.iota {dimensions = array<i32: 1>} : vector<16x16x64xi32>
    %c1_i32_85 = arith.constant 1 : i32
    %121 = vector.broadcast %c1_i32_85 : i32 to vector<16x16x64xi32>
    %122 = arith.cmpi sge, %120, %121 : vector<16x16x64xi32>
    %c0_86 = arith.constant 0 : index
    %c7_87 = arith.constant 7 : index
    %c0_88 = arith.constant 0 : index
    %123 = vector.load %arg19[%c0_86, %c7_87, %c0_88] : memref<16x25x64xf32, #tpu.memory_space<vmem>>, vector<16x16x64xf32>
    %cst_89 = arith.constant 0.000000e+00 : f32
    %124 = vector.broadcast %cst_89 : f32 to vector<16x16x64xf32>
    %125 = arith.select %122, %123, %124 : vector<16x16x64xi1>, vector<16x16x64xf32>
    %c14_i32_90 = arith.constant 14 : i32
    %126 = vector.broadcast %c14_i32_90 : i32 to vector<16x16x64xi32>
    %127 = arith.cmpi sle, %120, %126 : vector<16x16x64xi32>
    %c0_91 = arith.constant 0 : index
    %c9_92 = arith.constant 9 : index
    %c0_93 = arith.constant 0 : index
    %128 = vector.load %arg19[%c0_91, %c9_92, %c0_93] : memref<16x25x64xf32, #tpu.memory_space<vmem>>, vector<16x16x64xf32>
    %cst_94 = arith.constant 0.000000e+00 : f32
    %129 = vector.broadcast %cst_94 : f32 to vector<16x16x64xf32>
    %130 = arith.select %127, %128, %129 : vector<16x16x64xi1>, vector<16x16x64xf32>
    %131 = tpu.concatenate %125, %117, %130 in 2 : vector<16x16x64xf32>, vector<16x16x64xf32>, vector<16x16x64xf32> -> vector<16x16x192xf32>
    %132 = arith.truncf %131 : vector<16x16x192xf32> to vector<16x16x192xbf16>
    %cst_95 = arith.constant 0.000000e+00 : bf16
    %133 = vector.broadcast %cst_95 : bf16 to vector<1x16x192xbf16>
    %c0_96 = arith.constant 0 : index
    %c0_97 = arith.constant 0 : index
    %c0_98 = arith.constant 0 : index
    %134 = vector.load %arg20[%c0_96, %c0_97, %c0_98] : memref<18x16x192xbf16, #tpu.memory_space<vmem>>, vector<1x16x192xbf16>
    tpu.vector_store %arg20[%c0_96, %c0_97, %c0_98], %133 {strides = array<i32>} : memref<18x16x192xbf16, #tpu.memory_space<vmem>>, vector<1x16x192xbf16>,
    %cst_99 = arith.constant 0.000000e+00 : bf16
    %135 = vector.broadcast %cst_99 : bf16 to vector<1x16x192xbf16>
    %c17_100 = arith.constant 17 : index
    %c0_101 = arith.constant 0 : index
    %c0_102 = arith.constant 0 : index
    %136 = vector.load %arg20[%c17_100, %c0_101, %c0_102] : memref<18x16x192xbf16, #tpu.memory_space<vmem>>, vector<1x16x192xbf16>
    tpu.vector_store %arg20[%c17_100, %c0_101, %c0_102], %135 {strides = array<i32>} : memref<18x16x192xbf16, #tpu.memory_space<vmem>>, vector<1x16x192xbf16>,
    %c1_103 = arith.constant 1 : index
    %c0_104 = arith.constant 0 : index
    %c0_105 = arith.constant 0 : index
    %137 = vector.load %arg20[%c1_103, %c0_104, %c0_105] : memref<18x16x192xbf16, #tpu.memory_space<vmem>>, vector<16x16x192xbf16>
    tpu.vector_store %arg20[%c1_103, %c0_104, %c0_105], %132 {strides = array<i32>} : memref<18x16x192xbf16, #tpu.memory_space<vmem>>, vector<16x16x192xbf16>,
    %cst_106 = arith.constant 0.000000e+00 : f32
    %138 = vector.broadcast %cst_106 : f32 to vector<256x64xf32>
    %c0_107 = arith.constant 0 : index
    %c0_108 = arith.constant 0 : index
    %c0_109 = arith.constant 0 : index
    %139 = vector.load %arg20[%c0_107, %c0_108, %c0_109] : memref<18x16x192xbf16, #tpu.memory_space<vmem>>, vector<16x16x192xbf16>
    %140 = vector.shape_cast %139 : vector<16x16x192xbf16> to vector<256x192xbf16>
    %c0_110 = arith.constant 0 : index
    %c0_111 = arith.constant 0 : index
    %c0_112 = arith.constant 0 : index
    %141 = vector.load %arg12[%c0_110, %c0_111, %c0_112] : memref<3x192x64xbf16, #tpu.memory_space<vmem>>, vector<1x192x64xbf16>
    %142 = vector.shape_cast %141 : vector<1x192x64xbf16> to vector<192x64xbf16>
    %cst_113 = arith.constant dense<0.000000e+00> : vector<256x64xf32>
    %143 = tpu.matmul %140, %142, %cst_113 {dimension_numbers = #tpu.dot_dimension_numbers<[1], [0], [0], [1], [0, 0, 1, 1], [], []>} : vector<256x192xbf16>, vector<192x64xbf16>, vector<256x64xf32> -> vector<256x64xf32>
    %144 = arith.addf %138, %143 : vector<256x64xf32>
    %c1_114 = arith.constant 1 : index
    %c0_115 = arith.constant 0 : index
    %c0_116 = arith.constant 0 : index
    %145 = vector.load %arg20[%c1_114, %c0_115, %c0_116] : memref<18x16x192xbf16, #tpu.memory_space<vmem>>, vector<16x16x192xbf16>
    %146 = vector.shape_cast %145 : vector<16x16x192xbf16> to vector<256x192xbf16>
    %c1_117 = arith.constant 1 : index
    %c0_118 = arith.constant 0 : index
    %c0_119 = arith.constant 0 : index
    %147 = vector.load %arg12[%c1_117, %c0_118, %c0_119] : memref<3x192x64xbf16, #tpu.memory_space<vmem>>, vector<1x192x64xbf16>
    %148 = vector.shape_cast %147 : vector<1x192x64xbf16> to vector<192x64xbf16>
    %cst_120 = arith.constant dense<0.000000e+00> : vector<256x64xf32>
    %149 = tpu.matmul %146, %148, %cst_120 {dimension_numbers = #tpu.dot_dimension_numbers<[1], [0], [0], [1], [0, 0, 1, 1], [], []>} : vector<256x192xbf16>, vector<192x64xbf16>, vector<256x64xf32> -> vector<256x64xf32>
    %150 = arith.addf %144, %149 : vector<256x64xf32>
    %c2_121 = arith.constant 2 : index
    %c0_122 = arith.constant 0 : index
    %c0_123 = arith.constant 0 : index
    %151 = vector.load %arg20[%c2_121, %c0_122, %c0_123] : memref<18x16x192xbf16, #tpu.memory_space<vmem>>, vector<16x16x192xbf16>
    %152 = vector.shape_cast %151 : vector<16x16x192xbf16> to vector<256x192xbf16>
    %c2_124 = arith.constant 2 : index
    %c0_125 = arith.constant 0 : index
    %c0_126 = arith.constant 0 : index
    %153 = vector.load %arg12[%c2_124, %c0_125, %c0_126] : memref<3x192x64xbf16, #tpu.memory_space<vmem>>, vector<1x192x64xbf16>
    %154 = vector.shape_cast %153 : vector<1x192x64xbf16> to vector<192x64xbf16>
    %cst_127 = arith.constant dense<0.000000e+00> : vector<256x64xf32>
    %155 = tpu.matmul %152, %154, %cst_127 {dimension_numbers = #tpu.dot_dimension_numbers<[1], [0], [0], [1], [0, 0, 1, 1], [], []>} : vector<256x192xbf16>, vector<192x64xbf16>, vector<256x64xf32> -> vector<256x64xf32>
    %156 = arith.addf %150, %155 : vector<256x64xf32>
    %157 = vector.broadcast %118 : vector<1x64xf32> to vector<256x64xf32>
    %158 = arith.addf %156, %157 : vector<256x64xf32>
    %159 = arith.truncf %2 : vector<256x32xf32> to vector<256x32xbf16>
    %c0_128 = arith.constant 0 : index
    %c0_129 = arith.constant 0 : index
    %160 = vector.load %arg14[%c0_128, %c0_129] : memref<32x64xbf16, #tpu.memory_space<vmem>>, vector<32x64xbf16>
    %cst_130 = arith.constant dense<0.000000e+00> : vector<256x64xf32>
    %161 = tpu.matmul %159, %160, %cst_130 {dimension_numbers = #tpu.dot_dimension_numbers<[1], [0], [0], [1], [0, 0, 1, 1], [], []>} : vector<256x32xbf16>, vector<32x64xbf16>, vector<256x64xf32> -> vector<256x64xf32>
    %c0_131 = arith.constant 0 : index
    %c0_132 = arith.constant 0 : index
    %162 = vector.load %arg15[%c0_131, %c0_132] : memref<1x64xf32, #tpu.memory_space<vmem>>, vector<1x64xf32>
    %163 = vector.broadcast %162 : vector<1x64xf32> to vector<256x64xf32>
    %164 = arith.addf %161, %163 : vector<256x64xf32>
    %165 = arith.addf %158, %164 : vector<256x64xf32>
    %166 = vector.shape_cast %165 : vector<256x64xf32> to vector<16x16x64xf32>
    %c0_133 = arith.constant 0 : index
    %c0_134 = arith.constant 0 : index
    %c0_135 = arith.constant 0 : index
    %c0_136 = arith.constant 0 : index
    %167 = vector.load %arg16[%c0_133, %c0_134, %c0_135, %c0_136] : memref<1x16x16x64xf32, #tpu.memory_space<vmem>>, vector<1x16x16x64xf32>
    %168 = vector.shape_cast %167 : vector<1x16x16x64xf32> to vector<16x16x64xf32>
    %169 = vector.shape_cast %166 : vector<16x16x64xf32> to vector<1x16x16x64xf32>
    tpu.vector_store %arg16[%c0_133, %c0_134, %c0_135, %c0_136], %169 {strides = array<i32>} : memref<1x16x16x64xf32, #tpu.memory_space<vmem>>, vector<1x16x16x64xf32>,
    return
  }
  func.func @transform_0(%arg0: i32) -> (i32, i32, i32, i32) {
    %c0_i32 = arith.constant 0 : i32
    %c0_i32_0 = arith.constant 0 : i32
    %c0_i32_1 = arith.constant 0 : i32
    %c0_i32_2 = arith.constant 0 : i32
    return %arg0, %c0_i32, %c0_i32_0, %c0_i32_1 : i32, i32, i32, i32
  }
  func.func @transform_1(%arg0: i32) -> (i32, i32) {
    %c0_i32 = arith.constant 0 : i32
    %c0_i32_0 = arith.constant 0 : i32
    %c0_i32_1 = arith.constant 0 : i32
    return %c0_i32, %c0_i32_0 : i32, i32
  }
  func.func @transform_2(%arg0: i32) -> (i32, i32) {
    %c0_i32 = arith.constant 0 : i32
    %c0_i32_0 = arith.constant 0 : i32
    %c0_i32_1 = arith.constant 0 : i32
    return %c0_i32, %c0_i32_0 : i32, i32
  }
  func.func @transform_3(%arg0: i32) -> (i32, i32) {
    %c0_i32 = arith.constant 0 : i32
    %c0_i32_0 = arith.constant 0 : i32
    %c0_i32_1 = arith.constant 0 : i32
    return %c0_i32, %c0_i32_0 : i32, i32
  }
  func.func @transform_4(%arg0: i32) -> (i32, i32) {
    %c0_i32 = arith.constant 0 : i32
    %c0_i32_0 = arith.constant 0 : i32
    %c0_i32_1 = arith.constant 0 : i32
    return %c0_i32, %c0_i32_0 : i32, i32
  }
  func.func @transform_5(%arg0: i32) -> (i32, i32, i32) {
    %c0_i32 = arith.constant 0 : i32
    %c0_i32_0 = arith.constant 0 : i32
    %c0_i32_1 = arith.constant 0 : i32
    %c0_i32_2 = arith.constant 0 : i32
    return %c0_i32, %c0_i32_0, %c0_i32_1 : i32, i32, i32
  }
  func.func @transform_6(%arg0: i32) -> (i32, i32) {
    %c0_i32 = arith.constant 0 : i32
    %c0_i32_0 = arith.constant 0 : i32
    %c0_i32_1 = arith.constant 0 : i32
    return %c0_i32, %c0_i32_0 : i32, i32
  }
  func.func @transform_7(%arg0: i32) -> (i32, i32) {
    %c0_i32 = arith.constant 0 : i32
    %c0_i32_0 = arith.constant 0 : i32
    %c0_i32_1 = arith.constant 0 : i32
    return %c0_i32, %c0_i32_0 : i32, i32
  }
  func.func @transform_8(%arg0: i32) -> (i32, i32) {
    %c0_i32 = arith.constant 0 : i32
    %c0_i32_0 = arith.constant 0 : i32
    %c0_i32_1 = arith.constant 0 : i32
    return %c0_i32, %c0_i32_0 : i32, i32
  }
  func.func @transform_9(%arg0: i32) -> (i32, i32) {
    %c0_i32 = arith.constant 0 : i32
    %c0_i32_0 = arith.constant 0 : i32
    %c0_i32_1 = arith.constant 0 : i32
    return %c0_i32, %c0_i32_0 : i32, i32
  }
  func.func @transform_10(%arg0: i32) -> (i32, i32) {
    %c0_i32 = arith.constant 0 : i32
    %c0_i32_0 = arith.constant 0 : i32
    %c0_i32_1 = arith.constant 0 : i32
    return %c0_i32, %c0_i32_0 : i32, i32
  }
  func.func @transform_11(%arg0: i32) -> (i32, i32, i32) {
    %c0_i32 = arith.constant 0 : i32
    %c0_i32_0 = arith.constant 0 : i32
    %c0_i32_1 = arith.constant 0 : i32
    %c0_i32_2 = arith.constant 0 : i32
    return %c0_i32, %c0_i32_0, %c0_i32_1 : i32, i32, i32
  }
  func.func @transform_12(%arg0: i32) -> (i32, i32) {
    %c0_i32 = arith.constant 0 : i32
    %c0_i32_0 = arith.constant 0 : i32
    %c0_i32_1 = arith.constant 0 : i32
    return %c0_i32, %c0_i32_0 : i32, i32
  }
  func.func @transform_13(%arg0: i32) -> (i32, i32) {
    %c0_i32 = arith.constant 0 : i32
    %c0_i32_0 = arith.constant 0 : i32
    %c0_i32_1 = arith.constant 0 : i32
    return %c0_i32, %c0_i32_0 : i32, i32
  }
  func.func @transform_14(%arg0: i32) -> (i32, i32) {
    %c0_i32 = arith.constant 0 : i32
    %c0_i32_0 = arith.constant 0 : i32
    %c0_i32_1 = arith.constant 0 : i32
    return %c0_i32, %c0_i32_0 : i32, i32
  }
  func.func @transform_15(%arg0: i32) -> (i32, i32, i32, i32) {
    %c0_i32 = arith.constant 0 : i32
    %c0_i32_0 = arith.constant 0 : i32
    %c0_i32_1 = arith.constant 0 : i32
    %c0_i32_2 = arith.constant 0 : i32
    return %arg0, %c0_i32, %c0_i32_0, %c0_i32_1 : i32, i32, i32, i32
  }
}

</mosaic_0001>

<llo_original>
// kernel: tpu_custom_call.1
$region0: #{tpu_custom_call.1}
  #allocation0 [shape = 'u32[]', space=smem, size = 0x4, offset = 0x4, fixed_abs, tag = 'smem constant byte address 0x4 - core index']
  #allocation1 [shape = 'u32[144,128]{1,0:T(1,128)}', space=vmem, size = 0x12000, scoped, tag = 'internal scratch']
  #allocation2 [shape = 'f32[16,25,32]{2,1,0:T(8,128)}', space=vmem, size = 0x40000, scoped, tag = 'scratch operand']
  #allocation3 [shape = 'bf16[18,16,96]{2,1,0:T(8,128)(2,1)}', space=vmem, size = 0x12000, scoped, tag = 'scratch operand']
  #allocation4 [shape = 'f32[16,25,64]{2,1,0:T(8,128)}', space=vmem, size = 0x40000, scoped, tag = 'scratch operand']
  #allocation5 [shape = 'bf16[18,16,192]{2,1,0:T(8,128)(2,1)}', space=vmem, size = 0x24000, scoped, tag = 'scratch operand']
  %s0 = inlined_call_operand.vmem [shape: f32[2,16,16,32], index: 0, kind: input, shape index: {}]
  %s1 = inlined_call_operand.vmem [shape: f32[1,32], index: 1, kind: input, shape index: {}]
  %s2 = inlined_call_operand.vmem [shape: f32[1,32], index: 2, kind: input, shape index: {}]
  %s3 = inlined_call_operand.vmem [shape: f32[32,32], index: 3, kind: input, shape index: {}]
  %s4 = inlined_call_operand.vmem [shape: f32[32,32], index: 4, kind: input, shape index: {}]
  %s5 = inlined_call_operand.vmem [shape: bf16[3,96,64], index: 5, kind: input, shape index: {}]
  %s6 = inlined_call_operand.vmem [shape: f32[1,64], index: 6, kind: input, shape index: {}]
  %s7 = inlined_call_operand.vmem [shape: f32[1,64], index: 7, kind: input, shape index: {}]
  %s8 = inlined_call_operand.vmem [shape: f32[1,64], index: 8, kind: input, shape index: {}]
  %s9 = inlined_call_operand.vmem [shape: f32[64,32], index: 9, kind: input, shape index: {}]
  %s10 = inlined_call_operand.vmem [shape: f32[32,64], index: 10, kind: input, shape index: {}]
  %s11 = inlined_call_operand.vmem [shape: bf16[3,192,64], index: 11, kind: input, shape index: {}]
  %s12 = inlined_call_operand.vmem [shape: f32[1,64], index: 12, kind: input, shape index: {}]
  %s13 = inlined_call_operand.vmem [shape: bf16[32,64], index: 13, kind: input, shape index: {}]
  %s14 = inlined_call_operand.vmem [shape: f32[1,64], index: 14, kind: input, shape index: {}]
  %s15 = inlined_call_operand.hbm [shape: f32[2,16,16,64], index: 15, kind: output, shape index: {}]
  %s16 = sld [smem:[#allocation0]]
  $region93: #{tpu_custom_call.1} parent=0
    _
  %s18 = ssub.s32 1, %s16
  %s19 = scalar_select 0, %s18, %s16
  $region1: #{tpu_custom_call.1} parent=0
    #allocation6 [shape = 'u8[262144]{0}', space=vmem, size = 0x40000, scoped, tag = 'output window, operand 0']
    #allocation7 [shape = 's32[2]{0}', space=sflag, size = 0x8, scoped, tag = 'scoped memory for tpu_custom_call.1']
    %20 = vsyncpa [#allocation7], 0
    %s21 = scalar_lea.sflag [#allocation7], 1
    %22 = vsyncpa %s21, 0
    loop: start=0, step=1, limit=4
    $region2: #{tpu_custom_call.1} parent=1 // loop_pre_header
      _
    $region3: #{tpu_custom_call.1} parent=1 // loop_header
      %s24 = sphi 0, %s28
      %p25 = scmp.ge.s32.totalorder %s24, 4
      %s34 = sphi 0, %s36
      %s37 = sphi 0, %s34
      %s38 = sphi 0, %s37
      %s54 = sphi 0, %s38
      %s58 = sphi 0, %s58
      %s60 = sphi 0, %s58
      %s61 = sphi 0, %s60
      %s75 = sphi 0, %s61
      %s79 = sphi 0, %s79
      %s81 = sphi 0, %s79
      %s82 = sphi 0, %s81
      %s96 = sphi 0, %s82
      %s100 = sphi 0, %s100
      %s102 = sphi 0, %s100
      %s103 = sphi 0, %s102
      %s117 = sphi 0, %s103
      %s121 = sphi 0, %s121
      %s123 = sphi 0, %s121
      %s124 = sphi 0, %s123
      %s138 = sphi 0, %s124
      %s142 = sphi 0, %s142
      %s144 = sphi 0, %s142
      %s145 = sphi 0, %s144
      %s159 = sphi 0, %s145
      %s163 = sphi 0, %s163
      %s165 = sphi 0, %s163
      %s166 = sphi 0, %s165
      %s180 = sphi 0, %s166
      %s184 = sphi 0, %s184
      %s186 = sphi 0, %s184
      %s187 = sphi 0, %s186
      %s201 = sphi 0, %s187
      %s205 = sphi 0, %s205
      %s207 = sphi 0, %s205
      %s208 = sphi 0, %s207
      %s222 = sphi 0, %s208
      %s226 = sphi 0, %s226
      %s228 = sphi 0, %s226
      %s229 = sphi 0, %s228
      %s243 = sphi 0, %s229
      %s247 = sphi 0, %s247
      %s249 = sphi 0, %s247
      %s250 = sphi 0, %s249
      %s264 = sphi 0, %s250
      %s268 = sphi 0, %s268
      %s270 = sphi 0, %s268
      %s271 = sphi 0, %s270
      %s285 = sphi 0, %s271
      %s289 = sphi 0, %s289
      %s291 = sphi 0, %s289
      %s292 = sphi 0, %s291
      %s306 = sphi 0, %s292
      %s310 = sphi 0, %s310
      %s312 = sphi 0, %s310
      %s313 = sphi 0, %s312
      %s327 = sphi 0, %s313
      %s331 = sphi 0, %s331
      %s333 = sphi 0, %s331
      %s334 = sphi 0, %s333
      %s348 = sphi 0, %s334
      %s354 = sphi 0, %s356
      %s357 = sphi 0, %s354
      %s358 = sphi 0, %s357
      %s374 = sphi 0, %s358
    $region4: #{tpu_custom_call.1} parent=1 // loop_header_branch
      %27 = sbr.rel (%p25) target = $region8
    $region5: #{tpu_custom_call.1} parent=1 // loop_body
      %s29 = ssub.s32 %s24, 1
      %s30 = ssub.s32 %s24, 2
      %s31 = sadd.s32 %s24, 1
      %s32 = ssub.s32 %s24, %s31
      %p33 = scmp.eq.s32.totalorder %s32, 0
      %s35 = sadd.s32 %s34, 1
      %s36 = scalar_select %p33, %s34, %s35
      %p39 = pneg %p33
      %p40 = scmp.eq.s32.totalorder %s24, 1
      %p41 = por %p39, %p40
      %p42 = scmp.ne.s32.totalorder %s34, %s37
      %p43 = scmp.eq.s32.totalorder %s24, 0
      %p44 = por %p42, %p43
      %p45 = scmp.ne.s32.totalorder %s34, %s37
      %p46 = scmp.eq.s32.totalorder %s29, 1
      %p47 = por %p45, %p46
      %p48 = scmp.ne.s32.totalorder %s37, %s38
      %p49 = scmp.eq.s32.totalorder %s29, 0
      %p50 = por %p48, %p49
      %p51 = scmp.ne.s32.totalorder %s37, %s38
      %p52 = scmp.eq.s32.totalorder %s30, 1
      %p53 = por %p51, %p52
      %p55 = scmp.ne.s32.totalorder %s38, %s54
      %p56 = scmp.eq.s32.totalorder %s30, 0
      %p57 = por %p55, %p56
      %s59 = sadd.s32 %s58, 1
      %p62 = scmp.eq.s32.totalorder %s24, 1
      %p63 = scmp.ne.s32.totalorder %s58, %s60
      %p64 = scmp.eq.s32.totalorder %s24, 0
      %p65 = por %p63, %p64
      %p66 = scmp.ne.s32.totalorder %s58, %s60
      %p67 = scmp.eq.s32.totalorder %s29, 1
      %p68 = por %p66, %p67
      %p69 = scmp.ne.s32.totalorder %s60, %s61
      %p70 = scmp.eq.s32.totalorder %s29, 0
      %p71 = por %p69, %p70
      %p72 = scmp.ne.s32.totalorder %s60, %s61
      %p73 = scmp.eq.s32.totalorder %s30, 1
      %p74 = por %p72, %p73
      %p76 = scmp.ne.s32.totalorder %s61, %s75
      %p77 = scmp.eq.s32.totalorder %s30, 0
      %p78 = por %p76, %p77
      %s80 = sadd.s32 %s79, 1
      %p83 = scmp.eq.s32.totalorder %s24, 1
      %p84 = scmp.ne.s32.totalorder %s79, %s81
      %p85 = scmp.eq.s32.totalorder %s24, 0
      %p86 = por %p84, %p85
      %p87 = scmp.ne.s32.totalorder %s79, %s81
      %p88 = scmp.eq.s32.totalorder %s29, 1
      %p89 = por %p87, %p88
      %p90 = scmp.ne.s32.totalorder %s81, %s82
      %p91 = scmp.eq.s32.totalorder %s29, 0
      %p92 = por %p90, %p91
      %p93 = scmp.ne.s32.totalorder %s81, %s82
      %p94 = scmp.eq.s32.totalorder %s30, 1
      %p95 = por %p93, %p94
      %p97 = scmp.ne.s32.totalorder %s82, %s96
      %p98 = scmp.eq.s32.totalorder %s30, 0
      %p99 = por %p97, %p98
      %s101 = sadd.s32 %s100, 1
      %p104 = scmp.eq.s32.totalorder %s24, 1
      %p105 = scmp.ne.s32.totalorder %s100, %s102
      %p106 = scmp.eq.s32.totalorder %s24, 0
      %p107 = por %p105, %p106
      %p108 = scmp.ne.s32.totalorder %s100, %s102
      %p109 = scmp.eq.s32.totalorder %s29, 1
      %p110 = por %p108, %p109
      %p111 = scmp.ne.s32.totalorder %s102, %s103
      %p112 = scmp.eq.s32.totalorder %s29, 0
      %p113 = por %p111, %p112
      %p114 = scmp.ne.s32.totalorder %s102, %s103
      %p115 = scmp.eq.s32.totalorder %s30, 1
      %p116 = por %p114, %p115
      %p118 = scmp.ne.s32.totalorder %s103, %s117
      %p119 = scmp.eq.s32.totalorder %s30, 0
      %p120 = por %p118, %p119
      %s122 = sadd.s32 %s121, 1
      %p125 = scmp.eq.s32.totalorder %s24, 1
      %p126 = scmp.ne.s32.totalorder %s121, %s123
      %p127 = scmp.eq.s32.totalorder %s24, 0
      %p128 = por %p126, %p127
      %p129 = scmp.ne.s32.totalorder %s121, %s123
      %p130 = scmp.eq.s32.totalorder %s29, 1
      %p131 = por %p129, %p130
      %p132 = scmp.ne.s32.totalorder %s123, %s124
      %p133 = scmp.eq.s32.totalorder %s29, 0
      %p134 = por %p132, %p133
      %p135 = scmp.ne.s32.totalorder %s123, %s124
      %p136 = scmp.eq.s32.totalorder %s30, 1
      %p137 = por %p135, %p136
      %p139 = scmp.ne.s32.totalorder %s124, %s138
      %p140 = scmp.eq.s32.totalorder %s30, 0
      %p141 = por %p139, %p140
      %s143 = sadd.s32 %s142, 1
      %p146 = scmp.eq.s32.totalorder %s24, 1
      %p147 = scmp.ne.s32.totalorder %s142, %s144
      %p148 = scmp.eq.s32.totalorder %s24, 0
      %p149 = por %p147, %p148
      %p150 = scmp.ne.s32.totalorder %s142, %s144
      %p151 = scmp.eq.s32.totalorder %s29, 1
      %p152 = por %p150, %p151
      %p153 = scmp.ne.s32.totalorder %s144, %s145
      %p154 = scmp.eq.s32.totalorder %s29, 0
      %p155 = por %p153, %p154
      %p156 = scmp.ne.s32.totalorder %s144, %s145
      %p157 = scmp.eq.s32.totalorder %s30, 1
      %p158 = por %p156, %p157
      %p160 = scmp.ne.s32.totalorder %s145, %s159
      %p161 = scmp.eq.s32.totalorder %s30, 0
      %p162 = por %p160, %p161
      %s164 = sadd.s32 %s163, 1
      %p167 = scmp.eq.s32.totalorder %s24, 1
      %p168 = scmp.ne.s32.totalorder %s163, %s165
      %p169 = scmp.eq.s32.totalorder %s24, 0
      %p170 = por %p168, %p169
      %p171 = scmp.ne.s32.totalorder %s163, %s165
      %p172 = scmp.eq.s32.totalorder %s29, 1
      %p173 = por %p171, %p172
      %p174 = scmp.ne.s32.totalorder %s165, %s166
      %p175 = scmp.eq.s32.totalorder %s29, 0
      %p176 = por %p174, %p175
      %p177 = scmp.ne.s32.totalorder %s165, %s166
      %p178 = scmp.eq.s32.totalorder %s30, 1
      %p179 = por %p177, %p178
      %p181 = scmp.ne.s32.totalorder %s166, %s180
      %p182 = scmp.eq.s32.totalorder %s30, 0
      %p183 = por %p181, %p182
      %s185 = sadd.s32 %s184, 1
      %p188 = scmp.eq.s32.totalorder %s24, 1
      %p189 = scmp.ne.s32.totalorder %s184, %s186
      %p190 = scmp.eq.s32.totalorder %s24, 0
      %p191 = por %p189, %p190
      %p192 = scmp.ne.s32.totalorder %s184, %s186
      %p193 = scmp.eq.s32.totalorder %s29, 1
      %p194 = por %p192, %p193
      %p195 = scmp.ne.s32.totalorder %s186, %s187
      %p196 = scmp.eq.s32.totalorder %s29, 0
      %p197 = por %p195, %p196
      %p198 = scmp.ne.s32.totalorder %s186, %s187
      %p199 = scmp.eq.s32.totalorder %s30, 1
      %p200 = por %p198, %p199
      %p202 = scmp.ne.s32.totalorder %s187, %s201
      %p203 = scmp.eq.s32.totalorder %s30, 0
      %p204 = por %p202, %p203
      %s206 = sadd.s32 %s205, 1
      %p209 = scmp.eq.s32.totalorder %s24, 1
      %p210 = scmp.ne.s32.totalorder %s205, %s207
      %p211 = scmp.eq.s32.totalorder %s24, 0
      %p212 = por %p210, %p211
      %p213 = scmp.ne.s32.totalorder %s205, %s207
      %p214 = scmp.eq.s32.totalorder %s29, 1
      %p215 = por %p213, %p214
      %p216 = scmp.ne.s32.totalorder %s207, %s208
      %p217 = scmp.eq.s32.totalorder %s29, 0
      %p218 = por %p216, %p217
      %p219 = scmp.ne.s32.totalorder %s207, %s208
      %p220 = scmp.eq.s32.totalorder %s30, 1
      %p221 = por %p219, %p220
      %p223 = scmp.ne.s32.totalorder %s208, %s222
      %p224 = scmp.eq.s32.totalorder %s30, 0
      %p225 = por %p223, %p224
      %s227 = sadd.s32 %s226, 1
      %p230 = scmp.eq.s32.totalorder %s24, 1
      %p231 = scmp.ne.s32.totalorder %s226, %s228
      %p232 = scmp.eq.s32.totalorder %s24, 0
      %p233 = por %p231, %p232
      %p234 = scmp.ne.s32.totalorder %s226, %s228
      %p235 = scmp.eq.s32.totalorder %s29, 1
      %p236 = por %p234, %p235
      %p237 = scmp.ne.s32.totalorder %s228, %s229
      %p238 = scmp.eq.s32.totalorder %s29, 0
      %p239 = por %p237, %p238
      %p240 = scmp.ne.s32.totalorder %s228, %s229
      %p241 = scmp.eq.s32.totalorder %s30, 1
      %p242 = por %p240, %p241
      %p244 = scmp.ne.s32.totalorder %s229, %s243
      %p245 = scmp.eq.s32.totalorder %s30, 0
      %p246 = por %p244, %p245
      %s248 = sadd.s32 %s247, 1
      %p251 = scmp.eq.s32.totalorder %s24, 1
      %p252 = scmp.ne.s32.totalorder %s247, %s249
      %p253 = scmp.eq.s32.totalorder %s24, 0
      %p254 = por %p252, %p253
      %p255 = scmp.ne.s32.totalorder %s247, %s249
      %p256 = scmp.eq.s32.totalorder %s29, 1
      %p257 = por %p255, %p256
      %p258 = scmp.ne.s32.totalorder %s249, %s250
      %p259 = scmp.eq.s32.totalorder %s29, 0
      %p260 = por %p258, %p259
      %p261 = scmp.ne.s32.totalorder %s249, %s250
      %p262 = scmp.eq.s32.totalorder %s30, 1
      %p263 = por %p261, %p262
      %p265 = scmp.ne.s32.totalorder %s250, %s264
      %p266 = scmp.eq.s32.totalorder %s30, 0
      %p267 = por %p265, %p266
      %s269 = sadd.s32 %s268, 1
      %p272 = scmp.eq.s32.totalorder %s24, 1
      %p273 = scmp.ne.s32.totalorder %s268, %s270
      %p274 = scmp.eq.s32.totalorder %s24, 0
      %p275 = por %p273, %p274
      %p276 = scmp.ne.s32.totalorder %s268, %s270
      %p277 = scmp.eq.s32.totalorder %s29, 1
      %p278 = por %p276, %p277
      %p279 = scmp.ne.s32.totalorder %s270, %s271
      %p280 = scmp.eq.s32.totalorder %s29, 0
      %p281 = por %p279, %p280
      %p282 = scmp.ne.s32.totalorder %s270, %s271
      %p283 = scmp.eq.s32.totalorder %s30, 1
      %p284 = por %p282, %p283
      %p286 = scmp.ne.s32.totalorder %s271, %s285
      %p287 = scmp.eq.s32.totalorder %s30, 0
      %p288 = por %p286, %p287
      %s290 = sadd.s32 %s289, 1
      %p293 = scmp.eq.s32.totalorder %s24, 1
      %p294 = scmp.ne.s32.totalorder %s289, %s291
      %p295 = scmp.eq.s32.totalorder %s24, 0
      %p296 = por %p294, %p295
      %p297 = scmp.ne.s32.totalorder %s289, %s291
      %p298 = scmp.eq.s32.totalorder %s29, 1
      %p299 = por %p297, %p298
      %p300 = scmp.ne.s32.totalorder %s291, %s292
      %p301 = scmp.eq.s32.totalorder %s29, 0
      %p302 = por %p300, %p301
      %p303 = scmp.ne.s32.totalorder %s291, %s292
      %p304 = scmp.eq.s32.totalorder %s30, 1
      %p305 = por %p303, %p304
      %p307 = scmp.ne.s32.totalorder %s292, %s306
      %p308 = scmp.eq.s32.totalorder %s30, 0
      %p309 = por %p307, %p308
      %s311 = sadd.s32 %s310, 1
      %p314 = scmp.eq.s32.totalorder %s24, 1
      %p315 = scmp.ne.s32.totalorder %s310, %s312
      %p316 = scmp.eq.s32.totalorder %s24, 0
      %p317 = por %p315, %p316
      %p318 = scmp.ne.s32.totalorder %s310, %s312
      %p319 = scmp.eq.s32.totalorder %s29, 1
      %p320 = por %p318, %p319
      %p321 = scmp.ne.s32.totalorder %s312, %s313
      %p322 = scmp.eq.s32.totalorder %s29, 0
      %p323 = por %p321, %p322
      %p324 = scmp.ne.s32.totalorder %s312, %s313
      %p325 = scmp.eq.s32.totalorder %s30, 1
      %p326 = por %p324, %p325
      %p328 = scmp.ne.s32.totalorder %s313, %s327
      %p329 = scmp.eq.s32.totalorder %s30, 0
      %p330 = por %p328, %p329
      %s332 = sadd.s32 %s331, 1
      %p335 = scmp.eq.s32.totalorder %s24, 1
      %p336 = scmp.ne.s32.totalorder %s331, %s333
      %p337 = scmp.eq.s32.totalorder %s24, 0
      %p338 = por %p336, %p337
      %p339 = scmp.ne.s32.totalorder %s331, %s333
      %p340 = scmp.eq.s32.totalorder %s29, 1
      %p341 = por %p339, %p340
      %p342 = scmp.ne.s32.totalorder %s333, %s334
      %p343 = scmp.eq.s32.totalorder %s29, 0
      %p344 = por %p342, %p343
      %p345 = scmp.ne.s32.totalorder %s333, %s334
      %p346 = scmp.eq.s32.totalorder %s30, 1
      %p347 = por %p345, %p346
      %p349 = scmp.ne.s32.totalorder %s334, %s348
      %p350 = scmp.eq.s32.totalorder %s30, 0
      %p351 = por %p349, %p350
      %s352 = ssub.s32 %s24, %s31
      %p353 = scmp.eq.s32.totalorder %s352, 0
      %s355 = sadd.s32 %s354, 1
      %s356 = scalar_select %p353, %s354, %s355
      %p359 = pneg %p353
      %p360 = scmp.eq.s32.totalorder %s24, 1
      %p361 = por %p359, %p360
      %p362 = scmp.ne.s32.totalorder %s354, %s357
      %p363 = scmp.eq.s32.totalorder %s24, 0
      %p364 = por %p362, %p363
      %p365 = scmp.ne.s32.totalorder %s354, %s357
      %p366 = scmp.eq.s32.totalorder %s29, 1
      %p367 = por %p365, %p366
      %p368 = scmp.ne.s32.totalorder %s357, %s358
      %p369 = scmp.eq.s32.totalorder %s29, 0
      %p370 = por %p368, %p369
      %p371 = scmp.ne.s32.totalorder %s357, %s358
      %p372 = scmp.eq.s32.totalorder %s30, 1
      %p373 = por %p371, %p372
      %p375 = scmp.ne.s32.totalorder %s358, %s374
      %p376 = scmp.eq.s32.totalorder %s30, 0
      %p377 = por %p375, %p376
      %p378 = scmp.le.s32.totalorder 1, %s24
      %p379 = scmp.lt.s32.totalorder %s24, 3
      %p380 = pnand %p378, %p379
      %p381 = pneg %p380
      // Predicated region
      $region9: #{tpu_custom_call.1} parent=5 // pred_check
        _
      $region10: #{tpu_custom_call.1} parent=5 // pred_check_branch
        %383 = sbr.rel (%p380) target = $region12
      $region11: #{tpu_custom_call.1} parent=5 // pred_region
        %s384 = ssub.s32 %s24, 1
        // Predicated region
        $region13: #{tpu_custom_call.1} parent=11 // pred_check
          %p385 = pneg %p71
        $region14: #{tpu_custom_call.1} parent=11 // pred_check_branch
          %387 = sbr.rel (%p385) target = $region16
        $region15: #{tpu_custom_call.1} parent=11 // pred_region
          _
        $region16: #{tpu_custom_call.1} parent=11 // pred_fallthru
          _
        // Predicated region
        $region17: #{tpu_custom_call.1} parent=11 // pred_check
          %p388 = pneg %p92
        $region18: #{tpu_custom_call.1} parent=11 // pred_check_branch
          %390 = sbr.rel (%p388) target = $region20
        $region19: #{tpu_custom_call.1} parent=11 // pred_region
          _
        $region20: #{tpu_custom_call.1} parent=11 // pred_fallthru
          _
        // Predicated region
        $region21: #{tpu_custom_call.1} parent=11 // pred_check
          %p391 = pneg %p113
        $region22: #{tpu_custom_call.1} parent=11 // pred_check_branch
          %393 = sbr.rel (%p391) target = $region24
        $region23: #{tpu_custom_call.1} parent=11 // pred_region
          _
        $region24: #{tpu_custom_call.1} parent=11 // pred_fallthru
          _
        // Predicated region
        $region25: #{tpu_custom_call.1} parent=11 // pred_check
          %p394 = pneg %p134
        $region26: #{tpu_custom_call.1} parent=11 // pred_check_branch
          %396 = sbr.rel (%p394) target = $region28
        $region27: #{tpu_custom_call.1} parent=11 // pred_region
          _
        $region28: #{tpu_custom_call.1} parent=11 // pred_fallthru
          _
        // Predicated region
        $region29: #{tpu_custom_call.1} parent=11 // pred_check
          %p397 = pneg %p155
        $region30: #{tpu_custom_call.1} parent=11 // pred_check_branch
          %399 = sbr.rel (%p397) target = $region32
        $region31: #{tpu_custom_call.1} parent=11 // pred_region
          _
        $region32: #{tpu_custom_call.1} parent=11 // pred_fallthru
          _
        // Predicated region
        $region33: #{tpu_custom_call.1} parent=11 // pred_check
          %p400 = pneg %p176
        $region34: #{tpu_custom_call.1} parent=11 // pred_check_branch
          %402 = sbr.rel (%p400) target = $region36
        $region35: #{tpu_custom_call.1} parent=11 // pred_region
          _
        $region36: #{tpu_custom_call.1} parent=11 // pred_fallthru
          _
        // Predicated region
        $region37: #{tpu_custom_call.1} parent=11 // pred_check
          %p403 = pneg %p197
        $region38: #{tpu_custom_call.1} parent=11 // pred_check_branch
          %405 = sbr.rel (%p403) target = $region40
        $region39: #{tpu_custom_call.1} parent=11 // pred_region
          _
        $region40: #{tpu_custom_call.1} parent=11 // pred_fallthru
          _
        // Predicated region
        $region41: #{tpu_custom_call.1} parent=11 // pred_check
          %p406 = pneg %p218
        $region42: #{tpu_custom_call.1} parent=11 // pred_check_branch
          %408 = sbr.rel (%p406) target = $region44
        $region43: #{tpu_custom_call.1} parent=11 // pred_region
          _
        $region44: #{tpu_custom_call.1} parent=11 // pred_fallthru
          _
        // Predicated region
        $region45: #{tpu_custom_call.1} parent=11 // pred_check
          %p409 = pneg %p239
        $region46: #{tpu_custom_call.1} parent=11 // pred_check_branch
          %411 = sbr.rel (%p409) target = $region48
        $region47: #{tpu_custom_call.1} parent=11 // pred_region
          _
        $region48: #{tpu_custom_call.1} parent=11 // pred_fallthru
          _
        // Predicated region
        $region49: #{tpu_custom_call.1} parent=11 // pred_check
          %p412 = pneg %p260
        $region50: #{tpu_custom_call.1} parent=11 // pred_check_branch
          %414 = sbr.rel (%p412) target = $region52
        $region51: #{tpu_custom_call.1} parent=11 // pred_region
          _
        $region52: #{tpu_custom_call.1} parent=11 // pred_fallthru
          _
        // Predicated region
        $region53: #{tpu_custom_call.1} parent=11 // pred_check
          %p415 = pneg %p281
        $region54: #{tpu_custom_call.1} parent=11 // pred_check_branch
          %417 = sbr.rel (%p415) target = $region56
        $region55: #{tpu_custom_call.1} parent=11 // pred_region
          _
        $region56: #{tpu_custom_call.1} parent=11 // pred_fallthru
          _
        // Predicated region
        $region57: #{tpu_custom_call.1} parent=11 // pred_check
          %p418 = pneg %p302
        $region58: #{tpu_custom_call.1} parent=11 // pred_check_branch
          %420 = sbr.rel (%p418) target = $region60
        $region59: #{tpu_custom_call.1} parent=11 // pred_region
          _
        $region60: #{tpu_custom_call.1} parent=11 // pred_fallthru
          _
        // Predicated region
        $region61: #{tpu_custom_call.1} parent=11 // pred_check
          %p421 = pneg %p323
        $region62: #{tpu_custom_call.1} parent=11 // pred_check_branch
          %423 = sbr.rel (%p421) target = $region64
        $region63: #{tpu_custom_call.1} parent=11 // pred_region
          _
        $region64: #{tpu_custom_call.1} parent=11 // pred_fallthru
          _
        // Predicated region
        $region65: #{tpu_custom_call.1} parent=11 // pred_check
          %p424 = pneg %p344
        $region66: #{tpu_custom_call.1} parent=11 // pred_check_branch
          %426 = sbr.rel (%p424) target = $region68
        $region67: #{tpu_custom_call.1} parent=11 // pred_region
          _
        $region68: #{tpu_custom_call.1} parent=11 // pred_fallthru
          _
      $region12: #{tpu_custom_call.1} parent=5 // pred_fallthru
        _
      %p427 = scmp.lt.s32.totalorder %s24, 2
      // Predicated region
      $region69: #{tpu_custom_call.1} parent=5 // pred_check
        %p428 = pneg %p427
      $region70: #{tpu_custom_call.1} parent=5 // pred_check_branch
        %430 = sbr.rel (%p428) target = $region72
      $region71: #{tpu_custom_call.1} parent=5 // pred_region
        // Predicated region
        $region73: #{tpu_custom_call.1} parent=71 // pred_check
          %p431 = pneg %p44
        $region74: #{tpu_custom_call.1} parent=71 // pred_check_branch
          %433 = sbr.rel (%p431) target = $region76
        $region75: #{tpu_custom_call.1} parent=71 // pred_region
          %p434 = scmp.lt.s32.totalorder %s24, 1
          %s435 = scalar_select %p434, %s24, 1
          %s436 = smul.addr %s435, 32
          %s437 = smul.addr %s436, 8
          %s438 = scalar_lea.vmem %s0, %s437
        $region76: #{tpu_custom_call.1} parent=71 // pred_fallthru
          _
      $region72: #{tpu_custom_call.1} parent=5 // pred_fallthru
        _
      %p439 = scmp.le.s32.totalorder 1, %s24
      %p440 = scmp.lt.s32.totalorder %s24, 3
      %p441 = pnand %p439, %p440
      %p442 = pneg %p441
      // Predicated region
      $region77: #{tpu_custom_call.1} parent=5 // pred_check
        _
      $region78: #{tpu_custom_call.1} parent=5 // pred_check_branch
        %444 = sbr.rel (%p441) target = $region80
      $region79: #{tpu_custom_call.1} parent=5 // pred_region
        %s445 = ssub.s32 %s24, 1
        %p446 = scmp.lt.s32.totalorder %s29, 1
        %s447 = scalar_select %p446, %s29, 1
        %s448 = smul.addr %s447, 32
        %s449 = smul.addr %s448, 8
        %s450 = scalar_lea.vmem %s0, %s449
        %p451 = pneg %p50
        %p452 = pneg %p47
        %p453 = pneg %p71
        %p454 = pneg %p68
        %p455 = pneg %p92
        %p456 = pneg %p89
        %p457 = pneg %p113
        %p458 = pneg %p110
        %p459 = pneg %p134
        %p460 = pneg %p131
        %p461 = pneg %p155
        %p462 = pneg %p152
        %p463 = pneg %p176
        %p464 = pneg %p173
        %p465 = pneg %p197
        %p466 = pneg %p194
        %p467 = pneg %p218
        %p468 = pneg %p215
        %p469 = pneg %p239
        %p470 = pneg %p236
        %p471 = pneg %p260
        %p472 = pneg %p257
        %p473 = pneg %p281
        %p474 = pneg %p278
        %p475 = pneg %p302
        %p476 = pneg %p299
        %p477 = pneg %p323
        %p478 = pneg %p320
        %p479 = pneg %p344
        %p480 = pneg %p341
        %p481 = pneg %p370
        %p482 = pneg %p367
        %s483 = sand.u32 %s357, 1
        %s484 = scalar_lea.sflag [#allocation7], %s483
        %s485 = sand.u32 %s357, 1
        %s486 = smul.addr %s485, 256
        %s487 = scalar_lea.vmem [#allocation6], %s486
        %p488 = scmp.lt.s32.totalorder %s29, 1
        %s489 = scalar_select %p488, %s29, 1
        %s490 = smul.addr %s489, 32
        %s491 = smul.addr %s490, 8
        %s492 = scalar_lea.vmem %s0, %s491
        %v494 = vld [vmem:[%s492] sm:$0xff]
        %v495 = vld [vmem:[%s492 + $0x8] sm:$0xff]
        %v496 = vld [vmem:[%s492 + $0x10] sm:$0xff]
        %v497 = vld [vmem:[%s492 + $0x18] sm:$0xff]
        %v498 = vld [vmem:[%s492 + $0x20] sm:$0xff]
        %v499 = vld [vmem:[%s492 + $0x28] sm:$0xff]
        %v500 = vld [vmem:[%s492 + $0x30] sm:$0xff]
        %v501 = vld [vmem:[%s492 + $0x38] sm:$0xff]
        %v502 = vld [vmem:[%s492 + $0x40] sm:$0xff]
        %v503 = vld [vmem:[%s492 + $0x48] sm:$0xff]
        %v504 = vld [vmem:[%s492 + $0x50] sm:$0xff]
        %v505 = vld [vmem:[%s492 + $0x58] sm:$0xff]
        %v506 = vld [vmem:[%s492 + $0x60] sm:$0xff]
        %v507 = vld [vmem:[%s492 + $0x68] sm:$0xff]
        %v508 = vld [vmem:[%s492 + $0x70] sm:$0xff]
        %v509 = vld [vmem:[%s492 + $0x78] sm:$0xff]
        %v510 = vld [vmem:[%s492 + $0x80] sm:$0xff]
        %v511 = vld [vmem:[%s492 + $0x88] sm:$0xff]
        %v512 = vld [vmem:[%s492 + $0x90] sm:$0xff]
        %v513 = vld [vmem:[%s492 + $0x98] sm:$0xff]
        %v514 = vld [vmem:[%s492 + $0xa0] sm:$0xff]
        %v515 = vld [vmem:[%s492 + $0xa8] sm:$0xff]
        %v516 = vld [vmem:[%s492 + $0xb0] sm:$0xff]
        %v517 = vld [vmem:[%s492 + $0xb8] sm:$0xff]
        %v518 = vld [vmem:[%s492 + $0xc0] sm:$0xff]
        %v519 = vld [vmem:[%s492 + $0xc8] sm:$0xff]
        %v520 = vld [vmem:[%s492 + $0xd0] sm:$0xff]
        %v521 = vld [vmem:[%s492 + $0xd8] sm:$0xff]
        %v522 = vld [vmem:[%s492 + $0xe0] sm:$0xff]
        %v523 = vld [vmem:[%s492 + $0xe8] sm:$0xff]
        %v524 = vld [vmem:[%s492 + $0xf0] sm:$0xff]
        %v525 = vld [vmem:[%s492 + $0xf8] sm:$0xff]
        %v526 = vld [vmem:[%s3] sm:$0xff]
        %v527 = vld [vmem:[%s3 + $0x8] sm:$0xff]
        %v528 = vld [vmem:[%s3 + $0x10] sm:$0xff]
        %v529 = vld [vmem:[%s3 + $0x18] sm:$0xff]
        %v530 = vld [vmem:[%s4] sm:$0xff]
        %v531 = vld [vmem:[%s4 + $0x8] sm:$0xff]
        %v532 = vld [vmem:[%s4 + $0x10] sm:$0xff]
        %v533 = vld [vmem:[%s4 + $0x18] sm:$0xff]
        %v534 = vld [vmem:[%s1] sm:$0x1]
        %v535 = vld [vmem:[%s2] sm:$0x1]
        %vm536 = vcmask 261120
        %v537 = vsel %vm536, %v494, 0.0
        %v538 = vsel %vm536, %v495, 0.0
        %v539 = vadd.f32 %v537, %v538
        %v540 = vsel %vm536, %v496, 0.0
        %v541 = vadd.f32 %v539, %v540
        %v542 = vsel %vm536, %v497, 0.0
        %v543 = vadd.f32 %v541, %v542
        %v544 = vsel %vm536, %v498, 0.0
        %v545 = vadd.f32 %v543, %v544
        %v546 = vsel %vm536, %v499, 0.0
        %v547 = vadd.f32 %v545, %v546
        %v548 = vsel %vm536, %v500, 0.0
        %v549 = vadd.f32 %v547, %v548
        %v550 = vsel %vm536, %v501, 0.0
        %v551 = vadd.f32 %v549, %v550
        %v552 = vsel %vm536, %v502, 0.0
        %v553 = vadd.f32 %v551, %v552
        %v554 = vsel %vm536, %v503, 0.0
        %v555 = vadd.f32 %v553, %v554
        %v556 = vsel %vm536, %v504, 0.0
        %v557 = vadd.f32 %v555, %v556
        %v558 = vsel %vm536, %v505, 0.0
        %v559 = vadd.f32 %v557, %v558
        %v560 = vsel %vm536, %v506, 0.0
        %v561 = vadd.f32 %v559, %v560
        %v562 = vsel %vm536, %v507, 0.0
        %v563 = vadd.f32 %v561, %v562
        %v564 = vsel %vm536, %v508, 0.0
        %v565 = vadd.f32 %v563, %v564
        %v566 = vsel %vm536, %v509, 0.0
        %v567 = vadd.f32 %v565, %v566
        %v568 = vsel %vm536, %v510, 0.0
        %v569 = vadd.f32 %v567, %v568
        %v570 = vsel %vm536, %v511, 0.0
        %v571 = vadd.f32 %v569, %v570
        %v572 = vsel %vm536, %v512, 0.0
        %v573 = vadd.f32 %v571, %v572
        %v574 = vsel %vm536, %v513, 0.0
        %v575 = vadd.f32 %v573, %v574
        %v576 = vsel %vm536, %v514, 0.0
        %v577 = vadd.f32 %v575, %v576
        %v578 = vsel %vm536, %v515, 0.0
        %v579 = vadd.f32 %v577, %v578
        %v580 = vsel %vm536, %v516, 0.0
        %v581 = vadd.f32 %v579, %v580
        %v582 = vsel %vm536, %v517, 0.0
        %v583 = vadd.f32 %v581, %v582
        %v584 = vsel %vm536, %v518, 0.0
        %v585 = vadd.f32 %v583, %v584
        %v586 = vsel %vm536, %v519, 0.0
        %v587 = vadd.f32 %v585, %v586
        %v588 = vsel %vm536, %v520, 0.0
        %v589 = vadd.f32 %v587, %v588
        %v590 = vsel %vm536, %v521, 0.0
        %v591 = vadd.f32 %v589, %v590
        %v592 = vsel %vm536, %v522, 0.0
        %v593 = vadd.f32 %v591, %v592
        %v594 = vsel %vm536, %v523, 0.0
        %v595 = vadd.f32 %v593, %v594
        %v596 = vsel %vm536, %v524, 0.0
        %v597 = vadd.f32 %v595, %v596
        %v598 = vsel %vm536, %v525, 0.0
        %v599 = vadd.f32 %v597, %v598
        %v600 = vrot.slane %v599, 4
        %v601 = vadd.f32 %v599, %v600
        %v602 = vrot.slane %v601, 2
        %v603 = vadd.f32 %v601, %v602
        %v604 = vrot.slane %v603, 1
        %v605 = vadd.f32 %v603, %v604
        %v606 = vmul.f32 %v494, %v494
        %v607 = vmul.f32 %v495, %v495
        %v608 = vmul.f32 %v496, %v496
        %v609 = vmul.f32 %v497, %v497
        %v610 = vmul.f32 %v498, %v498
        %v611 = vmul.f32 %v499, %v499
        %v612 = vmul.f32 %v500, %v500
        %v613 = vmul.f32 %v501, %v501
        %v614 = vmul.f32 %v502, %v502
        %v615 = vmul.f32 %v503, %v503
        %v616 = vmul.f32 %v504, %v504
        %v617 = vmul.f32 %v505, %v505
        %v618 = vmul.f32 %v506, %v506
        %v619 = vmul.f32 %v507, %v507
        %v620 = vmul.f32 %v508, %v508
        %v621 = vmul.f32 %v509, %v509
        %v622 = vmul.f32 %v510, %v510
        %v623 = vmul.f32 %v511, %v511
        %v624 = vmul.f32 %v512, %v512
        %v625 = vmul.f32 %v513, %v513
        %v626 = vmul.f32 %v514, %v514
        %v627 = vmul.f32 %v515, %v515
        %v628 = vmul.f32 %v516, %v516
        %v629 = vmul.f32 %v517, %v517
        %v630 = vmul.f32 %v518, %v518
        %v631 = vmul.f32 %v519, %v519
        %v632 = vmul.f32 %v520, %v520
        %v633 = vmul.f32 %v521, %v521
        %v634 = vmul.f32 %v522, %v522
        %v635 = vmul.f32 %v523, %v523
        %v636 = vmul.f32 %v524, %v524
        %v637 = vmul.f32 %v525, %v525
        %v638 = vsel %vm536, %v606, 0.0
        %v639 = vsel %vm536, %v607, 0.0
        %v640 = vadd.f32 %v638, %v639
        %v641 = vsel %vm536, %v608, 0.0
        %v642 = vadd.f32 %v640, %v641
        %v643 = vsel %vm536, %v609, 0.0
        %v644 = vadd.f32 %v642, %v643
        %v645 = vsel %vm536, %v610, 0.0
        %v646 = vadd.f32 %v644, %v645
        %v647 = vsel %vm536, %v611, 0.0
        %v648 = vadd.f32 %v646, %v647
        %v649 = vsel %vm536, %v612, 0.0
        %v650 = vadd.f32 %v648, %v649
        %v651 = vsel %vm536, %v613, 0.0
        %v652 = vadd.f32 %v650, %v651
        %v653 = vsel %vm536, %v614, 0.0
        %v654 = vadd.f32 %v652, %v653
        %v655 = vsel %vm536, %v615, 0.0
        %v656 = vadd.f32 %v654, %v655
        %v657 = vsel %vm536, %v616, 0.0
        %v658 = vadd.f32 %v656, %v657
        %v659 = vsel %vm536, %v617, 0.0
        %v660 = vadd.f32 %v658, %v659
        %v661 = vsel %vm536, %v618, 0.0
        %v662 = vadd.f32 %v660, %v661
        %v663 = vsel %vm536, %v619, 0.0
        %v664 = vadd.f32 %v662, %v663
        %v665 = vsel %vm536, %v620, 0.0
        %v666 = vadd.f32 %v664, %v665
        %v667 = vsel %vm536, %v621, 0.0
        %v668 = vadd.f32 %v666, %v667
        %v669 = vsel %vm536, %v622, 0.0
        %v670 = vadd.f32 %v668, %v669
        %v671 = vsel %vm536, %v623, 0.0
        %v672 = vadd.f32 %v670, %v671
        %v673 = vsel %vm536, %v624, 0.0
        %v674 = vadd.f32 %v672, %v673
        %v675 = vsel %vm536, %v625, 0.0
        %v676 = vadd.f32 %v674, %v675
        %v677 = vsel %vm536, %v626, 0.0
        %v678 = vadd.f32 %v676, %v677
        %v679 = vsel %vm536, %v627, 0.0
        %v680 = vadd.f32 %v678, %v679
        %v681 = vsel %vm536, %v628, 0.0
        %v682 = vadd.f32 %v680, %v681
        %v683 = vsel %vm536, %v629, 0.0
        %v684 = vadd.f32 %v682, %v683
        %v685 = vsel %vm536, %v630, 0.0
        %v686 = vadd.f32 %v684, %v685
        %v687 = vsel %vm536, %v631, 0.0
        %v688 = vadd.f32 %v686, %v687
        %v689 = vsel %vm536, %v632, 0.0
        %v690 = vadd.f32 %v688, %v689
        %v691 = vsel %vm536, %v633, 0.0
        %v692 = vadd.f32 %v690, %v691
        %v693 = vsel %vm536, %v634, 0.0
        %v694 = vadd.f32 %v692, %v693
        %v695 = vsel %vm536, %v635, 0.0
        %v696 = vadd.f32 %v694, %v695
        %v697 = vsel %vm536, %v636, 0.0
        %v698 = vadd.f32 %v696, %v697
        %v699 = vsel %vm536, %v637, 0.0
        %v700 = vadd.f32 %v698, %v699
        %v701 = vrot.slane %v700, 4
        %v702 = vadd.f32 %v700, %v701
        %v703 = vrot.slane %v702, 2
        %v704 = vadd.f32 %v702, %v703
        %v705 = vrot.slane %v704, 1
        %v706 = vadd.f32 %v704, %v705
        %v708 = vsel %vm536, %v605, 0
        %710 = vmatprep.subr.mxu0 0.0
        %711 = vmatpush1.msra.mxu0 0.0
        %712 = vmatprep.subr.mxu0 0.0
        %713 = vmatpush1.msra.mxu0 0.0
        %714 = vmatprep.subr.mxu0 0.0
        %715 = vmatpush1.msra.mxu0 0.0
        %716 = vmatprep.subr.mxu0 0.0
        %717 = vmatpush1.msra.mxu0 0.0
        %718 = vmatprep.subr.mxu0 0.0
        %719 = vmatpush1.msra.mxu0 0.0
        %720 = vmatprep.subr.mxu0 0.0
        %721 = vmatpush1.msra.mxu0 0.0
        %722 = vmatprep.subr.mxu0 0.0
        %723 = vmatpush1.msra.mxu0 0.0
        %724 = vmatprep.subr.mxu0 0.0
        %725 = vmatpush1.msra.mxu0 0.0
        %726 = vmatprep.subr.mxu0 0.0
        %727 = vmatpush1.msra.mxu0 0.0
        %728 = vmatprep.subr.mxu0 0.0
        %729 = vmatpush1.msra.mxu0 0.0
        %730 = vmatprep.subr.mxu0 0.0
        %731 = vmatpush1.msra.mxu0 0.0
        %732 = vmatprep.subr.mxu0 0.0
        %733 = vmatpush1.msra.mxu0 0.0
        %734 = vmatprep.subr.mxu0 0.0
        %v735 = vand.u32 %v529, 4294901760
        %736 = vmatpush1.msra.mxu0 %v735
        %737 = vmatprep.subr.mxu0 0.0
        %v738 = vand.u32 %v528, 4294901760
        %739 = vmatpush1.msra.mxu0 %v738
        %740 = vmatprep.subr.mxu0 0.0
        %v741 = vand.u32 %v527, 4294901760
        %742 = vmatpush1.msra.mxu0 %v741
        %743 = vmatprep.subr.mxu0 0.0
        %v744 = vand.u32 %v526, 4294901760
        %745 = vmatpush1.msra.mxu0 %v744
        %746 = vmatprep.subr.mxu0 0.0
        %747 = vmatpush2.msra.mxu0 0.0
        %748 = vmatprep.subr.mxu0 0.0
        %749 = vmatpush2.msra.mxu0 0.0
        %750 = vmatprep.subr.mxu0 0.0
        %751 = vmatpush2.msra.mxu0 0.0
        %752 = vmatprep.subr.mxu0 0.0
        %753 = vmatpush2.msra.mxu0 0.0
        %754 = vmatprep.subr.mxu0 0.0
        %755 = vmatpush2.msra.mxu0 0.0
        %756 = vmatprep.subr.mxu0 0.0
        %757 = vmatpush2.msra.mxu0 0.0
        %758 = vmatprep.subr.mxu0 0.0
        %759 = vmatpush2.msra.mxu0 0.0
        %760 = vmatprep.subr.mxu0 0.0
        %761 = vmatpush2.msra.mxu0 0.0
        %762 = vmatprep.subr.mxu0 0.0
        %763 = vmatpush2.msra.mxu0 0.0
        %764 = vmatprep.subr.mxu0 0.0
        %765 = vmatpush2.msra.mxu0 0.0
        %766 = vmatprep.subr.mxu0 0.0
        %767 = vmatpush2.msra.mxu0 0.0
        %768 = vmatprep.subr.mxu0 0.0
        %769 = vmatpush2.msra.mxu0 0.0
        %770 = vmatprep.subr.mxu0 0.0
        %771 = vmatpush2.msra.mxu0 0.0
        %772 = vmatprep.subr.mxu0 0.0
        %773 = vmatpush2.msra.mxu0 0.0
        %774 = vmatprep.subr.mxu0 0.0
        %775 = vmatpush2.msra.mxu0 0.0
        %776 = vmatprep.subr.mxu0 0.0
        %777 = vmatpush2.msra.mxu0 0.0
        %778 = vmatprep.mubr.f32.mxu0 0.0
        %v779 = vand.u32 %v708, 4294901760
        %v780 = vsub.f32 %v708, %v779
        %v781 = vand.u32 %v780, 4294901760
        %v782 = vsub.f32 %v780, %v781
        %v783 = vand.u32 %v782, 4294901760
        %784 = vmatmul.mubr.f32.gmra.mxu0 %v783
        %v785 = vpop.f32.mrf.mxu0
        %v786 = vadd.f32 0.0, %v785
        %v787 = vpop.f32.mrf.mxu0
        %788 = vdwg.mxu0
        %789 = vmatprep.subr.mxu0 0.0
        %790 = vmatpush1.msra.mxu0 0.0
        %791 = vmatprep.subr.mxu0 0.0
        %792 = vmatpush1.msra.mxu0 0.0
        %793 = vmatprep.subr.mxu0 0.0
        %794 = vmatpush1.msra.mxu0 0.0
        %795 = vmatprep.subr.mxu0 0.0
        %796 = vmatpush1.msra.mxu0 0.0
        %797 = vmatprep.subr.mxu0 0.0
        %798 = vmatpush1.msra.mxu0 0.0
        %799 = vmatprep.subr.mxu0 0.0
        %800 = vmatpush1.msra.mxu0 0.0
        %801 = vmatprep.subr.mxu0 0.0
        %802 = vmatpush1.msra.mxu0 0.0
        %803 = vmatprep.subr.mxu0 0.0
        %804 = vmatpush1.msra.mxu0 0.0
        %805 = vmatprep.subr.mxu0 0.0
        %806 = vmatpush1.msra.mxu0 0.0
        %807 = vmatprep.subr.mxu0 0.0
        %808 = vmatpush1.msra.mxu0 0.0
        %809 = vmatprep.subr.mxu0 0.0
        %810 = vmatpush1.msra.mxu0 0.0
        %811 = vmatprep.subr.mxu0 0.0
        %812 = vmatpush1.msra.mxu0 0.0
        %813 = vmatprep.subr.mxu0 0.0
        %v814 = vand.u32 %v529, 4294901760
        %v815 = vsub.f32 %v529, %v814
        %v816 = vand.u32 %v815, 4294901760
        %v817 = vsub.f32 %v815, %v816
        %v818 = vand.u32 %v817, 4294901760
        %819 = vmatpush1.msra.mxu0 %v818
        %820 = vmatprep.subr.mxu0 0.0
        %v821 = vand.u32 %v528, 4294901760
        %v822 = vsub.f32 %v528, %v821
        %v823 = vand.u32 %v822, 4294901760
        %v824 = vsub.f32 %v822, %v823
        %v825 = vand.u32 %v824, 4294901760
        %826 = vmatpush1.msra.mxu0 %v825
        %827 = vmatprep.subr.mxu0 0.0
        %v828 = vand.u32 %v527, 4294901760
        %v829 = vsub.f32 %v527, %v828
        %v830 = vand.u32 %v829, 4294901760
        %v831 = vsub.f32 %v829, %v830
        %v832 = vand.u32 %v831, 4294901760
        %833 = vmatpush1.msra.mxu0 %v832
        %834 = vmatprep.subr.mxu0 0.0
        %v835 = vand.u32 %v526, 4294901760
        %v836 = vsub.f32 %v526, %v835
        %v837 = vand.u32 %v836, 4294901760
        %v838 = vsub.f32 %v836, %v837
        %v839 = vand.u32 %v838, 4294901760
        %840 = vmatpush1.msra.mxu0 %v839
        %841 = vmatprep.subr.mxu0 0.0
        %842 = vmatpush2.msra.mxu0 0.0
        %843 = vmatprep.subr.mxu0 0.0
        %844 = vmatpush2.msra.mxu0 0.0
        %845 = vmatprep.subr.mxu0 0.0
        %846 = vmatpush2.msra.mxu0 0.0
        %847 = vmatprep.subr.mxu0 0.0
        %848 = vmatpush2.msra.mxu0 0.0
        %849 = vmatprep.subr.mxu0 0.0
        %850 = vmatpush2.msra.mxu0 0.0
        %851 = vmatprep.subr.mxu0 0.0
        %852 = vmatpush2.msra.mxu0 0.0
        %853 = vmatprep.subr.mxu0 0.0
        %854 = vmatpush2.msra.mxu0 0.0
        %855 = vmatprep.subr.mxu0 0.0
        %856 = vmatpush2.msra.mxu0 0.0
        %857 = vmatprep.subr.mxu0 0.0
        %858 = vmatpush2.msra.mxu0 0.0
        %859 = vmatprep.subr.mxu0 0.0
        %860 = vmatpush2.msra.mxu0 0.0
        %861 = vmatprep.subr.mxu0 0.0
        %862 = vmatpush2.msra.mxu0 0.0
        %863 = vmatprep.subr.mxu0 0.0
        %864 = vmatpush2.msra.mxu0 0.0
        %865 = vmatprep.subr.mxu0 0.0
        %866 = vmatpush2.msra.mxu0 0.0
        %867 = vmatprep.subr.mxu0 0.0
        %868 = vmatpush2.msra.mxu0 0.0
        %869 = vmatprep.subr.mxu0 0.0
        %870 = vmatpush2.msra.mxu0 0.0
        %871 = vmatprep.subr.mxu0 0.0
        %872 = vmatpush2.msra.mxu0 0.0
        %873 = vmatprep.mubr.f32.mxu0 0.0
        %v874 = vand.u32 %v708, 4294901760
        %875 = vmatmul.mubr.f32.gmra.mxu0 %v874
        %v876 = vpop.f32.mrf.mxu0
        %v877 = vadd.f32 %v786, %v876
        %v878 = vpop.f32.mrf.mxu0
        %879 = vdwg.mxu0
        %880 = vmatprep.subr.mxu0 0.0
        %881 = vmatpush1.msra.mxu0 0.0
        %882 = vmatprep.subr.mxu0 0.0
        %883 = vmatpush1.msra.mxu0 0.0
        %884 = vmatprep.subr.mxu0 0.0
        %885 = vmatpush1.msra.mxu0 0.0
        %886 = vmatprep.subr.mxu0 0.0
        %887 = vmatpush1.msra.mxu0 0.0
        %888 = vmatprep.subr.mxu0 0.0
        %889 = vmatpush1.msra.mxu0 0.0
        %890 = vmatprep.subr.mxu0 0.0
        %891 = vmatpush1.msra.mxu0 0.0
        %892 = vmatprep.subr.mxu0 0.0
        %893 = vmatpush1.msra.mxu0 0.0
        %894 = vmatprep.subr.mxu0 0.0
        %895 = vmatpush1.msra.mxu0 0.0
        %896 = vmatprep.subr.mxu0 0.0
        %897 = vmatpush1.msra.mxu0 0.0
        %898 = vmatprep.subr.mxu0 0.0
        %899 = vmatpush1.msra.mxu0 0.0
        %900 = vmatprep.subr.mxu0 0.0
        %901 = vmatpush1.msra.mxu0 0.0
        %902 = vmatprep.subr.mxu0 0.0
        %903 = vmatpush1.msra.mxu0 0.0
        %904 = vmatprep.subr.mxu0 0.0
        %v905 = vand.u32 %v529, 4294901760
        %v906 = vsub.f32 %v529, %v905
        %907 = vmatpush1.msra.mxu0 %v906
        %908 = vmatprep.subr.mxu0 0.0
        %v909 = vand.u32 %v528, 4294901760
        %v910 = vsub.f32 %v528, %v909
        %911 = vmatpush1.msra.mxu0 %v910
        %912 = vmatprep.subr.mxu0 0.0
        %v913 = vand.u32 %v527, 4294901760
        %v914 = vsub.f32 %v527, %v913
        %915 = vmatpush1.msra.mxu0 %v914
        %916 = vmatprep.subr.mxu0 0.0
        %v917 = vand.u32 %v526, 4294901760
        %v918 = vsub.f32 %v526, %v917
        %919 = vmatpush1.msra.mxu0 %v918
        %920 = vmatprep.subr.mxu0 0.0
        %921 = vmatpush2.msra.mxu0 0.0
        %922 = vmatprep.subr.mxu0 0.0
        %923 = vmatpush2.msra.mxu0 0.0
        %924 = vmatprep.subr.mxu0 0.0
        %925 = vmatpush2.msra.mxu0 0.0
        %926 = vmatprep.subr.mxu0 0.0
        %927 = vmatpush2.msra.mxu0 0.0
        %928 = vmatprep.subr.mxu0 0.0
        %929 = vmatpush2.msra.mxu0 0.0
        %930 = vmatprep.subr.mxu0 0.0
        %931 = vmatpush2.msra.mxu0 0.0
        %932 = vmatprep.subr.mxu0 0.0
        %933 = vmatpush2.msra.mxu0 0.0
        %934 = vmatprep.subr.mxu0 0.0
        %935 = vmatpush2.msra.mxu0 0.0
        %936 = vmatprep.subr.mxu0 0.0
        %937 = vmatpush2.msra.mxu0 0.0
        %938 = vmatprep.subr.mxu0 0.0
        %939 = vmatpush2.msra.mxu0 0.0
        %940 = vmatprep.subr.mxu0 0.0
        %941 = vmatpush2.msra.mxu0 0.0
        %942 = vmatprep.subr.mxu0 0.0
        %943 = vmatpush2.msra.mxu0 0.0
        %944 = vmatprep.subr.mxu0 0.0
        %945 = vmatpush2.msra.mxu0 0.0
        %946 = vmatprep.subr.mxu0 0.0
        %947 = vmatpush2.msra.mxu0 0.0
        %948 = vmatprep.subr.mxu0 0.0
        %949 = vmatpush2.msra.mxu0 0.0
        %950 = vmatprep.subr.mxu0 0.0
        %951 = vmatpush2.msra.mxu0 0.0
        %952 = vmatprep.mubr.f32.mxu0 0.0
        %v953 = vand.u32 %v708, 4294901760
        %v954 = vsub.f32 %v708, %v953
        %955 = vmatmul.mubr.f32.gmra.mxu0 %v954
        %v956 = vpop.f32.mrf.mxu0
        %v957 = vadd.f32 %v877, %v956
        %v958 = vpop.f32.mrf.mxu0
        %959 = vdwg.mxu0
        %960 = vmatprep.subr.mxu0 0.0
        %961 = vmatpush1.msra.mxu0 0.0
        %962 = vmatprep.subr.mxu0 0.0
        %963 = vmatpush1.msra.mxu0 0.0
        %964 = vmatprep.subr.mxu0 0.0
        %965 = vmatpush1.msra.mxu0 0.0
        %966 = vmatprep.subr.mxu0 0.0
        %967 = vmatpush1.msra.mxu0 0.0
        %968 = vmatprep.subr.mxu0 0.0
        %969 = vmatpush1.msra.mxu0 0.0
        %970 = vmatprep.subr.mxu0 0.0
        %971 = vmatpush1.msra.mxu0 0.0
        %972 = vmatprep.subr.mxu0 0.0
        %973 = vmatpush1.msra.mxu0 0.0
        %974 = vmatprep.subr.mxu0 0.0
        %975 = vmatpush1.msra.mxu0 0.0
        %976 = vmatprep.subr.mxu0 0.0
        %977 = vmatpush1.msra.mxu0 0.0
        %978 = vmatprep.subr.mxu0 0.0
        %979 = vmatpush1.msra.mxu0 0.0
        %980 = vmatprep.subr.mxu0 0.0
        %981 = vmatpush1.msra.mxu0 0.0
        %982 = vmatprep.subr.mxu0 0.0
        %983 = vmatpush1.msra.mxu0 0.0
        %984 = vmatprep.subr.mxu0 0.0
        %v985 = vand.u32 %v529, 4294901760
        %986 = vmatpush1.msra.mxu0 %v985
        %987 = vmatprep.subr.mxu0 0.0
        %v988 = vand.u32 %v528, 4294901760
        %989 = vmatpush1.msra.mxu0 %v988
        %990 = vmatprep.subr.mxu0 0.0
        %v991 = vand.u32 %v527, 4294901760
        %992 = vmatpush1.msra.mxu0 %v991
        %993 = vmatprep.subr.mxu0 0.0
        %v994 = vand.u32 %v526, 4294901760
        %995 = vmatpush1.msra.mxu0 %v994
        %996 = vmatprep.subr.mxu0 0.0
        %997 = vmatpush2.msra.mxu0 0.0
        %998 = vmatprep.subr.mxu0 0.0
        %999 = vmatpush2.msra.mxu0 0.0
        %1000 = vmatprep.subr.mxu0 0.0
        %1001 = vmatpush2.msra.mxu0 0.0
        %1002 = vmatprep.subr.mxu0 0.0
        %1003 = vmatpush2.msra.mxu0 0.0
        %1004 = vmatprep.subr.mxu0 0.0
        %1005 = vmatpush2.msra.mxu0 0.0
        %1006 = vmatprep.subr.mxu0 0.0
        %1007 = vmatpush2.msra.mxu0 0.0
        %1008 = vmatprep.subr.mxu0 0.0
        %1009 = vmatpush2.msra.mxu0 0.0
        %1010 = vmatprep.subr.mxu0 0.0
        %1011 = vmatpush2.msra.mxu0 0.0
        %1012 = vmatprep.subr.mxu0 0.0
        %1013 = vmatpush2.msra.mxu0 0.0
        %1014 = vmatprep.subr.mxu0 0.0
        %1015 = vmatpush2.msra.mxu0 0.0
        %1016 = vmatprep.subr.mxu0 0.0
        %1017 = vmatpush2.msra.mxu0 0.0
        %1018 = vmatprep.subr.mxu0 0.0
        %1019 = vmatpush2.msra.mxu0 0.0
        %1020 = vmatprep.subr.mxu0 0.0
        %1021 = vmatpush2.msra.mxu0 0.0
        %1022 = vmatprep.subr.mxu0 0.0
        %1023 = vmatpush2.msra.mxu0 0.0
        %1024 = vmatprep.subr.mxu0 0.0
        %1025 = vmatpush2.msra.mxu0 0.0
        %1026 = vmatprep.subr.mxu0 0.0
        %1027 = vmatpush2.msra.mxu0 0.0
        %1028 = vmatprep.mubr.f32.mxu0 0.0
        %v1029 = vand.u32 %v708, 4294901760
        %v1030 = vsub.f32 %v708, %v1029
        %v1031 = vand.u32 %v1030, 4294901760
        %1032 = vmatmul.mubr.f32.gmra.mxu0 %v1031
        %v1033 = vpop.f32.mrf.mxu0
        %v1034 = vadd.f32 %v957, %v1033
        %v1035 = vpop.f32.mrf.mxu0
        %1036 = vdwg.mxu0
        %1037 = vmatprep.subr.mxu0 0.0
        %1038 = vmatpush1.msra.mxu0 0.0
        %1039 = vmatprep.subr.mxu0 0.0
        %1040 = vmatpush1.msra.mxu0 0.0
        %1041 = vmatprep.subr.mxu0 0.0
        %1042 = vmatpush1.msra.mxu0 0.0
        %1043 = vmatprep.subr.mxu0 0.0
        %1044 = vmatpush1.msra.mxu0 0.0
        %1045 = vmatprep.subr.mxu0 0.0
        %1046 = vmatpush1.msra.mxu0 0.0
        %1047 = vmatprep.subr.mxu0 0.0
        %1048 = vmatpush1.msra.mxu0 0.0
        %1049 = vmatprep.subr.mxu0 0.0
        %1050 = vmatpush1.msra.mxu0 0.0
        %1051 = vmatprep.subr.mxu0 0.0
        %1052 = vmatpush1.msra.mxu0 0.0
        %1053 = vmatprep.subr.mxu0 0.0
        %1054 = vmatpush1.msra.mxu0 0.0
        %1055 = vmatprep.subr.mxu0 0.0
        %1056 = vmatpush1.msra.mxu0 0.0
        %1057 = vmatprep.subr.mxu0 0.0
        %1058 = vmatpush1.msra.mxu0 0.0
        %1059 = vmatprep.subr.mxu0 0.0
        %1060 = vmatpush1.msra.mxu0 0.0
        %1061 = vmatprep.subr.mxu0 0.0
        %v1062 = vand.u32 %v529, 4294901760
        %v1063 = vsub.f32 %v529, %v1062
        %v1064 = vand.u32 %v1063, 4294901760
        %1065 = vmatpush1.msra.mxu0 %v1064
        %1066 = vmatprep.subr.mxu0 0.0
        %v1067 = vand.u32 %v528, 4294901760
        %v1068 = vsub.f32 %v528, %v1067
        %v1069 = vand.u32 %v1068, 4294901760
        %1070 = vmatpush1.msra.mxu0 %v1069
        %1071 = vmatprep.subr.mxu0 0.0
        %v1072 = vand.u32 %v527, 4294901760
        %v1073 = vsub.f32 %v527, %v1072
        %v1074 = vand.u32 %v1073, 4294901760
        %1075 = vmatpush1.msra.mxu0 %v1074
        %1076 = vmatprep.subr.mxu0 0.0
        %v1077 = vand.u32 %v526, 4294901760
        %v1078 = vsub.f32 %v526, %v1077
        %v1079 = vand.u32 %v1078, 4294901760
        %1080 = vmatpush1.msra.mxu0 %v1079
        %1081 = vmatprep.subr.mxu0 0.0
        %1082 = vmatpush2.msra.mxu0 0.0
        %1083 = vmatprep.subr.mxu0 0.0
        %1084 = vmatpush2.msra.mxu0 0.0
        %1085 = vmatprep.subr.mxu0 0.0
        %1086 = vmatpush2.msra.mxu0 0.0
        %1087 = vmatprep.subr.mxu0 0.0
        %1088 = vmatpush2.msra.mxu0 0.0
        %1089 = vmatprep.subr.mxu0 0.0
        %1090 = vmatpush2.msra.mxu0 0.0
        %1091 = vmatprep.subr.mxu0 0.0
        %1092 = vmatpush2.msra.mxu0 0.0
        %1093 = vmatprep.subr.mxu0 0.0
        %1094 = vmatpush2.msra.mxu0 0.0
        %1095 = vmatprep.subr.mxu0 0.0
        %1096 = vmatpush2.msra.mxu0 0.0
        %1097 = vmatprep.subr.mxu0 0.0
        %1098 = vmatpush2.msra.mxu0 0.0
        %1099 = vmatprep.subr.mxu0 0.0
        %1100 = vmatpush2.msra.mxu0 0.0
        %1101 = vmatprep.subr.mxu0 0.0
        %1102 = vmatpush2.msra.mxu0 0.0
        %1103 = vmatprep.subr.mxu0 0.0
        %1104 = vmatpush2.msra.mxu0 0.0
        %1105 = vmatprep.subr.mxu0 0.0
        %1106 = vmatpush2.msra.mxu0 0.0
        %1107 = vmatprep.subr.mxu0 0.0
        %1108 = vmatpush2.msra.mxu0 0.0
        %1109 = vmatprep.subr.mxu0 0.0
        %1110 = vmatpush2.msra.mxu0 0.0
        %1111 = vmatprep.subr.mxu0 0.0
        %1112 = vmatpush2.msra.mxu0 0.0
        %1113 = vmatprep.mubr.f32.mxu0 0.0
        %v1114 = vand.u32 %v708, 4294901760
        %1115 = vmatmul.mubr.f32.gmra.mxu0 %v1114
        %v1116 = vpop.f32.mrf.mxu0
        %v1117 = vadd.f32 %v1034, %v1116
        %v1118 = vpop.f32.mrf.mxu0
        %1119 = vdwg.mxu0
        %1120 = vmatprep.subr.mxu0 0.0
        %1121 = vmatpush1.msra.mxu0 0.0
        %1122 = vmatprep.subr.mxu0 0.0
        %1123 = vmatpush1.msra.mxu0 0.0
        %1124 = vmatprep.subr.mxu0 0.0
        %1125 = vmatpush1.msra.mxu0 0.0
        %1126 = vmatprep.subr.mxu0 0.0
        %1127 = vmatpush1.msra.mxu0 0.0
        %1128 = vmatprep.subr.mxu0 0.0
        %1129 = vmatpush1.msra.mxu0 0.0
        %1130 = vmatprep.subr.mxu0 0.0
        %1131 = vmatpush1.msra.mxu0 0.0
        %1132 = vmatprep.subr.mxu0 0.0
        %1133 = vmatpush1.msra.mxu0 0.0
        %1134 = vmatprep.subr.mxu0 0.0
        %1135 = vmatpush1.msra.mxu0 0.0
        %1136 = vmatprep.subr.mxu0 0.0
        %1137 = vmatpush1.msra.mxu0 0.0
        %1138 = vmatprep.subr.mxu0 0.0
        %1139 = vmatpush1.msra.mxu0 0.0
        %1140 = vmatprep.subr.mxu0 0.0
        %1141 = vmatpush1.msra.mxu0 0.0
        %1142 = vmatprep.subr.mxu0 0.0
        %1143 = vmatpush1.msra.mxu0 0.0
        %1144 = vmatprep.subr.mxu0 0.0
        %v1145 = vand.u32 %v529, 4294901760
        %1146 = vmatpush1.msra.mxu0 %v1145
        %1147 = vmatprep.subr.mxu0 0.0
        %v1148 = vand.u32 %v528, 4294901760
        %1149 = vmatpush1.msra.mxu0 %v1148
        %1150 = vmatprep.subr.mxu0 0.0
        %v1151 = vand.u32 %v527, 4294901760
        %1152 = vmatpush1.msra.mxu0 %v1151
        %1153 = vmatprep.subr.mxu0 0.0
        %v1154 = vand.u32 %v526, 4294901760
        %1155 = vmatpush1.msra.mxu0 %v1154
        %1156 = vmatprep.subr.mxu0 0.0
        %1157 = vmatpush2.msra.mxu0 0.0
        %1158 = vmatprep.subr.mxu0 0.0
        %1159 = vmatpush2.msra.mxu0 0.0
        %1160 = vmatprep.subr.mxu0 0.0
        %1161 = vmatpush2.msra.mxu0 0.0
        %1162 = vmatprep.subr.mxu0 0.0
        %1163 = vmatpush2.msra.mxu0 0.0
        %1164 = vmatprep.subr.mxu0 0.0
        %1165 = vmatpush2.msra.mxu0 0.0
        %1166 = vmatprep.subr.mxu0 0.0
        %1167 = vmatpush2.msra.mxu0 0.0
        %1168 = vmatprep.subr.mxu0 0.0
        %1169 = vmatpush2.msra.mxu0 0.0
        %1170 = vmatprep.subr.mxu0 0.0
        %1171 = vmatpush2.msra.mxu0 0.0
        %1172 = vmatprep.subr.mxu0 0.0
        %1173 = vmatpush2.msra.mxu0 0.0
        %1174 = vmatprep.subr.mxu0 0.0
        %1175 = vmatpush2.msra.mxu0 0.0
        %1176 = vmatprep.subr.mxu0 0.0
        %1177 = vmatpush2.msra.mxu0 0.0
        %1178 = vmatprep.subr.mxu0 0.0
        %1179 = vmatpush2.msra.mxu0 0.0
        %1180 = vmatprep.subr.mxu0 0.0
        %1181 = vmatpush2.msra.mxu0 0.0
        %1182 = vmatprep.subr.mxu0 0.0
        %1183 = vmatpush2.msra.mxu0 0.0
        %1184 = vmatprep.subr.mxu0 0.0
        %1185 = vmatpush2.msra.mxu0 0.0
        %1186 = vmatprep.subr.mxu0 0.0
        %1187 = vmatpush2.msra.mxu0 0.0
        %1188 = vmatprep.mubr.f32.mxu0 0.0
        %v1189 = vand.u32 %v708, 4294901760
        %1190 = vmatmul.mubr.f32.gmra.mxu0 %v1189
        %v1191 = vpop.f32.mrf.mxu0
        %v1192 = vadd.f32 %v1117, %v1191
        %v1193 = vpop.f32.mrf.mxu0
        %1194 = vdwg.mxu0
        %v1196 = vsel %vm536, %v706, 0
        %1198 = vmatprep.subr.mxu0 0.0
        %1199 = vmatpush1.msra.mxu0 0.0
        %1200 = vmatprep.subr.mxu0 0.0
        %1201 = vmatpush1.msra.mxu0 0.0
        %1202 = vmatprep.subr.mxu0 0.0
        %1203 = vmatpush1.msra.mxu0 0.0
        %1204 = vmatprep.subr.mxu0 0.0
        %1205 = vmatpush1.msra.mxu0 0.0
        %1206 = vmatprep.subr.mxu0 0.0
        %1207 = vmatpush1.msra.mxu0 0.0
        %1208 = vmatprep.subr.mxu0 0.0
        %1209 = vmatpush1.msra.mxu0 0.0
        %1210 = vmatprep.subr.mxu0 0.0
        %1211 = vmatpush1.msra.mxu0 0.0
        %1212 = vmatprep.subr.mxu0 0.0
        %1213 = vmatpush1.msra.mxu0 0.0
        %1214 = vmatprep.subr.mxu0 0.0
        %1215 = vmatpush1.msra.mxu0 0.0
        %1216 = vmatprep.subr.mxu0 0.0
        %1217 = vmatpush1.msra.mxu0 0.0
        %1218 = vmatprep.subr.mxu0 0.0
        %1219 = vmatpush1.msra.mxu0 0.0
        %1220 = vmatprep.subr.mxu0 0.0
        %1221 = vmatpush1.msra.mxu0 0.0
        %1222 = vmatprep.subr.mxu0 0.0
        %v1223 = vand.u32 %v529, 4294901760
        %1224 = vmatpush1.msra.mxu0 %v1223
        %1225 = vmatprep.subr.mxu0 0.0
        %v1226 = vand.u32 %v528, 4294901760
        %1227 = vmatpush1.msra.mxu0 %v1226
        %1228 = vmatprep.subr.mxu0 0.0
        %v1229 = vand.u32 %v527, 4294901760
        %1230 = vmatpush1.msra.mxu0 %v1229
        %1231 = vmatprep.subr.mxu0 0.0
        %v1232 = vand.u32 %v526, 4294901760
        %1233 = vmatpush1.msra.mxu0 %v1232
        %1234 = vmatprep.subr.mxu0 0.0
        %1235 = vmatpush2.msra.mxu0 0.0
        %1236 = vmatprep.subr.mxu0 0.0
        %1237 = vmatpush2.msra.mxu0 0.0
        %1238 = vmatprep.subr.mxu0 0.0
        %1239 = vmatpush2.msra.mxu0 0.0
        %1240 = vmatprep.subr.mxu0 0.0
        %1241 = vmatpush2.msra.mxu0 0.0
        %1242 = vmatprep.subr.mxu0 0.0
        %1243 = vmatpush2.msra.mxu0 0.0
        %1244 = vmatprep.subr.mxu0 0.0
        %1245 = vmatpush2.msra.mxu0 0.0
        %1246 = vmatprep.subr.mxu0 0.0
        %1247 = vmatpush2.msra.mxu0 0.0
        %1248 = vmatprep.subr.mxu0 0.0
        %1249 = vmatpush2.msra.mxu0 0.0
        %1250 = vmatprep.subr.mxu0 0.0
        %1251 = vmatpush2.msra.mxu0 0.0
        %1252 = vmatprep.subr.mxu0 0.0
        %1253 = vmatpush2.msra.mxu0 0.0
        %1254 = vmatprep.subr.mxu0 0.0
        %1255 = vmatpush2.msra.mxu0 0.0
        %1256 = vmatprep.subr.mxu0 0.0
        %1257 = vmatpush2.msra.mxu0 0.0
        %1258 = vmatprep.subr.mxu0 0.0
        %1259 = vmatpush2.msra.mxu0 0.0
        %1260 = vmatprep.subr.mxu0 0.0
        %1261 = vmatpush2.msra.mxu0 0.0
        %1262 = vmatprep.subr.mxu0 0.0
        %1263 = vmatpush2.msra.mxu0 0.0
        %1264 = vmatprep.subr.mxu0 0.0
        %1265 = vmatpush2.msra.mxu0 0.0
        %1266 = vmatprep.mubr.f32.mxu0 0.0
        %v1267 = vand.u32 %v1196, 4294901760
        %v1268 = vsub.f32 %v1196, %v1267
        %v1269 = vand.u32 %v1268, 4294901760
        %v1270 = vsub.f32 %v1268, %v1269
        %v1271 = vand.u32 %v1270, 4294901760
        %1272 = vmatmul.mubr.f32.gmra.mxu0 %v1271
        %v1273 = vpop.f32.mrf.mxu0
        %v1274 = vadd.f32 0.0, %v1273
        %v1275 = vpop.f32.mrf.mxu0
        %1276 = vdwg.mxu0
        %1277 = vmatprep.subr.mxu0 0.0
        %1278 = vmatpush1.msra.mxu0 0.0
        %1279 = vmatprep.subr.mxu0 0.0
        %1280 = vmatpush1.msra.mxu0 0.0
        %1281 = vmatprep.subr.mxu0 0.0
        %1282 = vmatpush1.msra.mxu0 0.0
        %1283 = vmatprep.subr.mxu0 0.0
        %1284 = vmatpush1.msra.mxu0 0.0
        %1285 = vmatprep.subr.mxu0 0.0
        %1286 = vmatpush1.msra.mxu0 0.0
        %1287 = vmatprep.subr.mxu0 0.0
        %1288 = vmatpush1.msra.mxu0 0.0
        %1289 = vmatprep.subr.mxu0 0.0
        %1290 = vmatpush1.msra.mxu0 0.0
        %1291 = vmatprep.subr.mxu0 0.0
        %1292 = vmatpush1.msra.mxu0 0.0
        %1293 = vmatprep.subr.mxu0 0.0
        %1294 = vmatpush1.msra.mxu0 0.0
        %1295 = vmatprep.subr.mxu0 0.0
        %1296 = vmatpush1.msra.mxu0 0.0
        %1297 = vmatprep.subr.mxu0 0.0
        %1298 = vmatpush1.msra.mxu0 0.0
        %1299 = vmatprep.subr.mxu0 0.0
        %1300 = vmatpush1.msra.mxu0 0.0
        %1301 = vmatprep.subr.mxu0 0.0
        %v1302 = vand.u32 %v529, 4294901760
        %v1303 = vsub.f32 %v529, %v1302
        %v1304 = vand.u32 %v1303, 4294901760
        %v1305 = vsub.f32 %v1303, %v1304
        %v1306 = vand.u32 %v1305, 4294901760
        %1307 = vmatpush1.msra.mxu0 %v1306
        %1308 = vmatprep.subr.mxu0 0.0
        %v1309 = vand.u32 %v528, 4294901760
        %v1310 = vsub.f32 %v528, %v1309
        %v1311 = vand.u32 %v1310, 4294901760
        %v1312 = vsub.f32 %v1310, %v1311
        %v1313 = vand.u32 %v1312, 4294901760
        %1314 = vmatpush1.msra.mxu0 %v1313
        %1315 = vmatprep.subr.mxu0 0.0
        %v1316 = vand.u32 %v527, 4294901760
        %v1317 = vsub.f32 %v527, %v1316
        %v1318 = vand.u32 %v1317, 4294901760
        %v1319 = vsub.f32 %v1317, %v1318
        %v1320 = vand.u32 %v1319, 4294901760
        %1321 = vmatpush1.msra.mxu0 %v1320
        %1322 = vmatprep.subr.mxu0 0.0
        %v1323 = vand.u32 %v526, 4294901760
        %v1324 = vsub.f32 %v526, %v1323
        %v1325 = vand.u32 %v1324, 4294901760
        %v1326 = vsub.f32 %v1324, %v1325
        %v1327 = vand.u32 %v1326, 4294901760
        %1328 = vmatpush1.msra.mxu0 %v1327
        %1329 = vmatprep.subr.mxu0 0.0
        %1330 = vmatpush2.msra.mxu0 0.0
        %1331 = vmatprep.subr.mxu0 0.0
        %1332 = vmatpush2.msra.mxu0 0.0
        %1333 = vmatprep.subr.mxu0 0.0
        %1334 = vmatpush2.msra.mxu0 0.0
        %1335 = vmatprep.subr.mxu0 0.0
        %1336 = vmatpush2.msra.mxu0 0.0
        %1337 = vmatprep.subr.mxu0 0.0
        %1338 = vmatpush2.msra.mxu0 0.0
        %1339 = vmatprep.subr.mxu0 0.0
        %1340 = vmatpush2.msra.mxu0 0.0
        %1341 = vmatprep.subr.mxu0 0.0
        %1342 = vmatpush2.msra.mxu0 0.0
        %1343 = vmatprep.subr.mxu0 0.0
        %1344 = vmatpush2.msra.mxu0 0.0
        %1345 = vmatprep.subr.mxu0 0.0
        %1346 = vmatpush2.msra.mxu0 0.0
        %1347 = vmatprep.subr.mxu0 0.0
        %1348 = vmatpush2.msra.mxu0 0.0
        %1349 = vmatprep.subr.mxu0 0.0
        %1350 = vmatpush2.msra.mxu0 0.0
        %1351 = vmatprep.subr.mxu0 0.0
        %1352 = vmatpush2.msra.mxu0 0.0
        %1353 = vmatprep.subr.mxu0 0.0
        %1354 = vmatpush2.msra.mxu0 0.0
        %1355 = vmatprep.subr.mxu0 0.0
        %1356 = vmatpush2.msra.mxu0 0.0
        %1357 = vmatprep.subr.mxu0 0.0
        %1358 = vmatpush2.msra.mxu0 0.0
        %1359 = vmatprep.subr.mxu0 0.0
        %1360 = vmatpush2.msra.mxu0 0.0
        %1361 = vmatprep.mubr.f32.mxu0 0.0
        %v1362 = vand.u32 %v1196, 4294901760
        %1363 = vmatmul.mubr.f32.gmra.mxu0 %v1362
        %v1364 = vpop.f32.mrf.mxu0
        %v1365 = vadd.f32 %v1274, %v1364
        %v1366 = vpop.f32.mrf.mxu0
        %1367 = vdwg.mxu0
        %1368 = vmatprep.subr.mxu0 0.0
        %1369 = vmatpush1.msra.mxu0 0.0
        %1370 = vmatprep.subr.mxu0 0.0
        %1371 = vmatpush1.msra.mxu0 0.0
        %1372 = vmatprep.subr.mxu0 0.0
        %1373 = vmatpush1.msra.mxu0 0.0
        %1374 = vmatprep.subr.mxu0 0.0
        %1375 = vmatpush1.msra.mxu0 0.0
        %1376 = vmatprep.subr.mxu0 0.0
        %1377 = vmatpush1.msra.mxu0 0.0
        %1378 = vmatprep.subr.mxu0 0.0
        %1379 = vmatpush1.msra.mxu0 0.0
        %1380 = vmatprep.subr.mxu0 0.0
        %1381 = vmatpush1.msra.mxu0 0.0
        %1382 = vmatprep.subr.mxu0 0.0
        %1383 = vmatpush1.msra.mxu0 0.0
        %1384 = vmatprep.subr.mxu0 0.0
        %1385 = vmatpush1.msra.mxu0 0.0
        %1386 = vmatprep.subr.mxu0 0.0
        %1387 = vmatpush1.msra.mxu0 0.0
        %1388 = vmatprep.subr.mxu0 0.0
        %1389 = vmatpush1.msra.mxu0 0.0
        %1390 = vmatprep.subr.mxu0 0.0
        %1391 = vmatpush1.msra.mxu0 0.0
        %1392 = vmatprep.subr.mxu0 0.0
        %v1393 = vand.u32 %v529, 4294901760
        %v1394 = vsub.f32 %v529, %v1393
        %1395 = vmatpush1.msra.mxu0 %v1394
        %1396 = vmatprep.subr.mxu0 0.0
        %v1397 = vand.u32 %v528, 4294901760
        %v1398 = vsub.f32 %v528, %v1397
        %1399 = vmatpush1.msra.mxu0 %v1398
        %1400 = vmatprep.subr.mxu0 0.0
        %v1401 = vand.u32 %v527, 4294901760
        %v1402 = vsub.f32 %v527, %v1401
        %1403 = vmatpush1.msra.mxu0 %v1402
        %1404 = vmatprep.subr.mxu0 0.0
        %v1405 = vand.u32 %v526, 4294901760
        %v1406 = vsub.f32 %v526, %v1405
        %1407 = vmatpush1.msra.mxu0 %v1406
        %1408 = vmatprep.subr.mxu0 0.0
        %1409 = vmatpush2.msra.mxu0 0.0
        %1410 = vmatprep.subr.mxu0 0.0
        %1411 = vmatpush2.msra.mxu0 0.0
        %1412 = vmatprep.subr.mxu0 0.0
        %1413 = vmatpush2.msra.mxu0 0.0
        %1414 = vmatprep.subr.mxu0 0.0
        %1415 = vmatpush2.msra.mxu0 0.0
        %1416 = vmatprep.subr.mxu0 0.0
        %1417 = vmatpush2.msra.mxu0 0.0
        %1418 = vmatprep.subr.mxu0 0.0
        %1419 = vmatpush2.msra.mxu0 0.0
        %1420 = vmatprep.subr.mxu0 0.0
        %1421 = vmatpush2.msra.mxu0 0.0
        %1422 = vmatprep.subr.mxu0 0.0
        %1423 = vmatpush2.msra.mxu0 0.0
        %1424 = vmatprep.subr.mxu0 0.0
        %1425 = vmatpush2.msra.mxu0 0.0
        %1426 = vmatprep.subr.mxu0 0.0
        %1427 = vmatpush2.msra.mxu0 0.0
        %1428 = vmatprep.subr.mxu0 0.0
        %1429 = vmatpush2.msra.mxu0 0.0
        %1430 = vmatprep.subr.mxu0 0.0
        %1431 = vmatpush2.msra.mxu0 0.0
        %1432 = vmatprep.subr.mxu0 0.0
        %1433 = vmatpush2.msra.mxu0 0.0
        %1434 = vmatprep.subr.mxu0 0.0
        %1435 = vmatpush2.msra.mxu0 0.0
        %1436 = vmatprep.subr.mxu0 0.0
        %1437 = vmatpush2.msra.mxu0 0.0
        %1438 = vmatprep.subr.mxu0 0.0
        %1439 = vmatpush2.msra.mxu0 0.0
        %1440 = vmatprep.mubr.f32.mxu0 0.0
        %v1441 = vand.u32 %v1196, 4294901760
        %v1442 = vsub.f32 %v1196, %v1441
        %1443 = vmatmul.mubr.f32.gmra.mxu0 %v1442
        %v1444 = vpop.f32.mrf.mxu0
        %v1445 = vadd.f32 %v1365, %v1444
        %v1446 = vpop.f32.mrf.mxu0
        %1447 = vdwg.mxu0
        %1448 = vmatprep.subr.mxu0 0.0
        %1449 = vmatpush1.msra.mxu0 0.0
        %1450 = vmatprep.subr.mxu0 0.0
        %1451 = vmatpush1.msra.mxu0 0.0
        %1452 = vmatprep.subr.mxu0 0.0
        %1453 = vmatpush1.msra.mxu0 0.0
        %1454 = vmatprep.subr.mxu0 0.0
        %1455 = vmatpush1.msra.mxu0 0.0
        %1456 = vmatprep.subr.mxu0 0.0
        %1457 = vmatpush1.msra.mxu0 0.0
        %1458 = vmatprep.subr.mxu0 0.0
        %1459 = vmatpush1.msra.mxu0 0.0
        %1460 = vmatprep.subr.mxu0 0.0
        %1461 = vmatpush1.msra.mxu0 0.0
        %1462 = vmatprep.subr.mxu0 0.0
        %1463 = vmatpush1.msra.mxu0 0.0
        %1464 = vmatprep.subr.mxu0 0.0
        %1465 = vmatpush1.msra.mxu0 0.0
        %1466 = vmatprep.subr.mxu0 0.0
        %1467 = vmatpush1.msra.mxu0 0.0
        %1468 = vmatprep.subr.mxu0 0.0
        %1469 = vmatpush1.msra.mxu0 0.0
        %1470 = vmatprep.subr.mxu0 0.0
        %1471 = vmatpush1.msra.mxu0 0.0
        %1472 = vmatprep.subr.mxu0 0.0
        %v1473 = vand.u32 %v529, 4294901760
        %1474 = vmatpush1.msra.mxu0 %v1473
        %1475 = vmatprep.subr.mxu0 0.0
        %v1476 = vand.u32 %v528, 4294901760
        %1477 = vmatpush1.msra.mxu0 %v1476
        %1478 = vmatprep.subr.mxu0 0.0
        %v1479 = vand.u32 %v527, 4294901760
        %1480 = vmatpush1.msra.mxu0 %v1479
        %1481 = vmatprep.subr.mxu0 0.0
        %v1482 = vand.u32 %v526, 4294901760
        %1483 = vmatpush1.msra.mxu0 %v1482
        %1484 = vmatprep.subr.mxu0 0.0
        %1485 = vmatpush2.msra.mxu0 0.0
        %1486 = vmatprep.subr.mxu0 0.0
        %1487 = vmatpush2.msra.mxu0 0.0
        %1488 = vmatprep.subr.mxu0 0.0
        %1489 = vmatpush2.msra.mxu0 0.0
        %1490 = vmatprep.subr.mxu0 0.0
        %1491 = vmatpush2.msra.mxu0 0.0
        %1492 = vmatprep.subr.mxu0 0.0
        %1493 = vmatpush2.msra.mxu0 0.0
        %1494 = vmatprep.subr.mxu0 0.0
        %1495 = vmatpush2.msra.mxu0 0.0
        %1496 = vmatprep.subr.mxu0 0.0
        %1497 = vmatpush2.msra.mxu0 0.0
        %1498 = vmatprep.subr.mxu0 0.0
        %1499 = vmatpush2.msra.mxu0 0.0
        %1500 = vmatprep.subr.mxu0 0.0
        %1501 = vmatpush2.msra.mxu0 0.0
        %1502 = vmatprep.subr.mxu0 0.0
        %1503 = vmatpush2.msra.mxu0 0.0
        %1504 = vmatprep.subr.mxu0 0.0
        %1505 = vmatpush2.msra.mxu0 0.0
        %1506 = vmatprep.subr.mxu0 0.0
        %1507 = vmatpush2.msra.mxu0 0.0
        %1508 = vmatprep.subr.mxu0 0.0
        %1509 = vmatpush2.msra.mxu0 0.0
        %1510 = vmatprep.subr.mxu0 0.0
        %1511 = vmatpush2.msra.mxu0 0.0
        %1512 = vmatprep.subr.mxu0 0.0
        %1513 = vmatpush2.msra.mxu0 0.0
        %1514 = vmatprep.subr.mxu0 0.0
        %1515 = vmatpush2.msra.mxu0 0.0
        %1516 = vmatprep.mubr.f32.mxu0 0.0
        %v1517 = vand.u32 %v1196, 4294901760
        %v1518 = vsub.f32 %v1196, %v1517
        %v1519 = vand.u32 %v1518, 4294901760
        %1520 = vmatmul.mubr.f32.gmra.mxu0 %v1519
        %v1521 = vpop.f32.mrf.mxu0
        %v1522 = vadd.f32 %v1445, %v1521
        %v1523 = vpop.f32.mrf.mxu0
        %1524 = vdwg.mxu0
        %1525 = vmatprep.subr.mxu0 0.0
        %1526 = vmatpush1.msra.mxu0 0.0
        %1527 = vmatprep.subr.mxu0 0.0
        %1528 = vmatpush1.msra.mxu0 0.0
        %1529 = vmatprep.subr.mxu0 0.0
        %1530 = vmatpush1.msra.mxu0 0.0
        %1531 = vmatprep.subr.mxu0 0.0
        %1532 = vmatpush1.msra.mxu0 0.0
        %1533 = vmatprep.subr.mxu0 0.0
        %1534 = vmatpush1.msra.mxu0 0.0
        %1535 = vmatprep.subr.mxu0 0.0
        %1536 = vmatpush1.msra.mxu0 0.0
        %1537 = vmatprep.subr.mxu0 0.0
        %1538 = vmatpush1.msra.mxu0 0.0
        %1539 = vmatprep.subr.mxu0 0.0
        %1540 = vmatpush1.msra.mxu0 0.0
        %1541 = vmatprep.subr.mxu0 0.0
        %1542 = vmatpush1.msra.mxu0 0.0
        %1543 = vmatprep.subr.mxu0 0.0
        %1544 = vmatpush1.msra.mxu0 0.0
        %1545 = vmatprep.subr.mxu0 0.0
        %1546 = vmatpush1.msra.mxu0 0.0
        %1547 = vmatprep.subr.mxu0 0.0
        %1548 = vmatpush1.msra.mxu0 0.0
        %1549 = vmatprep.subr.mxu0 0.0
        %v1550 = vand.u32 %v529, 4294901760
        %v1551 = vsub.f32 %v529, %v1550
        %v1552 = vand.u32 %v1551, 4294901760
        %1553 = vmatpush1.msra.mxu0 %v1552
        %1554 = vmatprep.subr.mxu0 0.0
        %v1555 = vand.u32 %v528, 4294901760
        %v1556 = vsub.f32 %v528, %v1555
        %v1557 = vand.u32 %v1556, 4294901760
        %1558 = vmatpush1.msra.mxu0 %v1557
        %1559 = vmatprep.subr.mxu0 0.0
        %v1560 = vand.u32 %v527, 4294901760
        %v1561 = vsub.f32 %v527, %v1560
        %v1562 = vand.u32 %v1561, 4294901760
        %1563 = vmatpush1.msra.mxu0 %v1562
        %1564 = vmatprep.subr.mxu0 0.0
        %v1565 = vand.u32 %v526, 4294901760
        %v1566 = vsub.f32 %v526, %v1565
        %v1567 = vand.u32 %v1566, 4294901760
        %1568 = vmatpush1.msra.mxu0 %v1567
        %1569 = vmatprep.subr.mxu0 0.0
        %1570 = vmatpush2.msra.mxu0 0.0
        %1571 = vmatprep.subr.mxu0 0.0
        %1572 = vmatpush2.msra.mxu0 0.0
        %1573 = vmatprep.subr.mxu0 0.0
        %1574 = vmatpush2.msra.mxu0 0.0
        %1575 = vmatprep.subr.mxu0 0.0
        %1576 = vmatpush2.msra.mxu0 0.0
        %1577 = vmatprep.subr.mxu0 0.0
        %1578 = vmatpush2.msra.mxu0 0.0
        %1579 = vmatprep.subr.mxu0 0.0
        %1580 = vmatpush2.msra.mxu0 0.0
        %1581 = vmatprep.subr.mxu0 0.0
        %1582 = vmatpush2.msra.mxu0 0.0
        %1583 = vmatprep.subr.mxu0 0.0
        %1584 = vmatpush2.msra.mxu0 0.0
        %1585 = vmatprep.subr.mxu0 0.0
        %1586 = vmatpush2.msra.mxu0 0.0
        %1587 = vmatprep.subr.mxu0 0.0
        %1588 = vmatpush2.msra.mxu0 0.0
        %1589 = vmatprep.subr.mxu0 0.0
        %1590 = vmatpush2.msra.mxu0 0.0
        %1591 = vmatprep.subr.mxu0 0.0
        %1592 = vmatpush2.msra.mxu0 0.0
        %1593 = vmatprep.subr.mxu0 0.0
        %1594 = vmatpush2.msra.mxu0 0.0
        %1595 = vmatprep.subr.mxu0 0.0
        %1596 = vmatpush2.msra.mxu0 0.0
        %1597 = vmatprep.subr.mxu0 0.0
        %1598 = vmatpush2.msra.mxu0 0.0
        %1599 = vmatprep.subr.mxu0 0.0
        %1600 = vmatpush2.msra.mxu0 0.0
        %1601 = vmatprep.mubr.f32.mxu0 0.0
        %v1602 = vand.u32 %v1196, 4294901760
        %1603 = vmatmul.mubr.f32.gmra.mxu0 %v1602
        %v1604 = vpop.f32.mrf.mxu0
        %v1605 = vadd.f32 %v1522, %v1604
        %v1606 = vpop.f32.mrf.mxu0
        %1607 = vdwg.mxu0
        %1608 = vmatprep.subr.mxu0 0.0
        %1609 = vmatpush1.msra.mxu0 0.0
        %1610 = vmatprep.subr.mxu0 0.0
        %1611 = vmatpush1.msra.mxu0 0.0
        %1612 = vmatprep.subr.mxu0 0.0
        %1613 = vmatpush1.msra.mxu0 0.0
        %1614 = vmatprep.subr.mxu0 0.0
        %1615 = vmatpush1.msra.mxu0 0.0
        %1616 = vmatprep.subr.mxu0 0.0
        %1617 = vmatpush1.msra.mxu0 0.0
        %1618 = vmatprep.subr.mxu0 0.0
        %1619 = vmatpush1.msra.mxu0 0.0
        %1620 = vmatprep.subr.mxu0 0.0
        %1621 = vmatpush1.msra.mxu0 0.0
        %1622 = vmatprep.subr.mxu0 0.0
        %1623 = vmatpush1.msra.mxu0 0.0
        %1624 = vmatprep.subr.mxu0 0.0
        %1625 = vmatpush1.msra.mxu0 0.0
        %1626 = vmatprep.subr.mxu0 0.0
        %1627 = vmatpush1.msra.mxu0 0.0
        %1628 = vmatprep.subr.mxu0 0.0
        %1629 = vmatpush1.msra.mxu0 0.0
        %1630 = vmatprep.subr.mxu0 0.0
        %1631 = vmatpush1.msra.mxu0 0.0
        %1632 = vmatprep.subr.mxu0 0.0
        %v1633 = vand.u32 %v529, 4294901760
        %1634 = vmatpush1.msra.mxu0 %v1633
        %1635 = vmatprep.subr.mxu0 0.0
        %v1636 = vand.u32 %v528, 4294901760
        %1637 = vmatpush1.msra.mxu0 %v1636
        %1638 = vmatprep.subr.mxu0 0.0
        %v1639 = vand.u32 %v527, 4294901760
        %1640 = vmatpush1.msra.mxu0 %v1639
        %1641 = vmatprep.subr.mxu0 0.0
        %v1642 = vand.u32 %v526, 4294901760
        %1643 = vmatpush1.msra.mxu0 %v1642
        %1644 = vmatprep.subr.mxu0 0.0
        %1645 = vmatpush2.msra.mxu0 0.0
        %1646 = vmatprep.subr.mxu0 0.0
        %1647 = vmatpush2.msra.mxu0 0.0
        %1648 = vmatprep.subr.mxu0 0.0
        %1649 = vmatpush2.msra.mxu0 0.0
        %1650 = vmatprep.subr.mxu0 0.0
        %1651 = vmatpush2.msra.mxu0 0.0
        %1652 = vmatprep.subr.mxu0 0.0
        %1653 = vmatpush2.msra.mxu0 0.0
        %1654 = vmatprep.subr.mxu0 0.0
        %1655 = vmatpush2.msra.mxu0 0.0
        %1656 = vmatprep.subr.mxu0 0.0
        %1657 = vmatpush2.msra.mxu0 0.0
        %1658 = vmatprep.subr.mxu0 0.0
        %1659 = vmatpush2.msra.mxu0 0.0
        %1660 = vmatprep.subr.mxu0 0.0
        %1661 = vmatpush2.msra.mxu0 0.0
        %1662 = vmatprep.subr.mxu0 0.0
        %1663 = vmatpush2.msra.mxu0 0.0
        %1664 = vmatprep.subr.mxu0 0.0
        %1665 = vmatpush2.msra.mxu0 0.0
        %1666 = vmatprep.subr.mxu0 0.0
        %1667 = vmatpush2.msra.mxu0 0.0
        %1668 = vmatprep.subr.mxu0 0.0
        %1669 = vmatpush2.msra.mxu0 0.0
        %1670 = vmatprep.subr.mxu0 0.0
        %1671 = vmatpush2.msra.mxu0 0.0
        %1672 = vmatprep.subr.mxu0 0.0
        %1673 = vmatpush2.msra.mxu0 0.0
        %1674 = vmatprep.subr.mxu0 0.0
        %1675 = vmatpush2.msra.mxu0 0.0
        %1676 = vmatprep.mubr.f32.mxu0 0.0
        %v1677 = vand.u32 %v1196, 4294901760
        %1678 = vmatmul.mubr.f32.gmra.mxu0 %v1677
        %v1679 = vpop.f32.mrf.mxu0
        %v1680 = vadd.f32 %v1605, %v1679
        %v1681 = vpop.f32.mrf.mxu0
        %1682 = vdwg.mxu0
        %v1683 = vmul.f32 %v1192, 0.00390625
        %v1684 = vmul.f32 %v1680, 0.00390625
        %v1685 = vmul.f32 %v1683, %v1683
        %v1686 = vsub.f32 %v1684, %v1685
        %v1687 = vadd.f32 %v1686, 1e-05
        %v1688 = vrsqrt.pop %v1687
        %v1690 = vsel %vm536, %v1683, 0
        %1692 = vmatprep.subr.mxu0 0.0
        %1693 = vmatpush1.msra.mxu0 0.0
        %1694 = vmatprep.subr.mxu0 0.0
        %1695 = vmatpush1.msra.mxu0 0.0
        %1696 = vmatprep.subr.mxu0 0.0
        %1697 = vmatpush1.msra.mxu0 0.0
        %1698 = vmatprep.subr.mxu0 0.0
        %1699 = vmatpush1.msra.mxu0 0.0
        %1700 = vmatprep.subr.mxu0 0.0
        %1701 = vmatpush1.msra.mxu0 0.0
        %1702 = vmatprep.subr.mxu0 0.0
        %1703 = vmatpush1.msra.mxu0 0.0
        %1704 = vmatprep.subr.mxu0 0.0
        %1705 = vmatpush1.msra.mxu0 0.0
        %1706 = vmatprep.subr.mxu0 0.0
        %1707 = vmatpush1.msra.mxu0 0.0
        %1708 = vmatprep.subr.mxu0 0.0
        %1709 = vmatpush1.msra.mxu0 0.0
        %1710 = vmatprep.subr.mxu0 0.0
        %1711 = vmatpush1.msra.mxu0 0.0
        %1712 = vmatprep.subr.mxu0 0.0
        %1713 = vmatpush1.msra.mxu0 0.0
        %1714 = vmatprep.subr.mxu0 0.0
        %1715 = vmatpush1.msra.mxu0 0.0
        %1716 = vmatprep.subr.mxu0 0.0
        %v1717 = vand.u32 %v533, 4294901760
        %1718 = vmatpush1.msra.mxu0 %v1717
        %1719 = vmatprep.subr.mxu0 0.0
        %v1720 = vand.u32 %v532, 4294901760
        %1721 = vmatpush1.msra.mxu0 %v1720
        %1722 = vmatprep.subr.mxu0 0.0
        %v1723 = vand.u32 %v531, 4294901760
        %1724 = vmatpush1.msra.mxu0 %v1723
        %1725 = vmatprep.subr.mxu0 0.0
        %v1726 = vand.u32 %v530, 4294901760
        %1727 = vmatpush1.msra.mxu0 %v1726
        %1728 = vmatprep.subr.mxu0 0.0
        %1729 = vmatpush2.msra.mxu0 0.0
        %1730 = vmatprep.subr.mxu0 0.0
        %1731 = vmatpush2.msra.mxu0 0.0
        %1732 = vmatprep.subr.mxu0 0.0
        %1733 = vmatpush2.msra.mxu0 0.0
        %1734 = vmatprep.subr.mxu0 0.0
        %1735 = vmatpush2.msra.mxu0 0.0
        %1736 = vmatprep.subr.mxu0 0.0
        %1737 = vmatpush2.msra.mxu0 0.0
        %1738 = vmatprep.subr.mxu0 0.0
        %1739 = vmatpush2.msra.mxu0 0.0
        %1740 = vmatprep.subr.mxu0 0.0
        %1741 = vmatpush2.msra.mxu0 0.0
        %1742 = vmatprep.subr.mxu0 0.0
        %1743 = vmatpush2.msra.mxu0 0.0
        %1744 = vmatprep.subr.mxu0 0.0
        %1745 = vmatpush2.msra.mxu0 0.0
        %1746 = vmatprep.subr.mxu0 0.0
        %1747 = vmatpush2.msra.mxu0 0.0
        %1748 = vmatprep.subr.mxu0 0.0
        %1749 = vmatpush2.msra.mxu0 0.0
        %1750 = vmatprep.subr.mxu0 0.0
        %1751 = vmatpush2.msra.mxu0 0.0
        %1752 = vmatprep.subr.mxu0 0.0
        %1753 = vmatpush2.msra.mxu0 0.0
        %1754 = vmatprep.subr.mxu0 0.0
        %1755 = vmatpush2.msra.mxu0 0.0
        %1756 = vmatprep.subr.mxu0 0.0
        %1757 = vmatpush2.msra.mxu0 0.0
        %1758 = vmatprep.subr.mxu0 0.0
        %1759 = vmatpush2.msra.mxu0 0.0
        %1760 = vmatprep.mubr.f32.mxu0 0.0
        %v1761 = vand.u32 %v1690, 4294901760
        %v1762 = vsub.f32 %v1690, %v1761
        %v1763 = vand.u32 %v1762, 4294901760
        %v1764 = vsub.f32 %v1762, %v1763
        %v1765 = vand.u32 %v1764, 4294901760
        %1766 = vmatmul.mubr.f32.gmra.mxu0 %v1765
        %v1767 = vpop.f32.mrf.mxu0
        %v1768 = vadd.f32 0.0, %v1767
        %v1769 = vpop.f32.mrf.mxu0
        %1770 = vdwg.mxu0
        %1771 = vmatprep.subr.mxu0 0.0
        %1772 = vmatpush1.msra.mxu0 0.0
        %1773 = vmatprep.subr.mxu0 0.0
        %1774 = vmatpush1.msra.mxu0 0.0
        %1775 = vmatprep.subr.mxu0 0.0
        %1776 = vmatpush1.msra.mxu0 0.0
        %1777 = vmatprep.subr.mxu0 0.0
        %1778 = vmatpush1.msra.mxu0 0.0
        %1779 = vmatprep.subr.mxu0 0.0
        %1780 = vmatpush1.msra.mxu0 0.0
        %1781 = vmatprep.subr.mxu0 0.0
        %1782 = vmatpush1.msra.mxu0 0.0
        %1783 = vmatprep.subr.mxu0 0.0
        %1784 = vmatpush1.msra.mxu0 0.0
        %1785 = vmatprep.subr.mxu0 0.0
        %1786 = vmatpush1.msra.mxu0 0.0
        %1787 = vmatprep.subr.mxu0 0.0
        %1788 = vmatpush1.msra.mxu0 0.0
        %1789 = vmatprep.subr.mxu0 0.0
        %1790 = vmatpush1.msra.mxu0 0.0
        %1791 = vmatprep.subr.mxu0 0.0
        %1792 = vmatpush1.msra.mxu0 0.0
        %1793 = vmatprep.subr.mxu0 0.0
        %1794 = vmatpush1.msra.mxu0 0.0
        %1795 = vmatprep.subr.mxu0 0.0
        %v1796 = vand.u32 %v533, 4294901760
        %v1797 = vsub.f32 %v533, %v1796
        %v1798 = vand.u32 %v1797, 4294901760
        %v1799 = vsub.f32 %v1797, %v1798
        %v1800 = vand.u32 %v1799, 4294901760
        %1801 = vmatpush1.msra.mxu0 %v1800
        %1802 = vmatprep.subr.mxu0 0.0
        %v1803 = vand.u32 %v532, 4294901760
        %v1804 = vsub.f32 %v532, %v1803
        %v1805 = vand.u32 %v1804, 4294901760
        %v1806 = vsub.f32 %v1804, %v1805
        %v1807 = vand.u32 %v1806, 4294901760
        %1808 = vmatpush1.msra.mxu0 %v1807
        %1809 = vmatprep.subr.mxu0 0.0
        %v1810 = vand.u32 %v531, 4294901760
        %v1811 = vsub.f32 %v531, %v1810
        %v1812 = vand.u32 %v1811, 4294901760
        %v1813 = vsub.f32 %v1811, %v1812
        %v1814 = vand.u32 %v1813, 4294901760
        %1815 = vmatpush1.msra.mxu0 %v1814
        %1816 = vmatprep.subr.mxu0 0.0
        %v1817 = vand.u32 %v530, 4294901760
        %v1818 = vsub.f32 %v530, %v1817
        %v1819 = vand.u32 %v1818, 4294901760
        %v1820 = vsub.f32 %v1818, %v1819
        %v1821 = vand.u32 %v1820, 4294901760
        %1822 = vmatpush1.msra.mxu0 %v1821
        %1823 = vmatprep.subr.mxu0 0.0
        %1824 = vmatpush2.msra.mxu0 0.0
        %1825 = vmatprep.subr.mxu0 0.0
        %1826 = vmatpush2.msra.mxu0 0.0
        %1827 = vmatprep.subr.mxu0 0.0
        %1828 = vmatpush2.msra.mxu0 0.0
        %1829 = vmatprep.subr.mxu0 0.0
        %1830 = vmatpush2.msra.mxu0 0.0
        %1831 = vmatprep.subr.mxu0 0.0
        %1832 = vmatpush2.msra.mxu0 0.0
        %1833 = vmatprep.subr.mxu0 0.0
        %1834 = vmatpush2.msra.mxu0 0.0
        %1835 = vmatprep.subr.mxu0 0.0
        %1836 = vmatpush2.msra.mxu0 0.0
        %1837 = vmatprep.subr.mxu0 0.0
        %1838 = vmatpush2.msra.mxu0 0.0
        %1839 = vmatprep.subr.mxu0 0.0
        %1840 = vmatpush2.msra.mxu0 0.0
        %1841 = vmatprep.subr.mxu0 0.0
        %1842 = vmatpush2.msra.mxu0 0.0
        %1843 = vmatprep.subr.mxu0 0.0
        %1844 = vmatpush2.msra.mxu0 0.0
        %1845 = vmatprep.subr.mxu0 0.0
        %1846 = vmatpush2.msra.mxu0 0.0
        %1847 = vmatprep.subr.mxu0 0.0
        %1848 = vmatpush2.msra.mxu0 0.0
        %1849 = vmatprep.subr.mxu0 0.0
        %1850 = vmatpush2.msra.mxu0 0.0
        %1851 = vmatprep.subr.mxu0 0.0
        %1852 = vmatpush2.msra.mxu0 0.0
        %1853 = vmatprep.subr.mxu0 0.0
        %1854 = vmatpush2.msra.mxu0 0.0
        %1855 = vmatprep.mubr.f32.mxu0 0.0
        %v1856 = vand.u32 %v1690, 4294901760
        %1857 = vmatmul.mubr.f32.gmra.mxu0 %v1856
        %v1858 = vpop.f32.mrf.mxu0
        %v1859 = vadd.f32 %v1768, %v1858
        %v1860 = vpop.f32.mrf.mxu0
        %1861 = vdwg.mxu0
        %1862 = vmatprep.subr.mxu0 0.0
        %1863 = vmatpush1.msra.mxu0 0.0
        %1864 = vmatprep.subr.mxu0 0.0
        %1865 = vmatpush1.msra.mxu0 0.0
        %1866 = vmatprep.subr.mxu0 0.0
        %1867 = vmatpush1.msra.mxu0 0.0
        %1868 = vmatprep.subr.mxu0 0.0
        %1869 = vmatpush1.msra.mxu0 0.0
        %1870 = vmatprep.subr.mxu0 0.0
        %1871 = vmatpush1.msra.mxu0 0.0
        %1872 = vmatprep.subr.mxu0 0.0
        %1873 = vmatpush1.msra.mxu0 0.0
        %1874 = vmatprep.subr.mxu0 0.0
        %1875 = vmatpush1.msra.mxu0 0.0
        %1876 = vmatprep.subr.mxu0 0.0
        %1877 = vmatpush1.msra.mxu0 0.0
        %1878 = vmatprep.subr.mxu0 0.0
        %1879 = vmatpush1.msra.mxu0 0.0
        %1880 = vmatprep.subr.mxu0 0.0
        %1881 = vmatpush1.msra.mxu0 0.0
        %1882 = vmatprep.subr.mxu0 0.0
        %1883 = vmatpush1.msra.mxu0 0.0
        %1884 = vmatprep.subr.mxu0 0.0
        %1885 = vmatpush1.msra.mxu0 0.0
        %1886 = vmatprep.subr.mxu0 0.0
        %v1887 = vand.u32 %v533, 4294901760
        %v1888 = vsub.f32 %v533, %v1887
        %1889 = vmatpush1.msra.mxu0 %v1888
        %1890 = vmatprep.subr.mxu0 0.0
        %v1891 = vand.u32 %v532, 4294901760
        %v1892 = vsub.f32 %v532, %v1891
        %1893 = vmatpush1.msra.mxu0 %v1892
        %1894 = vmatprep.subr.mxu0 0.0
        %v1895 = vand.u32 %v531, 4294901760
        %v1896 = vsub.f32 %v531, %v1895
        %1897 = vmatpush1.msra.mxu0 %v1896
        %1898 = vmatprep.subr.mxu0 0.0
        %v1899 = vand.u32 %v530, 4294901760
        %v1900 = vsub.f32 %v530, %v1899
        %1901 = vmatpush1.msra.mxu0 %v1900
        %1902 = vmatprep.subr.mxu0 0.0
        %1903 = vmatpush2.msra.mxu0 0.0
        %1904 = vmatprep.subr.mxu0 0.0
        %1905 = vmatpush2.msra.mxu0 0.0
        %1906 = vmatprep.subr.mxu0 0.0
        %1907 = vmatpush2.msra.mxu0 0.0
        %1908 = vmatprep.subr.mxu0 0.0
        %1909 = vmatpush2.msra.mxu0 0.0
        %1910 = vmatprep.subr.mxu0 0.0
        %1911 = vmatpush2.msra.mxu0 0.0
        %1912 = vmatprep.subr.mxu0 0.0
        %1913 = vmatpush2.msra.mxu0 0.0
        %1914 = vmatprep.subr.mxu0 0.0
        %1915 = vmatpush2.msra.mxu0 0.0
        %1916 = vmatprep.subr.mxu0 0.0
        %1917 = vmatpush2.msra.mxu0 0.0
        %1918 = vmatprep.subr.mxu0 0.0
        %1919 = vmatpush2.msra.mxu0 0.0
        %1920 = vmatprep.subr.mxu0 0.0
        %1921 = vmatpush2.msra.mxu0 0.0
        %1922 = vmatprep.subr.mxu0 0.0
        %1923 = vmatpush2.msra.mxu0 0.0
        %1924 = vmatprep.subr.mxu0 0.0
        %1925 = vmatpush2.msra.mxu0 0.0
        %1926 = vmatprep.subr.mxu0 0.0
        %1927 = vmatpush2.msra.mxu0 0.0
        %1928 = vmatprep.subr.mxu0 0.0
        %1929 = vmatpush2.msra.mxu0 0.0
        %1930 = vmatprep.subr.mxu0 0.0
        %1931 = vmatpush2.msra.mxu0 0.0
        %1932 = vmatprep.subr.mxu0 0.0
        %1933 = vmatpush2.msra.mxu0 0.0
        %1934 = vmatprep.mubr.f32.mxu0 0.0
        %v1935 = vand.u32 %v1690, 4294901760
        %v1936 = vsub.f32 %v1690, %v1935
        %1937 = vmatmul.mubr.f32.gmra.mxu0 %v1936
        %v1938 = vpop.f32.mrf.mxu0
        %v1939 = vadd.f32 %v1859, %v1938
        %v1940 = vpop.f32.mrf.mxu0
        %1941 = vdwg.mxu0
        %1942 = vmatprep.subr.mxu0 0.0
        %1943 = vmatpush1.msra.mxu0 0.0
        %1944 = vmatprep.subr.mxu0 0.0
        %1945 = vmatpush1.msra.mxu0 0.0
        %1946 = vmatprep.subr.mxu0 0.0
        %1947 = vmatpush1.msra.mxu0 0.0
        %1948 = vmatprep.subr.mxu0 0.0
        %1949 = vmatpush1.msra.mxu0 0.0
        %1950 = vmatprep.subr.mxu0 0.0
        %1951 = vmatpush1.msra.mxu0 0.0
        %1952 = vmatprep.subr.mxu0 0.0
        %1953 = vmatpush1.msra.mxu0 0.0
        %1954 = vmatprep.subr.mxu0 0.0
        %1955 = vmatpush1.msra.mxu0 0.0
        %1956 = vmatprep.subr.mxu0 0.0
        %1957 = vmatpush1.msra.mxu0 0.0
        %1958 = vmatprep.subr.mxu0 0.0
        %1959 = vmatpush1.msra.mxu0 0.0
        %1960 = vmatprep.subr.mxu0 0.0
        %1961 = vmatpush1.msra.mxu0 0.0
        %1962 = vmatprep.subr.mxu0 0.0
        %1963 = vmatpush1.msra.mxu0 0.0
        %1964 = vmatprep.subr.mxu0 0.0
        %1965 = vmatpush1.msra.mxu0 0.0
        %1966 = vmatprep.subr.mxu0 0.0
        %v1967 = vand.u32 %v533, 4294901760
        %1968 = vmatpush1.msra.mxu0 %v1967
        %1969 = vmatprep.subr.mxu0 0.0
        %v1970 = vand.u32 %v532, 4294901760
        %1971 = vmatpush1.msra.mxu0 %v1970
        %1972 = vmatprep.subr.mxu0 0.0
        %v1973 = vand.u32 %v531, 4294901760
        %1974 = vmatpush1.msra.mxu0 %v1973
        %1975 = vmatprep.subr.mxu0 0.0
        %v1976 = vand.u32 %v530, 4294901760
        %1977 = vmatpush1.msra.mxu0 %v1976
        %1978 = vmatprep.subr.mxu0 0.0
        %1979 = vmatpush2.msra.mxu0 0.0
        %1980 = vmatprep.subr.mxu0 0.0
        %1981 = vmatpush2.msra.mxu0 0.0
        %1982 = vmatprep.subr.mxu0 0.0
        %1983 = vmatpush2.msra.mxu0 0.0
        %1984 = vmatprep.subr.mxu0 0.0
        %1985 = vmatpush2.msra.mxu0 0.0
        %1986 = vmatprep.subr.mxu0 0.0
        %1987 = vmatpush2.msra.mxu0 0.0
        %1988 = vmatprep.subr.mxu0 0.0
        %1989 = vmatpush2.msra.mxu0 0.0
        %1990 = vmatprep.subr.mxu0 0.0
        %1991 = vmatpush2.msra.mxu0 0.0
        %1992 = vmatprep.subr.mxu0 0.0
        %1993 = vmatpush2.msra.mxu0 0.0
        %1994 = vmatprep.subr.mxu0 0.0
        %1995 = vmatpush2.msra.mxu0 0.0
        %1996 = vmatprep.subr.mxu0 0.0
        %1997 = vmatpush2.msra.mxu0 0.0
        %1998 = vmatprep.subr.mxu0 0.0
        %1999 = vmatpush2.msra.mxu0 0.0
        %2000 = vmatprep.subr.mxu0 0.0
        %2001 = vmatpush2.msra.mxu0 0.0
        %2002 = vmatprep.subr.mxu0 0.0
        %2003 = vmatpush2.msra.mxu0 0.0
        %2004 = vmatprep.subr.mxu0 0.0
        %2005 = vmatpush2.msra.mxu0 0.0
        %2006 = vmatprep.subr.mxu0 0.0
        %2007 = vmatpush2.msra.mxu0 0.0
        %2008 = vmatprep.subr.mxu0 0.0
        %2009 = vmatpush2.msra.mxu0 0.0
        %2010 = vmatprep.mubr.f32.mxu0 0.0
        %v2011 = vand.u32 %v1690, 4294901760
        %v2012 = vsub.f32 %v1690, %v2011
        %v2013 = vand.u32 %v2012, 4294901760
        %2014 = vmatmul.mubr.f32.gmra.mxu0 %v2013
        %v2015 = vpop.f32.mrf.mxu0
        %v2016 = vadd.f32 %v1939, %v2015
        %v2017 = vpop.f32.mrf.mxu0
        %2018 = vdwg.mxu0
        %2019 = vmatprep.subr.mxu0 0.0
        %2020 = vmatpush1.msra.mxu0 0.0
        %2021 = vmatprep.subr.mxu0 0.0
        %2022 = vmatpush1.msra.mxu0 0.0
        %2023 = vmatprep.subr.mxu0 0.0
        %2024 = vmatpush1.msra.mxu0 0.0
        %2025 = vmatprep.subr.mxu0 0.0
        %2026 = vmatpush1.msra.mxu0 0.0
        %2027 = vmatprep.subr.mxu0 0.0
        %2028 = vmatpush1.msra.mxu0 0.0
        %2029 = vmatprep.subr.mxu0 0.0
        %2030 = vmatpush1.msra.mxu0 0.0
        %2031 = vmatprep.subr.mxu0 0.0
        %2032 = vmatpush1.msra.mxu0 0.0
        %2033 = vmatprep.subr.mxu0 0.0
        %2034 = vmatpush1.msra.mxu0 0.0
        %2035 = vmatprep.subr.mxu0 0.0
        %2036 = vmatpush1.msra.mxu0 0.0
        %2037 = vmatprep.subr.mxu0 0.0
        %2038 = vmatpush1.msra.mxu0 0.0
        %2039 = vmatprep.subr.mxu0 0.0
        %2040 = vmatpush1.msra.mxu0 0.0
        %2041 = vmatprep.subr.mxu0 0.0
        %2042 = vmatpush1.msra.mxu0 0.0
        %2043 = vmatprep.subr.mxu0 0.0
        %v2044 = vand.u32 %v533, 4294901760
        %v2045 = vsub.f32 %v533, %v2044
        %v2046 = vand.u32 %v2045, 4294901760
        %2047 = vmatpush1.msra.mxu0 %v2046
        %2048 = vmatprep.subr.mxu0 0.0
        %v2049 = vand.u32 %v532, 4294901760
        %v2050 = vsub.f32 %v532, %v2049
        %v2051 = vand.u32 %v2050, 4294901760
        %2052 = vmatpush1.msra.mxu0 %v2051
        %2053 = vmatprep.subr.mxu0 0.0
        %v2054 = vand.u32 %v531, 4294901760
        %v2055 = vsub.f32 %v531, %v2054
        %v2056 = vand.u32 %v2055, 4294901760
        %2057 = vmatpush1.msra.mxu0 %v2056
        %2058 = vmatprep.subr.mxu0 0.0
        %v2059 = vand.u32 %v530, 4294901760
        %v2060 = vsub.f32 %v530, %v2059
        %v2061 = vand.u32 %v2060, 4294901760
        %2062 = vmatpush1.msra.mxu0 %v2061
        %2063 = vmatprep.subr.mxu0 0.0
        %2064 = vmatpush2.msra.mxu0 0.0
        %2065 = vmatprep.subr.mxu0 0.0
        %2066 = vmatpush2.msra.mxu0 0.0
        %2067 = vmatprep.subr.mxu0 0.0
        %2068 = vmatpush2.msra.mxu0 0.0
        %2069 = vmatprep.subr.mxu0 0.0
        %2070 = vmatpush2.msra.mxu0 0.0
        %2071 = vmatprep.subr.mxu0 0.0
        %2072 = vmatpush2.msra.mxu0 0.0
        %2073 = vmatprep.subr.mxu0 0.0
        %2074 = vmatpush2.msra.mxu0 0.0
        %2075 = vmatprep.subr.mxu0 0.0
        %2076 = vmatpush2.msra.mxu0 0.0
        %2077 = vmatprep.subr.mxu0 0.0
        %2078 = vmatpush2.msra.mxu0 0.0
        %2079 = vmatprep.subr.mxu0 0.0
        %2080 = vmatpush2.msra.mxu0 0.0
        %2081 = vmatprep.subr.mxu0 0.0
        %2082 = vmatpush2.msra.mxu0 0.0
        %2083 = vmatprep.subr.mxu0 0.0
        %2084 = vmatpush2.msra.mxu0 0.0
        %2085 = vmatprep.subr.mxu0 0.0
        %2086 = vmatpush2.msra.mxu0 0.0
        %2087 = vmatprep.subr.mxu0 0.0
        %2088 = vmatpush2.msra.mxu0 0.0
        %2089 = vmatprep.subr.mxu0 0.0
        %2090 = vmatpush2.msra.mxu0 0.0
        %2091 = vmatprep.subr.mxu0 0.0
        %2092 = vmatpush2.msra.mxu0 0.0
        %2093 = vmatprep.subr.mxu0 0.0
        %2094 = vmatpush2.msra.mxu0 0.0
        %2095 = vmatprep.mubr.f32.mxu0 0.0
        %v2096 = vand.u32 %v1690, 4294901760
        %2097 = vmatmul.mubr.f32.gmra.mxu0 %v2096
        %v2098 = vpop.f32.mrf.mxu0
        %v2099 = vadd.f32 %v2016, %v2098
        %v2100 = vpop.f32.mrf.mxu0
        %2101 = vdwg.mxu0
        %2102 = vmatprep.subr.mxu0 0.0
        %2103 = vmatpush1.msra.mxu0 0.0
        %2104 = vmatprep.subr.mxu0 0.0
        %2105 = vmatpush1.msra.mxu0 0.0
        %2106 = vmatprep.subr.mxu0 0.0
        %2107 = vmatpush1.msra.mxu0 0.0
        %2108 = vmatprep.subr.mxu0 0.0
        %2109 = vmatpush1.msra.mxu0 0.0
        %2110 = vmatprep.subr.mxu0 0.0
        %2111 = vmatpush1.msra.mxu0 0.0
        %2112 = vmatprep.subr.mxu0 0.0
        %2113 = vmatpush1.msra.mxu0 0.0
        %2114 = vmatprep.subr.mxu0 0.0
        %2115 = vmatpush1.msra.mxu0 0.0
        %2116 = vmatprep.subr.mxu0 0.0
        %2117 = vmatpush1.msra.mxu0 0.0
        %2118 = vmatprep.subr.mxu0 0.0
        %2119 = vmatpush1.msra.mxu0 0.0
        %2120 = vmatprep.subr.mxu0 0.0
        %2121 = vmatpush1.msra.mxu0 0.0
        %2122 = vmatprep.subr.mxu0 0.0
        %2123 = vmatpush1.msra.mxu0 0.0
        %2124 = vmatprep.subr.mxu0 0.0
        %2125 = vmatpush1.msra.mxu0 0.0
        %2126 = vmatprep.subr.mxu0 0.0
        %v2127 = vand.u32 %v533, 4294901760
        %2128 = vmatpush1.msra.mxu0 %v2127
        %2129 = vmatprep.subr.mxu0 0.0
        %v2130 = vand.u32 %v532, 4294901760
        %2131 = vmatpush1.msra.mxu0 %v2130
        %2132 = vmatprep.subr.mxu0 0.0
        %v2133 = vand.u32 %v531, 4294901760
        %2134 = vmatpush1.msra.mxu0 %v2133
        %2135 = vmatprep.subr.mxu0 0.0
        %v2136 = vand.u32 %v530, 4294901760
        %2137 = vmatpush1.msra.mxu0 %v2136
        %2138 = vmatprep.subr.mxu0 0.0
        %2139 = vmatpush2.msra.mxu0 0.0
        %2140 = vmatprep.subr.mxu0 0.0
        %2141 = vmatpush2.msra.mxu0 0.0
        %2142 = vmatprep.subr.mxu0 0.0
        %2143 = vmatpush2.msra.mxu0 0.0
        %2144 = vmatprep.subr.mxu0 0.0
        %2145 = vmatpush2.msra.mxu0 0.0
        %2146 = vmatprep.subr.mxu0 0.0
        %2147 = vmatpush2.msra.mxu0 0.0
        %2148 = vmatprep.subr.mxu0 0.0
        %2149 = vmatpush2.msra.mxu0 0.0
        %2150 = vmatprep.subr.mxu0 0.0
        %2151 = vmatpush2.msra.mxu0 0.0
        %2152 = vmatprep.subr.mxu0 0.0
        %2153 = vmatpush2.msra.mxu0 0.0
        %2154 = vmatprep.subr.mxu0 0.0
        %2155 = vmatpush2.msra.mxu0 0.0
        %2156 = vmatprep.subr.mxu0 0.0
        %2157 = vmatpush2.msra.mxu0 0.0
        %2158 = vmatprep.subr.mxu0 0.0
        %2159 = vmatpush2.msra.mxu0 0.0
        %2160 = vmatprep.subr.mxu0 0.0
        %2161 = vmatpush2.msra.mxu0 0.0
        %2162 = vmatprep.subr.mxu0 0.0
        %2163 = vmatpush2.msra.mxu0 0.0
        %2164 = vmatprep.subr.mxu0 0.0
        %2165 = vmatpush2.msra.mxu0 0.0
        %2166 = vmatprep.subr.mxu0 0.0
        %2167 = vmatpush2.msra.mxu0 0.0
        %2168 = vmatprep.subr.mxu0 0.0
        %2169 = vmatpush2.msra.mxu0 0.0
        %2170 = vmatprep.mubr.f32.mxu0 0.0
        %v2171 = vand.u32 %v1690, 4294901760
        %2172 = vmatmul.mubr.f32.gmra.mxu0 %v2171
        %v2173 = vpop.f32.mrf.mxu0
        %v2174 = vadd.f32 %v2099, %v2173
        %v2175 = vpop.f32.mrf.mxu0
        %2176 = vdwg.mxu0
        %v2178 = vsel %vm536, %v1688, 0
        %2180 = vmatprep.subr.mxu0 0.0
        %2181 = vmatpush1.msra.mxu0 0.0
        %2182 = vmatprep.subr.mxu0 0.0
        %2183 = vmatpush1.msra.mxu0 0.0
        %2184 = vmatprep.subr.mxu0 0.0
        %2185 = vmatpush1.msra.mxu0 0.0
        %2186 = vmatprep.subr.mxu0 0.0
        %2187 = vmatpush1.msra.mxu0 0.0
        %2188 = vmatprep.subr.mxu0 0.0
        %2189 = vmatpush1.msra.mxu0 0.0
        %2190 = vmatprep.subr.mxu0 0.0
        %2191 = vmatpush1.msra.mxu0 0.0
        %2192 = vmatprep.subr.mxu0 0.0
        %2193 = vmatpush1.msra.mxu0 0.0
        %2194 = vmatprep.subr.mxu0 0.0
        %2195 = vmatpush1.msra.mxu0 0.0
        %2196 = vmatprep.subr.mxu0 0.0
        %2197 = vmatpush1.msra.mxu0 0.0
        %2198 = vmatprep.subr.mxu0 0.0
        %2199 = vmatpush1.msra.mxu0 0.0
        %2200 = vmatprep.subr.mxu0 0.0
        %2201 = vmatpush1.msra.mxu0 0.0
        %2202 = vmatprep.subr.mxu0 0.0
        %2203 = vmatpush1.msra.mxu0 0.0
        %2204 = vmatprep.subr.mxu0 0.0
        %v2205 = vand.u32 %v533, 4294901760
        %2206 = vmatpush1.msra.mxu0 %v2205
        %2207 = vmatprep.subr.mxu0 0.0
        %v2208 = vand.u32 %v532, 4294901760
        %2209 = vmatpush1.msra.mxu0 %v2208
        %2210 = vmatprep.subr.mxu0 0.0
        %v2211 = vand.u32 %v531, 4294901760
        %2212 = vmatpush1.msra.mxu0 %v2211
        %2213 = vmatprep.subr.mxu0 0.0
        %v2214 = vand.u32 %v530, 4294901760
        %2215 = vmatpush1.msra.mxu0 %v2214
        %2216 = vmatprep.subr.mxu0 0.0
        %2217 = vmatpush2.msra.mxu0 0.0
        %2218 = vmatprep.subr.mxu0 0.0
        %2219 = vmatpush2.msra.mxu0 0.0
        %2220 = vmatprep.subr.mxu0 0.0
        %2221 = vmatpush2.msra.mxu0 0.0
        %2222 = vmatprep.subr.mxu0 0.0
        %2223 = vmatpush2.msra.mxu0 0.0
        %2224 = vmatprep.subr.mxu0 0.0
        %2225 = vmatpush2.msra.mxu0 0.0
        %2226 = vmatprep.subr.mxu0 0.0
        %2227 = vmatpush2.msra.mxu0 0.0
        %2228 = vmatprep.subr.mxu0 0.0
        %2229 = vmatpush2.msra.mxu0 0.0
        %2230 = vmatprep.subr.mxu0 0.0
        %2231 = vmatpush2.msra.mxu0 0.0
        %2232 = vmatprep.subr.mxu0 0.0
        %2233 = vmatpush2.msra.mxu0 0.0
        %2234 = vmatprep.subr.mxu0 0.0
        %2235 = vmatpush2.msra.mxu0 0.0
        %2236 = vmatprep.subr.mxu0 0.0
        %2237 = vmatpush2.msra.mxu0 0.0
        %2238 = vmatprep.subr.mxu0 0.0
        %2239 = vmatpush2.msra.mxu0 0.0
        %2240 = vmatprep.subr.mxu0 0.0
        %2241 = vmatpush2.msra.mxu0 0.0
        %2242 = vmatprep.subr.mxu0 0.0
        %2243 = vmatpush2.msra.mxu0 0.0
        %2244 = vmatprep.subr.mxu0 0.0
        %2245 = vmatpush2.msra.mxu0 0.0
        %2246 = vmatprep.subr.mxu0 0.0
        %2247 = vmatpush2.msra.mxu0 0.0
        %2248 = vmatprep.mubr.f32.mxu0 0.0
        %v2249 = vand.u32 %v2178, 4294901760
        %v2250 = vsub.f32 %v2178, %v2249
        %v2251 = vand.u32 %v2250, 4294901760
        %v2252 = vsub.f32 %v2250, %v2251
        %v2253 = vand.u32 %v2252, 4294901760
        %2254 = vmatmul.mubr.f32.gmra.mxu0 %v2253
        %v2255 = vpop.f32.mrf.mxu0
        %v2256 = vadd.f32 0.0, %v2255
        %v2257 = vpop.f32.mrf.mxu0
        %2258 = vdwg.mxu0
        %2259 = vmatprep.subr.mxu0 0.0
        %2260 = vmatpush1.msra.mxu0 0.0
        %2261 = vmatprep.subr.mxu0 0.0
        %2262 = vmatpush1.msra.mxu0 0.0
        %2263 = vmatprep.subr.mxu0 0.0
        %2264 = vmatpush1.msra.mxu0 0.0
        %2265 = vmatprep.subr.mxu0 0.0
        %2266 = vmatpush1.msra.mxu0 0.0
        %2267 = vmatprep.subr.mxu0 0.0
        %2268 = vmatpush1.msra.mxu0 0.0
        %2269 = vmatprep.subr.mxu0 0.0
        %2270 = vmatpush1.msra.mxu0 0.0
        %2271 = vmatprep.subr.mxu0 0.0
        %2272 = vmatpush1.msra.mxu0 0.0
        %2273 = vmatprep.subr.mxu0 0.0
        %2274 = vmatpush1.msra.mxu0 0.0
        %2275 = vmatprep.subr.mxu0 0.0
        %2276 = vmatpush1.msra.mxu0 0.0
        %2277 = vmatprep.subr.mxu0 0.0
        %2278 = vmatpush1.msra.mxu0 0.0
        %2279 = vmatprep.subr.mxu0 0.0
        %2280 = vmatpush1.msra.mxu0 0.0
        %2281 = vmatprep.subr.mxu0 0.0
        %2282 = vmatpush1.msra.mxu0 0.0
        %2283 = vmatprep.subr.mxu0 0.0
        %v2284 = vand.u32 %v533, 4294901760
        %v2285 = vsub.f32 %v533, %v2284
        %v2286 = vand.u32 %v2285, 4294901760
        %v2287 = vsub.f32 %v2285, %v2286
        %v2288 = vand.u32 %v2287, 4294901760
        %2289 = vmatpush1.msra.mxu0 %v2288
        %2290 = vmatprep.subr.mxu0 0.0
        %v2291 = vand.u32 %v532, 4294901760
        %v2292 = vsub.f32 %v532, %v2291
        %v2293 = vand.u32 %v2292, 4294901760
        %v2294 = vsub.f32 %v2292, %v2293
        %v2295 = vand.u32 %v2294, 4294901760
        %2296 = vmatpush1.msra.mxu0 %v2295
        %2297 = vmatprep.subr.mxu0 0.0
        %v2298 = vand.u32 %v531, 4294901760
        %v2299 = vsub.f32 %v531, %v2298
        %v2300 = vand.u32 %v2299, 4294901760
        %v2301 = vsub.f32 %v2299, %v2300
        %v2302 = vand.u32 %v2301, 4294901760
        %2303 = vmatpush1.msra.mxu0 %v2302
        %2304 = vmatprep.subr.mxu0 0.0
        %v2305 = vand.u32 %v530, 4294901760
        %v2306 = vsub.f32 %v530, %v2305
        %v2307 = vand.u32 %v2306, 4294901760
        %v2308 = vsub.f32 %v2306, %v2307
        %v2309 = vand.u32 %v2308, 4294901760
        %2310 = vmatpush1.msra.mxu0 %v2309
        %2311 = vmatprep.subr.mxu0 0.0
        %2312 = vmatpush2.msra.mxu0 0.0
        %2313 = vmatprep.subr.mxu0 0.0
        %2314 = vmatpush2.msra.mxu0 0.0
        %2315 = vmatprep.subr.mxu0 0.0
        %2316 = vmatpush2.msra.mxu0 0.0
        %2317 = vmatprep.subr.mxu0 0.0
        %2318 = vmatpush2.msra.mxu0 0.0
        %2319 = vmatprep.subr.mxu0 0.0
        %2320 = vmatpush2.msra.mxu0 0.0
        %2321 = vmatprep.subr.mxu0 0.0
        %2322 = vmatpush2.msra.mxu0 0.0
        %2323 = vmatprep.subr.mxu0 0.0
        %2324 = vmatpush2.msra.mxu0 0.0
        %2325 = vmatprep.subr.mxu0 0.0
        %2326 = vmatpush2.msra.mxu0 0.0
        %2327 = vmatprep.subr.mxu0 0.0
        %2328 = vmatpush2.msra.mxu0 0.0
        %2329 = vmatprep.subr.mxu0 0.0
        %2330 = vmatpush2.msra.mxu0 0.0
        %2331 = vmatprep.subr.mxu0 0.0
        %2332 = vmatpush2.msra.mxu0 0.0
        %2333 = vmatprep.subr.mxu0 0.0
        %2334 = vmatpush2.msra.mxu0 0.0
        %2335 = vmatprep.subr.mxu0 0.0
        %2336 = vmatpush2.msra.mxu0 0.0
        %2337 = vmatprep.subr.mxu0 0.0
        %2338 = vmatpush2.msra.mxu0 0.0
        %2339 = vmatprep.subr.mxu0 0.0
        %2340 = vmatpush2.msra.mxu0 0.0
        %2341 = vmatprep.subr.mxu0 0.0
        %2342 = vmatpush2.msra.mxu0 0.0
        %2343 = vmatprep.mubr.f32.mxu0 0.0
        %v2344 = vand.u32 %v2178, 4294901760
        %2345 = vmatmul.mubr.f32.gmra.mxu0 %v2344
        %v2346 = vpop.f32.mrf.mxu0
        %v2347 = vadd.f32 %v2256, %v2346
        %v2348 = vpop.f32.mrf.mxu0
        %2349 = vdwg.mxu0
        %2350 = vmatprep.subr.mxu0 0.0
        %2351 = vmatpush1.msra.mxu0 0.0
        %2352 = vmatprep.subr.mxu0 0.0
        %2353 = vmatpush1.msra.mxu0 0.0
        %2354 = vmatprep.subr.mxu0 0.0
        %2355 = vmatpush1.msra.mxu0 0.0
        %2356 = vmatprep.subr.mxu0 0.0
        %2357 = vmatpush1.msra.mxu0 0.0
        %2358 = vmatprep.subr.mxu0 0.0
        %2359 = vmatpush1.msra.mxu0 0.0
        %2360 = vmatprep.subr.mxu0 0.0
        %2361 = vmatpush1.msra.mxu0 0.0
        %2362 = vmatprep.subr.mxu0 0.0
        %2363 = vmatpush1.msra.mxu0 0.0
        %2364 = vmatprep.subr.mxu0 0.0
        %2365 = vmatpush1.msra.mxu0 0.0
        %2366 = vmatprep.subr.mxu0 0.0
        %2367 = vmatpush1.msra.mxu0 0.0
        %2368 = vmatprep.subr.mxu0 0.0
        %2369 = vmatpush1.msra.mxu0 0.0
        %2370 = vmatprep.subr.mxu0 0.0
        %2371 = vmatpush1.msra.mxu0 0.0
        %2372 = vmatprep.subr.mxu0 0.0
        %2373 = vmatpush1.msra.mxu0 0.0
        %2374 = vmatprep.subr.mxu0 0.0
        %v2375 = vand.u32 %v533, 4294901760
        %v2376 = vsub.f32 %v533, %v2375
        %2377 = vmatpush1.msra.mxu0 %v2376
        %2378 = vmatprep.subr.mxu0 0.0
        %v2379 = vand.u32 %v532, 4294901760
        %v2380 = vsub.f32 %v532, %v2379
        %2381 = vmatpush1.msra.mxu0 %v2380
        %2382 = vmatprep.subr.mxu0 0.0
        %v2383 = vand.u32 %v531, 4294901760
        %v2384 = vsub.f32 %v531, %v2383
        %2385 = vmatpush1.msra.mxu0 %v2384
        %2386 = vmatprep.subr.mxu0 0.0
        %v2387 = vand.u32 %v530, 4294901760
        %v2388 = vsub.f32 %v530, %v2387
        %2389 = vmatpush1.msra.mxu0 %v2388
        %2390 = vmatprep.subr.mxu0 0.0
        %2391 = vmatpush2.msra.mxu0 0.0
        %2392 = vmatprep.subr.mxu0 0.0
        %2393 = vmatpush2.msra.mxu0 0.0
        %2394 = vmatprep.subr.mxu0 0.0
        %2395 = vmatpush2.msra.mxu0 0.0
        %2396 = vmatprep.subr.mxu0 0.0
        %2397 = vmatpush2.msra.mxu0 0.0
        %2398 = vmatprep.subr.mxu0 0.0
        %2399 = vmatpush2.msra.mxu0 0.0
        %2400 = vmatprep.subr.mxu0 0.0
        %2401 = vmatpush2.msra.mxu0 0.0
        %2402 = vmatprep.subr.mxu0 0.0
        %2403 = vmatpush2.msra.mxu0 0.0
        %2404 = vmatprep.subr.mxu0 0.0
        %2405 = vmatpush2.msra.mxu0 0.0
        %2406 = vmatprep.subr.mxu0 0.0
        %2407 = vmatpush2.msra.mxu0 0.0
        %2408 = vmatprep.subr.mxu0 0.0
        %2409 = vmatpush2.msra.mxu0 0.0
        %2410 = vmatprep.subr.mxu0 0.0
        %2411 = vmatpush2.msra.mxu0 0.0
        %2412 = vmatprep.subr.mxu0 0.0
        %2413 = vmatpush2.msra.mxu0 0.0
        %2414 = vmatprep.subr.mxu0 0.0
        %2415 = vmatpush2.msra.mxu0 0.0
        %2416 = vmatprep.subr.mxu0 0.0
        %2417 = vmatpush2.msra.mxu0 0.0
        %2418 = vmatprep.subr.mxu0 0.0
        %2419 = vmatpush2.msra.mxu0 0.0
        %2420 = vmatprep.subr.mxu0 0.0
        %2421 = vmatpush2.msra.mxu0 0.0
        %2422 = vmatprep.mubr.f32.mxu0 0.0
        %v2423 = vand.u32 %v2178, 4294901760
        %v2424 = vsub.f32 %v2178, %v2423
        %2425 = vmatmul.mubr.f32.gmra.mxu0 %v2424
        %v2426 = vpop.f32.mrf.mxu0
        %v2427 = vadd.f32 %v2347, %v2426
        %v2428 = vpop.f32.mrf.mxu0
        %2429 = vdwg.mxu0
        %2430 = vmatprep.subr.mxu0 0.0
        %2431 = vmatpush1.msra.mxu0 0.0
        %2432 = vmatprep.subr.mxu0 0.0
        %2433 = vmatpush1.msra.mxu0 0.0
        %2434 = vmatprep.subr.mxu0 0.0
        %2435 = vmatpush1.msra.mxu0 0.0
        %2436 = vmatprep.subr.mxu0 0.0
        %2437 = vmatpush1.msra.mxu0 0.0
        %2438 = vmatprep.subr.mxu0 0.0
        %2439 = vmatpush1.msra.mxu0 0.0
        %2440 = vmatprep.subr.mxu0 0.0
        %2441 = vmatpush1.msra.mxu0 0.0
        %2442 = vmatprep.subr.mxu0 0.0
        %2443 = vmatpush1.msra.mxu0 0.0
        %2444 = vmatprep.subr.mxu0 0.0
        %2445 = vmatpush1.msra.mxu0 0.0
        %2446 = vmatprep.subr.mxu0 0.0
        %2447 = vmatpush1.msra.mxu0 0.0
        %2448 = vmatprep.subr.mxu0 0.0
        %2449 = vmatpush1.msra.mxu0 0.0
        %2450 = vmatprep.subr.mxu0 0.0
        %2451 = vmatpush1.msra.mxu0 0.0
        %2452 = vmatprep.subr.mxu0 0.0
        %2453 = vmatpush1.msra.mxu0 0.0
        %2454 = vmatprep.subr.mxu0 0.0
        %v2455 = vand.u32 %v533, 4294901760
        %2456 = vmatpush1.msra.mxu0 %v2455
        %2457 = vmatprep.subr.mxu0 0.0
        %v2458 = vand.u32 %v532, 4294901760
        %2459 = vmatpush1.msra.mxu0 %v2458
        %2460 = vmatprep.subr.mxu0 0.0
        %v2461 = vand.u32 %v531, 4294901760
        %2462 = vmatpush1.msra.mxu0 %v2461
        %2463 = vmatprep.subr.mxu0 0.0
        %v2464 = vand.u32 %v530, 4294901760
        %2465 = vmatpush1.msra.mxu0 %v2464
        %2466 = vmatprep.subr.mxu0 0.0
        %2467 = vmatpush2.msra.mxu0 0.0
        %2468 = vmatprep.subr.mxu0 0.0
        %2469 = vmatpush2.msra.mxu0 0.0
        %2470 = vmatprep.subr.mxu0 0.0
        %2471 = vmatpush2.msra.mxu0 0.0
        %2472 = vmatprep.subr.mxu0 0.0
        %2473 = vmatpush2.msra.mxu0 0.0
        %2474 = vmatprep.subr.mxu0 0.0
        %2475 = vmatpush2.msra.mxu0 0.0
        %2476 = vmatprep.subr.mxu0 0.0
        %2477 = vmatpush2.msra.mxu0 0.0
        %2478 = vmatprep.subr.mxu0 0.0
        %2479 = vmatpush2.msra.mxu0 0.0
        %2480 = vmatprep.subr.mxu0 0.0
        %2481 = vmatpush2.msra.mxu0 0.0
        %2482 = vmatprep.subr.mxu0 0.0
        %2483 = vmatpush2.msra.mxu0 0.0
        %2484 = vmatprep.subr.mxu0 0.0
        %2485 = vmatpush2.msra.mxu0 0.0
        %2486 = vmatprep.subr.mxu0 0.0
        %2487 = vmatpush2.msra.mxu0 0.0
        %2488 = vmatprep.subr.mxu0 0.0
        %2489 = vmatpush2.msra.mxu0 0.0
        %2490 = vmatprep.subr.mxu0 0.0
        %2491 = vmatpush2.msra.mxu0 0.0
        %2492 = vmatprep.subr.mxu0 0.0
        %2493 = vmatpush2.msra.mxu0 0.0
        %2494 = vmatprep.subr.mxu0 0.0
        %2495 = vmatpush2.msra.mxu0 0.0
        %2496 = vmatprep.subr.mxu0 0.0
        %2497 = vmatpush2.msra.mxu0 0.0
        %2498 = vmatprep.mubr.f32.mxu0 0.0
        %v2499 = vand.u32 %v2178, 4294901760
        %v2500 = vsub.f32 %v2178, %v2499
        %v2501 = vand.u32 %v2500, 4294901760
        %2502 = vmatmul.mubr.f32.gmra.mxu0 %v2501
        %v2503 = vpop.f32.mrf.mxu0
        %v2504 = vadd.f32 %v2427, %v2503
        %v2505 = vpop.f32.mrf.mxu0
        %2506 = vdwg.mxu0
        %2507 = vmatprep.subr.mxu0 0.0
        %2508 = vmatpush1.msra.mxu0 0.0
        %2509 = vmatprep.subr.mxu0 0.0
        %2510 = vmatpush1.msra.mxu0 0.0
        %2511 = vmatprep.subr.mxu0 0.0
        %2512 = vmatpush1.msra.mxu0 0.0
        %2513 = vmatprep.subr.mxu0 0.0
        %2514 = vmatpush1.msra.mxu0 0.0
        %2515 = vmatprep.subr.mxu0 0.0
        %2516 = vmatpush1.msra.mxu0 0.0
        %2517 = vmatprep.subr.mxu0 0.0
        %2518 = vmatpush1.msra.mxu0 0.0
        %2519 = vmatprep.subr.mxu0 0.0
        %2520 = vmatpush1.msra.mxu0 0.0
        %2521 = vmatprep.subr.mxu0 0.0
        %2522 = vmatpush1.msra.mxu0 0.0
        %2523 = vmatprep.subr.mxu0 0.0
        %2524 = vmatpush1.msra.mxu0 0.0
        %2525 = vmatprep.subr.mxu0 0.0
        %2526 = vmatpush1.msra.mxu0 0.0
        %2527 = vmatprep.subr.mxu0 0.0
        %2528 = vmatpush1.msra.mxu0 0.0
        %2529 = vmatprep.subr.mxu0 0.0
        %2530 = vmatpush1.msra.mxu0 0.0
        %2531 = vmatprep.subr.mxu0 0.0
        %v2532 = vand.u32 %v533, 4294901760
        %v2533 = vsub.f32 %v533, %v2532
        %v2534 = vand.u32 %v2533, 4294901760
        %2535 = vmatpush1.msra.mxu0 %v2534
        %2536 = vmatprep.subr.mxu0 0.0
        %v2537 = vand.u32 %v532, 4294901760
        %v2538 = vsub.f32 %v532, %v2537
        %v2539 = vand.u32 %v2538, 4294901760
        %2540 = vmatpush1.msra.mxu0 %v2539
        %2541 = vmatprep.subr.mxu0 0.0
        %v2542 = vand.u32 %v531, 4294901760
        %v2543 = vsub.f32 %v531, %v2542
        %v2544 = vand.u32 %v2543, 4294901760
        %2545 = vmatpush1.msra.mxu0 %v2544
        %2546 = vmatprep.subr.mxu0 0.0
        %v2547 = vand.u32 %v530, 4294901760
        %v2548 = vsub.f32 %v530, %v2547
        %v2549 = vand.u32 %v2548, 4294901760
        %2550 = vmatpush1.msra.mxu0 %v2549
        %2551 = vmatprep.subr.mxu0 0.0
        %2552 = vmatpush2.msra.mxu0 0.0
        %2553 = vmatprep.subr.mxu0 0.0
        %2554 = vmatpush2.msra.mxu0 0.0
        %2555 = vmatprep.subr.mxu0 0.0
        %2556 = vmatpush2.msra.mxu0 0.0
        %2557 = vmatprep.subr.mxu0 0.0
        %2558 = vmatpush2.msra.mxu0 0.0
        %2559 = vmatprep.subr.mxu0 0.0
        %2560 = vmatpush2.msra.mxu0 0.0
        %2561 = vmatprep.subr.mxu0 0.0
        %2562 = vmatpush2.msra.mxu0 0.0
        %2563 = vmatprep.subr.mxu0 0.0
        %2564 = vmatpush2.msra.mxu0 0.0
        %2565 = vmatprep.subr.mxu0 0.0
        %2566 = vmatpush2.msra.mxu0 0.0
        %2567 = vmatprep.subr.mxu0 0.0
        %2568 = vmatpush2.msra.mxu0 0.0
        %2569 = vmatprep.subr.mxu0 0.0
        %2570 = vmatpush2.msra.mxu0 0.0
        %2571 = vmatprep.subr.mxu0 0.0
        %2572 = vmatpush2.msra.mxu0 0.0
        %2573 = vmatprep.subr.mxu0 0.0
        %2574 = vmatpush2.msra.mxu0 0.0
        %2575 = vmatprep.subr.mxu0 0.0
        %2576 = vmatpush2.msra.mxu0 0.0
        %2577 = vmatprep.subr.mxu0 0.0
        %2578 = vmatpush2.msra.mxu0 0.0
        %2579 = vmatprep.subr.mxu0 0.0
        %2580 = vmatpush2.msra.mxu0 0.0
        %2581 = vmatprep.subr.mxu0 0.0
        %2582 = vmatpush2.msra.mxu0 0.0
        %2583 = vmatprep.mubr.f32.mxu0 0.0
        %v2584 = vand.u32 %v2178, 4294901760
        %2585 = vmatmul.mubr.f32.gmra.mxu0 %v2584
        %v2586 = vpop.f32.mrf.mxu0
        %v2587 = vadd.f32 %v2504, %v2586
        %v2588 = vpop.f32.mrf.mxu0
        %2589 = vdwg.mxu0
        %2590 = vmatprep.subr.mxu0 0.0
        %2591 = vmatpush1.msra.mxu0 0.0
        %2592 = vmatprep.subr.mxu0 0.0
        %2593 = vmatpush1.msra.mxu0 0.0
        %2594 = vmatprep.subr.mxu0 0.0
        %2595 = vmatpush1.msra.mxu0 0.0
        %2596 = vmatprep.subr.mxu0 0.0
        %2597 = vmatpush1.msra.mxu0 0.0
        %2598 = vmatprep.subr.mxu0 0.0
        %2599 = vmatpush1.msra.mxu0 0.0
        %2600 = vmatprep.subr.mxu0 0.0
        %2601 = vmatpush1.msra.mxu0 0.0
        %2602 = vmatprep.subr.mxu0 0.0
        %2603 = vmatpush1.msra.mxu0 0.0
        %2604 = vmatprep.subr.mxu0 0.0
        %2605 = vmatpush1.msra.mxu0 0.0
        %2606 = vmatprep.subr.mxu0 0.0
        %2607 = vmatpush1.msra.mxu0 0.0
        %2608 = vmatprep.subr.mxu0 0.0
        %2609 = vmatpush1.msra.mxu0 0.0
        %2610 = vmatprep.subr.mxu0 0.0
        %2611 = vmatpush1.msra.mxu0 0.0
        %2612 = vmatprep.subr.mxu0 0.0
        %2613 = vmatpush1.msra.mxu0 0.0
        %2614 = vmatprep.subr.mxu0 0.0
        %v2615 = vand.u32 %v533, 4294901760
        %2616 = vmatpush1.msra.mxu0 %v2615
        %2617 = vmatprep.subr.mxu0 0.0
        %v2618 = vand.u32 %v532, 4294901760
        %2619 = vmatpush1.msra.mxu0 %v2618
        %2620 = vmatprep.subr.mxu0 0.0
        %v2621 = vand.u32 %v531, 4294901760
        %2622 = vmatpush1.msra.mxu0 %v2621
        %2623 = vmatprep.subr.mxu0 0.0
        %v2624 = vand.u32 %v530, 4294901760
        %2625 = vmatpush1.msra.mxu0 %v2624
        %2626 = vmatprep.subr.mxu0 0.0
        %2627 = vmatpush2.msra.mxu0 0.0
        %2628 = vmatprep.subr.mxu0 0.0
        %2629 = vmatpush2.msra.mxu0 0.0
        %2630 = vmatprep.subr.mxu0 0.0
        %2631 = vmatpush2.msra.mxu0 0.0
        %2632 = vmatprep.subr.mxu0 0.0
        %2633 = vmatpush2.msra.mxu0 0.0
        %2634 = vmatprep.subr.mxu0 0.0
        %2635 = vmatpush2.msra.mxu0 0.0
        %2636 = vmatprep.subr.mxu0 0.0
        %2637 = vmatpush2.msra.mxu0 0.0
        %2638 = vmatprep.subr.mxu0 0.0
        %2639 = vmatpush2.msra.mxu0 0.0
        %2640 = vmatprep.subr.mxu0 0.0
        %2641 = vmatpush2.msra.mxu0 0.0
        %2642 = vmatprep.subr.mxu0 0.0
        %2643 = vmatpush2.msra.mxu0 0.0
        %2644 = vmatprep.subr.mxu0 0.0
        %2645 = vmatpush2.msra.mxu0 0.0
        %2646 = vmatprep.subr.mxu0 0.0
        %2647 = vmatpush2.msra.mxu0 0.0
        %2648 = vmatprep.subr.mxu0 0.0
        %2649 = vmatpush2.msra.mxu0 0.0
        %2650 = vmatprep.subr.mxu0 0.0
        %2651 = vmatpush2.msra.mxu0 0.0
        %2652 = vmatprep.subr.mxu0 0.0
        %2653 = vmatpush2.msra.mxu0 0.0
        %2654 = vmatprep.subr.mxu0 0.0
        %2655 = vmatpush2.msra.mxu0 0.0
        %2656 = vmatprep.subr.mxu0 0.0
        %2657 = vmatpush2.msra.mxu0 0.0
        %2658 = vmatprep.mubr.f32.mxu0 0.0
        %v2659 = vand.u32 %v2178, 4294901760
        %2660 = vmatmul.mubr.f32.gmra.mxu0 %v2659
        %v2661 = vpop.f32.mrf.mxu0
        %v2662 = vadd.f32 %v2587, %v2661
        %v2663 = vpop.f32.mrf.mxu0
        %2664 = vdwg.mxu0
        %v2665 = vmul.f32 %v2662, %v534
        %v2666 = vmul.f32 %v2174, %v2665
        %v2667 = vsub.f32 %v535, %v2666
        %v2668 = vlaneseq
        %v2669 = vshrl.u32 %v2668, 7
        %v2670 = vsub.s32 0, %v2669
        %v2671 = vrot.slane %v2665, %v2670
        %v2672 = vmul.f32 %v494, %v2671
        %v2673 = vmul.f32 %v495, %v2671
        %v2674 = vmul.f32 %v496, %v2671
        %v2675 = vmul.f32 %v497, %v2671
        %v2676 = vmul.f32 %v498, %v2671
        %v2677 = vmul.f32 %v499, %v2671
        %v2678 = vmul.f32 %v500, %v2671
        %v2679 = vmul.f32 %v501, %v2671
        %v2680 = vmul.f32 %v502, %v2671
        %v2681 = vmul.f32 %v503, %v2671
        %v2682 = vmul.f32 %v504, %v2671
        %v2683 = vmul.f32 %v505, %v2671
        %v2684 = vmul.f32 %v506, %v2671
        %v2685 = vmul.f32 %v507, %v2671
        %v2686 = vmul.f32 %v508, %v2671
        %v2687 = vmul.f32 %v509, %v2671
        %v2688 = vmul.f32 %v510, %v2671
        %v2689 = vmul.f32 %v511, %v2671
        %v2690 = vmul.f32 %v512, %v2671
        %v2691 = vmul.f32 %v513, %v2671
        %v2692 = vmul.f32 %v514, %v2671
        %v2693 = vmul.f32 %v515, %v2671
        %v2694 = vmul.f32 %v516, %v2671
        %v2695 = vmul.f32 %v517, %v2671
        %v2696 = vmul.f32 %v518, %v2671
        %v2697 = vmul.f32 %v519, %v2671
        %v2698 = vmul.f32 %v520, %v2671
        %v2699 = vmul.f32 %v521, %v2671
        %v2700 = vmul.f32 %v522, %v2671
        %v2701 = vmul.f32 %v523, %v2671
        %v2702 = vmul.f32 %v524, %v2671
        %v2703 = vmul.f32 %v525, %v2671
        %v2705 = vlaneseq
        %v2706 = vshrl.u32 %v2705, 7
        %v2707 = vsub.s32 0, %v2706
        %v2708 = vrot.slane %v2667, %v2707
        %v2710 = vadd.f32 %v2672, %v2708
        %v2711 = vadd.f32 %v2673, %v2708
        %v2712 = vadd.f32 %v2674, %v2708
        %v2713 = vadd.f32 %v2675, %v2708
        %v2714 = vadd.f32 %v2676, %v2708
        %v2715 = vadd.f32 %v2677, %v2708
        %v2716 = vadd.f32 %v2678, %v2708
        %v2717 = vadd.f32 %v2679, %v2708
        %v2718 = vadd.f32 %v2680, %v2708
        %v2719 = vadd.f32 %v2681, %v2708
        %v2720 = vadd.f32 %v2682, %v2708
        %v2721 = vadd.f32 %v2683, %v2708
        %v2722 = vadd.f32 %v2684, %v2708
        %v2723 = vadd.f32 %v2685, %v2708
        %v2724 = vadd.f32 %v2686, %v2708
        %v2725 = vadd.f32 %v2687, %v2708
        %v2726 = vadd.f32 %v2688, %v2708
        %v2727 = vadd.f32 %v2689, %v2708
        %v2728 = vadd.f32 %v2690, %v2708
        %v2729 = vadd.f32 %v2691, %v2708
        %v2730 = vadd.f32 %v2692, %v2708
        %v2731 = vadd.f32 %v2693, %v2708
        %v2732 = vadd.f32 %v2694, %v2708
        %v2733 = vadd.f32 %v2695, %v2708
        %v2734 = vadd.f32 %v2696, %v2708
        %v2735 = vadd.f32 %v2697, %v2708
        %v2736 = vadd.f32 %v2698, %v2708
        %v2737 = vadd.f32 %v2699, %v2708
        %v2738 = vadd.f32 %v2700, %v2708
        %v2739 = vadd.f32 %v2701, %v2708
        %v2740 = vadd.f32 %v2702, %v2708
        %v2741 = vadd.f32 %v2703, %v2708
        %v2742 = vsub.f32 0.0, %v2710
        %v2743 = vsub.f32 0.0, %v2711
        %v2744 = vsub.f32 0.0, %v2712
        %v2745 = vsub.f32 0.0, %v2713
        %v2746 = vsub.f32 0.0, %v2714
        %v2747 = vsub.f32 0.0, %v2715
        %v2748 = vsub.f32 0.0, %v2716
        %v2749 = vsub.f32 0.0, %v2717
        %v2750 = vsub.f32 0.0, %v2718
        %v2751 = vsub.f32 0.0, %v2719
        %v2752 = vsub.f32 0.0, %v2720
        %v2753 = vsub.f32 0.0, %v2721
        %v2754 = vsub.f32 0.0, %v2722
        %v2755 = vsub.f32 0.0, %v2723
        %v2756 = vsub.f32 0.0, %v2724
        %v2757 = vsub.f32 0.0, %v2725
        %v2758 = vsub.f32 0.0, %v2726
        %v2759 = vsub.f32 0.0, %v2727
        %v2760 = vsub.f32 0.0, %v2728
        %v2761 = vsub.f32 0.0, %v2729
        %v2762 = vsub.f32 0.0, %v2730
        %v2763 = vsub.f32 0.0, %v2731
        %v2764 = vsub.f32 0.0, %v2732
        %v2765 = vsub.f32 0.0, %v2733
        %v2766 = vsub.f32 0.0, %v2734
        %v2767 = vsub.f32 0.0, %v2735
        %v2768 = vsub.f32 0.0, %v2736
        %v2769 = vsub.f32 0.0, %v2737
        %v2770 = vsub.f32 0.0, %v2738
        %v2771 = vsub.f32 0.0, %v2739
        %v2772 = vsub.f32 0.0, %v2740
        %v2773 = vsub.f32 0.0, %v2741
        %v2774 = vmul.f32 %v2742, 1.442695
        %v2775 = vpow.pop %v2774
        %v2776 = vmul.f32 %v2743, 1.442695
        %v2777 = vpow.pop %v2776
        %v2778 = vmul.f32 %v2744, 1.442695
        %v2779 = vpow.pop %v2778
        %v2780 = vmul.f32 %v2745, 1.442695
        %v2781 = vpow.pop %v2780
        %v2782 = vmul.f32 %v2746, 1.442695
        %v2783 = vpow.pop %v2782
        %v2784 = vmul.f32 %v2747, 1.442695
        %v2785 = vpow.pop %v2784
        %v2786 = vmul.f32 %v2748, 1.442695
        %v2787 = vpow.pop %v2786
        %v2788 = vmul.f32 %v2749, 1.442695
        %v2789 = vpow.pop %v2788
        %v2790 = vmul.f32 %v2750, 1.442695
        %v2791 = vpow.pop %v2790
        %v2792 = vmul.f32 %v2751, 1.442695
        %v2793 = vpow.pop %v2792
        %v2794 = vmul.f32 %v2752, 1.442695
        %v2795 = vpow.pop %v2794
        %v2796 = vmul.f32 %v2753, 1.442695
        %v2797 = vpow.pop %v2796
        %v2798 = vmul.f32 %v2754, 1.442695
        %v2799 = vpow.pop %v2798
        %v2800 = vmul.f32 %v2755, 1.442695
        %v2801 = vpow.pop %v2800
        %v2802 = vmul.f32 %v2756, 1.442695
        %v2803 = vpow.pop %v2802
        %v2804 = vmul.f32 %v2757, 1.442695
        %v2805 = vpow.pop %v2804
        %v2806 = vmul.f32 %v2758, 1.442695
        %v2807 = vpow.pop %v2806
        %v2808 = vmul.f32 %v2759, 1.442695
        %v2809 = vpow.pop %v2808
        %v2810 = vmul.f32 %v2760, 1.442695
        %v2811 = vpow.pop %v2810
        %v2812 = vmul.f32 %v2761, 1.442695
        %v2813 = vpow.pop %v2812
        %v2814 = vmul.f32 %v2762, 1.442695
        %v2815 = vpow.pop %v2814
        %v2816 = vmul.f32 %v2763, 1.442695
        %v2817 = vpow.pop %v2816
        %v2818 = vmul.f32 %v2764, 1.442695
        %v2819 = vpow.pop %v2818
        %v2820 = vmul.f32 %v2765, 1.442695
        %v2821 = vpow.pop %v2820
        %v2822 = vmul.f32 %v2766, 1.442695
        %v2823 = vpow.pop %v2822
        %v2824 = vmul.f32 %v2767, 1.442695
        %v2825 = vpow.pop %v2824
        %v2826 = vmul.f32 %v2768, 1.442695
        %v2827 = vpow.pop %v2826
        %v2828 = vmul.f32 %v2769, 1.442695
        %v2829 = vpow.pop %v2828
        %v2830 = vmul.f32 %v2770, 1.442695
        %v2831 = vpow.pop %v2830
        %v2832 = vmul.f32 %v2771, 1.442695
        %v2833 = vpow.pop %v2832
        %v2834 = vmul.f32 %v2772, 1.442695
        %v2835 = vpow.pop %v2834
        %v2836 = vmul.f32 %v2773, 1.442695
        %v2837 = vpow.pop %v2836
        %v2838 = vadd.f32 %v2775, 1.0
        %v2839 = vadd.f32 %v2777, 1.0
        %v2840 = vadd.f32 %v2779, 1.0
        %v2841 = vadd.f32 %v2781, 1.0
        %v2842 = vadd.f32 %v2783, 1.0
        %v2843 = vadd.f32 %v2785, 1.0
        %v2844 = vadd.f32 %v2787, 1.0
        %v2845 = vadd.f32 %v2789, 1.0
        %v2846 = vadd.f32 %v2791, 1.0
        %v2847 = vadd.f32 %v2793, 1.0
        %v2848 = vadd.f32 %v2795, 1.0
        %v2849 = vadd.f32 %v2797, 1.0
        %v2850 = vadd.f32 %v2799, 1.0
        %v2851 = vadd.f32 %v2801, 1.0
        %v2852 = vadd.f32 %v2803, 1.0
        %v2853 = vadd.f32 %v2805, 1.0
        %v2854 = vadd.f32 %v2807, 1.0
        %v2855 = vadd.f32 %v2809, 1.0
        %v2856 = vadd.f32 %v2811, 1.0
        %v2857 = vadd.f32 %v2813, 1.0
        %v2858 = vadd.f32 %v2815, 1.0
        %v2859 = vadd.f32 %v2817, 1.0
        %v2860 = vadd.f32 %v2819, 1.0
        %v2861 = vadd.f32 %v2821, 1.0
        %v2862 = vadd.f32 %v2823, 1.0
        %v2863 = vadd.f32 %v2825, 1.0
        %v2864 = vadd.f32 %v2827, 1.0
        %v2865 = vadd.f32 %v2829, 1.0
        %v2866 = vadd.f32 %v2831, 1.0
        %v2867 = vadd.f32 %v2833, 1.0
        %v2868 = vadd.f32 %v2835, 1.0
        %v2869 = vadd.f32 %v2837, 1.0
        %v2870 = vrcp.pop %v2838
        %v2871 = vrcp.pop %v2839
        %v2872 = vrcp.pop %v2840
        %v2873 = vrcp.pop %v2841
        %v2874 = vrcp.pop %v2842
        %v2875 = vrcp.pop %v2843
        %v2876 = vrcp.pop %v2844
        %v2877 = vrcp.pop %v2845
        %v2878 = vrcp.pop %v2846
        %v2879 = vrcp.pop %v2847
        %v2880 = vrcp.pop %v2848
        %v2881 = vrcp.pop %v2849
        %v2882 = vrcp.pop %v2850
        %v2883 = vrcp.pop %v2851
        %v2884 = vrcp.pop %v2852
        %v2885 = vrcp.pop %v2853
        %v2886 = vrcp.pop %v2854
        %v2887 = vrcp.pop %v2855
        %v2888 = vrcp.pop %v2856
        %v2889 = vrcp.pop %v2857
        %v2890 = vrcp.pop %v2858
        %v2891 = vrcp.pop %v2859
        %v2892 = vrcp.pop %v2860
        %v2893 = vrcp.pop %v2861
        %v2894 = vrcp.pop %v2862
        %v2895 = vrcp.pop %v2863
        %v2896 = vrcp.pop %v2864
        %v2897 = vrcp.pop %v2865
        %v2898 = vrcp.pop %v2866
        %v2899 = vrcp.pop %v2867
        %v2900 = vrcp.pop %v2868
        %v2901 = vrcp.pop %v2869
        %v2902 = vmul.f32 %v2710, %v2870
        %v2903 = vmul.f32 %v2711, %v2871
        %v2904 = vmul.f32 %v2712, %v2872
        %v2905 = vmul.f32 %v2713, %v2873
        %v2906 = vmul.f32 %v2714, %v2874
        %v2907 = vmul.f32 %v2715, %v2875
        %v2908 = vmul.f32 %v2716, %v2876
        %v2909 = vmul.f32 %v2717, %v2877
        %v2910 = vmul.f32 %v2718, %v2878
        %v2911 = vmul.f32 %v2719, %v2879
        %v2912 = vmul.f32 %v2720, %v2880
        %v2913 = vmul.f32 %v2721, %v2881
        %v2914 = vmul.f32 %v2722, %v2882
        %v2915 = vmul.f32 %v2723, %v2883
        %v2916 = vmul.f32 %v2724, %v2884
        %v2917 = vmul.f32 %v2725, %v2885
        %v2918 = vmul.f32 %v2726, %v2886
        %v2919 = vmul.f32 %v2727, %v2887
        %v2920 = vmul.f32 %v2728, %v2888
        %v2921 = vmul.f32 %v2729, %v2889
        %v2922 = vmul.f32 %v2730, %v2890
        %v2923 = vmul.f32 %v2731, %v2891
        %v2924 = vmul.f32 %v2732, %v2892
        %v2925 = vmul.f32 %v2733, %v2893
        %v2926 = vmul.f32 %v2734, %v2894
        %v2927 = vmul.f32 %v2735, %v2895
        %v2928 = vmul.f32 %v2736, %v2896
        %v2929 = vmul.f32 %v2737, %v2897
        %v2930 = vmul.f32 %v2738, %v2898
        %v2931 = vmul.f32 %v2739, %v2899
        %v2932 = vmul.f32 %v2740, %v2900
        %v2933 = vmul.f32 %v2741, %v2901
        %v2934 = vld [vmem:[%s6] sm:$0x1]
        %2935 = vst.msk [vmem:[#allocation2 + $0x8] sm:$0xff] %vm536, %v2902
        %2936 = vst.msk [vmem:[#allocation2 + $0x10] sm:$0xff] %vm536, %v2903
        %2937 = vst.msk [vmem:[#allocation2 + $0x28] sm:$0xff] %vm536, %v2904
        %2938 = vst.msk [vmem:[#allocation2 + $0x30] sm:$0xff] %vm536, %v2905
        %2939 = vst.msk [vmem:[#allocation2 + $0x48] sm:$0xff] %vm536, %v2906
        %2940 = vst.msk [vmem:[#allocation2 + $0x50] sm:$0xff] %vm536, %v2907
        %2941 = vst.msk [vmem:[#allocation2 + $0x68] sm:$0xff] %vm536, %v2908
        %2942 = vst.msk [vmem:[#allocation2 + $0x70] sm:$0xff] %vm536, %v2909
        %2943 = vst.msk [vmem:[#allocation2 + $0x88] sm:$0xff] %vm536, %v2910
        %2944 = vst.msk [vmem:[#allocation2 + $0x90] sm:$0xff] %vm536, %v2911
        %2945 = vst.msk [vmem:[#allocation2 + $0xa8] sm:$0xff] %vm536, %v2912
        %2946 = vst.msk [vmem:[#allocation2 + $0xb0] sm:$0xff] %vm536, %v2913
        %2947 = vst.msk [vmem:[#allocation2 + $0xc8] sm:$0xff] %vm536, %v2914
        %2948 = vst.msk [vmem:[#allocation2 + $0xd0] sm:$0xff] %vm536, %v2915
        %2949 = vst.msk [vmem:[#allocation2 + $0xe8] sm:$0xff] %vm536, %v2916
        %2950 = vst.msk [vmem:[#allocation2 + $0xf0] sm:$0xff] %vm536, %v2917
        %2951 = vst.msk [vmem:[#allocation2 + $0x108] sm:$0xff] %vm536, %v2918
        %2952 = vst.msk [vmem:[#allocation2 + $0x110] sm:$0xff] %vm536, %v2919
        %2953 = vst.msk [vmem:[#allocation2 + $0x128] sm:$0xff] %vm536, %v2920
        %2954 = vst.msk [vmem:[#allocation2 + $0x130] sm:$0xff] %vm536, %v2921
        %2955 = vst.msk [vmem:[#allocation2 + $0x148] sm:$0xff] %vm536, %v2922
        %2956 = vst.msk [vmem:[#allocation2 + $0x150] sm:$0xff] %vm536, %v2923
        %2957 = vst.msk [vmem:[#allocation2 + $0x168] sm:$0xff] %vm536, %v2924
        %2958 = vst.msk [vmem:[#allocation2 + $0x170] sm:$0xff] %vm536, %v2925
        %2959 = vst.msk [vmem:[#allocation2 + $0x188] sm:$0xff] %vm536, %v2926
        %2960 = vst.msk [vmem:[#allocation2 + $0x190] sm:$0xff] %vm536, %v2927
        %2961 = vst.msk [vmem:[#allocation2 + $0x1a8] sm:$0xff] %vm536, %v2928
        %2962 = vst.msk [vmem:[#allocation2 + $0x1b0] sm:$0xff] %vm536, %v2929
        %2963 = vst.msk [vmem:[#allocation2 + $0x1c8] sm:$0xff] %vm536, %v2930
        %2964 = vst.msk [vmem:[#allocation2 + $0x1d0] sm:$0xff] %vm536, %v2931
        %2965 = vst.msk [vmem:[#allocation2 + $0x1e8] sm:$0xff] %vm536, %v2932
        %2966 = vst.msk [vmem:[#allocation2 + $0x1f0] sm:$0xff] %vm536, %v2933
        %v2967 = vlaneseq
        %v2968 = vshrl.u32 %v2967, 7
        %v2969 = vadd.s32 %v2968, 8
        %vm2970 = vcmp.ge.s32.totalorder %v2968, 1
        %vm2971 = vcmp.ge.s32.totalorder %v2969, 1
        %v2972 = vld [vmem:[#allocation2 + $0x7] sm:$0xff]
        %v2973 = vld [vmem:[#allocation2 + $0xf] sm:$0xff]
        %v2974 = vld [vmem:[#allocation2 + $0x27] sm:$0xff]
        %v2975 = vld [vmem:[#allocation2 + $0x2f] sm:$0xff]
        %v2976 = vld [vmem:[#allocation2 + $0x47] sm:$0xff]
        %v2977 = vld [vmem:[#allocation2 + $0x4f] sm:$0xff]
        %v2978 = vld [vmem:[#allocation2 + $0x67] sm:$0xff]
        %v2979 = vld [vmem:[#allocation2 + $0x6f] sm:$0xff]
        %v2980 = vld [vmem:[#allocation2 + $0x87] sm:$0xff]
        %v2981 = vld [vmem:[#allocation2 + $0x8f] sm:$0xff]
        %v2982 = vld [vmem:[#allocation2 + $0xa7] sm:$0xff]
        %v2983 = vld [vmem:[#allocation2 + $0xaf] sm:$0xff]
        %v2984 = vld [vmem:[#allocation2 + $0xc7] sm:$0xff]
        %v2985 = vld [vmem:[#allocation2 + $0xcf] sm:$0xff]
        %v2986 = vld [vmem:[#allocation2 + $0xe7] sm:$0xff]
        %v2987 = vld [vmem:[#allocation2 + $0xef] sm:$0xff]
        %v2988 = vld [vmem:[#allocation2 + $0x107] sm:$0xff]
        %v2989 = vld [vmem:[#allocation2 + $0x10f] sm:$0xff]
        %v2990 = vld [vmem:[#allocation2 + $0x127] sm:$0xff]
        %v2991 = vld [vmem:[#allocation2 + $0x12f] sm:$0xff]
        %v2992 = vld [vmem:[#allocation2 + $0x147] sm:$0xff]
        %v2993 = vld [vmem:[#allocation2 + $0x14f] sm:$0xff]
        %v2994 = vld [vmem:[#allocation2 + $0x167] sm:$0xff]
        %v2995 = vld [vmem:[#allocation2 + $0x16f] sm:$0xff]
        %v2996 = vld [vmem:[#allocation2 + $0x187] sm:$0xff]
        %v2997 = vld [vmem:[#allocation2 + $0x18f] sm:$0xff]
        %v2998 = vld [vmem:[#allocation2 + $0x1a7] sm:$0xff]
        %v2999 = vld [vmem:[#allocation2 + $0x1af] sm:$0xff]
        %v3000 = vld [vmem:[#allocation2 + $0x1c7] sm:$0xff]
        %v3001 = vld [vmem:[#allocation2 + $0x1cf] sm:$0xff]
        %v3002 = vld [vmem:[#allocation2 + $0x1e7] sm:$0xff]
        %v3003 = vld [vmem:[#allocation2 + $0x1ef] sm:$0xff]
        %v3004 = vsel %vm2970, %v2972, 0.0
        %v3005 = vsel %vm2971, %v2973, 0.0
        %v3006 = vsel %vm2970, %v2974, 0.0
        %v3007 = vsel %vm2971, %v2975, 0.0
        %v3008 = vsel %vm2970, %v2976, 0.0
        %v3009 = vsel %vm2971, %v2977, 0.0
        %v3010 = vsel %vm2970, %v2978, 0.0
        %v3011 = vsel %vm2971, %v2979, 0.0
        %v3012 = vsel %vm2970, %v2980, 0.0
        %v3013 = vsel %vm2971, %v2981, 0.0
        %v3014 = vsel %vm2970, %v2982, 0.0
        %v3015 = vsel %vm2971, %v2983, 0.0
        %v3016 = vsel %vm2970, %v2984, 0.0
        %v3017 = vsel %vm2971, %v2985, 0.0
        %v3018 = vsel %vm2970, %v2986, 0.0
        %v3019 = vsel %vm2971, %v2987, 0.0
        %v3020 = vsel %vm2970, %v2988, 0.0
        %v3021 = vsel %vm2971, %v2989, 0.0
        %v3022 = vsel %vm2970, %v2990, 0.0
        %v3023 = vsel %vm2971, %v2991, 0.0
        %v3024 = vsel %vm2970, %v2992, 0.0
        %v3025 = vsel %vm2971, %v2993, 0.0
        %v3026 = vsel %vm2970, %v2994, 0.0
        %v3027 = vsel %vm2971, %v2995, 0.0
        %v3028 = vsel %vm2970, %v2996, 0.0
        %v3029 = vsel %vm2971, %v2997, 0.0
        %v3030 = vsel %vm2970, %v2998, 0.0
        %v3031 = vsel %vm2971, %v2999, 0.0
        %v3032 = vsel %vm2970, %v3000, 0.0
        %v3033 = vsel %vm2971, %v3001, 0.0
        %v3034 = vsel %vm2970, %v3002, 0.0
        %v3035 = vsel %vm2971, %v3003, 0.0
        %vm3036 = vcmp.le.s32.totalorder %v2968, 14
        %vm3037 = vcmp.le.s32.totalorder %v2969, 14
        %v3038 = vld [vmem:[#allocation2 + $0x9] sm:$0xff]
        %v3039 = vld [vmem:[#allocation2 + $0x11] sm:$0xff]
        %v3040 = vld [vmem:[#allocation2 + $0x29] sm:$0xff]
        %v3041 = vld [vmem:[#allocation2 + $0x31] sm:$0xff]
        %v3042 = vld [vmem:[#allocation2 + $0x49] sm:$0xff]
        %v3043 = vld [vmem:[#allocation2 + $0x51] sm:$0xff]
        %v3044 = vld [vmem:[#allocation2 + $0x69] sm:$0xff]
        %v3045 = vld [vmem:[#allocation2 + $0x71] sm:$0xff]
        %v3046 = vld [vmem:[#allocation2 + $0x89] sm:$0xff]
        %v3047 = vld [vmem:[#allocation2 + $0x91] sm:$0xff]
        %v3048 = vld [vmem:[#allocation2 + $0xa9] sm:$0xff]
        %v3049 = vld [vmem:[#allocation2 + $0xb1] sm:$0xff]
        %v3050 = vld [vmem:[#allocation2 + $0xc9] sm:$0xff]
        %v3051 = vld [vmem:[#allocation2 + $0xd1] sm:$0xff]
        %v3052 = vld [vmem:[#allocation2 + $0xe9] sm:$0xff]
        %v3053 = vld [vmem:[#allocation2 + $0xf1] sm:$0xff]
        %v3054 = vld [vmem:[#allocation2 + $0x109] sm:$0xff]
        %v3055 = vld [vmem:[#allocation2 + $0x111] sm:$0xff]
        %v3056 = vld [vmem:[#allocation2 + $0x129] sm:$0xff]
        %v3057 = vld [vmem:[#allocation2 + $0x131] sm:$0xff]
        %v3058 = vld [vmem:[#allocation2 + $0x149] sm:$0xff]
        %v3059 = vld [vmem:[#allocation2 + $0x151] sm:$0xff]
        %v3060 = vld [vmem:[#allocation2 + $0x169] sm:$0xff]
        %v3061 = vld [vmem:[#allocation2 + $0x171] sm:$0xff]
        %v3062 = vld [vmem:[#allocation2 + $0x189] sm:$0xff]
        %v3063 = vld [vmem:[#allocation2 + $0x191] sm:$0xff]
        %v3064 = vld [vmem:[#allocation2 + $0x1a9] sm:$0xff]
        %v3065 = vld [vmem:[#allocation2 + $0x1b1] sm:$0xff]
        %v3066 = vld [vmem:[#allocation2 + $0x1c9] sm:$0xff]
        %v3067 = vld [vmem:[#allocation2 + $0x1d1] sm:$0xff]
        %v3068 = vld [vmem:[#allocation2 + $0x1e9] sm:$0xff]
        %v3069 = vld [vmem:[#allocation2 + $0x1f1] sm:$0xff]
        %v3070 = vsel %vm3036, %v3038, 0.0
        %v3071 = vsel %vm3037, %v3039, 0.0
        %v3072 = vsel %vm3036, %v3040, 0.0
        %v3073 = vsel %vm3037, %v3041, 0.0
        %v3074 = vsel %vm3036, %v3042, 0.0
        %v3075 = vsel %vm3037, %v3043, 0.0
        %v3076 = vsel %vm3036, %v3044, 0.0
        %v3077 = vsel %vm3037, %v3045, 0.0
        %v3078 = vsel %vm3036, %v3046, 0.0
        %v3079 = vsel %vm3037, %v3047, 0.0
        %v3080 = vsel %vm3036, %v3048, 0.0
        %v3081 = vsel %vm3037, %v3049, 0.0
        %v3082 = vsel %vm3036, %v3050, 0.0
        %v3083 = vsel %vm3037, %v3051, 0.0
        %v3084 = vsel %vm3036, %v3052, 0.0
        %v3085 = vsel %vm3037, %v3053, 0.0
        %v3086 = vsel %vm3036, %v3054, 0.0
        %v3087 = vsel %vm3037, %v3055, 0.0
        %v3088 = vsel %vm3036, %v3056, 0.0
        %v3089 = vsel %vm3037, %v3057, 0.0
        %v3090 = vsel %vm3036, %v3058, 0.0
        %v3091 = vsel %vm3037, %v3059, 0.0
        %v3092 = vsel %vm3036, %v3060, 0.0
        %v3093 = vsel %vm3037, %v3061, 0.0
        %v3094 = vsel %vm3036, %v3062, 0.0
        %v3095 = vsel %vm3037, %v3063, 0.0
        %v3096 = vsel %vm3036, %v3064, 0.0
        %v3097 = vsel %vm3037, %v3065, 0.0
        %v3098 = vsel %vm3036, %v3066, 0.0
        %v3099 = vsel %vm3037, %v3067, 0.0
        %v3100 = vsel %vm3036, %v3068, 0.0
        %v3101 = vsel %vm3037, %v3069, 0.0
        %3134 = vrot.lane.b32.xlu0 %v2902, 32
        %v3135 = vpop.permute.xlu0 %3134
        %3136 = vrot.lane.b32.xlu0 %v2903, 32
        %v3137 = vpop.permute.xlu0 %3136
        %3138 = vrot.lane.b32.xlu0 %v2904, 32
        %v3139 = vpop.permute.xlu0 %3138
        %3140 = vrot.lane.b32.xlu0 %v2905, 32
        %v3141 = vpop.permute.xlu0 %3140
        %3142 = vrot.lane.b32.xlu0 %v2906, 32
        %v3143 = vpop.permute.xlu0 %3142
        %3144 = vrot.lane.b32.xlu0 %v2907, 32
        %v3145 = vpop.permute.xlu0 %3144
        %3146 = vrot.lane.b32.xlu0 %v2908, 32
        %v3147 = vpop.permute.xlu0 %3146
        %3148 = vrot.lane.b32.xlu0 %v2909, 32
        %v3149 = vpop.permute.xlu0 %3148
        %3150 = vrot.lane.b32.xlu0 %v2910, 32
        %v3151 = vpop.permute.xlu0 %3150
        %3152 = vrot.lane.b32.xlu0 %v2911, 32
        %v3153 = vpop.permute.xlu0 %3152
        %3154 = vrot.lane.b32.xlu0 %v2912, 32
        %v3155 = vpop.permute.xlu0 %3154
        %3156 = vrot.lane.b32.xlu0 %v2913, 32
        %v3157 = vpop.permute.xlu0 %3156
        %3158 = vrot.lane.b32.xlu0 %v2914, 32
        %v3159 = vpop.permute.xlu0 %3158
        %3160 = vrot.lane.b32.xlu0 %v2915, 32
        %v3161 = vpop.permute.xlu0 %3160
        %3162 = vrot.lane.b32.xlu0 %v2916, 32
        %v3163 = vpop.permute.xlu0 %3162
        %3164 = vrot.lane.b32.xlu0 %v2917, 32
        %v3165 = vpop.permute.xlu0 %3164
        %3166 = vrot.lane.b32.xlu0 %v2918, 32
        %v3167 = vpop.permute.xlu0 %3166
        %3168 = vrot.lane.b32.xlu0 %v2919, 32
        %v3169 = vpop.permute.xlu0 %3168
        %3170 = vrot.lane.b32.xlu0 %v2920, 32
        %v3171 = vpop.permute.xlu0 %3170
        %3172 = vrot.lane.b32.xlu0 %v2921, 32
        %v3173 = vpop.permute.xlu0 %3172
        %3174 = vrot.lane.b32.xlu0 %v2922, 32
        %v3175 = vpop.permute.xlu0 %3174
        %3176 = vrot.lane.b32.xlu0 %v2923, 32
        %v3177 = vpop.permute.xlu0 %3176
        %3178 = vrot.lane.b32.xlu0 %v2924, 32
        %v3179 = vpop.permute.xlu0 %3178
        %3180 = vrot.lane.b32.xlu0 %v2925, 32
        %v3181 = vpop.permute.xlu0 %3180
        %3182 = vrot.lane.b32.xlu0 %v2926, 32
        %v3183 = vpop.permute.xlu0 %3182
        %3184 = vrot.lane.b32.xlu0 %v2927, 32
        %v3185 = vpop.permute.xlu0 %3184
        %3186 = vrot.lane.b32.xlu0 %v2928, 32
        %v3187 = vpop.permute.xlu0 %3186
        %3188 = vrot.lane.b32.xlu0 %v2929, 32
        %v3189 = vpop.permute.xlu0 %3188
        %3190 = vrot.lane.b32.xlu0 %v2930, 32
        %v3191 = vpop.permute.xlu0 %3190
        %3192 = vrot.lane.b32.xlu0 %v2931, 32
        %v3193 = vpop.permute.xlu0 %3192
        %3194 = vrot.lane.b32.xlu0 %v2932, 32
        %v3195 = vpop.permute.xlu0 %3194
        %3196 = vrot.lane.b32.xlu0 %v2933, 32
        %v3197 = vpop.permute.xlu0 %3196
        %3262 = vrot.lane.b32.xlu0 %v3070, 64
        %v3263 = vpop.permute.xlu0 %3262
        %3264 = vrot.lane.b32.xlu0 %v3071, 64
        %v3265 = vpop.permute.xlu0 %3264
        %3266 = vrot.lane.b32.xlu0 %v3072, 64
        %v3267 = vpop.permute.xlu0 %3266
        %3268 = vrot.lane.b32.xlu0 %v3073, 64
        %v3269 = vpop.permute.xlu0 %3268
        %3270 = vrot.lane.b32.xlu0 %v3074, 64
        %v3271 = vpop.permute.xlu0 %3270
        %3272 = vrot.lane.b32.xlu0 %v3075, 64
        %v3273 = vpop.permute.xlu0 %3272
        %3274 = vrot.lane.b32.xlu0 %v3076, 64
        %v3275 = vpop.permute.xlu0 %3274
        %3276 = vrot.lane.b32.xlu0 %v3077, 64
        %v3277 = vpop.permute.xlu0 %3276
        %3278 = vrot.lane.b32.xlu0 %v3078, 64
        %v3279 = vpop.permute.xlu0 %3278
        %3280 = vrot.lane.b32.xlu0 %v3079, 64
        %v3281 = vpop.permute.xlu0 %3280
        %3282 = vrot.lane.b32.xlu0 %v3080, 64
        %v3283 = vpop.permute.xlu0 %3282
        %3284 = vrot.lane.b32.xlu0 %v3081, 64
        %v3285 = vpop.permute.xlu0 %3284
        %3286 = vrot.lane.b32.xlu0 %v3082, 64
        %v3287 = vpop.permute.xlu0 %3286
        %3288 = vrot.lane.b32.xlu0 %v3083, 64
        %v3289 = vpop.permute.xlu0 %3288
        %3290 = vrot.lane.b32.xlu0 %v3084, 64
        %v3291 = vpop.permute.xlu0 %3290
        %3292 = vrot.lane.b32.xlu0 %v3085, 64
        %v3293 = vpop.permute.xlu0 %3292
        %3294 = vrot.lane.b32.xlu0 %v3086, 64
        %v3295 = vpop.permute.xlu0 %3294
        %3296 = vrot.lane.b32.xlu0 %v3087, 64
        %v3297 = vpop.permute.xlu0 %3296
        %3298 = vrot.lane.b32.xlu0 %v3088, 64
        %v3299 = vpop.permute.xlu0 %3298
        %3300 = vrot.lane.b32.xlu0 %v3089, 64
        %v3301 = vpop.permute.xlu0 %3300
        %3302 = vrot.lane.b32.xlu0 %v3090, 64
        %v3303 = vpop.permute.xlu0 %3302
        %3304 = vrot.lane.b32.xlu0 %v3091, 64
        %v3305 = vpop.permute.xlu0 %3304
        %3306 = vrot.lane.b32.xlu0 %v3092, 64
        %v3307 = vpop.permute.xlu0 %3306
        %3308 = vrot.lane.b32.xlu0 %v3093, 64
        %v3309 = vpop.permute.xlu0 %3308
        %3310 = vrot.lane.b32.xlu0 %v3094, 64
        %v3311 = vpop.permute.xlu0 %3310
        %3312 = vrot.lane.b32.xlu0 %v3095, 64
        %v3313 = vpop.permute.xlu0 %3312
        %3314 = vrot.lane.b32.xlu0 %v3096, 64
        %v3315 = vpop.permute.xlu0 %3314
        %3316 = vrot.lane.b32.xlu0 %v3097, 64
        %v3317 = vpop.permute.xlu0 %3316
        %3318 = vrot.lane.b32.xlu0 %v3098, 64
        %v3319 = vpop.permute.xlu0 %3318
        %3320 = vrot.lane.b32.xlu0 %v3099, 64
        %v3321 = vpop.permute.xlu0 %3320
        %3322 = vrot.lane.b32.xlu0 %v3100, 64
        %v3323 = vpop.permute.xlu0 %3322
        %3324 = vrot.lane.b32.xlu0 %v3101, 64
        %v3325 = vpop.permute.xlu0 %3324
        %v3358 = vsel %vm536, %v3004, %v3135
        %v3359 = vsel %vm536, %v3005, %v3137
        %v3360 = vsel %vm536, %v3006, %v3139
        %v3361 = vsel %vm536, %v3007, %v3141
        %v3362 = vsel %vm536, %v3008, %v3143
        %v3363 = vsel %vm536, %v3009, %v3145
        %v3364 = vsel %vm536, %v3010, %v3147
        %v3365 = vsel %vm536, %v3011, %v3149
        %v3366 = vsel %vm536, %v3012, %v3151
        %v3367 = vsel %vm536, %v3013, %v3153
        %v3368 = vsel %vm536, %v3014, %v3155
        %v3369 = vsel %vm536, %v3015, %v3157
        %v3370 = vsel %vm536, %v3016, %v3159
        %v3371 = vsel %vm536, %v3017, %v3161
        %v3372 = vsel %vm536, %v3018, %v3163
        %v3373 = vsel %vm536, %v3019, %v3165
        %v3374 = vsel %vm536, %v3020, %v3167
        %v3375 = vsel %vm536, %v3021, %v3169
        %v3376 = vsel %vm536, %v3022, %v3171
        %v3377 = vsel %vm536, %v3023, %v3173
        %v3378 = vsel %vm536, %v3024, %v3175
        %v3379 = vsel %vm536, %v3025, %v3177
        %v3380 = vsel %vm536, %v3026, %v3179
        %v3381 = vsel %vm536, %v3027, %v3181
        %v3382 = vsel %vm536, %v3028, %v3183
        %v3383 = vsel %vm536, %v3029, %v3185
        %v3384 = vsel %vm536, %v3030, %v3187
        %v3385 = vsel %vm536, %v3031, %v3189
        %v3386 = vsel %vm536, %v3032, %v3191
        %v3387 = vsel %vm536, %v3033, %v3193
        %v3388 = vsel %vm536, %v3034, %v3195
        %v3389 = vsel %vm536, %v3035, %v3197
        %vm3390 = vcmask 523264
        %v3391 = vsel %vm3390, %v3358, %v3263
        %v3392 = vsel %vm3390, %v3359, %v3265
        %v3393 = vsel %vm3390, %v3360, %v3267
        %v3394 = vsel %vm3390, %v3361, %v3269
        %v3395 = vsel %vm3390, %v3362, %v3271
        %v3396 = vsel %vm3390, %v3363, %v3273
        %v3397 = vsel %vm3390, %v3364, %v3275
        %v3398 = vsel %vm3390, %v3365, %v3277
        %v3399 = vsel %vm3390, %v3366, %v3279
        %v3400 = vsel %vm3390, %v3367, %v3281
        %v3401 = vsel %vm3390, %v3368, %v3283
        %v3402 = vsel %vm3390, %v3369, %v3285
        %v3403 = vsel %vm3390, %v3370, %v3287
        %v3404 = vsel %vm3390, %v3371, %v3289
        %v3405 = vsel %vm3390, %v3372, %v3291
        %v3406 = vsel %vm3390, %v3373, %v3293
        %v3407 = vsel %vm3390, %v3374, %v3295
        %v3408 = vsel %vm3390, %v3375, %v3297
        %v3409 = vsel %vm3390, %v3376, %v3299
        %v3410 = vsel %vm3390, %v3377, %v3301
        %v3411 = vsel %vm3390, %v3378, %v3303
        %v3412 = vsel %vm3390, %v3379, %v3305
        %v3413 = vsel %vm3390, %v3380, %v3307
        %v3414 = vsel %vm3390, %v3381, %v3309
        %v3415 = vsel %vm3390, %v3382, %v3311
        %v3416 = vsel %vm3390, %v3383, %v3313
        %v3417 = vsel %vm3390, %v3384, %v3315
        %v3418 = vsel %vm3390, %v3385, %v3317
        %v3419 = vsel %vm3390, %v3386, %v3319
        %v3420 = vsel %vm3390, %v3387, %v3321
        %v3421 = vsel %vm3390, %v3388, %v3323
        %v3422 = vsel %vm3390, %v3389, %v3325
        %v3423 = vpack.c.bf16 %v3392, %v3391
        %v3424 = vpack.c.bf16 %v3394, %v3393
        %v3425 = vpack.c.bf16 %v3396, %v3395
        %v3426 = vpack.c.bf16 %v3398, %v3397
        %v3427 = vpack.c.bf16 %v3400, %v3399
        %v3428 = vpack.c.bf16 %v3402, %v3401
        %v3429 = vpack.c.bf16 %v3404, %v3403
        %v3430 = vpack.c.bf16 %v3406, %v3405
        %v3431 = vpack.c.bf16 %v3408, %v3407
        %v3432 = vpack.c.bf16 %v3410, %v3409
        %v3433 = vpack.c.bf16 %v3412, %v3411
        %v3434 = vpack.c.bf16 %v3414, %v3413
        %v3435 = vpack.c.bf16 %v3416, %v3415
        %v3436 = vpack.c.bf16 %v3418, %v3417
        %v3437 = vpack.c.bf16 %v3420, %v3419
        %v3438 = vpack.c.bf16 %v3422, %v3421
        %vm3439 = vcmask 781312
        %3440 = vst.msk [vmem:[#allocation3] sm:$0xf] %vm3439, 0
        %3441 = vst.msk [vmem:[#allocation3 + $0x4] sm:$0xf] %vm3439, 0
        %s3442 = scalar_lea.vmem [#allocation3], 136
        %3443 = vst.msk [vmem:[%s3442] sm:$0xf] %vm3439, 0
        %3444 = vst.msk [vmem:[%s3442 + $0x4] sm:$0xf] %vm3439, 0
        %v3461 = vunpack.c.l.b16 %v3423
        %v3462 = vunpack.c.h.b16 %v3423
        %v3463 = vunpack.c.l.b16 %v3424
        %v3464 = vunpack.c.h.b16 %v3424
        %v3465 = vunpack.c.l.b16 %v3425
        %v3466 = vunpack.c.h.b16 %v3425
        %v3467 = vunpack.c.l.b16 %v3426
        %v3468 = vunpack.c.h.b16 %v3426
        %v3469 = vunpack.c.l.b16 %v3427
        %v3470 = vunpack.c.h.b16 %v3427
        %v3471 = vunpack.c.l.b16 %v3428
        %v3472 = vunpack.c.h.b16 %v3428
        %v3473 = vunpack.c.l.b16 %v3429
        %v3474 = vunpack.c.h.b16 %v3429
        %v3475 = vunpack.c.l.b16 %v3430
        %v3476 = vunpack.c.h.b16 %v3430
        %v3477 = vunpack.c.l.b16 %v3431
        %v3478 = vunpack.c.h.b16 %v3431
        %v3479 = vunpack.c.l.b16 %v3432
        %v3480 = vunpack.c.h.b16 %v3432
        %v3481 = vunpack.c.l.b16 %v3433
        %v3482 = vunpack.c.h.b16 %v3433
        %v3483 = vunpack.c.l.b16 %v3434
        %v3484 = vunpack.c.h.b16 %v3434
        %v3485 = vunpack.c.l.b16 %v3435
        %v3486 = vunpack.c.h.b16 %v3435
        %v3487 = vunpack.c.l.b16 %v3436
        %v3488 = vunpack.c.h.b16 %v3436
        %v3489 = vunpack.c.l.b16 %v3437
        %v3490 = vunpack.c.h.b16 %v3437
        %v3491 = vunpack.c.l.b16 %v3438
        %v3492 = vunpack.c.h.b16 %v3438
        %v3493 = vpack.c.b16 %v3461, %v3461
        %v3494 = vpack.c.b16 %v3462, %v3462
        %v3495 = vpack.c.b16 %v3463, %v3463
        %v3496 = vpack.c.b16 %v3464, %v3464
        %v3497 = vpack.c.b16 %v3465, %v3465
        %v3498 = vpack.c.b16 %v3466, %v3466
        %v3499 = vpack.c.b16 %v3467, %v3467
        %v3500 = vpack.c.b16 %v3468, %v3468
        %v3501 = vpack.c.b16 %v3469, %v3469
        %v3502 = vpack.c.b16 %v3470, %v3470
        %v3503 = vpack.c.b16 %v3471, %v3471
        %v3504 = vpack.c.b16 %v3472, %v3472
        %v3505 = vpack.c.b16 %v3473, %v3473
        %v3506 = vpack.c.b16 %v3474, %v3474
        %v3507 = vpack.c.b16 %v3475, %v3475
        %v3508 = vpack.c.b16 %v3476, %v3476
        %v3509 = vpack.c.b16 %v3477, %v3477
        %v3510 = vpack.c.b16 %v3478, %v3478
        %v3511 = vpack.c.b16 %v3479, %v3479
        %v3512 = vpack.c.b16 %v3480, %v3480
        %v3513 = vpack.c.b16 %v3481, %v3481
        %v3514 = vpack.c.b16 %v3482, %v3482
        %v3515 = vpack.c.b16 %v3483, %v3483
        %v3516 = vpack.c.b16 %v3484, %v3484
        %v3517 = vpack.c.b16 %v3485, %v3485
        %v3518 = vpack.c.b16 %v3486, %v3486
        %v3519 = vpack.c.b16 %v3487, %v3487
        %v3520 = vpack.c.b16 %v3488, %v3488
        %v3521 = vpack.c.b16 %v3489, %v3489
        %v3522 = vpack.c.b16 %v3490, %v3490
        %v3523 = vpack.c.b16 %v3491, %v3491
        %v3524 = vpack.c.b16 %v3492, %v3492
        %s3557 = scalar_lea.vmem [#allocation3], 8
        %3558 = vst.msk [vmem:[%s3557] sm:$0xf] %vm3439, %v3493
        %3559 = vst.msk [vmem:[%s3557 + $0x4] sm:$0xf] %vm3439, %v3494
        %3560 = vst.msk [vmem:[%s3557 + $0x8] sm:$0xf] %vm3439, %v3495
        %3561 = vst.msk [vmem:[%s3557 + $0xc] sm:$0xf] %vm3439, %v3496
        %3562 = vst.msk [vmem:[%s3557 + $0x10] sm:$0xf] %vm3439, %v3497
        %3563 = vst.msk [vmem:[%s3557 + $0x14] sm:$0xf] %vm3439, %v3498
        %3564 = vst.msk [vmem:[%s3557 + $0x18] sm:$0xf] %vm3439, %v3499
        %3565 = vst.msk [vmem:[%s3557 + $0x1c] sm:$0xf] %vm3439, %v3500
        %3566 = vst.msk [vmem:[%s3557 + $0x20] sm:$0xf] %vm3439, %v3501
        %3567 = vst.msk [vmem:[%s3557 + $0x24] sm:$0xf] %vm3439, %v3502
        %3568 = vst.msk [vmem:[%s3557 + $0x28] sm:$0xf] %vm3439, %v3503
        %3569 = vst.msk [vmem:[%s3557 + $0x2c] sm:$0xf] %vm3439, %v3504
        %3570 = vst.msk [vmem:[%s3557 + $0x30] sm:$0xf] %vm3439, %v3505
        %3571 = vst.msk [vmem:[%s3557 + $0x34] sm:$0xf] %vm3439, %v3506
        %3572 = vst.msk [vmem:[%s3557 + $0x38] sm:$0xf] %vm3439, %v3507
        %3573 = vst.msk [vmem:[%s3557 + $0x3c] sm:$0xf] %vm3439, %v3508
        %3574 = vst.msk [vmem:[%s3557 + $0x40] sm:$0xf] %vm3439, %v3509
        %3575 = vst.msk [vmem:[%s3557 + $0x44] sm:$0xf] %vm3439, %v3510
        %3576 = vst.msk [vmem:[%s3557 + $0x48] sm:$0xf] %vm3439, %v3511
        %3577 = vst.msk [vmem:[%s3557 + $0x4c] sm:$0xf] %vm3439, %v3512
        %3578 = vst.msk [vmem:[%s3557 + $0x50] sm:$0xf] %vm3439, %v3513
        %3579 = vst.msk [vmem:[%s3557 + $0x54] sm:$0xf] %vm3439, %v3514
        %3580 = vst.msk [vmem:[%s3557 + $0x58] sm:$0xf] %vm3439, %v3515
        %3581 = vst.msk [vmem:[%s3557 + $0x5c] sm:$0xf] %vm3439, %v3516
        %3582 = vst.msk [vmem:[%s3557 + $0x60] sm:$0xf] %vm3439, %v3517
        %3583 = vst.msk [vmem:[%s3557 + $0x64] sm:$0xf] %vm3439, %v3518
        %3584 = vst.msk [vmem:[%s3557 + $0x68] sm:$0xf] %vm3439, %v3519
        %3585 = vst.msk [vmem:[%s3557 + $0x6c] sm:$0xf] %vm3439, %v3520
        %3586 = vst.msk [vmem:[%s3557 + $0x70] sm:$0xf] %vm3439, %v3521
        %3587 = vst.msk [vmem:[%s3557 + $0x74] sm:$0xf] %vm3439, %v3522
        %3588 = vst.msk [vmem:[%s3557 + $0x78] sm:$0xf] %vm3439, %v3523
        %3589 = vst.msk [vmem:[%s3557 + $0x7c] sm:$0xf] %vm3439, %v3524
        %v3590 = vld [vmem:[#allocation3] sm:$0xf]
        %v3591 = vld [vmem:[#allocation3 + $0x4] sm:$0xf]
        %v3592 = vld [vmem:[#allocation3 + $0x8] sm:$0xf]
        %v3593 = vld [vmem:[#allocation3 + $0xc] sm:$0xf]
        %v3594 = vld [vmem:[#allocation3 + $0x10] sm:$0xf]
        %v3595 = vld [vmem:[#allocation3 + $0x14] sm:$0xf]
        %v3596 = vld [vmem:[#allocation3 + $0x18] sm:$0xf]
        %v3597 = vld [vmem:[#allocation3 + $0x1c] sm:$0xf]
        %v3598 = vld [vmem:[#allocation3 + $0x20] sm:$0xf]
        %v3599 = vld [vmem:[#allocation3 + $0x24] sm:$0xf]
        %v3600 = vld [vmem:[#allocation3 + $0x28] sm:$0xf]
        %v3601 = vld [vmem:[#allocation3 + $0x2c] sm:$0xf]
        %v3602 = vld [vmem:[#allocation3 + $0x30] sm:$0xf]
        %v3603 = vld [vmem:[#allocation3 + $0x34] sm:$0xf]
        %v3604 = vld [vmem:[#allocation3 + $0x38] sm:$0xf]
        %v3605 = vld [vmem:[#allocation3 + $0x3c] sm:$0xf]
        %v3606 = vld [vmem:[#allocation3 + $0x40] sm:$0xf]
        %v3607 = vld [vmem:[#allocation3 + $0x44] sm:$0xf]
        %v3608 = vld [vmem:[#allocation3 + $0x48] sm:$0xf]
        %v3609 = vld [vmem:[#allocation3 + $0x4c] sm:$0xf]
        %v3610 = vld [vmem:[#allocation3 + $0x50] sm:$0xf]
        %v3611 = vld [vmem:[#allocation3 + $0x54] sm:$0xf]
        %v3612 = vld [vmem:[#allocation3 + $0x58] sm:$0xf]
        %v3613 = vld [vmem:[#allocation3 + $0x5c] sm:$0xf]
        %v3614 = vld [vmem:[#allocation3 + $0x60] sm:$0xf]
        %v3615 = vld [vmem:[#allocation3 + $0x64] sm:$0xf]
        %v3616 = vld [vmem:[#allocation3 + $0x68] sm:$0xf]
        %v3617 = vld [vmem:[#allocation3 + $0x6c] sm:$0xf]
        %v3618 = vld [vmem:[#allocation3 + $0x70] sm:$0xf]
        %v3619 = vld [vmem:[#allocation3 + $0x74] sm:$0xf]
        %v3620 = vld [vmem:[#allocation3 + $0x78] sm:$0xf]
        %v3621 = vld [vmem:[#allocation3 + $0x7c] sm:$0xf]
        %v3622 = vld [vmem:[%s5] sm:$0xf]
        %v3623 = vld [vmem:[%s5 + $0x4] sm:$0xf]
        %v3624 = vld [vmem:[%s5 + $0x8] sm:$0xf]
        %v3625 = vld [vmem:[%s5 + $0xc] sm:$0xf]
        %v3626 = vld [vmem:[%s5 + $0x10] sm:$0xf]
        %v3627 = vld [vmem:[%s5 + $0x14] sm:$0xf]
        %v3628 = vld [vmem:[%s5 + $0x18] sm:$0xf]
        %v3629 = vld [vmem:[%s5 + $0x1c] sm:$0xf]
        %v3630 = vld [vmem:[%s5 + $0x20] sm:$0xf]
        %v3631 = vld [vmem:[%s5 + $0x24] sm:$0xf]
        %v3632 = vld [vmem:[%s5 + $0x28] sm:$0xf]
        %v3633 = vld [vmem:[%s5 + $0x2c] sm:$0xf]
        %v3634 = vld [vmem:[%s3557] sm:$0xf]
        %v3635 = vld [vmem:[%s3557 + $0x4] sm:$0xf]
        %v3636 = vld [vmem:[%s3557 + $0x8] sm:$0xf]
        %v3637 = vld [vmem:[%s3557 + $0xc] sm:$0xf]
        %v3638 = vld [vmem:[%s3557 + $0x10] sm:$0xf]
        %v3639 = vld [vmem:[%s3557 + $0x14] sm:$0xf]
        %v3640 = vld [vmem:[%s3557 + $0x18] sm:$0xf]
        %v3641 = vld [vmem:[%s3557 + $0x1c] sm:$0xf]
        %v3642 = vld [vmem:[%s3557 + $0x20] sm:$0xf]
        %v3643 = vld [vmem:[%s3557 + $0x24] sm:$0xf]
        %v3644 = vld [vmem:[%s3557 + $0x28] sm:$0xf]
        %v3645 = vld [vmem:[%s3557 + $0x2c] sm:$0xf]
        %v3646 = vld [vmem:[%s3557 + $0x30] sm:$0xf]
        %v3647 = vld [vmem:[%s3557 + $0x34] sm:$0xf]
        %v3648 = vld [vmem:[%s3557 + $0x38] sm:$0xf]
        %v3649 = vld [vmem:[%s3557 + $0x3c] sm:$0xf]
        %v3650 = vld [vmem:[%s3557 + $0x40] sm:$0xf]
        %v3651 = vld [vmem:[%s3557 + $0x44] sm:$0xf]
        %v3652 = vld [vmem:[%s3557 + $0x48] sm:$0xf]
        %v3653 = vld [vmem:[%s3557 + $0x4c] sm:$0xf]
        %v3654 = vld [vmem:[%s3557 + $0x50] sm:$0xf]
        %v3655 = vld [vmem:[%s3557 + $0x54] sm:$0xf]
        %v3656 = vld [vmem:[%s3557 + $0x58] sm:$0xf]
        %v3657 = vld [vmem:[%s3557 + $0x5c] sm:$0xf]
        %v3658 = vld [vmem:[%s3557 + $0x60] sm:$0xf]
        %v3659 = vld [vmem:[%s3557 + $0x64] sm:$0xf]
        %v3660 = vld [vmem:[%s3557 + $0x68] sm:$0xf]
        %v3661 = vld [vmem:[%s3557 + $0x6c] sm:$0xf]
        %v3662 = vld [vmem:[%s3557 + $0x70] sm:$0xf]
        %v3663 = vld [vmem:[%s3557 + $0x74] sm:$0xf]
        %v3664 = vld [vmem:[%s3557 + $0x78] sm:$0xf]
        %v3665 = vld [vmem:[%s3557 + $0x7c] sm:$0xf]
        %s3666 = scalar_lea.vmem %s5, 48
        %v3667 = vld [vmem:[%s3666] sm:$0xf]
        %v3668 = vld [vmem:[%s3666 + $0x4] sm:$0xf]
        %v3669 = vld [vmem:[%s3666 + $0x8] sm:$0xf]
        %v3670 = vld [vmem:[%s3666 + $0xc] sm:$0xf]
        %v3671 = vld [vmem:[%s3666 + $0x10] sm:$0xf]
        %v3672 = vld [vmem:[%s3666 + $0x14] sm:$0xf]
        %v3673 = vld [vmem:[%s3666 + $0x18] sm:$0xf]
        %v3674 = vld [vmem:[%s3666 + $0x1c] sm:$0xf]
        %v3675 = vld [vmem:[%s3666 + $0x20] sm:$0xf]
        %v3676 = vld [vmem:[%s3666 + $0x24] sm:$0xf]
        %v3677 = vld [vmem:[%s3666 + $0x28] sm:$0xf]
        %v3678 = vld [vmem:[%s3666 + $0x2c] sm:$0xf]
        %v3711 = vunpack.c.l.b16 %v3634
        %v3712 = vunpack.c.l.b16 %v3635
        %v3713 = vunpack.c.l.b16 %v3636
        %v3714 = vunpack.c.l.b16 %v3637
        %v3715 = vunpack.c.l.b16 %v3638
        %v3716 = vunpack.c.l.b16 %v3639
        %v3717 = vunpack.c.l.b16 %v3640
        %v3718 = vunpack.c.l.b16 %v3641
        %v3719 = vunpack.c.l.b16 %v3642
        %v3720 = vunpack.c.l.b16 %v3643
        %v3721 = vunpack.c.l.b16 %v3644
        %v3722 = vunpack.c.l.b16 %v3645
        %v3723 = vunpack.c.l.b16 %v3646
        %v3724 = vunpack.c.l.b16 %v3647
        %v3725 = vunpack.c.l.b16 %v3648
        %v3726 = vunpack.c.l.b16 %v3649
        %v3727 = vunpack.c.l.b16 %v3650
        %v3728 = vunpack.c.l.b16 %v3651
        %v3729 = vunpack.c.l.b16 %v3652
        %v3730 = vunpack.c.l.b16 %v3653
        %v3731 = vunpack.c.l.b16 %v3654
        %v3732 = vunpack.c.l.b16 %v3655
        %v3733 = vunpack.c.l.b16 %v3656
        %v3734 = vunpack.c.l.b16 %v3657
        %v3735 = vunpack.c.l.b16 %v3658
        %v3736 = vunpack.c.l.b16 %v3659
        %v3737 = vunpack.c.l.b16 %v3660
        %v3738 = vunpack.c.l.b16 %v3661
        %v3739 = vunpack.c.l.b16 %v3662
        %v3740 = vunpack.c.l.b16 %v3663
        %v3741 = vunpack.c.l.b16 %v3664
        %v3742 = vunpack.c.l.b16 %v3665
        %v3743 = vpack.c.b16 %v3712, %v3711
        %v3744 = vpack.c.b16 %v3714, %v3713
        %v3745 = vpack.c.b16 %v3716, %v3715
        %v3746 = vpack.c.b16 %v3718, %v3717
        %v3747 = vpack.c.b16 %v3720, %v3719
        %v3748 = vpack.c.b16 %v3722, %v3721
        %v3749 = vpack.c.b16 %v3724, %v3723
        %v3750 = vpack.c.b16 %v3726, %v3725
        %v3751 = vpack.c.b16 %v3728, %v3727
        %v3752 = vpack.c.b16 %v3730, %v3729
        %v3753 = vpack.c.b16 %v3732, %v3731
        %v3754 = vpack.c.b16 %v3734, %v3733
        %v3755 = vpack.c.b16 %v3736, %v3735
        %v3756 = vpack.c.b16 %v3738, %v3737
        %v3757 = vpack.c.b16 %v3740, %v3739
        %v3758 = vpack.c.b16 %v3742, %v3741
        %v3771 = vunpack.c.l.b16 %v3667
        %v3772 = vunpack.c.l.b16 %v3668
        %v3773 = vunpack.c.l.b16 %v3669
        %v3774 = vunpack.c.l.b16 %v3670
        %v3775 = vunpack.c.l.b16 %v3671
        %v3776 = vunpack.c.l.b16 %v3672
        %v3777 = vunpack.c.l.b16 %v3673
        %v3778 = vunpack.c.l.b16 %v3674
        %v3779 = vunpack.c.l.b16 %v3675
        %v3780 = vunpack.c.l.b16 %v3676
        %v3781 = vunpack.c.l.b16 %v3677
        %v3782 = vunpack.c.l.b16 %v3678
        %v3783 = vpack.c.b16 %v3772, %v3771
        %v3784 = vpack.c.b16 %v3774, %v3773
        %v3785 = vpack.c.b16 %v3776, %v3775
        %v3786 = vpack.c.b16 %v3778, %v3777
        %v3787 = vpack.c.b16 %v3780, %v3779
        %v3788 = vpack.c.b16 %v3782, %v3781
        %vm3795 = vcmask 785408
        %v3797 = vsel %vm3795, %v3743, 0
        %v3800 = vsel %vm3795, %v3744, 0
        %v3803 = vsel %vm3795, %v3745, 0
        %v3806 = vsel %vm3795, %v3746, 0
        %v3809 = vsel %vm3795, %v3747, 0
        %v3812 = vsel %vm3795, %v3748, 0
        %v3815 = vsel %vm3795, %v3749, 0
        %v3818 = vsel %vm3795, %v3750, 0
        %v3821 = vsel %vm3795, %v3751, 0
        %v3824 = vsel %vm3795, %v3752, 0
        %v3827 = vsel %vm3795, %v3753, 0
        %v3830 = vsel %vm3795, %v3754, 0
        %v3833 = vsel %vm3795, %v3755, 0
        %v3836 = vsel %vm3795, %v3756, 0
        %v3839 = vsel %vm3795, %v3757, 0
        %v3842 = vsel %vm3795, %v3758, 0
        %3844 = vmatprep.subr.bf16.mxu0 0
        %3845 = vmatpush1.bf16.msra.mxu0 0
        %3846 = vmatprep.subr.bf16.mxu0 0
        %3847 = vmatpush1.bf16.msra.mxu0 0
        %3848 = vmatprep.subr.bf16.mxu0 0
        %3849 = vmatpush1.bf16.msra.mxu0 %v3788
        %3850 = vmatprep.subr.bf16.mxu0 0
        %3851 = vmatpush1.bf16.msra.mxu0 %v3787
        %3852 = vmatprep.subr.bf16.mxu0 0
        %3853 = vmatpush1.bf16.msra.mxu0 %v3786
        %3854 = vmatprep.subr.bf16.mxu0 0
        %3855 = vmatpush1.bf16.msra.mxu0 %v3785
        %3856 = vmatprep.subr.bf16.mxu0 0
        %3857 = vmatpush1.bf16.msra.mxu0 %v3784
        %3858 = vmatprep.subr.bf16.mxu0 0
        %3859 = vmatpush1.bf16.msra.mxu0 %v3783
        %3860 = vmatprep.subr.bf16.mxu0 0
        %3861 = vmatpush2.bf16.msra.mxu0 0
        %3862 = vmatprep.subr.bf16.mxu0 0
        %3863 = vmatpush2.bf16.msra.mxu0 0
        %3864 = vmatprep.subr.bf16.mxu0 0
        %3865 = vmatpush2.bf16.msra.mxu0 0
        %3866 = vmatprep.subr.bf16.mxu0 0
        %3867 = vmatpush2.bf16.msra.mxu0 0
        %3868 = vmatprep.subr.bf16.mxu0 0
        %3869 = vmatpush2.bf16.msra.mxu0 0
        %3870 = vmatprep.subr.bf16.mxu0 0
        %3871 = vmatpush2.bf16.msra.mxu0 0
        %3872 = vmatprep.subr.bf16.mxu0 0
        %3873 = vmatpush2.bf16.msra.mxu0 0
        %3874 = vmatprep.subr.bf16.mxu0 0
        %3875 = vmatpush2.bf16.msra.mxu0 0
        %3876 = vmatprep.mubr.bf16.mxu0 0
        %3877 = vmatmul.mubr.bf16.gmra.mxu0 %v3797
        %v3878 = vpop.f32.mrf.mxu0
        %v3879 = vadd.f32 0.0, %v3878
        %v3880 = vpop.f32.mrf.mxu0
        %v3881 = vpop.f32.mrf.mxu0
        %v3882 = vadd.f32 0.0, %v3881
        %v3883 = vpop.f32.mrf.mxu0
        %3884 = vmatprep.mubr.bf16.mxu0 0
        %3885 = vmatmul.mubr.bf16.gmra.mxu0 %v3800
        %v3886 = vpop.f32.mrf.mxu0
        %v3887 = vadd.f32 0.0, %v3886
        %v3888 = vpop.f32.mrf.mxu0
        %v3889 = vpop.f32.mrf.mxu0
        %v3890 = vadd.f32 0.0, %v3889
        %v3891 = vpop.f32.mrf.mxu0
        %3892 = vmatprep.mubr.bf16.mxu0 0
        %3893 = vmatmul.mubr.bf16.gmra.mxu0 %v3803
        %v3894 = vpop.f32.mrf.mxu0
        %v3895 = vadd.f32 0.0, %v3894
        %v3896 = vpop.f32.mrf.mxu0
        %v3897 = vpop.f32.mrf.mxu0
        %v3898 = vadd.f32 0.0, %v3897
        %v3899 = vpop.f32.mrf.mxu0
        %3900 = vmatprep.mubr.bf16.mxu0 0
        %3901 = vmatmul.mubr.bf16.gmra.mxu0 %v3806
        %v3902 = vpop.f32.mrf.mxu0
        %v3903 = vadd.f32 0.0, %v3902
        %v3904 = vpop.f32.mrf.mxu0
        %v3905 = vpop.f32.mrf.mxu0
        %v3906 = vadd.f32 0.0, %v3905
        %v3907 = vpop.f32.mrf.mxu0
        %3908 = vmatprep.mubr.bf16.mxu0 0
        %3909 = vmatmul.mubr.bf16.gmra.mxu0 %v3809
        %v3910 = vpop.f32.mrf.mxu0
        %v3911 = vadd.f32 0.0, %v3910
        %v3912 = vpop.f32.mrf.mxu0
        %v3913 = vpop.f32.mrf.mxu0
        %v3914 = vadd.f32 0.0, %v3913
        %v3915 = vpop.f32.mrf.mxu0
        %3916 = vmatprep.mubr.bf16.mxu0 0
        %3917 = vmatmul.mubr.bf16.gmra.mxu0 %v3812
        %v3918 = vpop.f32.mrf.mxu0
        %v3919 = vadd.f32 0.0, %v3918
        %v3920 = vpop.f32.mrf.mxu0
        %v3921 = vpop.f32.mrf.mxu0
        %v3922 = vadd.f32 0.0, %v3921
        %v3923 = vpop.f32.mrf.mxu0
        %3924 = vmatprep.mubr.bf16.mxu0 0
        %3925 = vmatmul.mubr.bf16.gmra.mxu0 %v3815
        %v3926 = vpop.f32.mrf.mxu0
        %v3927 = vadd.f32 0.0, %v3926
        %v3928 = vpop.f32.mrf.mxu0
        %v3929 = vpop.f32.mrf.mxu0
        %v3930 = vadd.f32 0.0, %v3929
        %v3931 = vpop.f32.mrf.mxu0
        %3932 = vmatprep.mubr.bf16.mxu0 0
        %3933 = vmatmul.mubr.bf16.gmra.mxu0 %v3818
        %v3934 = vpop.f32.mrf.mxu0
        %v3935 = vadd.f32 0.0, %v3934
        %v3936 = vpop.f32.mrf.mxu0
        %v3937 = vpop.f32.mrf.mxu0
        %v3938 = vadd.f32 0.0, %v3937
        %v3939 = vpop.f32.mrf.mxu0
        %3940 = vmatprep.mubr.bf16.mxu0 0
        %3941 = vmatmul.mubr.bf16.gmra.mxu0 %v3821
        %v3942 = vpop.f32.mrf.mxu0
        %v3943 = vadd.f32 0.0, %v3942
        %v3944 = vpop.f32.mrf.mxu0
        %v3945 = vpop.f32.mrf.mxu0
        %v3946 = vadd.f32 0.0, %v3945
        %v3947 = vpop.f32.mrf.mxu0
        %3948 = vmatprep.mubr.bf16.mxu0 0
        %3949 = vmatmul.mubr.bf16.gmra.mxu0 %v3824
        %v3950 = vpop.f32.mrf.mxu0
        %v3951 = vadd.f32 0.0, %v3950
        %v3952 = vpop.f32.mrf.mxu0
        %v3953 = vpop.f32.mrf.mxu0
        %v3954 = vadd.f32 0.0, %v3953
        %v3955 = vpop.f32.mrf.mxu0
        %3956 = vmatprep.mubr.bf16.mxu0 0
        %3957 = vmatmul.mubr.bf16.gmra.mxu0 %v3827
        %v3958 = vpop.f32.mrf.mxu0
        %v3959 = vadd.f32 0.0, %v3958
        %v3960 = vpop.f32.mrf.mxu0
        %v3961 = vpop.f32.mrf.mxu0
        %v3962 = vadd.f32 0.0, %v3961
        %v3963 = vpop.f32.mrf.mxu0
        %3964 = vmatprep.mubr.bf16.mxu0 0
        %3965 = vmatmul.mubr.bf16.gmra.mxu0 %v3830
        %v3966 = vpop.f32.mrf.mxu0
        %v3967 = vadd.f32 0.0, %v3966
        %v3968 = vpop.f32.mrf.mxu0
        %v3969 = vpop.f32.mrf.mxu0
        %v3970 = vadd.f32 0.0, %v3969
        %v3971 = vpop.f32.mrf.mxu0
        %3972 = vmatprep.mubr.bf16.mxu0 0
        %3973 = vmatmul.mubr.bf16.gmra.mxu0 %v3833
        %v3974 = vpop.f32.mrf.mxu0
        %v3975 = vadd.f32 0.0, %v3974
        %v3976 = vpop.f32.mrf.mxu0
        %v3977 = vpop.f32.mrf.mxu0
        %v3978 = vadd.f32 0.0, %v3977
        %v3979 = vpop.f32.mrf.mxu0
        %3980 = vmatprep.mubr.bf16.mxu0 0
        %3981 = vmatmul.mubr.bf16.gmra.mxu0 %v3836
        %v3982 = vpop.f32.mrf.mxu0
        %v3983 = vadd.f32 0.0, %v3982
        %v3984 = vpop.f32.mrf.mxu0
        %v3985 = vpop.f32.mrf.mxu0
        %v3986 = vadd.f32 0.0, %v3985
        %v3987 = vpop.f32.mrf.mxu0
        %3988 = vmatprep.mubr.bf16.mxu0 0
        %3989 = vmatmul.mubr.bf16.gmra.mxu0 %v3839
        %v3990 = vpop.f32.mrf.mxu0
        %v3991 = vadd.f32 0.0, %v3990
        %v3992 = vpop.f32.mrf.mxu0
        %v3993 = vpop.f32.mrf.mxu0
        %v3994 = vadd.f32 0.0, %v3993
        %v3995 = vpop.f32.mrf.mxu0
        %3996 = vmatprep.mubr.bf16.mxu0 0
        %3997 = vmatmul.mubr.bf16.gmra.mxu0 %v3842
        %v3998 = vpop.f32.mrf.mxu0
        %v3999 = vadd.f32 0.0, %v3998
        %v4000 = vpop.f32.mrf.mxu0
        %v4001 = vpop.f32.mrf.mxu0
        %v4002 = vadd.f32 0.0, %v4001
        %v4003 = vpop.f32.mrf.mxu0
        %4004 = vdwg.mxu0
        %v4037 = vunpack.c.l.b16 %v3590
        %v4038 = vunpack.c.l.b16 %v3591
        %v4039 = vunpack.c.l.b16 %v3592
        %v4040 = vunpack.c.l.b16 %v3593
        %v4041 = vunpack.c.l.b16 %v3594
        %v4042 = vunpack.c.l.b16 %v3595
        %v4043 = vunpack.c.l.b16 %v3596
        %v4044 = vunpack.c.l.b16 %v3597
        %v4045 = vunpack.c.l.b16 %v3598
        %v4046 = vunpack.c.l.b16 %v3599
        %v4047 = vunpack.c.l.b16 %v3600
        %v4048 = vunpack.c.l.b16 %v3601
        %v4049 = vunpack.c.l.b16 %v3602
        %v4050 = vunpack.c.l.b16 %v3603
        %v4051 = vunpack.c.l.b16 %v3604
        %v4052 = vunpack.c.l.b16 %v3605
        %v4053 = vunpack.c.l.b16 %v3606
        %v4054 = vunpack.c.l.b16 %v3607
        %v4055 = vunpack.c.l.b16 %v3608
        %v4056 = vunpack.c.l.b16 %v3609
        %v4057 = vunpack.c.l.b16 %v3610
        %v4058 = vunpack.c.l.b16 %v3611
        %v4059 = vunpack.c.l.b16 %v3612
        %v4060 = vunpack.c.l.b16 %v3613
        %v4061 = vunpack.c.l.b16 %v3614
        %v4062 = vunpack.c.l.b16 %v3615
        %v4063 = vunpack.c.l.b16 %v3616
        %v4064 = vunpack.c.l.b16 %v3617
        %v4065 = vunpack.c.l.b16 %v3618
        %v4066 = vunpack.c.l.b16 %v3619
        %v4067 = vunpack.c.l.b16 %v3620
        %v4068 = vunpack.c.l.b16 %v3621
        %v4069 = vpack.c.b16 %v4038, %v4037
        %v4070 = vpack.c.b16 %v4040, %v4039
        %v4071 = vpack.c.b16 %v4042, %v4041
        %v4072 = vpack.c.b16 %v4044, %v4043
        %v4073 = vpack.c.b16 %v4046, %v4045
        %v4074 = vpack.c.b16 %v4048, %v4047
        %v4075 = vpack.c.b16 %v4050, %v4049
        %v4076 = vpack.c.b16 %v4052, %v4051
        %v4077 = vpack.c.b16 %v4054, %v4053
        %v4078 = vpack.c.b16 %v4056, %v4055
        %v4079 = vpack.c.b16 %v4058, %v4057
        %v4080 = vpack.c.b16 %v4060, %v4059
        %v4081 = vpack.c.b16 %v4062, %v4061
        %v4082 = vpack.c.b16 %v4064, %v4063
        %v4083 = vpack.c.b16 %v4066, %v4065
        %v4084 = vpack.c.b16 %v4068, %v4067
        %v4097 = vunpack.c.l.b16 %v3622
        %v4098 = vunpack.c.l.b16 %v3623
        %v4099 = vunpack.c.l.b16 %v3624
        %v4100 = vunpack.c.l.b16 %v3625
        %v4101 = vunpack.c.l.b16 %v3626
        %v4102 = vunpack.c.l.b16 %v3627
        %v4103 = vunpack.c.l.b16 %v3628
        %v4104 = vunpack.c.l.b16 %v3629
        %v4105 = vunpack.c.l.b16 %v3630
        %v4106 = vunpack.c.l.b16 %v3631
        %v4107 = vunpack.c.l.b16 %v3632
        %v4108 = vunpack.c.l.b16 %v3633
        %v4109 = vpack.c.b16 %v4098, %v4097
        %v4110 = vpack.c.b16 %v4100, %v4099
        %v4111 = vpack.c.b16 %v4102, %v4101
        %v4112 = vpack.c.b16 %v4104, %v4103
        %v4113 = vpack.c.b16 %v4106, %v4105
        %v4114 = vpack.c.b16 %v4108, %v4107
        %v4122 = vsel %vm3795, %v4069, 0
        %v4125 = vsel %vm3795, %v4070, 0
        %v4128 = vsel %vm3795, %v4071, 0
        %v4131 = vsel %vm3795, %v4072, 0
        %v4134 = vsel %vm3795, %v4073, 0
        %v4137 = vsel %vm3795, %v4074, 0
        %v4140 = vsel %vm3795, %v4075, 0
        %v4143 = vsel %vm3795, %v4076, 0
        %v4146 = vsel %vm3795, %v4077, 0
        %v4149 = vsel %vm3795, %v4078, 0
        %v4152 = vsel %vm3795, %v4079, 0
        %v4155 = vsel %vm3795, %v4080, 0
        %v4158 = vsel %vm3795, %v4081, 0
        %v4161 = vsel %vm3795, %v4082, 0
        %v4164 = vsel %vm3795, %v4083, 0
        %v4167 = vsel %vm3795, %v4084, 0
        %4169 = vmatprep.subr.bf16.mxu0 0
        %4170 = vmatpush1.bf16.msra.mxu0 0
        %4171 = vmatprep.subr.bf16.mxu0 0
        %4172 = vmatpush1.bf16.msra.mxu0 0
        %4173 = vmatprep.subr.bf16.mxu0 0
        %4174 = vmatpush1.bf16.msra.mxu0 %v4114
        %4175 = vmatprep.subr.bf16.mxu0 0
        %4176 = vmatpush1.bf16.msra.mxu0 %v4113
        %4177 = vmatprep.subr.bf16.mxu0 0
        %4178 = vmatpush1.bf16.msra.mxu0 %v4112
        %4179 = vmatprep.subr.bf16.mxu0 0
        %4180 = vmatpush1.bf16.msra.mxu0 %v4111
        %4181 = vmatprep.subr.bf16.mxu0 0
        %4182 = vmatpush1.bf16.msra.mxu0 %v4110
        %4183 = vmatprep.subr.bf16.mxu0 0
        %4184 = vmatpush1.bf16.msra.mxu0 %v4109
        %4185 = vmatprep.subr.bf16.mxu0 0
        %4186 = vmatpush2.bf16.msra.mxu0 0
        %4187 = vmatprep.subr.bf16.mxu0 0
        %4188 = vmatpush2.bf16.msra.mxu0 0
        %4189 = vmatprep.subr.bf16.mxu0 0
        %4190 = vmatpush2.bf16.msra.mxu0 0
        %4191 = vmatprep.subr.bf16.mxu0 0
        %4192 = vmatpush2.bf16.msra.mxu0 0
        %4193 = vmatprep.subr.bf16.mxu0 0
        %4194 = vmatpush2.bf16.msra.mxu0 0
        %4195 = vmatprep.subr.bf16.mxu0 0
        %4196 = vmatpush2.bf16.msra.mxu0 0
        %4197 = vmatprep.subr.bf16.mxu0 0
        %4198 = vmatpush2.bf16.msra.mxu0 0
        %4199 = vmatprep.subr.bf16.mxu0 0
        %4200 = vmatpush2.bf16.msra.mxu0 0
        %4201 = vmatprep.mubr.bf16.mxu0 0
        %4202 = vmatmul.mubr.bf16.gmra.mxu0 %v4122
        %v4203 = vpop.f32.mrf.mxu0
        %v4204 = vadd.f32 %v3879, %v4203
        %v4205 = vpop.f32.mrf.mxu0
        %v4206 = vpop.f32.mrf.mxu0
        %v4207 = vadd.f32 %v3882, %v4206
        %v4208 = vpop.f32.mrf.mxu0
        %4209 = vmatprep.mubr.bf16.mxu0 0
        %4210 = vmatmul.mubr.bf16.gmra.mxu0 %v4125
        %v4211 = vpop.f32.mrf.mxu0
        %v4212 = vadd.f32 %v3887, %v4211
        %v4213 = vpop.f32.mrf.mxu0
        %v4214 = vpop.f32.mrf.mxu0
        %v4215 = vadd.f32 %v3890, %v4214
        %v4216 = vpop.f32.mrf.mxu0
        %4217 = vmatprep.mubr.bf16.mxu0 0
        %4218 = vmatmul.mubr.bf16.gmra.mxu0 %v4128
        %v4219 = vpop.f32.mrf.mxu0
        %v4220 = vadd.f32 %v3895, %v4219
        %v4221 = vpop.f32.mrf.mxu0
        %v4222 = vpop.f32.mrf.mxu0
        %v4223 = vadd.f32 %v3898, %v4222
        %v4224 = vpop.f32.mrf.mxu0
        %4225 = vmatprep.mubr.bf16.mxu0 0
        %4226 = vmatmul.mubr.bf16.gmra.mxu0 %v4131
        %v4227 = vpop.f32.mrf.mxu0
        %v4228 = vadd.f32 %v3903, %v4227
        %v4229 = vpop.f32.mrf.mxu0
        %v4230 = vpop.f32.mrf.mxu0
        %v4231 = vadd.f32 %v3906, %v4230
        %v4232 = vpop.f32.mrf.mxu0
        %4233 = vmatprep.mubr.bf16.mxu0 0
        %4234 = vmatmul.mubr.bf16.gmra.mxu0 %v4134
        %v4235 = vpop.f32.mrf.mxu0
        %v4236 = vadd.f32 %v3911, %v4235
        %v4237 = vpop.f32.mrf.mxu0
        %v4238 = vpop.f32.mrf.mxu0
        %v4239 = vadd.f32 %v3914, %v4238
        %v4240 = vpop.f32.mrf.mxu0
        %4241 = vmatprep.mubr.bf16.mxu0 0
        %4242 = vmatmul.mubr.bf16.gmra.mxu0 %v4137
        %v4243 = vpop.f32.mrf.mxu0
        %v4244 = vadd.f32 %v3919, %v4243
        %v4245 = vpop.f32.mrf.mxu0
        %v4246 = vpop.f32.mrf.mxu0
        %v4247 = vadd.f32 %v3922, %v4246
        %v4248 = vpop.f32.mrf.mxu0
        %4249 = vmatprep.mubr.bf16.mxu0 0
        %4250 = vmatmul.mubr.bf16.gmra.mxu0 %v4140
        %v4251 = vpop.f32.mrf.mxu0
        %v4252 = vadd.f32 %v3927, %v4251
        %v4253 = vpop.f32.mrf.mxu0
        %v4254 = vpop.f32.mrf.mxu0
        %v4255 = vadd.f32 %v3930, %v4254
        %v4256 = vpop.f32.mrf.mxu0
        %4257 = vmatprep.mubr.bf16.mxu0 0
        %4258 = vmatmul.mubr.bf16.gmra.mxu0 %v4143
        %v4259 = vpop.f32.mrf.mxu0
        %v4260 = vadd.f32 %v3935, %v4259
        %v4261 = vpop.f32.mrf.mxu0
        %v4262 = vpop.f32.mrf.mxu0
        %v4263 = vadd.f32 %v3938, %v4262
        %v4264 = vpop.f32.mrf.mxu0
        %4265 = vmatprep.mubr.bf16.mxu0 0
        %4266 = vmatmul.mubr.bf16.gmra.mxu0 %v4146
        %v4267 = vpop.f32.mrf.mxu0
        %v4268 = vadd.f32 %v3943, %v4267
        %v4269 = vpop.f32.mrf.mxu0
        %v4270 = vpop.f32.mrf.mxu0
        %v4271 = vadd.f32 %v3946, %v4270
        %v4272 = vpop.f32.mrf.mxu0
        %4273 = vmatprep.mubr.bf16.mxu0 0
        %4274 = vmatmul.mubr.bf16.gmra.mxu0 %v4149
        %v4275 = vpop.f32.mrf.mxu0
        %v4276 = vadd.f32 %v3951, %v4275
        %v4277 = vpop.f32.mrf.mxu0
        %v4278 = vpop.f32.mrf.mxu0
        %v4279 = vadd.f32 %v3954, %v4278
        %v4280 = vpop.f32.mrf.mxu0
        %4281 = vmatprep.mubr.bf16.mxu0 0
        %4282 = vmatmul.mubr.bf16.gmra.mxu0 %v4152
        %v4283 = vpop.f32.mrf.mxu0
        %v4284 = vadd.f32 %v3959, %v4283
        %v4285 = vpop.f32.mrf.mxu0
        %v4286 = vpop.f32.mrf.mxu0
        %v4287 = vadd.f32 %v3962, %v4286
        %v4288 = vpop.f32.mrf.mxu0
        %4289 = vmatprep.mubr.bf16.mxu0 0
        %4290 = vmatmul.mubr.bf16.gmra.mxu0 %v4155
        %v4291 = vpop.f32.mrf.mxu0
        %v4292 = vadd.f32 %v3967, %v4291
        %v4293 = vpop.f32.mrf.mxu0
        %v4294 = vpop.f32.mrf.mxu0
        %v4295 = vadd.f32 %v3970, %v4294
        %v4296 = vpop.f32.mrf.mxu0
        %4297 = vmatprep.mubr.bf16.mxu0 0
        %4298 = vmatmul.mubr.bf16.gmra.mxu0 %v4158
        %v4299 = vpop.f32.mrf.mxu0
        %v4300 = vadd.f32 %v3975, %v4299
        %v4301 = vpop.f32.mrf.mxu0
        %v4302 = vpop.f32.mrf.mxu0
        %v4303 = vadd.f32 %v3978, %v4302
        %v4304 = vpop.f32.mrf.mxu0
        %4305 = vmatprep.mubr.bf16.mxu0 0
        %4306 = vmatmul.mubr.bf16.gmra.mxu0 %v4161
        %v4307 = vpop.f32.mrf.mxu0
        %v4308 = vadd.f32 %v3983, %v4307
        %v4309 = vpop.f32.mrf.mxu0
        %v4310 = vpop.f32.mrf.mxu0
        %v4311 = vadd.f32 %v3986, %v4310
        %v4312 = vpop.f32.mrf.mxu0
        %4313 = vmatprep.mubr.bf16.mxu0 0
        %4314 = vmatmul.mubr.bf16.gmra.mxu0 %v4164
        %v4315 = vpop.f32.mrf.mxu0
        %v4316 = vadd.f32 %v3991, %v4315
        %v4317 = vpop.f32.mrf.mxu0
        %v4318 = vpop.f32.mrf.mxu0
        %v4319 = vadd.f32 %v3994, %v4318
        %v4320 = vpop.f32.mrf.mxu0
        %4321 = vmatprep.mubr.bf16.mxu0 0
        %4322 = vmatmul.mubr.bf16.gmra.mxu0 %v4167
        %v4323 = vpop.f32.mrf.mxu0
        %v4324 = vadd.f32 %v3999, %v4323
        %v4325 = vpop.f32.mrf.mxu0
        %v4326 = vpop.f32.mrf.mxu0
        %v4327 = vadd.f32 %v4002, %v4326
        %v4328 = vpop.f32.mrf.mxu0
        %4329 = vdwg.mxu0
        %s4330 = scalar_lea.vmem [#allocation3], 16
        %v4331 = vld [vmem:[%s4330] sm:$0xf]
        %v4332 = vld [vmem:[%s4330 + $0x4] sm:$0xf]
        %v4333 = vld [vmem:[%s4330 + $0x8] sm:$0xf]
        %v4334 = vld [vmem:[%s4330 + $0xc] sm:$0xf]
        %v4335 = vld [vmem:[%s4330 + $0x10] sm:$0xf]
        %v4336 = vld [vmem:[%s4330 + $0x14] sm:$0xf]
        %v4337 = vld [vmem:[%s4330 + $0x18] sm:$0xf]
        %v4338 = vld [vmem:[%s4330 + $0x1c] sm:$0xf]
        %v4339 = vld [vmem:[%s4330 + $0x20] sm:$0xf]
        %v4340 = vld [vmem:[%s4330 + $0x24] sm:$0xf]
        %v4341 = vld [vmem:[%s4330 + $0x28] sm:$0xf]
        %v4342 = vld [vmem:[%s4330 + $0x2c] sm:$0xf]
        %v4343 = vld [vmem:[%s4330 + $0x30] sm:$0xf]
        %v4344 = vld [vmem:[%s4330 + $0x34] sm:$0xf]
        %v4345 = vld [vmem:[%s4330 + $0x38] sm:$0xf]
        %v4346 = vld [vmem:[%s4330 + $0x3c] sm:$0xf]
        %v4347 = vld [vmem:[%s4330 + $0x40] sm:$0xf]
        %v4348 = vld [vmem:[%s4330 + $0x44] sm:$0xf]
        %v4349 = vld [vmem:[%s4330 + $0x48] sm:$0xf]
        %v4350 = vld [vmem:[%s4330 + $0x4c] sm:$0xf]
        %v4351 = vld [vmem:[%s4330 + $0x50] sm:$0xf]
        %v4352 = vld [vmem:[%s4330 + $0x54] sm:$0xf]
        %v4353 = vld [vmem:[%s4330 + $0x58] sm:$0xf]
        %v4354 = vld [vmem:[%s4330 + $0x5c] sm:$0xf]
        %v4355 = vld [vmem:[%s4330 + $0x60] sm:$0xf]
        %v4356 = vld [vmem:[%s4330 + $0x64] sm:$0xf]
        %v4357 = vld [vmem:[%s4330 + $0x68] sm:$0xf]
        %v4358 = vld [vmem:[%s4330 + $0x6c] sm:$0xf]
        %v4359 = vld [vmem:[%s4330 + $0x70] sm:$0xf]
        %v4360 = vld [vmem:[%s4330 + $0x74] sm:$0xf]
        %v4361 = vld [vmem:[%s4330 + $0x78] sm:$0xf]
        %v4362 = vld [vmem:[%s4330 + $0x7c] sm:$0xf]
        %s4363 = scalar_lea.vmem %s5, 96
        %v4364 = vld [vmem:[%s4363] sm:$0xf]
        %v4365 = vld [vmem:[%s4363 + $0x4] sm:$0xf]
        %v4366 = vld [vmem:[%s4363 + $0x8] sm:$0xf]
        %v4367 = vld [vmem:[%s4363 + $0xc] sm:$0xf]
        %v4368 = vld [vmem:[%s4363 + $0x10] sm:$0xf]
        %v4369 = vld [vmem:[%s4363 + $0x14] sm:$0xf]
        %v4370 = vld [vmem:[%s4363 + $0x18] sm:$0xf]
        %v4371 = vld [vmem:[%s4363 + $0x1c] sm:$0xf]
        %v4372 = vld [vmem:[%s4363 + $0x20] sm:$0xf]
        %v4373 = vld [vmem:[%s4363 + $0x24] sm:$0xf]
        %v4374 = vld [vmem:[%s4363 + $0x28] sm:$0xf]
        %v4375 = vld [vmem:[%s4363 + $0x2c] sm:$0xf]
        %v4408 = vunpack.c.l.b16 %v4331
        %v4409 = vunpack.c.l.b16 %v4332
        %v4410 = vunpack.c.l.b16 %v4333
        %v4411 = vunpack.c.l.b16 %v4334
        %v4412 = vunpack.c.l.b16 %v4335
        %v4413 = vunpack.c.l.b16 %v4336
        %v4414 = vunpack.c.l.b16 %v4337
        %v4415 = vunpack.c.l.b16 %v4338
        %v4416 = vunpack.c.l.b16 %v4339
        %v4417 = vunpack.c.l.b16 %v4340
        %v4418 = vunpack.c.l.b16 %v4341
        %v4419 = vunpack.c.l.b16 %v4342
        %v4420 = vunpack.c.l.b16 %v4343
        %v4421 = vunpack.c.l.b16 %v4344
        %v4422 = vunpack.c.l.b16 %v4345
        %v4423 = vunpack.c.l.b16 %v4346
        %v4424 = vunpack.c.l.b16 %v4347
        %v4425 = vunpack.c.l.b16 %v4348
        %v4426 = vunpack.c.l.b16 %v4349
        %v4427 = vunpack.c.l.b16 %v4350
        %v4428 = vunpack.c.l.b16 %v4351
        %v4429 = vunpack.c.l.b16 %v4352
        %v4430 = vunpack.c.l.b16 %v4353
        %v4431 = vunpack.c.l.b16 %v4354
        %v4432 = vunpack.c.l.b16 %v4355
        %v4433 = vunpack.c.l.b16 %v4356
        %v4434 = vunpack.c.l.b16 %v4357
        %v4435 = vunpack.c.l.b16 %v4358
        %v4436 = vunpack.c.l.b16 %v4359
        %v4437 = vunpack.c.l.b16 %v4360
        %v4438 = vunpack.c.l.b16 %v4361
        %v4439 = vunpack.c.l.b16 %v4362
        %v4440 = vpack.c.b16 %v4409, %v4408
        %v4441 = vpack.c.b16 %v4411, %v4410
        %v4442 = vpack.c.b16 %v4413, %v4412
        %v4443 = vpack.c.b16 %v4415, %v4414
        %v4444 = vpack.c.b16 %v4417, %v4416
        %v4445 = vpack.c.b16 %v4419, %v4418
        %v4446 = vpack.c.b16 %v4421, %v4420
        %v4447 = vpack.c.b16 %v4423, %v4422
        %v4448 = vpack.c.b16 %v4425, %v4424
        %v4449 = vpack.c.b16 %v4427, %v4426
        %v4450 = vpack.c.b16 %v4429, %v4428
        %v4451 = vpack.c.b16 %v4431, %v4430
        %v4452 = vpack.c.b16 %v4433, %v4432
        %v4453 = vpack.c.b16 %v4435, %v4434
        %v4454 = vpack.c.b16 %v4437, %v4436
        %v4455 = vpack.c.b16 %v4439, %v4438
        %v4468 = vunpack.c.l.b16 %v4364
        %v4469 = vunpack.c.l.b16 %v4365
        %v4470 = vunpack.c.l.b16 %v4366
        %v4471 = vunpack.c.l.b16 %v4367
        %v4472 = vunpack.c.l.b16 %v4368
        %v4473 = vunpack.c.l.b16 %v4369
        %v4474 = vunpack.c.l.b16 %v4370
        %v4475 = vunpack.c.l.b16 %v4371
        %v4476 = vunpack.c.l.b16 %v4372
        %v4477 = vunpack.c.l.b16 %v4373
        %v4478 = vunpack.c.l.b16 %v4374
        %v4479 = vunpack.c.l.b16 %v4375
        %v4480 = vpack.c.b16 %v4469, %v4468
        %v4481 = vpack.c.b16 %v4471, %v4470
        %v4482 = vpack.c.b16 %v4473, %v4472
        %v4483 = vpack.c.b16 %v4475, %v4474
        %v4484 = vpack.c.b16 %v4477, %v4476
        %v4485 = vpack.c.b16 %v4479, %v4478
        %v4493 = vsel %vm3795, %v4440, 0
        %v4496 = vsel %vm3795, %v4441, 0
        %v4499 = vsel %vm3795, %v4442, 0
        %v4502 = vsel %vm3795, %v4443, 0
        %v4505 = vsel %vm3795, %v4444, 0
        %v4508 = vsel %vm3795, %v4445, 0
        %v4511 = vsel %vm3795, %v4446, 0
        %v4514 = vsel %vm3795, %v4447, 0
        %v4517 = vsel %vm3795, %v4448, 0
        %v4520 = vsel %vm3795, %v4449, 0
        %v4523 = vsel %vm3795, %v4450, 0
        %v4526 = vsel %vm3795, %v4451, 0
        %v4529 = vsel %vm3795, %v4452, 0
        %v4532 = vsel %vm3795, %v4453, 0
        %v4535 = vsel %vm3795, %v4454, 0
        %v4538 = vsel %vm3795, %v4455, 0
        %4540 = vmatprep.subr.bf16.mxu0 0
        %4541 = vmatpush1.bf16.msra.mxu0 0
        %4542 = vmatprep.subr.bf16.mxu0 0
        %4543 = vmatpush1.bf16.msra.mxu0 0
        %4544 = vmatprep.subr.bf16.mxu0 0
        %4545 = vmatpush1.bf16.msra.mxu0 %v4485
        %4546 = vmatprep.subr.bf16.mxu0 0
        %4547 = vmatpush1.bf16.msra.mxu0 %v4484
        %4548 = vmatprep.subr.bf16.mxu0 0
        %4549 = vmatpush1.bf16.msra.mxu0 %v4483
        %4550 = vmatprep.subr.bf16.mxu0 0
        %4551 = vmatpush1.bf16.msra.mxu0 %v4482
        %4552 = vmatprep.subr.bf16.mxu0 0
        %4553 = vmatpush1.bf16.msra.mxu0 %v4481
        %4554 = vmatprep.subr.bf16.mxu0 0
        %4555 = vmatpush1.bf16.msra.mxu0 %v4480
        %4556 = vmatprep.subr.bf16.mxu0 0
        %4557 = vmatpush2.bf16.msra.mxu0 0
        %4558 = vmatprep.subr.bf16.mxu0 0
        %4559 = vmatpush2.bf16.msra.mxu0 0
        %4560 = vmatprep.subr.bf16.mxu0 0
        %4561 = vmatpush2.bf16.msra.mxu0 0
        %4562 = vmatprep.subr.bf16.mxu0 0
        %4563 = vmatpush2.bf16.msra.mxu0 0
        %4564 = vmatprep.subr.bf16.mxu0 0
        %4565 = vmatpush2.bf16.msra.mxu0 0
        %4566 = vmatprep.subr.bf16.mxu0 0
        %4567 = vmatpush2.bf16.msra.mxu0 0
        %4568 = vmatprep.subr.bf16.mxu0 0
        %4569 = vmatpush2.bf16.msra.mxu0 0
        %4570 = vmatprep.subr.bf16.mxu0 0
        %4571 = vmatpush2.bf16.msra.mxu0 0
        %4572 = vmatprep.mubr.bf16.mxu0 0
        %4573 = vmatmul.mubr.bf16.gmra.mxu0 %v4493
        %v4574 = vpop.f32.mrf.mxu0
        %v4575 = vadd.f32 0.0, %v4574
        %v4576 = vpop.f32.mrf.mxu0
        %v4577 = vpop.f32.mrf.mxu0
        %v4578 = vadd.f32 0.0, %v4577
        %v4579 = vpop.f32.mrf.mxu0
        %4580 = vmatprep.mubr.bf16.mxu0 0
        %4581 = vmatmul.mubr.bf16.gmra.mxu0 %v4496
        %v4582 = vpop.f32.mrf.mxu0
        %v4583 = vadd.f32 0.0, %v4582
        %v4584 = vpop.f32.mrf.mxu0
        %v4585 = vpop.f32.mrf.mxu0
        %v4586 = vadd.f32 0.0, %v4585
        %v4587 = vpop.f32.mrf.mxu0
        %4588 = vmatprep.mubr.bf16.mxu0 0
        %4589 = vmatmul.mubr.bf16.gmra.mxu0 %v4499
        %v4590 = vpop.f32.mrf.mxu0
        %v4591 = vadd.f32 0.0, %v4590
        %v4592 = vpop.f32.mrf.mxu0
        %v4593 = vpop.f32.mrf.mxu0
        %v4594 = vadd.f32 0.0, %v4593
        %v4595 = vpop.f32.mrf.mxu0
        %4596 = vmatprep.mubr.bf16.mxu0 0
        %4597 = vmatmul.mubr.bf16.gmra.mxu0 %v4502
        %v4598 = vpop.f32.mrf.mxu0
        %v4599 = vadd.f32 0.0, %v4598
        %v4600 = vpop.f32.mrf.mxu0
        %v4601 = vpop.f32.mrf.mxu0
        %v4602 = vadd.f32 0.0, %v4601
        %v4603 = vpop.f32.mrf.mxu0
        %4604 = vmatprep.mubr.bf16.mxu0 0
        %4605 = vmatmul.mubr.bf16.gmra.mxu0 %v4505
        %v4606 = vpop.f32.mrf.mxu0
        %v4607 = vadd.f32 0.0, %v4606
        %v4608 = vpop.f32.mrf.mxu0
        %v4609 = vpop.f32.mrf.mxu0
        %v4610 = vadd.f32 0.0, %v4609
        %v4611 = vpop.f32.mrf.mxu0
        %4612 = vmatprep.mubr.bf16.mxu0 0
        %4613 = vmatmul.mubr.bf16.gmra.mxu0 %v4508
        %v4614 = vpop.f32.mrf.mxu0
        %v4615 = vadd.f32 0.0, %v4614
        %v4616 = vpop.f32.mrf.mxu0
        %v4617 = vpop.f32.mrf.mxu0
        %v4618 = vadd.f32 0.0, %v4617
        %v4619 = vpop.f32.mrf.mxu0
        %4620 = vmatprep.mubr.bf16.mxu0 0
        %4621 = vmatmul.mubr.bf16.gmra.mxu0 %v4511
        %v4622 = vpop.f32.mrf.mxu0
        %v4623 = vadd.f32 0.0, %v4622
        %v4624 = vpop.f32.mrf.mxu0
        %v4625 = vpop.f32.mrf.mxu0
        %v4626 = vadd.f32 0.0, %v4625
        %v4627 = vpop.f32.mrf.mxu0
        %4628 = vmatprep.mubr.bf16.mxu0 0
        %4629 = vmatmul.mubr.bf16.gmra.mxu0 %v4514
        %v4630 = vpop.f32.mrf.mxu0
        %v4631 = vadd.f32 0.0, %v4630
        %v4632 = vpop.f32.mrf.mxu0
        %v4633 = vpop.f32.mrf.mxu0
        %v4634 = vadd.f32 0.0, %v4633
        %v4635 = vpop.f32.mrf.mxu0
        %4636 = vmatprep.mubr.bf16.mxu0 0
        %4637 = vmatmul.mubr.bf16.gmra.mxu0 %v4517
        %v4638 = vpop.f32.mrf.mxu0
        %v4639 = vadd.f32 0.0, %v4638
        %v4640 = vpop.f32.mrf.mxu0
        %v4641 = vpop.f32.mrf.mxu0
        %v4642 = vadd.f32 0.0, %v4641
        %v4643 = vpop.f32.mrf.mxu0
        %4644 = vmatprep.mubr.bf16.mxu0 0
        %4645 = vmatmul.mubr.bf16.gmra.mxu0 %v4520
        %v4646 = vpop.f32.mrf.mxu0
        %v4647 = vadd.f32 0.0, %v4646
        %v4648 = vpop.f32.mrf.mxu0
        %v4649 = vpop.f32.mrf.mxu0
        %v4650 = vadd.f32 0.0, %v4649
        %v4651 = vpop.f32.mrf.mxu0
        %4652 = vmatprep.mubr.bf16.mxu0 0
        %4653 = vmatmul.mubr.bf16.gmra.mxu0 %v4523
        %v4654 = vpop.f32.mrf.mxu0
        %v4655 = vadd.f32 0.0, %v4654
        %v4656 = vpop.f32.mrf.mxu0
        %v4657 = vpop.f32.mrf.mxu0
        %v4658 = vadd.f32 0.0, %v4657
        %v4659 = vpop.f32.mrf.mxu0
        %4660 = vmatprep.mubr.bf16.mxu0 0
        %4661 = vmatmul.mubr.bf16.gmra.mxu0 %v4526
        %v4662 = vpop.f32.mrf.mxu0
        %v4663 = vadd.f32 0.0, %v4662
        %v4664 = vpop.f32.mrf.mxu0
        %v4665 = vpop.f32.mrf.mxu0
        %v4666 = vadd.f32 0.0, %v4665
        %v4667 = vpop.f32.mrf.mxu0
        %4668 = vmatprep.mubr.bf16.mxu0 0
        %4669 = vmatmul.mubr.bf16.gmra.mxu0 %v4529
        %v4670 = vpop.f32.mrf.mxu0
        %v4671 = vadd.f32 0.0, %v4670
        %v4672 = vpop.f32.mrf.mxu0
        %v4673 = vpop.f32.mrf.mxu0
        %v4674 = vadd.f32 0.0, %v4673
        %v4675 = vpop.f32.mrf.mxu0
        %4676 = vmatprep.mubr.bf16.mxu0 0
        %4677 = vmatmul.mubr.bf16.gmra.mxu0 %v4532
        %v4678 = vpop.f32.mrf.mxu0
        %v4679 = vadd.f32 0.0, %v4678
        %v4680 = vpop.f32.mrf.mxu0
        %v4681 = vpop.f32.mrf.mxu0
        %v4682 = vadd.f32 0.0, %v4681
        %v4683 = vpop.f32.mrf.mxu0
        %4684 = vmatprep.mubr.bf16.mxu0 0
        %4685 = vmatmul.mubr.bf16.gmra.mxu0 %v4535
        %v4686 = vpop.f32.mrf.mxu0
        %v4687 = vadd.f32 0.0, %v4686
        %v4688 = vpop.f32.mrf.mxu0
        %v4689 = vpop.f32.mrf.mxu0
        %v4690 = vadd.f32 0.0, %v4689
        %v4691 = vpop.f32.mrf.mxu0
        %4692 = vmatprep.mubr.bf16.mxu0 0
        %4693 = vmatmul.mubr.bf16.gmra.mxu0 %v4538
        %v4694 = vpop.f32.mrf.mxu0
        %v4695 = vadd.f32 0.0, %v4694
        %v4696 = vpop.f32.mrf.mxu0
        %v4697 = vpop.f32.mrf.mxu0
        %v4698 = vadd.f32 0.0, %v4697
        %v4699 = vpop.f32.mrf.mxu0
        %4700 = vdwg.mxu0
        %v4701 = vadd.f32 %v4204, %v4575
        %v4702 = vadd.f32 %v4207, %v4578
        %v4703 = vadd.f32 %v4212, %v4583
        %v4704 = vadd.f32 %v4215, %v4586
        %v4705 = vadd.f32 %v4220, %v4591
        %v4706 = vadd.f32 %v4223, %v4594
        %v4707 = vadd.f32 %v4228, %v4599
        %v4708 = vadd.f32 %v4231, %v4602
        %v4709 = vadd.f32 %v4236, %v4607
        %v4710 = vadd.f32 %v4239, %v4610
        %v4711 = vadd.f32 %v4244, %v4615
        %v4712 = vadd.f32 %v4247, %v4618
        %v4713 = vadd.f32 %v4252, %v4623
        %v4714 = vadd.f32 %v4255, %v4626
        %v4715 = vadd.f32 %v4260, %v4631
        %v4716 = vadd.f32 %v4263, %v4634
        %v4717 = vadd.f32 %v4268, %v4639
        %v4718 = vadd.f32 %v4271, %v4642
        %v4719 = vadd.f32 %v4276, %v4647
        %v4720 = vadd.f32 %v4279, %v4650
        %v4721 = vadd.f32 %v4284, %v4655
        %v4722 = vadd.f32 %v4287, %v4658
        %v4723 = vadd.f32 %v4292, %v4663
        %v4724 = vadd.f32 %v4295, %v4666
        %v4725 = vadd.f32 %v4300, %v4671
        %v4726 = vadd.f32 %v4303, %v4674
        %v4727 = vadd.f32 %v4308, %v4679
        %v4728 = vadd.f32 %v4311, %v4682
        %v4729 = vadd.f32 %v4316, %v4687
        %v4730 = vadd.f32 %v4319, %v4690
        %v4731 = vadd.f32 %v4324, %v4695
        %v4732 = vadd.f32 %v4327, %v4698
        %v4734 = vlaneseq
        %v4735 = vshrl.u32 %v4734, 7
        %v4736 = vsub.s32 0, %v4735
        %v4737 = vrot.slane %v2934, %v4736
        %v4739 = vadd.f32 %v4701, %v4737
        %v4740 = vadd.f32 %v4702, %v4737
        %v4741 = vadd.f32 %v4703, %v4737
        %v4742 = vadd.f32 %v4704, %v4737
        %v4743 = vadd.f32 %v4705, %v4737
        %v4744 = vadd.f32 %v4706, %v4737
        %v4745 = vadd.f32 %v4707, %v4737
        %v4746 = vadd.f32 %v4708, %v4737
        %v4747 = vadd.f32 %v4709, %v4737
        %v4748 = vadd.f32 %v4710, %v4737
        %v4749 = vadd.f32 %v4711, %v4737
        %v4750 = vadd.f32 %v4712, %v4737
        %v4751 = vadd.f32 %v4713, %v4737
        %v4752 = vadd.f32 %v4714, %v4737
        %v4753 = vadd.f32 %v4715, %v4737
        %v4754 = vadd.f32 %v4716, %v4737
        %v4755 = vadd.f32 %v4717, %v4737
        %v4756 = vadd.f32 %v4718, %v4737
        %v4757 = vadd.f32 %v4719, %v4737
        %v4758 = vadd.f32 %v4720, %v4737
        %v4759 = vadd.f32 %v4721, %v4737
        %v4760 = vadd.f32 %v4722, %v4737
        %v4761 = vadd.f32 %v4723, %v4737
        %v4762 = vadd.f32 %v4724, %v4737
        %v4763 = vadd.f32 %v4725, %v4737
        %v4764 = vadd.f32 %v4726, %v4737
        %v4765 = vadd.f32 %v4727, %v4737
        %v4766 = vadd.f32 %v4728, %v4737
        %v4767 = vadd.f32 %v4729, %v4737
        %v4768 = vadd.f32 %v4730, %v4737
        %v4769 = vadd.f32 %v4731, %v4737
        %v4770 = vadd.f32 %v4732, %v4737
        %v4771 = vld [vmem:[%s9] sm:$0xff]
        %v4772 = vld [vmem:[%s9 + $0x8] sm:$0xff]
        %v4773 = vld [vmem:[%s9 + $0x10] sm:$0xff]
        %v4774 = vld [vmem:[%s9 + $0x18] sm:$0xff]
        %v4775 = vld [vmem:[%s9 + $0x20] sm:$0xff]
        %v4776 = vld [vmem:[%s9 + $0x28] sm:$0xff]
        %v4777 = vld [vmem:[%s9 + $0x30] sm:$0xff]
        %v4778 = vld [vmem:[%s9 + $0x38] sm:$0xff]
        %v4779 = vld [vmem:[%s10] sm:$0xff]
        %v4780 = vld [vmem:[%s10 + $0x8] sm:$0xff]
        %v4781 = vld [vmem:[%s10 + $0x10] sm:$0xff]
        %v4782 = vld [vmem:[%s10 + $0x18] sm:$0xff]
        %v4783 = vld [vmem:[%s7] sm:$0x1]
        %v4784 = vld [vmem:[%s8] sm:$0x1]
        %v4785 = vsel %vm3390, %v4739, 0.0
        %v4786 = vsel %vm3390, %v4740, 0.0
        %v4787 = vadd.f32 %v4785, %v4786
        %v4788 = vsel %vm3390, %v4741, 0.0
        %v4789 = vadd.f32 %v4787, %v4788
        %v4790 = vsel %vm3390, %v4742, 0.0
        %v4791 = vadd.f32 %v4789, %v4790
        %v4792 = vsel %vm3390, %v4743, 0.0
        %v4793 = vadd.f32 %v4791, %v4792
        %v4794 = vsel %vm3390, %v4744, 0.0
        %v4795 = vadd.f32 %v4793, %v4794
        %v4796 = vsel %vm3390, %v4745, 0.0
        %v4797 = vadd.f32 %v4795, %v4796
        %v4798 = vsel %vm3390, %v4746, 0.0
        %v4799 = vadd.f32 %v4797, %v4798
        %v4800 = vsel %vm3390, %v4747, 0.0
        %v4801 = vadd.f32 %v4799, %v4800
        %v4802 = vsel %vm3390, %v4748, 0.0
        %v4803 = vadd.f32 %v4801, %v4802
        %v4804 = vsel %vm3390, %v4749, 0.0
        %v4805 = vadd.f32 %v4803, %v4804
        %v4806 = vsel %vm3390, %v4750, 0.0
        %v4807 = vadd.f32 %v4805, %v4806
        %v4808 = vsel %vm3390, %v4751, 0.0
        %v4809 = vadd.f32 %v4807, %v4808
        %v4810 = vsel %vm3390, %v4752, 0.0
        %v4811 = vadd.f32 %v4809, %v4810
        %v4812 = vsel %vm3390, %v4753, 0.0
        %v4813 = vadd.f32 %v4811, %v4812
        %v4814 = vsel %vm3390, %v4754, 0.0
        %v4815 = vadd.f32 %v4813, %v4814
        %v4816 = vsel %vm3390, %v4755, 0.0
        %v4817 = vadd.f32 %v4815, %v4816
        %v4818 = vsel %vm3390, %v4756, 0.0
        %v4819 = vadd.f32 %v4817, %v4818
        %v4820 = vsel %vm3390, %v4757, 0.0
        %v4821 = vadd.f32 %v4819, %v4820
        %v4822 = vsel %vm3390, %v4758, 0.0
        %v4823 = vadd.f32 %v4821, %v4822
        %v4824 = vsel %vm3390, %v4759, 0.0
        %v4825 = vadd.f32 %v4823, %v4824
        %v4826 = vsel %vm3390, %v4760, 0.0
        %v4827 = vadd.f32 %v4825, %v4826
        %v4828 = vsel %vm3390, %v4761, 0.0
        %v4829 = vadd.f32 %v4827, %v4828
        %v4830 = vsel %vm3390, %v4762, 0.0
        %v4831 = vadd.f32 %v4829, %v4830
        %v4832 = vsel %vm3390, %v4763, 0.0
        %v4833 = vadd.f32 %v4831, %v4832
        %v4834 = vsel %vm3390, %v4764, 0.0
        %v4835 = vadd.f32 %v4833, %v4834
        %v4836 = vsel %vm3390, %v4765, 0.0
        %v4837 = vadd.f32 %v4835, %v4836
        %v4838 = vsel %vm3390, %v4766, 0.0
        %v4839 = vadd.f32 %v4837, %v4838
        %v4840 = vsel %vm3390, %v4767, 0.0
        %v4841 = vadd.f32 %v4839, %v4840
        %v4842 = vsel %vm3390, %v4768, 0.0
        %v4843 = vadd.f32 %v4841, %v4842
        %v4844 = vsel %vm3390, %v4769, 0.0
        %v4845 = vadd.f32 %v4843, %v4844
        %v4846 = vsel %vm3390, %v4770, 0.0
        %v4847 = vadd.f32 %v4845, %v4846
        %v4848 = vrot.slane %v4847, 4
        %v4849 = vadd.f32 %v4847, %v4848
        %v4850 = vrot.slane %v4849, 2
        %v4851 = vadd.f32 %v4849, %v4850
        %v4852 = vrot.slane %v4851, 1
        %v4853 = vadd.f32 %v4851, %v4852
        %v4854 = vmul.f32 %v4739, %v4739
        %v4855 = vmul.f32 %v4740, %v4740
        %v4856 = vmul.f32 %v4741, %v4741
        %v4857 = vmul.f32 %v4742, %v4742
        %v4858 = vmul.f32 %v4743, %v4743
        %v4859 = vmul.f32 %v4744, %v4744
        %v4860 = vmul.f32 %v4745, %v4745
        %v4861 = vmul.f32 %v4746, %v4746
        %v4862 = vmul.f32 %v4747, %v4747
        %v4863 = vmul.f32 %v4748, %v4748
        %v4864 = vmul.f32 %v4749, %v4749
        %v4865 = vmul.f32 %v4750, %v4750
        %v4866 = vmul.f32 %v4751, %v4751
        %v4867 = vmul.f32 %v4752, %v4752
        %v4868 = vmul.f32 %v4753, %v4753
        %v4869 = vmul.f32 %v4754, %v4754
        %v4870 = vmul.f32 %v4755, %v4755
        %v4871 = vmul.f32 %v4756, %v4756
        %v4872 = vmul.f32 %v4757, %v4757
        %v4873 = vmul.f32 %v4758, %v4758
        %v4874 = vmul.f32 %v4759, %v4759
        %v4875 = vmul.f32 %v4760, %v4760
        %v4876 = vmul.f32 %v4761, %v4761
        %v4877 = vmul.f32 %v4762, %v4762
        %v4878 = vmul.f32 %v4763, %v4763
        %v4879 = vmul.f32 %v4764, %v4764
        %v4880 = vmul.f32 %v4765, %v4765
        %v4881 = vmul.f32 %v4766, %v4766
        %v4882 = vmul.f32 %v4767, %v4767
        %v4883 = vmul.f32 %v4768, %v4768
        %v4884 = vmul.f32 %v4769, %v4769
        %v4885 = vmul.f32 %v4770, %v4770
        %v4886 = vsel %vm3390, %v4854, 0.0
        %v4887 = vsel %vm3390, %v4855, 0.0
        %v4888 = vadd.f32 %v4886, %v4887
        %v4889 = vsel %vm3390, %v4856, 0.0
        %v4890 = vadd.f32 %v4888, %v4889
        %v4891 = vsel %vm3390, %v4857, 0.0
        %v4892 = vadd.f32 %v4890, %v4891
        %v4893 = vsel %vm3390, %v4858, 0.0
        %v4894 = vadd.f32 %v4892, %v4893
        %v4895 = vsel %vm3390, %v4859, 0.0
        %v4896 = vadd.f32 %v4894, %v4895
        %v4897 = vsel %vm3390, %v4860, 0.0
        %v4898 = vadd.f32 %v4896, %v4897
        %v4899 = vsel %vm3390, %v4861, 0.0
        %v4900 = vadd.f32 %v4898, %v4899
        %v4901 = vsel %vm3390, %v4862, 0.0
        %v4902 = vadd.f32 %v4900, %v4901
        %v4903 = vsel %vm3390, %v4863, 0.0
        %v4904 = vadd.f32 %v4902, %v4903
        %v4905 = vsel %vm3390, %v4864, 0.0
        %v4906 = vadd.f32 %v4904, %v4905
        %v4907 = vsel %vm3390, %v4865, 0.0
        %v4908 = vadd.f32 %v4906, %v4907
        %v4909 = vsel %vm3390, %v4866, 0.0
        %v4910 = vadd.f32 %v4908, %v4909
        %v4911 = vsel %vm3390, %v4867, 0.0
        %v4912 = vadd.f32 %v4910, %v4911
        %v4913 = vsel %vm3390, %v4868, 0.0
        %v4914 = vadd.f32 %v4912, %v4913
        %v4915 = vsel %vm3390, %v4869, 0.0
        %v4916 = vadd.f32 %v4914, %v4915
        %v4917 = vsel %vm3390, %v4870, 0.0
        %v4918 = vadd.f32 %v4916, %v4917
        %v4919 = vsel %vm3390, %v4871, 0.0
        %v4920 = vadd.f32 %v4918, %v4919
        %v4921 = vsel %vm3390, %v4872, 0.0
        %v4922 = vadd.f32 %v4920, %v4921
        %v4923 = vsel %vm3390, %v4873, 0.0
        %v4924 = vadd.f32 %v4922, %v4923
        %v4925 = vsel %vm3390, %v4874, 0.0
        %v4926 = vadd.f32 %v4924, %v4925
        %v4927 = vsel %vm3390, %v4875, 0.0
        %v4928 = vadd.f32 %v4926, %v4927
        %v4929 = vsel %vm3390, %v4876, 0.0
        %v4930 = vadd.f32 %v4928, %v4929
        %v4931 = vsel %vm3390, %v4877, 0.0
        %v4932 = vadd.f32 %v4930, %v4931
        %v4933 = vsel %vm3390, %v4878, 0.0
        %v4934 = vadd.f32 %v4932, %v4933
        %v4935 = vsel %vm3390, %v4879, 0.0
        %v4936 = vadd.f32 %v4934, %v4935
        %v4937 = vsel %vm3390, %v4880, 0.0
        %v4938 = vadd.f32 %v4936, %v4937
        %v4939 = vsel %vm3390, %v4881, 0.0
        %v4940 = vadd.f32 %v4938, %v4939
        %v4941 = vsel %vm3390, %v4882, 0.0
        %v4942 = vadd.f32 %v4940, %v4941
        %v4943 = vsel %vm3390, %v4883, 0.0
        %v4944 = vadd.f32 %v4942, %v4943
        %v4945 = vsel %vm3390, %v4884, 0.0
        %v4946 = vadd.f32 %v4944, %v4945
        %v4947 = vsel %vm3390, %v4885, 0.0
        %v4948 = vadd.f32 %v4946, %v4947
        %v4949 = vrot.slane %v4948, 4
        %v4950 = vadd.f32 %v4948, %v4949
        %v4951 = vrot.slane %v4950, 2
        %v4952 = vadd.f32 %v4950, %v4951
        %v4953 = vrot.slane %v4952, 1
        %v4954 = vadd.f32 %v4952, %v4953
        %v4956 = vsel %vm3390, %v4853, 0
        %4958 = vmatprep.subr.mxu0 0.0
        %4959 = vmatpush1.msra.mxu0 0.0
        %4960 = vmatprep.subr.mxu0 0.0
        %4961 = vmatpush1.msra.mxu0 0.0
        %4962 = vmatprep.subr.mxu0 0.0
        %4963 = vmatpush1.msra.mxu0 0.0
        %4964 = vmatprep.subr.mxu0 0.0
        %4965 = vmatpush1.msra.mxu0 0.0
        %4966 = vmatprep.subr.mxu0 0.0
        %4967 = vmatpush1.msra.mxu0 0.0
        %4968 = vmatprep.subr.mxu0 0.0
        %4969 = vmatpush1.msra.mxu0 0.0
        %4970 = vmatprep.subr.mxu0 0.0
        %4971 = vmatpush1.msra.mxu0 0.0
        %4972 = vmatprep.subr.mxu0 0.0
        %4973 = vmatpush1.msra.mxu0 0.0
        %4974 = vmatprep.subr.mxu0 0.0
        %v4975 = vand.u32 %v4778, 4294901760
        %4976 = vmatpush1.msra.mxu0 %v4975
        %4977 = vmatprep.subr.mxu0 0.0
        %v4978 = vand.u32 %v4777, 4294901760
        %4979 = vmatpush1.msra.mxu0 %v4978
        %4980 = vmatprep.subr.mxu0 0.0
        %v4981 = vand.u32 %v4776, 4294901760
        %4982 = vmatpush1.msra.mxu0 %v4981
        %4983 = vmatprep.subr.mxu0 0.0
        %v4984 = vand.u32 %v4775, 4294901760
        %4985 = vmatpush1.msra.mxu0 %v4984
        %4986 = vmatprep.subr.mxu0 0.0
        %v4987 = vand.u32 %v4774, 4294901760
        %4988 = vmatpush1.msra.mxu0 %v4987
        %4989 = vmatprep.subr.mxu0 0.0
        %v4990 = vand.u32 %v4773, 4294901760
        %4991 = vmatpush1.msra.mxu0 %v4990
        %4992 = vmatprep.subr.mxu0 0.0
        %v4993 = vand.u32 %v4772, 4294901760
        %4994 = vmatpush1.msra.mxu0 %v4993
        %4995 = vmatprep.subr.mxu0 0.0
        %v4996 = vand.u32 %v4771, 4294901760
        %4997 = vmatpush1.msra.mxu0 %v4996
        %4998 = vmatprep.subr.mxu0 0.0
        %4999 = vmatpush2.msra.mxu0 0.0
        %5000 = vmatprep.subr.mxu0 0.0
        %5001 = vmatpush2.msra.mxu0 0.0
        %5002 = vmatprep.subr.mxu0 0.0
        %5003 = vmatpush2.msra.mxu0 0.0
        %5004 = vmatprep.subr.mxu0 0.0
        %5005 = vmatpush2.msra.mxu0 0.0
        %5006 = vmatprep.subr.mxu0 0.0
        %5007 = vmatpush2.msra.mxu0 0.0
        %5008 = vmatprep.subr.mxu0 0.0
        %5009 = vmatpush2.msra.mxu0 0.0
        %5010 = vmatprep.subr.mxu0 0.0
        %5011 = vmatpush2.msra.mxu0 0.0
        %5012 = vmatprep.subr.mxu0 0.0
        %5013 = vmatpush2.msra.mxu0 0.0
        %5014 = vmatprep.subr.mxu0 0.0
        %5015 = vmatpush2.msra.mxu0 0.0
        %5016 = vmatprep.subr.mxu0 0.0
        %5017 = vmatpush2.msra.mxu0 0.0
        %5018 = vmatprep.subr.mxu0 0.0
        %5019 = vmatpush2.msra.mxu0 0.0
        %5020 = vmatprep.subr.mxu0 0.0
        %5021 = vmatpush2.msra.mxu0 0.0
        %5022 = vmatprep.subr.mxu0 0.0
        %5023 = vmatpush2.msra.mxu0 0.0
        %5024 = vmatprep.subr.mxu0 0.0
        %5025 = vmatpush2.msra.mxu0 0.0
        %5026 = vmatprep.subr.mxu0 0.0
        %5027 = vmatpush2.msra.mxu0 0.0
        %5028 = vmatprep.subr.mxu0 0.0
        %5029 = vmatpush2.msra.mxu0 0.0
        %5030 = vmatprep.mubr.f32.mxu0 0.0
        %v5031 = vand.u32 %v4956, 4294901760
        %v5032 = vsub.f32 %v4956, %v5031
        %v5033 = vand.u32 %v5032, 4294901760
        %v5034 = vsub.f32 %v5032, %v5033
        %v5035 = vand.u32 %v5034, 4294901760
        %5036 = vmatmul.mubr.f32.gmra.mxu0 %v5035
        %v5037 = vpop.f32.mrf.mxu0
        %v5038 = vadd.f32 0.0, %v5037
        %v5039 = vpop.f32.mrf.mxu0
        %5040 = vdwg.mxu0
        %5041 = vmatprep.subr.mxu0 0.0
        %5042 = vmatpush1.msra.mxu0 0.0
        %5043 = vmatprep.subr.mxu0 0.0
        %5044 = vmatpush1.msra.mxu0 0.0
        %5045 = vmatprep.subr.mxu0 0.0
        %5046 = vmatpush1.msra.mxu0 0.0
        %5047 = vmatprep.subr.mxu0 0.0
        %5048 = vmatpush1.msra.mxu0 0.0
        %5049 = vmatprep.subr.mxu0 0.0
        %5050 = vmatpush1.msra.mxu0 0.0
        %5051 = vmatprep.subr.mxu0 0.0
        %5052 = vmatpush1.msra.mxu0 0.0
        %5053 = vmatprep.subr.mxu0 0.0
        %5054 = vmatpush1.msra.mxu0 0.0
        %5055 = vmatprep.subr.mxu0 0.0
        %5056 = vmatpush1.msra.mxu0 0.0
        %5057 = vmatprep.subr.mxu0 0.0
        %v5058 = vand.u32 %v4778, 4294901760
        %v5059 = vsub.f32 %v4778, %v5058
        %v5060 = vand.u32 %v5059, 4294901760
        %v5061 = vsub.f32 %v5059, %v5060
        %v5062 = vand.u32 %v5061, 4294901760
        %5063 = vmatpush1.msra.mxu0 %v5062
        %5064 = vmatprep.subr.mxu0 0.0
        %v5065 = vand.u32 %v4777, 4294901760
        %v5066 = vsub.f32 %v4777, %v5065
        %v5067 = vand.u32 %v5066, 4294901760
        %v5068 = vsub.f32 %v5066, %v5067
        %v5069 = vand.u32 %v5068, 4294901760
        %5070 = vmatpush1.msra.mxu0 %v5069
        %5071 = vmatprep.subr.mxu0 0.0
        %v5072 = vand.u32 %v4776, 4294901760
        %v5073 = vsub.f32 %v4776, %v5072
        %v5074 = vand.u32 %v5073, 4294901760
        %v5075 = vsub.f32 %v5073, %v5074
        %v5076 = vand.u32 %v5075, 4294901760
        %5077 = vmatpush1.msra.mxu0 %v5076
        %5078 = vmatprep.subr.mxu0 0.0
        %v5079 = vand.u32 %v4775, 4294901760
        %v5080 = vsub.f32 %v4775, %v5079
        %v5081 = vand.u32 %v5080, 4294901760
        %v5082 = vsub.f32 %v5080, %v5081
        %v5083 = vand.u32 %v5082, 4294901760
        %5084 = vmatpush1.msra.mxu0 %v5083
        %5085 = vmatprep.subr.mxu0 0.0
        %v5086 = vand.u32 %v4774, 4294901760
        %v5087 = vsub.f32 %v4774, %v5086
        %v5088 = vand.u32 %v5087, 4294901760
        %v5089 = vsub.f32 %v5087, %v5088
        %v5090 = vand.u32 %v5089, 4294901760
        %5091 = vmatpush1.msra.mxu0 %v5090
        %5092 = vmatprep.subr.mxu0 0.0
        %v5093 = vand.u32 %v4773, 4294901760
        %v5094 = vsub.f32 %v4773, %v5093
        %v5095 = vand.u32 %v5094, 4294901760
        %v5096 = vsub.f32 %v5094, %v5095
        %v5097 = vand.u32 %v5096, 4294901760
        %5098 = vmatpush1.msra.mxu0 %v5097
        %5099 = vmatprep.subr.mxu0 0.0
        %v5100 = vand.u32 %v4772, 4294901760
        %v5101 = vsub.f32 %v4772, %v5100
        %v5102 = vand.u32 %v5101, 4294901760
        %v5103 = vsub.f32 %v5101, %v5102
        %v5104 = vand.u32 %v5103, 4294901760
        %5105 = vmatpush1.msra.mxu0 %v5104
        %5106 = vmatprep.subr.mxu0 0.0
        %v5107 = vand.u32 %v4771, 4294901760
        %v5108 = vsub.f32 %v4771, %v5107
        %v5109 = vand.u32 %v5108, 4294901760
        %v5110 = vsub.f32 %v5108, %v5109
        %v5111 = vand.u32 %v5110, 4294901760
        %5112 = vmatpush1.msra.mxu0 %v5111
        %5113 = vmatprep.subr.mxu0 0.0
        %5114 = vmatpush2.msra.mxu0 0.0
        %5115 = vmatprep.subr.mxu0 0.0
        %5116 = vmatpush2.msra.mxu0 0.0
        %5117 = vmatprep.subr.mxu0 0.0
        %5118 = vmatpush2.msra.mxu0 0.0
        %5119 = vmatprep.subr.mxu0 0.0
        %5120 = vmatpush2.msra.mxu0 0.0
        %5121 = vmatprep.subr.mxu0 0.0
        %5122 = vmatpush2.msra.mxu0 0.0
        %5123 = vmatprep.subr.mxu0 0.0
        %5124 = vmatpush2.msra.mxu0 0.0
        %5125 = vmatprep.subr.mxu0 0.0
        %5126 = vmatpush2.msra.mxu0 0.0
        %5127 = vmatprep.subr.mxu0 0.0
        %5128 = vmatpush2.msra.mxu0 0.0
        %5129 = vmatprep.subr.mxu0 0.0
        %5130 = vmatpush2.msra.mxu0 0.0
        %5131 = vmatprep.subr.mxu0 0.0
        %5132 = vmatpush2.msra.mxu0 0.0
        %5133 = vmatprep.subr.mxu0 0.0
        %5134 = vmatpush2.msra.mxu0 0.0
        %5135 = vmatprep.subr.mxu0 0.0
        %5136 = vmatpush2.msra.mxu0 0.0
        %5137 = vmatprep.subr.mxu0 0.0
        %5138 = vmatpush2.msra.mxu0 0.0
        %5139 = vmatprep.subr.mxu0 0.0
        %5140 = vmatpush2.msra.mxu0 0.0
        %5141 = vmatprep.subr.mxu0 0.0
        %5142 = vmatpush2.msra.mxu0 0.0
        %5143 = vmatprep.subr.mxu0 0.0
        %5144 = vmatpush2.msra.mxu0 0.0
        %5145 = vmatprep.mubr.f32.mxu0 0.0
        %v5146 = vand.u32 %v4956, 4294901760
        %5147 = vmatmul.mubr.f32.gmra.mxu0 %v5146
        %v5148 = vpop.f32.mrf.mxu0
        %v5149 = vadd.f32 %v5038, %v5148
        %v5150 = vpop.f32.mrf.mxu0
        %5151 = vdwg.mxu0
        %5152 = vmatprep.subr.mxu0 0.0
        %5153 = vmatpush1.msra.mxu0 0.0
        %5154 = vmatprep.subr.mxu0 0.0
        %5155 = vmatpush1.msra.mxu0 0.0
        %5156 = vmatprep.subr.mxu0 0.0
        %5157 = vmatpush1.msra.mxu0 0.0
        %5158 = vmatprep.subr.mxu0 0.0
        %5159 = vmatpush1.msra.mxu0 0.0
        %5160 = vmatprep.subr.mxu0 0.0
        %5161 = vmatpush1.msra.mxu0 0.0
        %5162 = vmatprep.subr.mxu0 0.0
        %5163 = vmatpush1.msra.mxu0 0.0
        %5164 = vmatprep.subr.mxu0 0.0
        %5165 = vmatpush1.msra.mxu0 0.0
        %5166 = vmatprep.subr.mxu0 0.0
        %5167 = vmatpush1.msra.mxu0 0.0
        %5168 = vmatprep.subr.mxu0 0.0
        %v5169 = vand.u32 %v4778, 4294901760
        %v5170 = vsub.f32 %v4778, %v5169
        %5171 = vmatpush1.msra.mxu0 %v5170
        %5172 = vmatprep.subr.mxu0 0.0
        %v5173 = vand.u32 %v4777, 4294901760
        %v5174 = vsub.f32 %v4777, %v5173
        %5175 = vmatpush1.msra.mxu0 %v5174
        %5176 = vmatprep.subr.mxu0 0.0
        %v5177 = vand.u32 %v4776, 4294901760
        %v5178 = vsub.f32 %v4776, %v5177
        %5179 = vmatpush1.msra.mxu0 %v5178
        %5180 = vmatprep.subr.mxu0 0.0
        %v5181 = vand.u32 %v4775, 4294901760
        %v5182 = vsub.f32 %v4775, %v5181
        %5183 = vmatpush1.msra.mxu0 %v5182
        %5184 = vmatprep.subr.mxu0 0.0
        %v5185 = vand.u32 %v4774, 4294901760
        %v5186 = vsub.f32 %v4774, %v5185
        %5187 = vmatpush1.msra.mxu0 %v5186
        %5188 = vmatprep.subr.mxu0 0.0
        %v5189 = vand.u32 %v4773, 4294901760
        %v5190 = vsub.f32 %v4773, %v5189
        %5191 = vmatpush1.msra.mxu0 %v5190
        %5192 = vmatprep.subr.mxu0 0.0
        %v5193 = vand.u32 %v4772, 4294901760
        %v5194 = vsub.f32 %v4772, %v5193
        %5195 = vmatpush1.msra.mxu0 %v5194
        %5196 = vmatprep.subr.mxu0 0.0
        %v5197 = vand.u32 %v4771, 4294901760
        %v5198 = vsub.f32 %v4771, %v5197
        %5199 = vmatpush1.msra.mxu0 %v5198
        %5200 = vmatprep.subr.mxu0 0.0
        %5201 = vmatpush2.msra.mxu0 0.0
        %5202 = vmatprep.subr.mxu0 0.0
        %5203 = vmatpush2.msra.mxu0 0.0
        %5204 = vmatprep.subr.mxu0 0.0
        %5205 = vmatpush2.msra.mxu0 0.0
        %5206 = vmatprep.subr.mxu0 0.0
        %5207 = vmatpush2.msra.mxu0 0.0
        %5208 = vmatprep.subr.mxu0 0.0
        %5209 = vmatpush2.msra.mxu0 0.0
        %5210 = vmatprep.subr.mxu0 0.0
        %5211 = vmatpush2.msra.mxu0 0.0
        %5212 = vmatprep.subr.mxu0 0.0
        %5213 = vmatpush2.msra.mxu0 0.0
        %5214 = vmatprep.subr.mxu0 0.0
        %5215 = vmatpush2.msra.mxu0 0.0
        %5216 = vmatprep.subr.mxu0 0.0
        %5217 = vmatpush2.msra.mxu0 0.0
        %5218 = vmatprep.subr.mxu0 0.0
        %5219 = vmatpush2.msra.mxu0 0.0
        %5220 = vmatprep.subr.mxu0 0.0
        %5221 = vmatpush2.msra.mxu0 0.0
        %5222 = vmatprep.subr.mxu0 0.0
        %5223 = vmatpush2.msra.mxu0 0.0
        %5224 = vmatprep.subr.mxu0 0.0
        %5225 = vmatpush2.msra.mxu0 0.0
        %5226 = vmatprep.subr.mxu0 0.0
        %5227 = vmatpush2.msra.mxu0 0.0
        %5228 = vmatprep.subr.mxu0 0.0
        %5229 = vmatpush2.msra.mxu0 0.0
        %5230 = vmatprep.subr.mxu0 0.0
        %5231 = vmatpush2.msra.mxu0 0.0
        %5232 = vmatprep.mubr.f32.mxu0 0.0
        %v5233 = vand.u32 %v4956, 4294901760
        %v5234 = vsub.f32 %v4956, %v5233
        %5235 = vmatmul.mubr.f32.gmra.mxu0 %v5234
        %v5236 = vpop.f32.mrf.mxu0
        %v5237 = vadd.f32 %v5149, %v5236
        %v5238 = vpop.f32.mrf.mxu0
        %5239 = vdwg.mxu0
        %5240 = vmatprep.subr.mxu0 0.0
        %5241 = vmatpush1.msra.mxu0 0.0
        %5242 = vmatprep.subr.mxu0 0.0
        %5243 = vmatpush1.msra.mxu0 0.0
        %5244 = vmatprep.subr.mxu0 0.0
        %5245 = vmatpush1.msra.mxu0 0.0
        %5246 = vmatprep.subr.mxu0 0.0
        %5247 = vmatpush1.msra.mxu0 0.0
        %5248 = vmatprep.subr.mxu0 0.0
        %5249 = vmatpush1.msra.mxu0 0.0
        %5250 = vmatprep.subr.mxu0 0.0
        %5251 = vmatpush1.msra.mxu0 0.0
        %5252 = vmatprep.subr.mxu0 0.0
        %5253 = vmatpush1.msra.mxu0 0.0
        %5254 = vmatprep.subr.mxu0 0.0
        %5255 = vmatpush1.msra.mxu0 0.0
        %5256 = vmatprep.subr.mxu0 0.0
        %v5257 = vand.u32 %v4778, 4294901760
        %5258 = vmatpush1.msra.mxu0 %v5257
        %5259 = vmatprep.subr.mxu0 0.0
        %v5260 = vand.u32 %v4777, 4294901760
        %5261 = vmatpush1.msra.mxu0 %v5260
        %5262 = vmatprep.subr.mxu0 0.0
        %v5263 = vand.u32 %v4776, 4294901760
        %5264 = vmatpush1.msra.mxu0 %v5263
        %5265 = vmatprep.subr.mxu0 0.0
        %v5266 = vand.u32 %v4775, 4294901760
        %5267 = vmatpush1.msra.mxu0 %v5266
        %5268 = vmatprep.subr.mxu0 0.0
        %v5269 = vand.u32 %v4774, 4294901760
        %5270 = vmatpush1.msra.mxu0 %v5269
        %5271 = vmatprep.subr.mxu0 0.0
        %v5272 = vand.u32 %v4773, 4294901760
        %5273 = vmatpush1.msra.mxu0 %v5272
        %5274 = vmatprep.subr.mxu0 0.0
        %v5275 = vand.u32 %v4772, 4294901760
        %5276 = vmatpush1.msra.mxu0 %v5275
        %5277 = vmatprep.subr.mxu0 0.0
        %v5278 = vand.u32 %v4771, 4294901760
        %5279 = vmatpush1.msra.mxu0 %v5278
        %5280 = vmatprep.subr.mxu0 0.0
        %5281 = vmatpush2.msra.mxu0 0.0
        %5282 = vmatprep.subr.mxu0 0.0
        %5283 = vmatpush2.msra.mxu0 0.0
        %5284 = vmatprep.subr.mxu0 0.0
        %5285 = vmatpush2.msra.mxu0 0.0
        %5286 = vmatprep.subr.mxu0 0.0
        %5287 = vmatpush2.msra.mxu0 0.0
        %5288 = vmatprep.subr.mxu0 0.0
        %5289 = vmatpush2.msra.mxu0 0.0
        %5290 = vmatprep.subr.mxu0 0.0
        %5291 = vmatpush2.msra.mxu0 0.0
        %5292 = vmatprep.subr.mxu0 0.0
        %5293 = vmatpush2.msra.mxu0 0.0
        %5294 = vmatprep.subr.mxu0 0.0
        %5295 = vmatpush2.msra.mxu0 0.0
        %5296 = vmatprep.subr.mxu0 0.0
        %5297 = vmatpush2.msra.mxu0 0.0
        %5298 = vmatprep.subr.mxu0 0.0
        %5299 = vmatpush2.msra.mxu0 0.0
        %5300 = vmatprep.subr.mxu0 0.0
        %5301 = vmatpush2.msra.mxu0 0.0
        %5302 = vmatprep.subr.mxu0 0.0
        %5303 = vmatpush2.msra.mxu0 0.0
        %5304 = vmatprep.subr.mxu0 0.0
        %5305 = vmatpush2.msra.mxu0 0.0
        %5306 = vmatprep.subr.mxu0 0.0
        %5307 = vmatpush2.msra.mxu0 0.0
        %5308 = vmatprep.subr.mxu0 0.0
        %5309 = vmatpush2.msra.mxu0 0.0
        %5310 = vmatprep.subr.mxu0 0.0
        %5311 = vmatpush2.msra.mxu0 0.0
        %5312 = vmatprep.mubr.f32.mxu0 0.0
        %v5313 = vand.u32 %v4956, 4294901760
        %v5314 = vsub.f32 %v4956, %v5313
        %v5315 = vand.u32 %v5314, 4294901760
        %5316 = vmatmul.mubr.f32.gmra.mxu0 %v5315
        %v5317 = vpop.f32.mrf.mxu0
        %v5318 = vadd.f32 %v5237, %v5317
        %v5319 = vpop.f32.mrf.mxu0
        %5320 = vdwg.mxu0
        %5321 = vmatprep.subr.mxu0 0.0
        %5322 = vmatpush1.msra.mxu0 0.0
        %5323 = vmatprep.subr.mxu0 0.0
        %5324 = vmatpush1.msra.mxu0 0.0
        %5325 = vmatprep.subr.mxu0 0.0
        %5326 = vmatpush1.msra.mxu0 0.0
        %5327 = vmatprep.subr.mxu0 0.0
        %5328 = vmatpush1.msra.mxu0 0.0
        %5329 = vmatprep.subr.mxu0 0.0
        %5330 = vmatpush1.msra.mxu0 0.0
        %5331 = vmatprep.subr.mxu0 0.0
        %5332 = vmatpush1.msra.mxu0 0.0
        %5333 = vmatprep.subr.mxu0 0.0
        %5334 = vmatpush1.msra.mxu0 0.0
        %5335 = vmatprep.subr.mxu0 0.0
        %5336 = vmatpush1.msra.mxu0 0.0
        %5337 = vmatprep.subr.mxu0 0.0
        %v5338 = vand.u32 %v4778, 4294901760
        %v5339 = vsub.f32 %v4778, %v5338
        %v5340 = vand.u32 %v5339, 4294901760
        %5341 = vmatpush1.msra.mxu0 %v5340
        %5342 = vmatprep.subr.mxu0 0.0
        %v5343 = vand.u32 %v4777, 4294901760
        %v5344 = vsub.f32 %v4777, %v5343
        %v5345 = vand.u32 %v5344, 4294901760
        %5346 = vmatpush1.msra.mxu0 %v5345
        %5347 = vmatprep.subr.mxu0 0.0
        %v5348 = vand.u32 %v4776, 4294901760
        %v5349 = vsub.f32 %v4776, %v5348
        %v5350 = vand.u32 %v5349, 4294901760
        %5351 = vmatpush1.msra.mxu0 %v5350
        %5352 = vmatprep.subr.mxu0 0.0
        %v5353 = vand.u32 %v4775, 4294901760
        %v5354 = vsub.f32 %v4775, %v5353
        %v5355 = vand.u32 %v5354, 4294901760
        %5356 = vmatpush1.msra.mxu0 %v5355
        %5357 = vmatprep.subr.mxu0 0.0
        %v5358 = vand.u32 %v4774, 4294901760
        %v5359 = vsub.f32 %v4774, %v5358
        %v5360 = vand.u32 %v5359, 4294901760
        %5361 = vmatpush1.msra.mxu0 %v5360
        %5362 = vmatprep.subr.mxu0 0.0
        %v5363 = vand.u32 %v4773, 4294901760
        %v5364 = vsub.f32 %v4773, %v5363
        %v5365 = vand.u32 %v5364, 4294901760
        %5366 = vmatpush1.msra.mxu0 %v5365
        %5367 = vmatprep.subr.mxu0 0.0
        %v5368 = vand.u32 %v4772, 4294901760
        %v5369 = vsub.f32 %v4772, %v5368
        %v5370 = vand.u32 %v5369, 4294901760
        %5371 = vmatpush1.msra.mxu0 %v5370
        %5372 = vmatprep.subr.mxu0 0.0
        %v5373 = vand.u32 %v4771, 4294901760
        %v5374 = vsub.f32 %v4771, %v5373
        %v5375 = vand.u32 %v5374, 4294901760
        %5376 = vmatpush1.msra.mxu0 %v5375
        %5377 = vmatprep.subr.mxu0 0.0
        %5378 = vmatpush2.msra.mxu0 0.0
        %5379 = vmatprep.subr.mxu0 0.0
        %5380 = vmatpush2.msra.mxu0 0.0
        %5381 = vmatprep.subr.mxu0 0.0
        %5382 = vmatpush2.msra.mxu0 0.0
        %5383 = vmatprep.subr.mxu0 0.0
        %5384 = vmatpush2.msra.mxu0 0.0
        %5385 = vmatprep.subr.mxu0 0.0
        %5386 = vmatpush2.msra.mxu0 0.0
        %5387 = vmatprep.subr.mxu0 0.0
        %5388 = vmatpush2.msra.mxu0 0.0
        %5389 = vmatprep.subr.mxu0 0.0
        %5390 = vmatpush2.msra.mxu0 0.0
        %5391 = vmatprep.subr.mxu0 0.0
        %5392 = vmatpush2.msra.mxu0 0.0
        %5393 = vmatprep.subr.mxu0 0.0
        %5394 = vmatpush2.msra.mxu0 0.0
        %5395 = vmatprep.subr.mxu0 0.0
        %5396 = vmatpush2.msra.mxu0 0.0
        %5397 = vmatprep.subr.mxu0 0.0
        %5398 = vmatpush2.msra.mxu0 0.0
        %5399 = vmatprep.subr.mxu0 0.0
        %5400 = vmatpush2.msra.mxu0 0.0
        %5401 = vmatprep.subr.mxu0 0.0
        %5402 = vmatpush2.msra.mxu0 0.0
        %5403 = vmatprep.subr.mxu0 0.0
        %5404 = vmatpush2.msra.mxu0 0.0
        %5405 = vmatprep.subr.mxu0 0.0
        %5406 = vmatpush2.msra.mxu0 0.0
        %5407 = vmatprep.subr.mxu0 0.0
        %5408 = vmatpush2.msra.mxu0 0.0
        %5409 = vmatprep.mubr.f32.mxu0 0.0
        %v5410 = vand.u32 %v4956, 4294901760
        %5411 = vmatmul.mubr.f32.gmra.mxu0 %v5410
        %v5412 = vpop.f32.mrf.mxu0
        %v5413 = vadd.f32 %v5318, %v5412
        %v5414 = vpop.f32.mrf.mxu0
        %5415 = vdwg.mxu0
        %5416 = vmatprep.subr.mxu0 0.0
        %5417 = vmatpush1.msra.mxu0 0.0
        %5418 = vmatprep.subr.mxu0 0.0
        %5419 = vmatpush1.msra.mxu0 0.0
        %5420 = vmatprep.subr.mxu0 0.0
        %5421 = vmatpush1.msra.mxu0 0.0
        %5422 = vmatprep.subr.mxu0 0.0
        %5423 = vmatpush1.msra.mxu0 0.0
        %5424 = vmatprep.subr.mxu0 0.0
        %5425 = vmatpush1.msra.mxu0 0.0
        %5426 = vmatprep.subr.mxu0 0.0
        %5427 = vmatpush1.msra.mxu0 0.0
        %5428 = vmatprep.subr.mxu0 0.0
        %5429 = vmatpush1.msra.mxu0 0.0
        %5430 = vmatprep.subr.mxu0 0.0
        %5431 = vmatpush1.msra.mxu0 0.0
        %5432 = vmatprep.subr.mxu0 0.0
        %v5433 = vand.u32 %v4778, 4294901760
        %5434 = vmatpush1.msra.mxu0 %v5433
        %5435 = vmatprep.subr.mxu0 0.0
        %v5436 = vand.u32 %v4777, 4294901760
        %5437 = vmatpush1.msra.mxu0 %v5436
        %5438 = vmatprep.subr.mxu0 0.0
        %v5439 = vand.u32 %v4776, 4294901760
        %5440 = vmatpush1.msra.mxu0 %v5439
        %5441 = vmatprep.subr.mxu0 0.0
        %v5442 = vand.u32 %v4775, 4294901760
        %5443 = vmatpush1.msra.mxu0 %v5442
        %5444 = vmatprep.subr.mxu0 0.0
        %v5445 = vand.u32 %v4774, 4294901760
        %5446 = vmatpush1.msra.mxu0 %v5445
        %5447 = vmatprep.subr.mxu0 0.0
        %v5448 = vand.u32 %v4773, 4294901760
        %5449 = vmatpush1.msra.mxu0 %v5448
        %5450 = vmatprep.subr.mxu0 0.0
        %v5451 = vand.u32 %v4772, 4294901760
        %5452 = vmatpush1.msra.mxu0 %v5451
        %5453 = vmatprep.subr.mxu0 0.0
        %v5454 = vand.u32 %v4771, 4294901760
        %5455 = vmatpush1.msra.mxu0 %v5454
        %5456 = vmatprep.subr.mxu0 0.0
        %5457 = vmatpush2.msra.mxu0 0.0
        %5458 = vmatprep.subr.mxu0 0.0
        %5459 = vmatpush2.msra.mxu0 0.0
        %5460 = vmatprep.subr.mxu0 0.0
        %5461 = vmatpush2.msra.mxu0 0.0
        %5462 = vmatprep.subr.mxu0 0.0
        %5463 = vmatpush2.msra.mxu0 0.0
        %5464 = vmatprep.subr.mxu0 0.0
        %5465 = vmatpush2.msra.mxu0 0.0
        %5466 = vmatprep.subr.mxu0 0.0
        %5467 = vmatpush2.msra.mxu0 0.0
        %5468 = vmatprep.subr.mxu0 0.0
        %5469 = vmatpush2.msra.mxu0 0.0
        %5470 = vmatprep.subr.mxu0 0.0
        %5471 = vmatpush2.msra.mxu0 0.0
        %5472 = vmatprep.subr.mxu0 0.0
        %5473 = vmatpush2.msra.mxu0 0.0
        %5474 = vmatprep.subr.mxu0 0.0
        %5475 = vmatpush2.msra.mxu0 0.0
        %5476 = vmatprep.subr.mxu0 0.0
        %5477 = vmatpush2.msra.mxu0 0.0
        %5478 = vmatprep.subr.mxu0 0.0
        %5479 = vmatpush2.msra.mxu0 0.0
        %5480 = vmatprep.subr.mxu0 0.0
        %5481 = vmatpush2.msra.mxu0 0.0
        %5482 = vmatprep.subr.mxu0 0.0
        %5483 = vmatpush2.msra.mxu0 0.0
        %5484 = vmatprep.subr.mxu0 0.0
        %5485 = vmatpush2.msra.mxu0 0.0
        %5486 = vmatprep.subr.mxu0 0.0
        %5487 = vmatpush2.msra.mxu0 0.0
        %5488 = vmatprep.mubr.f32.mxu0 0.0
        %v5489 = vand.u32 %v4956, 4294901760
        %5490 = vmatmul.mubr.f32.gmra.mxu0 %v5489
        %v5491 = vpop.f32.mrf.mxu0
        %v5492 = vadd.f32 %v5413, %v5491
        %v5493 = vpop.f32.mrf.mxu0
        %5494 = vdwg.mxu0
        %v5496 = vsel %vm3390, %v4954, 0
        %5498 = vmatprep.subr.mxu0 0.0
        %5499 = vmatpush1.msra.mxu0 0.0
        %5500 = vmatprep.subr.mxu0 0.0
        %5501 = vmatpush1.msra.mxu0 0.0
        %5502 = vmatprep.subr.mxu0 0.0
        %5503 = vmatpush1.msra.mxu0 0.0
        %5504 = vmatprep.subr.mxu0 0.0
        %5505 = vmatpush1.msra.mxu0 0.0
        %5506 = vmatprep.subr.mxu0 0.0
        %5507 = vmatpush1.msra.mxu0 0.0
        %5508 = vmatprep.subr.mxu0 0.0
        %5509 = vmatpush1.msra.mxu0 0.0
        %5510 = vmatprep.subr.mxu0 0.0
        %5511 = vmatpush1.msra.mxu0 0.0
        %5512 = vmatprep.subr.mxu0 0.0
        %5513 = vmatpush1.msra.mxu0 0.0
        %5514 = vmatprep.subr.mxu0 0.0
        %v5515 = vand.u32 %v4778, 4294901760
        %5516 = vmatpush1.msra.mxu0 %v5515
        %5517 = vmatprep.subr.mxu0 0.0
        %v5518 = vand.u32 %v4777, 4294901760
        %5519 = vmatpush1.msra.mxu0 %v5518
        %5520 = vmatprep.subr.mxu0 0.0
        %v5521 = vand.u32 %v4776, 4294901760
        %5522 = vmatpush1.msra.mxu0 %v5521
        %5523 = vmatprep.subr.mxu0 0.0
        %v5524 = vand.u32 %v4775, 4294901760
        %5525 = vmatpush1.msra.mxu0 %v5524
        %5526 = vmatprep.subr.mxu0 0.0
        %v5527 = vand.u32 %v4774, 4294901760
        %5528 = vmatpush1.msra.mxu0 %v5527
        %5529 = vmatprep.subr.mxu0 0.0
        %v5530 = vand.u32 %v4773, 4294901760
        %5531 = vmatpush1.msra.mxu0 %v5530
        %5532 = vmatprep.subr.mxu0 0.0
        %v5533 = vand.u32 %v4772, 4294901760
        %5534 = vmatpush1.msra.mxu0 %v5533
        %5535 = vmatprep.subr.mxu0 0.0
        %v5536 = vand.u32 %v4771, 4294901760
        %5537 = vmatpush1.msra.mxu0 %v5536
        %5538 = vmatprep.subr.mxu0 0.0
        %5539 = vmatpush2.msra.mxu0 0.0
        %5540 = vmatprep.subr.mxu0 0.0
        %5541 = vmatpush2.msra.mxu0 0.0
        %5542 = vmatprep.subr.mxu0 0.0
        %5543 = vmatpush2.msra.mxu0 0.0
        %5544 = vmatprep.subr.mxu0 0.0
        %5545 = vmatpush2.msra.mxu0 0.0
        %5546 = vmatprep.subr.mxu0 0.0
        %5547 = vmatpush2.msra.mxu0 0.0
        %5548 = vmatprep.subr.mxu0 0.0
        %5549 = vmatpush2.msra.mxu0 0.0
        %5550 = vmatprep.subr.mxu0 0.0
        %5551 = vmatpush2.msra.mxu0 0.0
        %5552 = vmatprep.subr.mxu0 0.0
        %5553 = vmatpush2.msra.mxu0 0.0
        %5554 = vmatprep.subr.mxu0 0.0
        %5555 = vmatpush2.msra.mxu0 0.0
        %5556 = vmatprep.subr.mxu0 0.0
        %5557 = vmatpush2.msra.mxu0 0.0
        %5558 = vmatprep.subr.mxu0 0.0
        %5559 = vmatpush2.msra.mxu0 0.0
        %5560 = vmatprep.subr.mxu0 0.0
        %5561 = vmatpush2.msra.mxu0 0.0
        %5562 = vmatprep.subr.mxu0 0.0
        %5563 = vmatpush2.msra.mxu0 0.0
        %5564 = vmatprep.subr.mxu0 0.0
        %5565 = vmatpush2.msra.mxu0 0.0
        %5566 = vmatprep.subr.mxu0 0.0
        %5567 = vmatpush2.msra.mxu0 0.0
        %5568 = vmatprep.subr.mxu0 0.0
        %5569 = vmatpush2.msra.mxu0 0.0
        %5570 = vmatprep.mubr.f32.mxu0 0.0
        %v5571 = vand.u32 %v5496, 4294901760
        %v5572 = vsub.f32 %v5496, %v5571
        %v5573 = vand.u32 %v5572, 4294901760
        %v5574 = vsub.f32 %v5572, %v5573
        %v5575 = vand.u32 %v5574, 4294901760
        %5576 = vmatmul.mubr.f32.gmra.mxu0 %v5575
        %v5577 = vpop.f32.mrf.mxu0
        %v5578 = vadd.f32 0.0, %v5577
        %v5579 = vpop.f32.mrf.mxu0
        %5580 = vdwg.mxu0
        %5581 = vmatprep.subr.mxu0 0.0
        %5582 = vmatpush1.msra.mxu0 0.0
        %5583 = vmatprep.subr.mxu0 0.0
        %5584 = vmatpush1.msra.mxu0 0.0
        %5585 = vmatprep.subr.mxu0 0.0
        %5586 = vmatpush1.msra.mxu0 0.0
        %5587 = vmatprep.subr.mxu0 0.0
        %5588 = vmatpush1.msra.mxu0 0.0
        %5589 = vmatprep.subr.mxu0 0.0
        %5590 = vmatpush1.msra.mxu0 0.0
        %5591 = vmatprep.subr.mxu0 0.0
        %5592 = vmatpush1.msra.mxu0 0.0
        %5593 = vmatprep.subr.mxu0 0.0
        %5594 = vmatpush1.msra.mxu0 0.0
        %5595 = vmatprep.subr.mxu0 0.0
        %5596 = vmatpush1.msra.mxu0 0.0
        %5597 = vmatprep.subr.mxu0 0.0
        %v5598 = vand.u32 %v4778, 4294901760
        %v5599 = vsub.f32 %v4778, %v5598
        %v5600 = vand.u32 %v5599, 4294901760
        %v5601 = vsub.f32 %v5599, %v5600
        %v5602 = vand.u32 %v5601, 4294901760
        %5603 = vmatpush1.msra.mxu0 %v5602
        %5604 = vmatprep.subr.mxu0 0.0
        %v5605 = vand.u32 %v4777, 4294901760
        %v5606 = vsub.f32 %v4777, %v5605
        %v5607 = vand.u32 %v5606, 4294901760
        %v5608 = vsub.f32 %v5606, %v5607
        %v5609 = vand.u32 %v5608, 4294901760
        %5610 = vmatpush1.msra.mxu0 %v5609
        %5611 = vmatprep.subr.mxu0 0.0
        %v5612 = vand.u32 %v4776, 4294901760
        %v5613 = vsub.f32 %v4776, %v5612
        %v5614 = vand.u32 %v5613, 4294901760
        %v5615 = vsub.f32 %v5613, %v5614
        %v5616 = vand.u32 %v5615, 4294901760
        %5617 = vmatpush1.msra.mxu0 %v5616
        %5618 = vmatprep.subr.mxu0 0.0
        %v5619 = vand.u32 %v4775, 4294901760
        %v5620 = vsub.f32 %v4775, %v5619
        %v5621 = vand.u32 %v5620, 4294901760
        %v5622 = vsub.f32 %v5620, %v5621
        %v5623 = vand.u32 %v5622, 4294901760
        %5624 = vmatpush1.msra.mxu0 %v5623
        %5625 = vmatprep.subr.mxu0 0.0
        %v5626 = vand.u32 %v4774, 4294901760
        %v5627 = vsub.f32 %v4774, %v5626
        %v5628 = vand.u32 %v5627, 4294901760
        %v5629 = vsub.f32 %v5627, %v5628
        %v5630 = vand.u32 %v5629, 4294901760
        %5631 = vmatpush1.msra.mxu0 %v5630
        %5632 = vmatprep.subr.mxu0 0.0
        %v5633 = vand.u32 %v4773, 4294901760
        %v5634 = vsub.f32 %v4773, %v5633
        %v5635 = vand.u32 %v5634, 4294901760
        %v5636 = vsub.f32 %v5634, %v5635
        %v5637 = vand.u32 %v5636, 4294901760
        %5638 = vmatpush1.msra.mxu0 %v5637
        %5639 = vmatprep.subr.mxu0 0.0
        %v5640 = vand.u32 %v4772, 4294901760
        %v5641 = vsub.f32 %v4772, %v5640
        %v5642 = vand.u32 %v5641, 4294901760
        %v5643 = vsub.f32 %v5641, %v5642
        %v5644 = vand.u32 %v5643, 4294901760
        %5645 = vmatpush1.msra.mxu0 %v5644
        %5646 = vmatprep.subr.mxu0 0.0
        %v5647 = vand.u32 %v4771, 4294901760
        %v5648 = vsub.f32 %v4771, %v5647
        %v5649 = vand.u32 %v5648, 4294901760
        %v5650 = vsub.f32 %v5648, %v5649
        %v5651 = vand.u32 %v5650, 4294901760
        %5652 = vmatpush1.msra.mxu0 %v5651
        %5653 = vmatprep.subr.mxu0 0.0
        %5654 = vmatpush2.msra.mxu0 0.0
        %5655 = vmatprep.subr.mxu0 0.0
        %5656 = vmatpush2.msra.mxu0 0.0
        %5657 = vmatprep.subr.mxu0 0.0
        %5658 = vmatpush2.msra.mxu0 0.0
        %5659 = vmatprep.subr.mxu0 0.0
        %5660 = vmatpush2.msra.mxu0 0.0
        %5661 = vmatprep.subr.mxu0 0.0
        %5662 = vmatpush2.msra.mxu0 0.0
        %5663 = vmatprep.subr.mxu0 0.0
        %5664 = vmatpush2.msra.mxu0 0.0
        %5665 = vmatprep.subr.mxu0 0.0
        %5666 = vmatpush2.msra.mxu0 0.0
        %5667 = vmatprep.subr.mxu0 0.0
        %5668 = vmatpush2.msra.mxu0 0.0
        %5669 = vmatprep.subr.mxu0 0.0
        %5670 = vmatpush2.msra.mxu0 0.0
        %5671 = vmatprep.subr.mxu0 0.0
        %5672 = vmatpush2.msra.mxu0 0.0
        %5673 = vmatprep.subr.mxu0 0.0
        %5674 = vmatpush2.msra.mxu0 0.0
        %5675 = vmatprep.subr.mxu0 0.0
        %5676 = vmatpush2.msra.mxu0 0.0
        %5677 = vmatprep.subr.mxu0 0.0
        %5678 = vmatpush2.msra.mxu0 0.0
        %5679 = vmatprep.subr.mxu0 0.0
        %5680 = vmatpush2.msra.mxu0 0.0
        %5681 = vmatprep.subr.mxu0 0.0
        %5682 = vmatpush2.msra.mxu0 0.0
        %5683 = vmatprep.subr.mxu0 0.0
        %5684 = vmatpush2.msra.mxu0 0.0
        %5685 = vmatprep.mubr.f32.mxu0 0.0
        %v5686 = vand.u32 %v5496, 4294901760
        %5687 = vmatmul.mubr.f32.gmra.mxu0 %v5686
        %v5688 = vpop.f32.mrf.mxu0
        %v5689 = vadd.f32 %v5578, %v5688
        %v5690 = vpop.f32.mrf.mxu0
        %5691 = vdwg.mxu0
        %5692 = vmatprep.subr.mxu0 0.0
        %5693 = vmatpush1.msra.mxu0 0.0
        %5694 = vmatprep.subr.mxu0 0.0
        %5695 = vmatpush1.msra.mxu0 0.0
        %5696 = vmatprep.subr.mxu0 0.0
        %5697 = vmatpush1.msra.mxu0 0.0
        %5698 = vmatprep.subr.mxu0 0.0
        %5699 = vmatpush1.msra.mxu0 0.0
        %5700 = vmatprep.subr.mxu0 0.0
        %5701 = vmatpush1.msra.mxu0 0.0
        %5702 = vmatprep.subr.mxu0 0.0
        %5703 = vmatpush1.msra.mxu0 0.0
        %5704 = vmatprep.subr.mxu0 0.0
        %5705 = vmatpush1.msra.mxu0 0.0
        %5706 = vmatprep.subr.mxu0 0.0
        %5707 = vmatpush1.msra.mxu0 0.0
        %5708 = vmatprep.subr.mxu0 0.0
        %v5709 = vand.u32 %v4778, 4294901760
        %v5710 = vsub.f32 %v4778, %v5709
        %5711 = vmatpush1.msra.mxu0 %v5710
        %5712 = vmatprep.subr.mxu0 0.0
        %v5713 = vand.u32 %v4777, 4294901760
        %v5714 = vsub.f32 %v4777, %v5713
        %5715 = vmatpush1.msra.mxu0 %v5714
        %5716 = vmatprep.subr.mxu0 0.0
        %v5717 = vand.u32 %v4776, 4294901760
        %v5718 = vsub.f32 %v4776, %v5717
        %5719 = vmatpush1.msra.mxu0 %v5718
        %5720 = vmatprep.subr.mxu0 0.0
        %v5721 = vand.u32 %v4775, 4294901760
        %v5722 = vsub.f32 %v4775, %v5721
        %5723 = vmatpush1.msra.mxu0 %v5722
        %5724 = vmatprep.subr.mxu0 0.0
        %v5725 = vand.u32 %v4774, 4294901760
        %v5726 = vsub.f32 %v4774, %v5725
        %5727 = vmatpush1.msra.mxu0 %v5726
        %5728 = vmatprep.subr.mxu0 0.0
        %v5729 = vand.u32 %v4773, 4294901760
        %v5730 = vsub.f32 %v4773, %v5729
        %5731 = vmatpush1.msra.mxu0 %v5730
        %5732 = vmatprep.subr.mxu0 0.0
        %v5733 = vand.u32 %v4772, 4294901760
        %v5734 = vsub.f32 %v4772, %v5733
        %5735 = vmatpush1.msra.mxu0 %v5734
        %5736 = vmatprep.subr.mxu0 0.0
        %v5737 = vand.u32 %v4771, 4294901760
        %v5738 = vsub.f32 %v4771, %v5737
        %5739 = vmatpush1.msra.mxu0 %v5738
        %5740 = vmatprep.subr.mxu0 0.0
        %5741 = vmatpush2.msra.mxu0 0.0
        %5742 = vmatprep.subr.mxu0 0.0
        %5743 = vmatpush2.msra.mxu0 0.0
        %5744 = vmatprep.subr.mxu0 0.0
        %5745 = vmatpush2.msra.mxu0 0.0
        %5746 = vmatprep.subr.mxu0 0.0
        %5747 = vmatpush2.msra.mxu0 0.0
        %5748 = vmatprep.subr.mxu0 0.0
        %5749 = vmatpush2.msra.mxu0 0.0
        %5750 = vmatprep.subr.mxu0 0.0
        %5751 = vmatpush2.msra.mxu0 0.0
        %5752 = vmatprep.subr.mxu0 0.0
        %5753 = vmatpush2.msra.mxu0 0.0
        %5754 = vmatprep.subr.mxu0 0.0
        %5755 = vmatpush2.msra.mxu0 0.0
        %5756 = vmatprep.subr.mxu0 0.0
        %5757 = vmatpush2.msra.mxu0 0.0
        %5758 = vmatprep.subr.mxu0 0.0
        %5759 = vmatpush2.msra.mxu0 0.0
        %5760 = vmatprep.subr.mxu0 0.0
        %5761 = vmatpush2.msra.mxu0 0.0
        %5762 = vmatprep.subr.mxu0 0.0
        %5763 = vmatpush2.msra.mxu0 0.0
        %5764 = vmatprep.subr.mxu0 0.0
        %5765 = vmatpush2.msra.mxu0 0.0
        %5766 = vmatprep.subr.mxu0 0.0
        %5767 = vmatpush2.msra.mxu0 0.0
        %5768 = vmatprep.subr.mxu0 0.0
        %5769 = vmatpush2.msra.mxu0 0.0
        %5770 = vmatprep.subr.mxu0 0.0
        %5771 = vmatpush2.msra.mxu0 0.0
        %5772 = vmatprep.mubr.f32.mxu0 0.0
        %v5773 = vand.u32 %v5496, 4294901760
        %v5774 = vsub.f32 %v5496, %v5773
        %5775 = vmatmul.mubr.f32.gmra.mxu0 %v5774
        %v5776 = vpop.f32.mrf.mxu0
        %v5777 = vadd.f32 %v5689, %v5776
        %v5778 = vpop.f32.mrf.mxu0
        %5779 = vdwg.mxu0
        %5780 = vmatprep.subr.mxu0 0.0
        %5781 = vmatpush1.msra.mxu0 0.0
        %5782 = vmatprep.subr.mxu0 0.0
        %5783 = vmatpush1.msra.mxu0 0.0
        %5784 = vmatprep.subr.mxu0 0.0
        %5785 = vmatpush1.msra.mxu0 0.0
        %5786 = vmatprep.subr.mxu0 0.0
        %5787 = vmatpush1.msra.mxu0 0.0
        %5788 = vmatprep.subr.mxu0 0.0
        %5789 = vmatpush1.msra.mxu0 0.0
        %5790 = vmatprep.subr.mxu0 0.0
        %5791 = vmatpush1.msra.mxu0 0.0
        %5792 = vmatprep.subr.mxu0 0.0
        %5793 = vmatpush1.msra.mxu0 0.0
        %5794 = vmatprep.subr.mxu0 0.0
        %5795 = vmatpush1.msra.mxu0 0.0
        %5796 = vmatprep.subr.mxu0 0.0
        %v5797 = vand.u32 %v4778, 4294901760
        %5798 = vmatpush1.msra.mxu0 %v5797
        %5799 = vmatprep.subr.mxu0 0.0
        %v5800 = vand.u32 %v4777, 4294901760
        %5801 = vmatpush1.msra.mxu0 %v5800
        %5802 = vmatprep.subr.mxu0 0.0
        %v5803 = vand.u32 %v4776, 4294901760
        %5804 = vmatpush1.msra.mxu0 %v5803
        %5805 = vmatprep.subr.mxu0 0.0
        %v5806 = vand.u32 %v4775, 4294901760
        %5807 = vmatpush1.msra.mxu0 %v5806
        %5808 = vmatprep.subr.mxu0 0.0
        %v5809 = vand.u32 %v4774, 4294901760
        %5810 = vmatpush1.msra.mxu0 %v5809
        %5811 = vmatprep.subr.mxu0 0.0
        %v5812 = vand.u32 %v4773, 4294901760
        %5813 = vmatpush1.msra.mxu0 %v5812
        %5814 = vmatprep.subr.mxu0 0.0
        %v5815 = vand.u32 %v4772, 4294901760
        %5816 = vmatpush1.msra.mxu0 %v5815
        %5817 = vmatprep.subr.mxu0 0.0
        %v5818 = vand.u32 %v4771, 4294901760
        %5819 = vmatpush1.msra.mxu0 %v5818
        %5820 = vmatprep.subr.mxu0 0.0
        %5821 = vmatpush2.msra.mxu0 0.0
        %5822 = vmatprep.subr.mxu0 0.0
        %5823 = vmatpush2.msra.mxu0 0.0
        %5824 = vmatprep.subr.mxu0 0.0
        %5825 = vmatpush2.msra.mxu0 0.0
        %5826 = vmatprep.subr.mxu0 0.0
        %5827 = vmatpush2.msra.mxu0 0.0
        %5828 = vmatprep.subr.mxu0 0.0
        %5829 = vmatpush2.msra.mxu0 0.0
        %5830 = vmatprep.subr.mxu0 0.0
        %5831 = vmatpush2.msra.mxu0 0.0
        %5832 = vmatprep.subr.mxu0 0.0
        %5833 = vmatpush2.msra.mxu0 0.0
        %5834 = vmatprep.subr.mxu0 0.0
        %5835 = vmatpush2.msra.mxu0 0.0
        %5836 = vmatprep.subr.mxu0 0.0
        %5837 = vmatpush2.msra.mxu0 0.0
        %5838 = vmatprep.subr.mxu0 0.0
        %5839 = vmatpush2.msra.mxu0 0.0
        %5840 = vmatprep.subr.mxu0 0.0
        %5841 = vmatpush2.msra.mxu0 0.0
        %5842 = vmatprep.subr.mxu0 0.0
        %5843 = vmatpush2.msra.mxu0 0.0
        %5844 = vmatprep.subr.mxu0 0.0
        %5845 = vmatpush2.msra.mxu0 0.0
        %5846 = vmatprep.subr.mxu0 0.0
        %5847 = vmatpush2.msra.mxu0 0.0
        %5848 = vmatprep.subr.mxu0 0.0
        %5849 = vmatpush2.msra.mxu0 0.0
        %5850 = vmatprep.subr.mxu0 0.0
        %5851 = vmatpush2.msra.mxu0 0.0
        %5852 = vmatprep.mubr.f32.mxu0 0.0
        %v5853 = vand.u32 %v5496, 4294901760
        %v5854 = vsub.f32 %v5496, %v5853
        %v5855 = vand.u32 %v5854, 4294901760
        %5856 = vmatmul.mubr.f32.gmra.mxu0 %v5855
        %v5857 = vpop.f32.mrf.mxu0
        %v5858 = vadd.f32 %v5777, %v5857
        %v5859 = vpop.f32.mrf.mxu0
        %5860 = vdwg.mxu0
        %5861 = vmatprep.subr.mxu0 0.0
        %5862 = vmatpush1.msra.mxu0 0.0
        %5863 = vmatprep.subr.mxu0 0.0
        %5864 = vmatpush1.msra.mxu0 0.0
        %5865 = vmatprep.subr.mxu0 0.0
        %5866 = vmatpush1.msra.mxu0 0.0
        %5867 = vmatprep.subr.mxu0 0.0
        %5868 = vmatpush1.msra.mxu0 0.0
        %5869 = vmatprep.subr.mxu0 0.0
        %5870 = vmatpush1.msra.mxu0 0.0
        %5871 = vmatprep.subr.mxu0 0.0
        %5872 = vmatpush1.msra.mxu0 0.0
        %5873 = vmatprep.subr.mxu0 0.0
        %5874 = vmatpush1.msra.mxu0 0.0
        %5875 = vmatprep.subr.mxu0 0.0
        %5876 = vmatpush1.msra.mxu0 0.0
        %5877 = vmatprep.subr.mxu0 0.0
        %v5878 = vand.u32 %v4778, 4294901760
        %v5879 = vsub.f32 %v4778, %v5878
        %v5880 = vand.u32 %v5879, 4294901760
        %5881 = vmatpush1.msra.mxu0 %v5880
        %5882 = vmatprep.subr.mxu0 0.0
        %v5883 = vand.u32 %v4777, 4294901760
        %v5884 = vsub.f32 %v4777, %v5883
        %v5885 = vand.u32 %v5884, 4294901760
        %5886 = vmatpush1.msra.mxu0 %v5885
        %5887 = vmatprep.subr.mxu0 0.0
        %v5888 = vand.u32 %v4776, 4294901760
        %v5889 = vsub.f32 %v4776, %v5888
        %v5890 = vand.u32 %v5889, 4294901760
        %5891 = vmatpush1.msra.mxu0 %v5890
        %5892 = vmatprep.subr.mxu0 0.0
        %v5893 = vand.u32 %v4775, 4294901760
        %v5894 = vsub.f32 %v4775, %v5893
        %v5895 = vand.u32 %v5894, 4294901760
        %5896 = vmatpush1.msra.mxu0 %v5895
        %5897 = vmatprep.subr.mxu0 0.0
        %v5898 = vand.u32 %v4774, 4294901760
        %v5899 = vsub.f32 %v4774, %v5898
        %v5900 = vand.u32 %v5899, 4294901760
        %5901 = vmatpush1.msra.mxu0 %v5900
        %5902 = vmatprep.subr.mxu0 0.0
        %v5903 = vand.u32 %v4773, 4294901760
        %v5904 = vsub.f32 %v4773, %v5903
        %v5905 = vand.u32 %v5904, 4294901760
        %5906 = vmatpush1.msra.mxu0 %v5905
        %5907 = vmatprep.subr.mxu0 0.0
        %v5908 = vand.u32 %v4772, 4294901760
        %v5909 = vsub.f32 %v4772, %v5908
        %v5910 = vand.u32 %v5909, 4294901760
        %5911 = vmatpush1.msra.mxu0 %v5910
        %5912 = vmatprep.subr.mxu0 0.0
        %v5913 = vand.u32 %v4771, 4294901760
        %v5914 = vsub.f32 %v4771, %v5913
        %v5915 = vand.u32 %v5914, 4294901760
        %5916 = vmatpush1.msra.mxu0 %v5915
        %5917 = vmatprep.subr.mxu0 0.0
        %5918 = vmatpush2.msra.mxu0 0.0
        %5919 = vmatprep.subr.mxu0 0.0
        %5920 = vmatpush2.msra.mxu0 0.0
        %5921 = vmatprep.subr.mxu0 0.0
        %5922 = vmatpush2.msra.mxu0 0.0
        %5923 = vmatprep.subr.mxu0 0.0
        %5924 = vmatpush2.msra.mxu0 0.0
        %5925 = vmatprep.subr.mxu0 0.0
        %5926 = vmatpush2.msra.mxu0 0.0
        %5927 = vmatprep.subr.mxu0 0.0
        %5928 = vmatpush2.msra.mxu0 0.0
        %5929 = vmatprep.subr.mxu0 0.0
        %5930 = vmatpush2.msra.mxu0 0.0
        %5931 = vmatprep.subr.mxu0 0.0
        %5932 = vmatpush2.msra.mxu0 0.0
        %5933 = vmatprep.subr.mxu0 0.0
        %5934 = vmatpush2.msra.mxu0 0.0
        %5935 = vmatprep.subr.mxu0 0.0
        %5936 = vmatpush2.msra.mxu0 0.0
        %5937 = vmatprep.subr.mxu0 0.0
        %5938 = vmatpush2.msra.mxu0 0.0
        %5939 = vmatprep.subr.mxu0 0.0
        %5940 = vmatpush2.msra.mxu0 0.0
        %5941 = vmatprep.subr.mxu0 0.0
        %5942 = vmatpush2.msra.mxu0 0.0
        %5943 = vmatprep.subr.mxu0 0.0
        %5944 = vmatpush2.msra.mxu0 0.0
        %5945 = vmatprep.subr.mxu0 0.0
        %5946 = vmatpush2.msra.mxu0 0.0
        %5947 = vmatprep.subr.mxu0 0.0
        %5948 = vmatpush2.msra.mxu0 0.0
        %5949 = vmatprep.mubr.f32.mxu0 0.0
        %v5950 = vand.u32 %v5496, 4294901760
        %5951 = vmatmul.mubr.f32.gmra.mxu0 %v5950
        %v5952 = vpop.f32.mrf.mxu0
        %v5953 = vadd.f32 %v5858, %v5952
        %v5954 = vpop.f32.mrf.mxu0
        %5955 = vdwg.mxu0
        %5956 = vmatprep.subr.mxu0 0.0
        %5957 = vmatpush1.msra.mxu0 0.0
        %5958 = vmatprep.subr.mxu0 0.0
        %5959 = vmatpush1.msra.mxu0 0.0
        %5960 = vmatprep.subr.mxu0 0.0
        %5961 = vmatpush1.msra.mxu0 0.0
        %5962 = vmatprep.subr.mxu0 0.0
        %5963 = vmatpush1.msra.mxu0 0.0
        %5964 = vmatprep.subr.mxu0 0.0
        %5965 = vmatpush1.msra.mxu0 0.0
        %5966 = vmatprep.subr.mxu0 0.0
        %5967 = vmatpush1.msra.mxu0 0.0
        %5968 = vmatprep.subr.mxu0 0.0
        %5969 = vmatpush1.msra.mxu0 0.0
        %5970 = vmatprep.subr.mxu0 0.0
        %5971 = vmatpush1.msra.mxu0 0.0
        %5972 = vmatprep.subr.mxu0 0.0
        %v5973 = vand.u32 %v4778, 4294901760
        %5974 = vmatpush1.msra.mxu0 %v5973
        %5975 = vmatprep.subr.mxu0 0.0
        %v5976 = vand.u32 %v4777, 4294901760
        %5977 = vmatpush1.msra.mxu0 %v5976
        %5978 = vmatprep.subr.mxu0 0.0
        %v5979 = vand.u32 %v4776, 4294901760
        %5980 = vmatpush1.msra.mxu0 %v5979
        %5981 = vmatprep.subr.mxu0 0.0
        %v5982 = vand.u32 %v4775, 4294901760
        %5983 = vmatpush1.msra.mxu0 %v5982
        %5984 = vmatprep.subr.mxu0 0.0
        %v5985 = vand.u32 %v4774, 4294901760
        %5986 = vmatpush1.msra.mxu0 %v5985
        %5987 = vmatprep.subr.mxu0 0.0
        %v5988 = vand.u32 %v4773, 4294901760
        %5989 = vmatpush1.msra.mxu0 %v5988
        %5990 = vmatprep.subr.mxu0 0.0
        %v5991 = vand.u32 %v4772, 4294901760
        %5992 = vmatpush1.msra.mxu0 %v5991
        %5993 = vmatprep.subr.mxu0 0.0
        %v5994 = vand.u32 %v4771, 4294901760
        %5995 = vmatpush1.msra.mxu0 %v5994
        %5996 = vmatprep.subr.mxu0 0.0
        %5997 = vmatpush2.msra.mxu0 0.0
        %5998 = vmatprep.subr.mxu0 0.0
        %5999 = vmatpush2.msra.mxu0 0.0
        %6000 = vmatprep.subr.mxu0 0.0
        %6001 = vmatpush2.msra.mxu0 0.0
        %6002 = vmatprep.subr.mxu0 0.0
        %6003 = vmatpush2.msra.mxu0 0.0
        %6004 = vmatprep.subr.mxu0 0.0
        %6005 = vmatpush2.msra.mxu0 0.0
        %6006 = vmatprep.subr.mxu0 0.0
        %6007 = vmatpush2.msra.mxu0 0.0
        %6008 = vmatprep.subr.mxu0 0.0
        %6009 = vmatpush2.msra.mxu0 0.0
        %6010 = vmatprep.subr.mxu0 0.0
        %6011 = vmatpush2.msra.mxu0 0.0
        %6012 = vmatprep.subr.mxu0 0.0
        %6013 = vmatpush2.msra.mxu0 0.0
        %6014 = vmatprep.subr.mxu0 0.0
        %6015 = vmatpush2.msra.mxu0 0.0
        %6016 = vmatprep.subr.mxu0 0.0
        %6017 = vmatpush2.msra.mxu0 0.0
        %6018 = vmatprep.subr.mxu0 0.0
        %6019 = vmatpush2.msra.mxu0 0.0
        %6020 = vmatprep.subr.mxu0 0.0
        %6021 = vmatpush2.msra.mxu0 0.0
        %6022 = vmatprep.subr.mxu0 0.0
        %6023 = vmatpush2.msra.mxu0 0.0
        %6024 = vmatprep.subr.mxu0 0.0
        %6025 = vmatpush2.msra.mxu0 0.0
        %6026 = vmatprep.subr.mxu0 0.0
        %6027 = vmatpush2.msra.mxu0 0.0
        %6028 = vmatprep.mubr.f32.mxu0 0.0
        %v6029 = vand.u32 %v5496, 4294901760
        %6030 = vmatmul.mubr.f32.gmra.mxu0 %v6029
        %v6031 = vpop.f32.mrf.mxu0
        %v6032 = vadd.f32 %v5953, %v6031
        %v6033 = vpop.f32.mrf.mxu0
        %6034 = vdwg.mxu0
        %v6035 = vmul.f32 %v5492, 0.001953125
        %v6036 = vmul.f32 %v6032, 0.001953125
        %v6037 = vmul.f32 %v6035, %v6035
        %v6038 = vsub.f32 %v6036, %v6037
        %v6039 = vadd.f32 %v6038, 1e-05
        %v6040 = vrsqrt.pop %v6039
        %v6042 = vsel %vm536, %v6035, 0
        %6044 = vmatprep.subr.mxu0 0.0
        %6045 = vmatpush1.msra.mxu0 0.0
        %6046 = vmatprep.subr.mxu0 0.0
        %6047 = vmatpush1.msra.mxu0 0.0
        %6048 = vmatprep.subr.mxu0 0.0
        %6049 = vmatpush1.msra.mxu0 0.0
        %6050 = vmatprep.subr.mxu0 0.0
        %6051 = vmatpush1.msra.mxu0 0.0
        %6052 = vmatprep.subr.mxu0 0.0
        %6053 = vmatpush1.msra.mxu0 0.0
        %6054 = vmatprep.subr.mxu0 0.0
        %6055 = vmatpush1.msra.mxu0 0.0
        %6056 = vmatprep.subr.mxu0 0.0
        %6057 = vmatpush1.msra.mxu0 0.0
        %6058 = vmatprep.subr.mxu0 0.0
        %6059 = vmatpush1.msra.mxu0 0.0
        %6060 = vmatprep.subr.mxu0 0.0
        %6061 = vmatpush1.msra.mxu0 0.0
        %6062 = vmatprep.subr.mxu0 0.0
        %6063 = vmatpush1.msra.mxu0 0.0
        %6064 = vmatprep.subr.mxu0 0.0
        %6065 = vmatpush1.msra.mxu0 0.0
        %6066 = vmatprep.subr.mxu0 0.0
        %6067 = vmatpush1.msra.mxu0 0.0
        %6068 = vmatprep.subr.mxu0 0.0
        %v6069 = vand.u32 %v4782, 4294901760
        %6070 = vmatpush1.msra.mxu0 %v6069
        %6071 = vmatprep.subr.mxu0 0.0
        %v6072 = vand.u32 %v4781, 4294901760
        %6073 = vmatpush1.msra.mxu0 %v6072
        %6074 = vmatprep.subr.mxu0 0.0
        %v6075 = vand.u32 %v4780, 4294901760
        %6076 = vmatpush1.msra.mxu0 %v6075
        %6077 = vmatprep.subr.mxu0 0.0
        %v6078 = vand.u32 %v4779, 4294901760
        %6079 = vmatpush1.msra.mxu0 %v6078
        %6080 = vmatprep.subr.mxu0 0.0
        %6081 = vmatpush2.msra.mxu0 0.0
        %6082 = vmatprep.subr.mxu0 0.0
        %6083 = vmatpush2.msra.mxu0 0.0
        %6084 = vmatprep.subr.mxu0 0.0
        %6085 = vmatpush2.msra.mxu0 0.0
        %6086 = vmatprep.subr.mxu0 0.0
        %6087 = vmatpush2.msra.mxu0 0.0
        %6088 = vmatprep.subr.mxu0 0.0
        %6089 = vmatpush2.msra.mxu0 0.0
        %6090 = vmatprep.subr.mxu0 0.0
        %6091 = vmatpush2.msra.mxu0 0.0
        %6092 = vmatprep.subr.mxu0 0.0
        %6093 = vmatpush2.msra.mxu0 0.0
        %6094 = vmatprep.subr.mxu0 0.0
        %6095 = vmatpush2.msra.mxu0 0.0
        %6096 = vmatprep.subr.mxu0 0.0
        %6097 = vmatpush2.msra.mxu0 0.0
        %6098 = vmatprep.subr.mxu0 0.0
        %6099 = vmatpush2.msra.mxu0 0.0
        %6100 = vmatprep.subr.mxu0 0.0
        %6101 = vmatpush2.msra.mxu0 0.0
        %6102 = vmatprep.subr.mxu0 0.0
        %6103 = vmatpush2.msra.mxu0 0.0
        %6104 = vmatprep.subr.mxu0 0.0
        %6105 = vmatpush2.msra.mxu0 0.0
        %6106 = vmatprep.subr.mxu0 0.0
        %6107 = vmatpush2.msra.mxu0 0.0
        %6108 = vmatprep.subr.mxu0 0.0
        %6109 = vmatpush2.msra.mxu0 0.0
        %6110 = vmatprep.subr.mxu0 0.0
        %6111 = vmatpush2.msra.mxu0 0.0
        %6112 = vmatprep.mubr.f32.mxu0 0.0
        %v6113 = vand.u32 %v6042, 4294901760
        %v6114 = vsub.f32 %v6042, %v6113
        %v6115 = vand.u32 %v6114, 4294901760
        %v6116 = vsub.f32 %v6114, %v6115
        %v6117 = vand.u32 %v6116, 4294901760
        %6118 = vmatmul.mubr.f32.gmra.mxu0 %v6117
        %v6119 = vpop.f32.mrf.mxu0
        %v6120 = vadd.f32 0.0, %v6119
        %v6121 = vpop.f32.mrf.mxu0
        %6122 = vdwg.mxu0
        %6123 = vmatprep.subr.mxu0 0.0
        %6124 = vmatpush1.msra.mxu0 0.0
        %6125 = vmatprep.subr.mxu0 0.0
        %6126 = vmatpush1.msra.mxu0 0.0
        %6127 = vmatprep.subr.mxu0 0.0
        %6128 = vmatpush1.msra.mxu0 0.0
        %6129 = vmatprep.subr.mxu0 0.0
        %6130 = vmatpush1.msra.mxu0 0.0
        %6131 = vmatprep.subr.mxu0 0.0
        %6132 = vmatpush1.msra.mxu0 0.0
        %6133 = vmatprep.subr.mxu0 0.0
        %6134 = vmatpush1.msra.mxu0 0.0
        %6135 = vmatprep.subr.mxu0 0.0
        %6136 = vmatpush1.msra.mxu0 0.0
        %6137 = vmatprep.subr.mxu0 0.0
        %6138 = vmatpush1.msra.mxu0 0.0
        %6139 = vmatprep.subr.mxu0 0.0
        %6140 = vmatpush1.msra.mxu0 0.0
        %6141 = vmatprep.subr.mxu0 0.0
        %6142 = vmatpush1.msra.mxu0 0.0
        %6143 = vmatprep.subr.mxu0 0.0
        %6144 = vmatpush1.msra.mxu0 0.0
        %6145 = vmatprep.subr.mxu0 0.0
        %6146 = vmatpush1.msra.mxu0 0.0
        %6147 = vmatprep.subr.mxu0 0.0
        %v6148 = vand.u32 %v4782, 4294901760
        %v6149 = vsub.f32 %v4782, %v6148
        %v6150 = vand.u32 %v6149, 4294901760
        %v6151 = vsub.f32 %v6149, %v6150
        %v6152 = vand.u32 %v6151, 4294901760
        %6153 = vmatpush1.msra.mxu0 %v6152
        %6154 = vmatprep.subr.mxu0 0.0
        %v6155 = vand.u32 %v4781, 4294901760
        %v6156 = vsub.f32 %v4781, %v6155
        %v6157 = vand.u32 %v6156, 4294901760
        %v6158 = vsub.f32 %v6156, %v6157
        %v6159 = vand.u32 %v6158, 4294901760
        %6160 = vmatpush1.msra.mxu0 %v6159
        %6161 = vmatprep.subr.mxu0 0.0
        %v6162 = vand.u32 %v4780, 4294901760
        %v6163 = vsub.f32 %v4780, %v6162
        %v6164 = vand.u32 %v6163, 4294901760
        %v6165 = vsub.f32 %v6163, %v6164
        %v6166 = vand.u32 %v6165, 4294901760
        %6167 = vmatpush1.msra.mxu0 %v6166
        %6168 = vmatprep.subr.mxu0 0.0
        %v6169 = vand.u32 %v4779, 4294901760
        %v6170 = vsub.f32 %v4779, %v6169
        %v6171 = vand.u32 %v6170, 4294901760
        %v6172 = vsub.f32 %v6170, %v6171
        %v6173 = vand.u32 %v6172, 4294901760
        %6174 = vmatpush1.msra.mxu0 %v6173
        %6175 = vmatprep.subr.mxu0 0.0
        %6176 = vmatpush2.msra.mxu0 0.0
        %6177 = vmatprep.subr.mxu0 0.0
        %6178 = vmatpush2.msra.mxu0 0.0
        %6179 = vmatprep.subr.mxu0 0.0
        %6180 = vmatpush2.msra.mxu0 0.0
        %6181 = vmatprep.subr.mxu0 0.0
        %6182 = vmatpush2.msra.mxu0 0.0
        %6183 = vmatprep.subr.mxu0 0.0
        %6184 = vmatpush2.msra.mxu0 0.0
        %6185 = vmatprep.subr.mxu0 0.0
        %6186 = vmatpush2.msra.mxu0 0.0
        %6187 = vmatprep.subr.mxu0 0.0
        %6188 = vmatpush2.msra.mxu0 0.0
        %6189 = vmatprep.subr.mxu0 0.0
        %6190 = vmatpush2.msra.mxu0 0.0
        %6191 = vmatprep.subr.mxu0 0.0
        %6192 = vmatpush2.msra.mxu0 0.0
        %6193 = vmatprep.subr.mxu0 0.0
        %6194 = vmatpush2.msra.mxu0 0.0
        %6195 = vmatprep.subr.mxu0 0.0
        %6196 = vmatpush2.msra.mxu0 0.0
        %6197 = vmatprep.subr.mxu0 0.0
        %6198 = vmatpush2.msra.mxu0 0.0
        %6199 = vmatprep.subr.mxu0 0.0
        %6200 = vmatpush2.msra.mxu0 0.0
        %6201 = vmatprep.subr.mxu0 0.0
        %6202 = vmatpush2.msra.mxu0 0.0
        %6203 = vmatprep.subr.mxu0 0.0
        %6204 = vmatpush2.msra.mxu0 0.0
        %6205 = vmatprep.subr.mxu0 0.0
        %6206 = vmatpush2.msra.mxu0 0.0
        %6207 = vmatprep.mubr.f32.mxu0 0.0
        %v6208 = vand.u32 %v6042, 4294901760
        %6209 = vmatmul.mubr.f32.gmra.mxu0 %v6208
        %v6210 = vpop.f32.mrf.mxu0
        %v6211 = vadd.f32 %v6120, %v6210
        %v6212 = vpop.f32.mrf.mxu0
        %6213 = vdwg.mxu0
        %6214 = vmatprep.subr.mxu0 0.0
        %6215 = vmatpush1.msra.mxu0 0.0
        %6216 = vmatprep.subr.mxu0 0.0
        %6217 = vmatpush1.msra.mxu0 0.0
        %6218 = vmatprep.subr.mxu0 0.0
        %6219 = vmatpush1.msra.mxu0 0.0
        %6220 = vmatprep.subr.mxu0 0.0
        %6221 = vmatpush1.msra.mxu0 0.0
        %6222 = vmatprep.subr.mxu0 0.0
        %6223 = vmatpush1.msra.mxu0 0.0
        %6224 = vmatprep.subr.mxu0 0.0
        %6225 = vmatpush1.msra.mxu0 0.0
        %6226 = vmatprep.subr.mxu0 0.0
        %6227 = vmatpush1.msra.mxu0 0.0
        %6228 = vmatprep.subr.mxu0 0.0
        %6229 = vmatpush1.msra.mxu0 0.0
        %6230 = vmatprep.subr.mxu0 0.0
        %6231 = vmatpush1.msra.mxu0 0.0
        %6232 = vmatprep.subr.mxu0 0.0
        %6233 = vmatpush1.msra.mxu0 0.0
        %6234 = vmatprep.subr.mxu0 0.0
        %6235 = vmatpush1.msra.mxu0 0.0
        %6236 = vmatprep.subr.mxu0 0.0
        %6237 = vmatpush1.msra.mxu0 0.0
        %6238 = vmatprep.subr.mxu0 0.0
        %v6239 = vand.u32 %v4782, 4294901760
        %v6240 = vsub.f32 %v4782, %v6239
        %6241 = vmatpush1.msra.mxu0 %v6240
        %6242 = vmatprep.subr.mxu0 0.0
        %v6243 = vand.u32 %v4781, 4294901760
        %v6244 = vsub.f32 %v4781, %v6243
        %6245 = vmatpush1.msra.mxu0 %v6244
        %6246 = vmatprep.subr.mxu0 0.0
        %v6247 = vand.u32 %v4780, 4294901760
        %v6248 = vsub.f32 %v4780, %v6247
        %6249 = vmatpush1.msra.mxu0 %v6248
        %6250 = vmatprep.subr.mxu0 0.0
        %v6251 = vand.u32 %v4779, 4294901760
        %v6252 = vsub.f32 %v4779, %v6251
        %6253 = vmatpush1.msra.mxu0 %v6252
        %6254 = vmatprep.subr.mxu0 0.0
        %6255 = vmatpush2.msra.mxu0 0.0
        %6256 = vmatprep.subr.mxu0 0.0
        %6257 = vmatpush2.msra.mxu0 0.0
        %6258 = vmatprep.subr.mxu0 0.0
        %6259 = vmatpush2.msra.mxu0 0.0
        %6260 = vmatprep.subr.mxu0 0.0
        %6261 = vmatpush2.msra.mxu0 0.0
        %6262 = vmatprep.subr.mxu0 0.0
        %6263 = vmatpush2.msra.mxu0 0.0
        %6264 = vmatprep.subr.mxu0 0.0
        %6265 = vmatpush2.msra.mxu0 0.0
        %6266 = vmatprep.subr.mxu0 0.0
        %6267 = vmatpush2.msra.mxu0 0.0
        %6268 = vmatprep.subr.mxu0 0.0
        %6269 = vmatpush2.msra.mxu0 0.0
        %6270 = vmatprep.subr.mxu0 0.0
        %6271 = vmatpush2.msra.mxu0 0.0
        %6272 = vmatprep.subr.mxu0 0.0
        %6273 = vmatpush2.msra.mxu0 0.0
        %6274 = vmatprep.subr.mxu0 0.0
        %6275 = vmatpush2.msra.mxu0 0.0
        %6276 = vmatprep.subr.mxu0 0.0
        %6277 = vmatpush2.msra.mxu0 0.0
        %6278 = vmatprep.subr.mxu0 0.0
        %6279 = vmatpush2.msra.mxu0 0.0
        %6280 = vmatprep.subr.mxu0 0.0
        %6281 = vmatpush2.msra.mxu0 0.0
        %6282 = vmatprep.subr.mxu0 0.0
        %6283 = vmatpush2.msra.mxu0 0.0
        %6284 = vmatprep.subr.mxu0 0.0
        %6285 = vmatpush2.msra.mxu0 0.0
        %6286 = vmatprep.mubr.f32.mxu0 0.0
        %v6287 = vand.u32 %v6042, 4294901760
        %v6288 = vsub.f32 %v6042, %v6287
        %6289 = vmatmul.mubr.f32.gmra.mxu0 %v6288
        %v6290 = vpop.f32.mrf.mxu0
        %v6291 = vadd.f32 %v6211, %v6290
        %v6292 = vpop.f32.mrf.mxu0
        %6293 = vdwg.mxu0
        %6294 = vmatprep.subr.mxu0 0.0
        %6295 = vmatpush1.msra.mxu0 0.0
        %6296 = vmatprep.subr.mxu0 0.0
        %6297 = vmatpush1.msra.mxu0 0.0
        %6298 = vmatprep.subr.mxu0 0.0
        %6299 = vmatpush1.msra.mxu0 0.0
        %6300 = vmatprep.subr.mxu0 0.0
        %6301 = vmatpush1.msra.mxu0 0.0
        %6302 = vmatprep.subr.mxu0 0.0
        %6303 = vmatpush1.msra.mxu0 0.0
        %6304 = vmatprep.subr.mxu0 0.0
        %6305 = vmatpush1.msra.mxu0 0.0
        %6306 = vmatprep.subr.mxu0 0.0
        %6307 = vmatpush1.msra.mxu0 0.0
        %6308 = vmatprep.subr.mxu0 0.0
        %6309 = vmatpush1.msra.mxu0 0.0
        %6310 = vmatprep.subr.mxu0 0.0
        %6311 = vmatpush1.msra.mxu0 0.0
        %6312 = vmatprep.subr.mxu0 0.0
        %6313 = vmatpush1.msra.mxu0 0.0
        %6314 = vmatprep.subr.mxu0 0.0
        %6315 = vmatpush1.msra.mxu0 0.0
        %6316 = vmatprep.subr.mxu0 0.0
        %6317 = vmatpush1.msra.mxu0 0.0
        %6318 = vmatprep.subr.mxu0 0.0
        %v6319 = vand.u32 %v4782, 4294901760
        %6320 = vmatpush1.msra.mxu0 %v6319
        %6321 = vmatprep.subr.mxu0 0.0
        %v6322 = vand.u32 %v4781, 4294901760
        %6323 = vmatpush1.msra.mxu0 %v6322
        %6324 = vmatprep.subr.mxu0 0.0
        %v6325 = vand.u32 %v4780, 4294901760
        %6326 = vmatpush1.msra.mxu0 %v6325
        %6327 = vmatprep.subr.mxu0 0.0
        %v6328 = vand.u32 %v4779, 4294901760
        %6329 = vmatpush1.msra.mxu0 %v6328
        %6330 = vmatprep.subr.mxu0 0.0
        %6331 = vmatpush2.msra.mxu0 0.0
        %6332 = vmatprep.subr.mxu0 0.0
        %6333 = vmatpush2.msra.mxu0 0.0
        %6334 = vmatprep.subr.mxu0 0.0
        %6335 = vmatpush2.msra.mxu0 0.0
        %6336 = vmatprep.subr.mxu0 0.0
        %6337 = vmatpush2.msra.mxu0 0.0
        %6338 = vmatprep.subr.mxu0 0.0
        %6339 = vmatpush2.msra.mxu0 0.0
        %6340 = vmatprep.subr.mxu0 0.0
        %6341 = vmatpush2.msra.mxu0 0.0
        %6342 = vmatprep.subr.mxu0 0.0
        %6343 = vmatpush2.msra.mxu0 0.0
        %6344 = vmatprep.subr.mxu0 0.0
        %6345 = vmatpush2.msra.mxu0 0.0
        %6346 = vmatprep.subr.mxu0 0.0
        %6347 = vmatpush2.msra.mxu0 0.0
        %6348 = vmatprep.subr.mxu0 0.0
        %6349 = vmatpush2.msra.mxu0 0.0
        %6350 = vmatprep.subr.mxu0 0.0
        %6351 = vmatpush2.msra.mxu0 0.0
        %6352 = vmatprep.subr.mxu0 0.0
        %6353 = vmatpush2.msra.mxu0 0.0
        %6354 = vmatprep.subr.mxu0 0.0
        %6355 = vmatpush2.msra.mxu0 0.0
        %6356 = vmatprep.subr.mxu0 0.0
        %6357 = vmatpush2.msra.mxu0 0.0
        %6358 = vmatprep.subr.mxu0 0.0
        %6359 = vmatpush2.msra.mxu0 0.0
        %6360 = vmatprep.subr.mxu0 0.0
        %6361 = vmatpush2.msra.mxu0 0.0
        %6362 = vmatprep.mubr.f32.mxu0 0.0
        %v6363 = vand.u32 %v6042, 4294901760
        %v6364 = vsub.f32 %v6042, %v6363
        %v6365 = vand.u32 %v6364, 4294901760
        %6366 = vmatmul.mubr.f32.gmra.mxu0 %v6365
        %v6367 = vpop.f32.mrf.mxu0
        %v6368 = vadd.f32 %v6291, %v6367
        %v6369 = vpop.f32.mrf.mxu0
        %6370 = vdwg.mxu0
        %6371 = vmatprep.subr.mxu0 0.0
        %6372 = vmatpush1.msra.mxu0 0.0
        %6373 = vmatprep.subr.mxu0 0.0
        %6374 = vmatpush1.msra.mxu0 0.0
        %6375 = vmatprep.subr.mxu0 0.0
        %6376 = vmatpush1.msra.mxu0 0.0
        %6377 = vmatprep.subr.mxu0 0.0
        %6378 = vmatpush1.msra.mxu0 0.0
        %6379 = vmatprep.subr.mxu0 0.0
        %6380 = vmatpush1.msra.mxu0 0.0
        %6381 = vmatprep.subr.mxu0 0.0
        %6382 = vmatpush1.msra.mxu0 0.0
        %6383 = vmatprep.subr.mxu0 0.0
        %6384 = vmatpush1.msra.mxu0 0.0
        %6385 = vmatprep.subr.mxu0 0.0
        %6386 = vmatpush1.msra.mxu0 0.0
        %6387 = vmatprep.subr.mxu0 0.0
        %6388 = vmatpush1.msra.mxu0 0.0
        %6389 = vmatprep.subr.mxu0 0.0
        %6390 = vmatpush1.msra.mxu0 0.0
        %6391 = vmatprep.subr.mxu0 0.0
        %6392 = vmatpush1.msra.mxu0 0.0
        %6393 = vmatprep.subr.mxu0 0.0
        %6394 = vmatpush1.msra.mxu0 0.0
        %6395 = vmatprep.subr.mxu0 0.0
        %v6396 = vand.u32 %v4782, 4294901760
        %v6397 = vsub.f32 %v4782, %v6396
        %v6398 = vand.u32 %v6397, 4294901760
        %6399 = vmatpush1.msra.mxu0 %v6398
        %6400 = vmatprep.subr.mxu0 0.0
        %v6401 = vand.u32 %v4781, 4294901760
        %v6402 = vsub.f32 %v4781, %v6401
        %v6403 = vand.u32 %v6402, 4294901760
        %6404 = vmatpush1.msra.mxu0 %v6403
        %6405 = vmatprep.subr.mxu0 0.0
        %v6406 = vand.u32 %v4780, 4294901760
        %v6407 = vsub.f32 %v4780, %v6406
        %v6408 = vand.u32 %v6407, 4294901760
        %6409 = vmatpush1.msra.mxu0 %v6408
        %6410 = vmatprep.subr.mxu0 0.0
        %v6411 = vand.u32 %v4779, 4294901760
        %v6412 = vsub.f32 %v4779, %v6411
        %v6413 = vand.u32 %v6412, 4294901760
        %6414 = vmatpush1.msra.mxu0 %v6413
        %6415 = vmatprep.subr.mxu0 0.0
        %6416 = vmatpush2.msra.mxu0 0.0
        %6417 = vmatprep.subr.mxu0 0.0
        %6418 = vmatpush2.msra.mxu0 0.0
        %6419 = vmatprep.subr.mxu0 0.0
        %6420 = vmatpush2.msra.mxu0 0.0
        %6421 = vmatprep.subr.mxu0 0.0
        %6422 = vmatpush2.msra.mxu0 0.0
        %6423 = vmatprep.subr.mxu0 0.0
        %6424 = vmatpush2.msra.mxu0 0.0
        %6425 = vmatprep.subr.mxu0 0.0
        %6426 = vmatpush2.msra.mxu0 0.0
        %6427 = vmatprep.subr.mxu0 0.0
        %6428 = vmatpush2.msra.mxu0 0.0
        %6429 = vmatprep.subr.mxu0 0.0
        %6430 = vmatpush2.msra.mxu0 0.0
        %6431 = vmatprep.subr.mxu0 0.0
        %6432 = vmatpush2.msra.mxu0 0.0
        %6433 = vmatprep.subr.mxu0 0.0
        %6434 = vmatpush2.msra.mxu0 0.0
        %6435 = vmatprep.subr.mxu0 0.0
        %6436 = vmatpush2.msra.mxu0 0.0
        %6437 = vmatprep.subr.mxu0 0.0
        %6438 = vmatpush2.msra.mxu0 0.0
        %6439 = vmatprep.subr.mxu0 0.0
        %6440 = vmatpush2.msra.mxu0 0.0
        %6441 = vmatprep.subr.mxu0 0.0
        %6442 = vmatpush2.msra.mxu0 0.0
        %6443 = vmatprep.subr.mxu0 0.0
        %6444 = vmatpush2.msra.mxu0 0.0
        %6445 = vmatprep.subr.mxu0 0.0
        %6446 = vmatpush2.msra.mxu0 0.0
        %6447 = vmatprep.mubr.f32.mxu0 0.0
        %v6448 = vand.u32 %v6042, 4294901760
        %6449 = vmatmul.mubr.f32.gmra.mxu0 %v6448
        %v6450 = vpop.f32.mrf.mxu0
        %v6451 = vadd.f32 %v6368, %v6450
        %v6452 = vpop.f32.mrf.mxu0
        %6453 = vdwg.mxu0
        %6454 = vmatprep.subr.mxu0 0.0
        %6455 = vmatpush1.msra.mxu0 0.0
        %6456 = vmatprep.subr.mxu0 0.0
        %6457 = vmatpush1.msra.mxu0 0.0
        %6458 = vmatprep.subr.mxu0 0.0
        %6459 = vmatpush1.msra.mxu0 0.0
        %6460 = vmatprep.subr.mxu0 0.0
        %6461 = vmatpush1.msra.mxu0 0.0
        %6462 = vmatprep.subr.mxu0 0.0
        %6463 = vmatpush1.msra.mxu0 0.0
        %6464 = vmatprep.subr.mxu0 0.0
        %6465 = vmatpush1.msra.mxu0 0.0
        %6466 = vmatprep.subr.mxu0 0.0
        %6467 = vmatpush1.msra.mxu0 0.0
        %6468 = vmatprep.subr.mxu0 0.0
        %6469 = vmatpush1.msra.mxu0 0.0
        %6470 = vmatprep.subr.mxu0 0.0
        %6471 = vmatpush1.msra.mxu0 0.0
        %6472 = vmatprep.subr.mxu0 0.0
        %6473 = vmatpush1.msra.mxu0 0.0
        %6474 = vmatprep.subr.mxu0 0.0
        %6475 = vmatpush1.msra.mxu0 0.0
        %6476 = vmatprep.subr.mxu0 0.0
        %6477 = vmatpush1.msra.mxu0 0.0
        %6478 = vmatprep.subr.mxu0 0.0
        %v6479 = vand.u32 %v4782, 4294901760
        %6480 = vmatpush1.msra.mxu0 %v6479
        %6481 = vmatprep.subr.mxu0 0.0
        %v6482 = vand.u32 %v4781, 4294901760
        %6483 = vmatpush1.msra.mxu0 %v6482
        %6484 = vmatprep.subr.mxu0 0.0
        %v6485 = vand.u32 %v4780, 4294901760
        %6486 = vmatpush1.msra.mxu0 %v6485
        %6487 = vmatprep.subr.mxu0 0.0
        %v6488 = vand.u32 %v4779, 4294901760
        %6489 = vmatpush1.msra.mxu0 %v6488
        %6490 = vmatprep.subr.mxu0 0.0
        %6491 = vmatpush2.msra.mxu0 0.0
        %6492 = vmatprep.subr.mxu0 0.0
        %6493 = vmatpush2.msra.mxu0 0.0
        %6494 = vmatprep.subr.mxu0 0.0
        %6495 = vmatpush2.msra.mxu0 0.0
        %6496 = vmatprep.subr.mxu0 0.0
        %6497 = vmatpush2.msra.mxu0 0.0
        %6498 = vmatprep.subr.mxu0 0.0
        %6499 = vmatpush2.msra.mxu0 0.0
        %6500 = vmatprep.subr.mxu0 0.0
        %6501 = vmatpush2.msra.mxu0 0.0
        %6502 = vmatprep.subr.mxu0 0.0
        %6503 = vmatpush2.msra.mxu0 0.0
        %6504 = vmatprep.subr.mxu0 0.0
        %6505 = vmatpush2.msra.mxu0 0.0
        %6506 = vmatprep.subr.mxu0 0.0
        %6507 = vmatpush2.msra.mxu0 0.0
        %6508 = vmatprep.subr.mxu0 0.0
        %6509 = vmatpush2.msra.mxu0 0.0
        %6510 = vmatprep.subr.mxu0 0.0
        %6511 = vmatpush2.msra.mxu0 0.0
        %6512 = vmatprep.subr.mxu0 0.0
        %6513 = vmatpush2.msra.mxu0 0.0
        %6514 = vmatprep.subr.mxu0 0.0
        %6515 = vmatpush2.msra.mxu0 0.0
        %6516 = vmatprep.subr.mxu0 0.0
        %6517 = vmatpush2.msra.mxu0 0.0
        %6518 = vmatprep.subr.mxu0 0.0
        %6519 = vmatpush2.msra.mxu0 0.0
        %6520 = vmatprep.subr.mxu0 0.0
        %6521 = vmatpush2.msra.mxu0 0.0
        %6522 = vmatprep.mubr.f32.mxu0 0.0
        %v6523 = vand.u32 %v6042, 4294901760
        %6524 = vmatmul.mubr.f32.gmra.mxu0 %v6523
        %v6525 = vpop.f32.mrf.mxu0
        %v6526 = vadd.f32 %v6451, %v6525
        %v6527 = vpop.f32.mrf.mxu0
        %6528 = vdwg.mxu0
        %v6530 = vsel %vm536, %v6040, 0
        %6532 = vmatprep.subr.mxu0 0.0
        %6533 = vmatpush1.msra.mxu0 0.0
        %6534 = vmatprep.subr.mxu0 0.0
        %6535 = vmatpush1.msra.mxu0 0.0
        %6536 = vmatprep.subr.mxu0 0.0
        %6537 = vmatpush1.msra.mxu0 0.0
        %6538 = vmatprep.subr.mxu0 0.0
        %6539 = vmatpush1.msra.mxu0 0.0
        %6540 = vmatprep.subr.mxu0 0.0
        %6541 = vmatpush1.msra.mxu0 0.0
        %6542 = vmatprep.subr.mxu0 0.0
        %6543 = vmatpush1.msra.mxu0 0.0
        %6544 = vmatprep.subr.mxu0 0.0
        %6545 = vmatpush1.msra.mxu0 0.0
        %6546 = vmatprep.subr.mxu0 0.0
        %6547 = vmatpush1.msra.mxu0 0.0
        %6548 = vmatprep.subr.mxu0 0.0
        %6549 = vmatpush1.msra.mxu0 0.0
        %6550 = vmatprep.subr.mxu0 0.0
        %6551 = vmatpush1.msra.mxu0 0.0
        %6552 = vmatprep.subr.mxu0 0.0
        %6553 = vmatpush1.msra.mxu0 0.0
        %6554 = vmatprep.subr.mxu0 0.0
        %6555 = vmatpush1.msra.mxu0 0.0
        %6556 = vmatprep.subr.mxu0 0.0
        %v6557 = vand.u32 %v4782, 4294901760
        %6558 = vmatpush1.msra.mxu0 %v6557
        %6559 = vmatprep.subr.mxu0 0.0
        %v6560 = vand.u32 %v4781, 4294901760
        %6561 = vmatpush1.msra.mxu0 %v6560
        %6562 = vmatprep.subr.mxu0 0.0
        %v6563 = vand.u32 %v4780, 4294901760
        %6564 = vmatpush1.msra.mxu0 %v6563
        %6565 = vmatprep.subr.mxu0 0.0
        %v6566 = vand.u32 %v4779, 4294901760
        %6567 = vmatpush1.msra.mxu0 %v6566
        %6568 = vmatprep.subr.mxu0 0.0
        %6569 = vmatpush2.msra.mxu0 0.0
        %6570 = vmatprep.subr.mxu0 0.0
        %6571 = vmatpush2.msra.mxu0 0.0
        %6572 = vmatprep.subr.mxu0 0.0
        %6573 = vmatpush2.msra.mxu0 0.0
        %6574 = vmatprep.subr.mxu0 0.0
        %6575 = vmatpush2.msra.mxu0 0.0
        %6576 = vmatprep.subr.mxu0 0.0
        %6577 = vmatpush2.msra.mxu0 0.0
        %6578 = vmatprep.subr.mxu0 0.0
        %6579 = vmatpush2.msra.mxu0 0.0
        %6580 = vmatprep.subr.mxu0 0.0
        %6581 = vmatpush2.msra.mxu0 0.0
        %6582 = vmatprep.subr.mxu0 0.0
        %6583 = vmatpush2.msra.mxu0 0.0
        %6584 = vmatprep.subr.mxu0 0.0
        %6585 = vmatpush2.msra.mxu0 0.0
        %6586 = vmatprep.subr.mxu0 0.0
        %6587 = vmatpush2.msra.mxu0 0.0
        %6588 = vmatprep.subr.mxu0 0.0
        %6589 = vmatpush2.msra.mxu0 0.0
        %6590 = vmatprep.subr.mxu0 0.0
        %6591 = vmatpush2.msra.mxu0 0.0
        %6592 = vmatprep.subr.mxu0 0.0
        %6593 = vmatpush2.msra.mxu0 0.0
        %6594 = vmatprep.subr.mxu0 0.0
        %6595 = vmatpush2.msra.mxu0 0.0
        %6596 = vmatprep.subr.mxu0 0.0
        %6597 = vmatpush2.msra.mxu0 0.0
        %6598 = vmatprep.subr.mxu0 0.0
        %6599 = vmatpush2.msra.mxu0 0.0
        %6600 = vmatprep.mubr.f32.mxu0 0.0
        %v6601 = vand.u32 %v6530, 4294901760
        %v6602 = vsub.f32 %v6530, %v6601
        %v6603 = vand.u32 %v6602, 4294901760
        %v6604 = vsub.f32 %v6602, %v6603
        %v6605 = vand.u32 %v6604, 4294901760
        %6606 = vmatmul.mubr.f32.gmra.mxu0 %v6605
        %v6607 = vpop.f32.mrf.mxu0
        %v6608 = vadd.f32 0.0, %v6607
        %v6609 = vpop.f32.mrf.mxu0
        %6610 = vdwg.mxu0
        %6611 = vmatprep.subr.mxu0 0.0
        %6612 = vmatpush1.msra.mxu0 0.0
        %6613 = vmatprep.subr.mxu0 0.0
        %6614 = vmatpush1.msra.mxu0 0.0
        %6615 = vmatprep.subr.mxu0 0.0
        %6616 = vmatpush1.msra.mxu0 0.0
        %6617 = vmatprep.subr.mxu0 0.0
        %6618 = vmatpush1.msra.mxu0 0.0
        %6619 = vmatprep.subr.mxu0 0.0
        %6620 = vmatpush1.msra.mxu0 0.0
        %6621 = vmatprep.subr.mxu0 0.0
        %6622 = vmatpush1.msra.mxu0 0.0
        %6623 = vmatprep.subr.mxu0 0.0
        %6624 = vmatpush1.msra.mxu0 0.0
        %6625 = vmatprep.subr.mxu0 0.0
        %6626 = vmatpush1.msra.mxu0 0.0
        %6627 = vmatprep.subr.mxu0 0.0
        %6628 = vmatpush1.msra.mxu0 0.0
        %6629 = vmatprep.subr.mxu0 0.0
        %6630 = vmatpush1.msra.mxu0 0.0
        %6631 = vmatprep.subr.mxu0 0.0
        %6632 = vmatpush1.msra.mxu0 0.0
        %6633 = vmatprep.subr.mxu0 0.0
        %6634 = vmatpush1.msra.mxu0 0.0
        %6635 = vmatprep.subr.mxu0 0.0
        %v6636 = vand.u32 %v4782, 4294901760
        %v6637 = vsub.f32 %v4782, %v6636
        %v6638 = vand.u32 %v6637, 4294901760
        %v6639 = vsub.f32 %v6637, %v6638
        %v6640 = vand.u32 %v6639, 4294901760
        %6641 = vmatpush1.msra.mxu0 %v6640
        %6642 = vmatprep.subr.mxu0 0.0
        %v6643 = vand.u32 %v4781, 4294901760
        %v6644 = vsub.f32 %v4781, %v6643
        %v6645 = vand.u32 %v6644, 4294901760
        %v6646 = vsub.f32 %v6644, %v6645
        %v6647 = vand.u32 %v6646, 4294901760
        %6648 = vmatpush1.msra.mxu0 %v6647
        %6649 = vmatprep.subr.mxu0 0.0
        %v6650 = vand.u32 %v4780, 4294901760
        %v6651 = vsub.f32 %v4780, %v6650
        %v6652 = vand.u32 %v6651, 4294901760
        %v6653 = vsub.f32 %v6651, %v6652
        %v6654 = vand.u32 %v6653, 4294901760
        %6655 = vmatpush1.msra.mxu0 %v6654
        %6656 = vmatprep.subr.mxu0 0.0
        %v6657 = vand.u32 %v4779, 4294901760
        %v6658 = vsub.f32 %v4779, %v6657
        %v6659 = vand.u32 %v6658, 4294901760
        %v6660 = vsub.f32 %v6658, %v6659
        %v6661 = vand.u32 %v6660, 4294901760
        %6662 = vmatpush1.msra.mxu0 %v6661
        %6663 = vmatprep.subr.mxu0 0.0
        %6664 = vmatpush2.msra.mxu0 0.0
        %6665 = vmatprep.subr.mxu0 0.0
        %6666 = vmatpush2.msra.mxu0 0.0
        %6667 = vmatprep.subr.mxu0 0.0
        %6668 = vmatpush2.msra.mxu0 0.0
        %6669 = vmatprep.subr.mxu0 0.0
        %6670 = vmatpush2.msra.mxu0 0.0
        %6671 = vmatprep.subr.mxu0 0.0
        %6672 = vmatpush2.msra.mxu0 0.0
        %6673 = vmatprep.subr.mxu0 0.0
        %6674 = vmatpush2.msra.mxu0 0.0
        %6675 = vmatprep.subr.mxu0 0.0
        %6676 = vmatpush2.msra.mxu0 0.0
        %6677 = vmatprep.subr.mxu0 0.0
        %6678 = vmatpush2.msra.mxu0 0.0
        %6679 = vmatprep.subr.mxu0 0.0
        %6680 = vmatpush2.msra.mxu0 0.0
        %6681 = vmatprep.subr.mxu0 0.0
        %6682 = vmatpush2.msra.mxu0 0.0
        %6683 = vmatprep.subr.mxu0 0.0
        %6684 = vmatpush2.msra.mxu0 0.0
        %6685 = vmatprep.subr.mxu0 0.0
        %6686 = vmatpush2.msra.mxu0 0.0
        %6687 = vmatprep.subr.mxu0 0.0
        %6688 = vmatpush2.msra.mxu0 0.0
        %6689 = vmatprep.subr.mxu0 0.0
        %6690 = vmatpush2.msra.mxu0 0.0
        %6691 = vmatprep.subr.mxu0 0.0
        %6692 = vmatpush2.msra.mxu0 0.0
        %6693 = vmatprep.subr.mxu0 0.0
        %6694 = vmatpush2.msra.mxu0 0.0
        %6695 = vmatprep.mubr.f32.mxu0 0.0
        %v6696 = vand.u32 %v6530, 4294901760
        %6697 = vmatmul.mubr.f32.gmra.mxu0 %v6696
        %v6698 = vpop.f32.mrf.mxu0
        %v6699 = vadd.f32 %v6608, %v6698
        %v6700 = vpop.f32.mrf.mxu0
        %6701 = vdwg.mxu0
        %6702 = vmatprep.subr.mxu0 0.0
        %6703 = vmatpush1.msra.mxu0 0.0
        %6704 = vmatprep.subr.mxu0 0.0
        %6705 = vmatpush1.msra.mxu0 0.0
        %6706 = vmatprep.subr.mxu0 0.0
        %6707 = vmatpush1.msra.mxu0 0.0
        %6708 = vmatprep.subr.mxu0 0.0
        %6709 = vmatpush1.msra.mxu0 0.0
        %6710 = vmatprep.subr.mxu0 0.0
        %6711 = vmatpush1.msra.mxu0 0.0
        %6712 = vmatprep.subr.mxu0 0.0
        %6713 = vmatpush1.msra.mxu0 0.0
        %6714 = vmatprep.subr.mxu0 0.0
        %6715 = vmatpush1.msra.mxu0 0.0
        %6716 = vmatprep.subr.mxu0 0.0
        %6717 = vmatpush1.msra.mxu0 0.0
        %6718 = vmatprep.subr.mxu0 0.0
        %6719 = vmatpush1.msra.mxu0 0.0
        %6720 = vmatprep.subr.mxu0 0.0
        %6721 = vmatpush1.msra.mxu0 0.0
        %6722 = vmatprep.subr.mxu0 0.0
        %6723 = vmatpush1.msra.mxu0 0.0
        %6724 = vmatprep.subr.mxu0 0.0
        %6725 = vmatpush1.msra.mxu0 0.0
        %6726 = vmatprep.subr.mxu0 0.0
        %v6727 = vand.u32 %v4782, 4294901760
        %v6728 = vsub.f32 %v4782, %v6727
        %6729 = vmatpush1.msra.mxu0 %v6728
        %6730 = vmatprep.subr.mxu0 0.0
        %v6731 = vand.u32 %v4781, 4294901760
        %v6732 = vsub.f32 %v4781, %v6731
        %6733 = vmatpush1.msra.mxu0 %v6732
        %6734 = vmatprep.subr.mxu0 0.0
        %v6735 = vand.u32 %v4780, 4294901760
        %v6736 = vsub.f32 %v4780, %v6735
        %6737 = vmatpush1.msra.mxu0 %v6736
        %6738 = vmatprep.subr.mxu0 0.0
        %v6739 = vand.u32 %v4779, 4294901760
        %v6740 = vsub.f32 %v4779, %v6739
        %6741 = vmatpush1.msra.mxu0 %v6740
        %6742 = vmatprep.subr.mxu0 0.0
        %6743 = vmatpush2.msra.mxu0 0.0
        %6744 = vmatprep.subr.mxu0 0.0
        %6745 = vmatpush2.msra.mxu0 0.0
        %6746 = vmatprep.subr.mxu0 0.0
        %6747 = vmatpush2.msra.mxu0 0.0
        %6748 = vmatprep.subr.mxu0 0.0
        %6749 = vmatpush2.msra.mxu0 0.0
        %6750 = vmatprep.subr.mxu0 0.0
        %6751 = vmatpush2.msra.mxu0 0.0
        %6752 = vmatprep.subr.mxu0 0.0
        %6753 = vmatpush2.msra.mxu0 0.0
        %6754 = vmatprep.subr.mxu0 0.0
        %6755 = vmatpush2.msra.mxu0 0.0
        %6756 = vmatprep.subr.mxu0 0.0
        %6757 = vmatpush2.msra.mxu0 0.0
        %6758 = vmatprep.subr.mxu0 0.0
        %6759 = vmatpush2.msra.mxu0 0.0
        %6760 = vmatprep.subr.mxu0 0.0
        %6761 = vmatpush2.msra.mxu0 0.0
        %6762 = vmatprep.subr.mxu0 0.0
        %6763 = vmatpush2.msra.mxu0 0.0
        %6764 = vmatprep.subr.mxu0 0.0
        %6765 = vmatpush2.msra.mxu0 0.0
        %6766 = vmatprep.subr.mxu0 0.0
        %6767 = vmatpush2.msra.mxu0 0.0
        %6768 = vmatprep.subr.mxu0 0.0
        %6769 = vmatpush2.msra.mxu0 0.0
        %6770 = vmatprep.subr.mxu0 0.0
        %6771 = vmatpush2.msra.mxu0 0.0
        %6772 = vmatprep.subr.mxu0 0.0
        %6773 = vmatpush2.msra.mxu0 0.0
        %6774 = vmatprep.mubr.f32.mxu0 0.0
        %v6775 = vand.u32 %v6530, 4294901760
        %v6776 = vsub.f32 %v6530, %v6775
        %6777 = vmatmul.mubr.f32.gmra.mxu0 %v6776
        %v6778 = vpop.f32.mrf.mxu0
        %v6779 = vadd.f32 %v6699, %v6778
        %v6780 = vpop.f32.mrf.mxu0
        %6781 = vdwg.mxu0
        %6782 = vmatprep.subr.mxu0 0.0
        %6783 = vmatpush1.msra.mxu0 0.0
        %6784 = vmatprep.subr.mxu0 0.0
        %6785 = vmatpush1.msra.mxu0 0.0
        %6786 = vmatprep.subr.mxu0 0.0
        %6787 = vmatpush1.msra.mxu0 0.0
        %6788 = vmatprep.subr.mxu0 0.0
        %6789 = vmatpush1.msra.mxu0 0.0
        %6790 = vmatprep.subr.mxu0 0.0
        %6791 = vmatpush1.msra.mxu0 0.0
        %6792 = vmatprep.subr.mxu0 0.0
        %6793 = vmatpush1.msra.mxu0 0.0
        %6794 = vmatprep.subr.mxu0 0.0
        %6795 = vmatpush1.msra.mxu0 0.0
        %6796 = vmatprep.subr.mxu0 0.0
        %6797 = vmatpush1.msra.mxu0 0.0
        %6798 = vmatprep.subr.mxu0 0.0
        %6799 = vmatpush1.msra.mxu0 0.0
        %6800 = vmatprep.subr.mxu0 0.0
        %6801 = vmatpush1.msra.mxu0 0.0
        %6802 = vmatprep.subr.mxu0 0.0
        %6803 = vmatpush1.msra.mxu0 0.0
        %6804 = vmatprep.subr.mxu0 0.0
        %6805 = vmatpush1.msra.mxu0 0.0
        %6806 = vmatprep.subr.mxu0 0.0
        %v6807 = vand.u32 %v4782, 4294901760
        %6808 = vmatpush1.msra.mxu0 %v6807
        %6809 = vmatprep.subr.mxu0 0.0
        %v6810 = vand.u32 %v4781, 4294901760
        %6811 = vmatpush1.msra.mxu0 %v6810
        %6812 = vmatprep.subr.mxu0 0.0
        %v6813 = vand.u32 %v4780, 4294901760
        %6814 = vmatpush1.msra.mxu0 %v6813
        %6815 = vmatprep.subr.mxu0 0.0
        %v6816 = vand.u32 %v4779, 4294901760
        %6817 = vmatpush1.msra.mxu0 %v6816
        %6818 = vmatprep.subr.mxu0 0.0
        %6819 = vmatpush2.msra.mxu0 0.0
        %6820 = vmatprep.subr.mxu0 0.0
        %6821 = vmatpush2.msra.mxu0 0.0
        %6822 = vmatprep.subr.mxu0 0.0
        %6823 = vmatpush2.msra.mxu0 0.0
        %6824 = vmatprep.subr.mxu0 0.0
        %6825 = vmatpush2.msra.mxu0 0.0
        %6826 = vmatprep.subr.mxu0 0.0
        %6827 = vmatpush2.msra.mxu0 0.0
        %6828 = vmatprep.subr.mxu0 0.0
        %6829 = vmatpush2.msra.mxu0 0.0
        %6830 = vmatprep.subr.mxu0 0.0
        %6831 = vmatpush2.msra.mxu0 0.0
        %6832 = vmatprep.subr.mxu0 0.0
        %6833 = vmatpush2.msra.mxu0 0.0
        %6834 = vmatprep.subr.mxu0 0.0
        %6835 = vmatpush2.msra.mxu0 0.0
        %6836 = vmatprep.subr.mxu0 0.0
        %6837 = vmatpush2.msra.mxu0 0.0
        %6838 = vmatprep.subr.mxu0 0.0
        %6839 = vmatpush2.msra.mxu0 0.0
        %6840 = vmatprep.subr.mxu0 0.0
        %6841 = vmatpush2.msra.mxu0 0.0
        %6842 = vmatprep.subr.mxu0 0.0
        %6843 = vmatpush2.msra.mxu0 0.0
        %6844 = vmatprep.subr.mxu0 0.0
        %6845 = vmatpush2.msra.mxu0 0.0
        %6846 = vmatprep.subr.mxu0 0.0
        %6847 = vmatpush2.msra.mxu0 0.0
        %6848 = vmatprep.subr.mxu0 0.0
        %6849 = vmatpush2.msra.mxu0 0.0
        %6850 = vmatprep.mubr.f32.mxu0 0.0
        %v6851 = vand.u32 %v6530, 4294901760
        %v6852 = vsub.f32 %v6530, %v6851
        %v6853 = vand.u32 %v6852, 4294901760
        %6854 = vmatmul.mubr.f32.gmra.mxu0 %v6853
        %v6855 = vpop.f32.mrf.mxu0
        %v6856 = vadd.f32 %v6779, %v6855
        %v6857 = vpop.f32.mrf.mxu0
        %6858 = vdwg.mxu0
        %6859 = vmatprep.subr.mxu0 0.0
        %6860 = vmatpush1.msra.mxu0 0.0
        %6861 = vmatprep.subr.mxu0 0.0
        %6862 = vmatpush1.msra.mxu0 0.0
        %6863 = vmatprep.subr.mxu0 0.0
        %6864 = vmatpush1.msra.mxu0 0.0
        %6865 = vmatprep.subr.mxu0 0.0
        %6866 = vmatpush1.msra.mxu0 0.0
        %6867 = vmatprep.subr.mxu0 0.0
        %6868 = vmatpush1.msra.mxu0 0.0
        %6869 = vmatprep.subr.mxu0 0.0
        %6870 = vmatpush1.msra.mxu0 0.0
        %6871 = vmatprep.subr.mxu0 0.0
        %6872 = vmatpush1.msra.mxu0 0.0
        %6873 = vmatprep.subr.mxu0 0.0
        %6874 = vmatpush1.msra.mxu0 0.0
        %6875 = vmatprep.subr.mxu0 0.0
        %6876 = vmatpush1.msra.mxu0 0.0
        %6877 = vmatprep.subr.mxu0 0.0
        %6878 = vmatpush1.msra.mxu0 0.0
        %6879 = vmatprep.subr.mxu0 0.0
        %6880 = vmatpush1.msra.mxu0 0.0
        %6881 = vmatprep.subr.mxu0 0.0
        %6882 = vmatpush1.msra.mxu0 0.0
        %6883 = vmatprep.subr.mxu0 0.0
        %v6884 = vand.u32 %v4782, 4294901760
        %v6885 = vsub.f32 %v4782, %v6884
        %v6886 = vand.u32 %v6885, 4294901760
        %6887 = vmatpush1.msra.mxu0 %v6886
        %6888 = vmatprep.subr.mxu0 0.0
        %v6889 = vand.u32 %v4781, 4294901760
        %v6890 = vsub.f32 %v4781, %v6889
        %v6891 = vand.u32 %v6890, 4294901760
        %6892 = vmatpush1.msra.mxu0 %v6891
        %6893 = vmatprep.subr.mxu0 0.0
        %v6894 = vand.u32 %v4780, 4294901760
        %v6895 = vsub.f32 %v4780, %v6894
        %v6896 = vand.u32 %v6895, 4294901760
        %6897 = vmatpush1.msra.mxu0 %v6896
        %6898 = vmatprep.subr.mxu0 0.0
        %v6899 = vand.u32 %v4779, 4294901760
        %v6900 = vsub.f32 %v4779, %v6899
        %v6901 = vand.u32 %v6900, 4294901760
        %6902 = vmatpush1.msra.mxu0 %v6901
        %6903 = vmatprep.subr.mxu0 0.0
        %6904 = vmatpush2.msra.mxu0 0.0
        %6905 = vmatprep.subr.mxu0 0.0
        %6906 = vmatpush2.msra.mxu0 0.0
        %6907 = vmatprep.subr.mxu0 0.0
        %6908 = vmatpush2.msra.mxu0 0.0
        %6909 = vmatprep.subr.mxu0 0.0
        %6910 = vmatpush2.msra.mxu0 0.0
        %6911 = vmatprep.subr.mxu0 0.0
        %6912 = vmatpush2.msra.mxu0 0.0
        %6913 = vmatprep.subr.mxu0 0.0
        %6914 = vmatpush2.msra.mxu0 0.0
        %6915 = vmatprep.subr.mxu0 0.0
        %6916 = vmatpush2.msra.mxu0 0.0
        %6917 = vmatprep.subr.mxu0 0.0
        %6918 = vmatpush2.msra.mxu0 0.0
        %6919 = vmatprep.subr.mxu0 0.0
        %6920 = vmatpush2.msra.mxu0 0.0
        %6921 = vmatprep.subr.mxu0 0.0
        %6922 = vmatpush2.msra.mxu0 0.0
        %6923 = vmatprep.subr.mxu0 0.0
        %6924 = vmatpush2.msra.mxu0 0.0
        %6925 = vmatprep.subr.mxu0 0.0
        %6926 = vmatpush2.msra.mxu0 0.0
        %6927 = vmatprep.subr.mxu0 0.0
        %6928 = vmatpush2.msra.mxu0 0.0
        %6929 = vmatprep.subr.mxu0 0.0
        %6930 = vmatpush2.msra.mxu0 0.0
        %6931 = vmatprep.subr.mxu0 0.0
        %6932 = vmatpush2.msra.mxu0 0.0
        %6933 = vmatprep.subr.mxu0 0.0
        %6934 = vmatpush2.msra.mxu0 0.0
        %6935 = vmatprep.mubr.f32.mxu0 0.0
        %v6936 = vand.u32 %v6530, 4294901760
        %6937 = vmatmul.mubr.f32.gmra.mxu0 %v6936
        %v6938 = vpop.f32.mrf.mxu0
        %v6939 = vadd.f32 %v6856, %v6938
        %v6940 = vpop.f32.mrf.mxu0
        %6941 = vdwg.mxu0
        %6942 = vmatprep.subr.mxu0 0.0
        %6943 = vmatpush1.msra.mxu0 0.0
        %6944 = vmatprep.subr.mxu0 0.0
        %6945 = vmatpush1.msra.mxu0 0.0
        %6946 = vmatprep.subr.mxu0 0.0
        %6947 = vmatpush1.msra.mxu0 0.0
        %6948 = vmatprep.subr.mxu0 0.0
        %6949 = vmatpush1.msra.mxu0 0.0
        %6950 = vmatprep.subr.mxu0 0.0
        %6951 = vmatpush1.msra.mxu0 0.0
        %6952 = vmatprep.subr.mxu0 0.0
        %6953 = vmatpush1.msra.mxu0 0.0
        %6954 = vmatprep.subr.mxu0 0.0
        %6955 = vmatpush1.msra.mxu0 0.0
        %6956 = vmatprep.subr.mxu0 0.0
        %6957 = vmatpush1.msra.mxu0 0.0
        %6958 = vmatprep.subr.mxu0 0.0
        %6959 = vmatpush1.msra.mxu0 0.0
        %6960 = vmatprep.subr.mxu0 0.0
        %6961 = vmatpush1.msra.mxu0 0.0
        %6962 = vmatprep.subr.mxu0 0.0
        %6963 = vmatpush1.msra.mxu0 0.0
        %6964 = vmatprep.subr.mxu0 0.0
        %6965 = vmatpush1.msra.mxu0 0.0
        %6966 = vmatprep.subr.mxu0 0.0
        %v6967 = vand.u32 %v4782, 4294901760
        %6968 = vmatpush1.msra.mxu0 %v6967
        %6969 = vmatprep.subr.mxu0 0.0
        %v6970 = vand.u32 %v4781, 4294901760
        %6971 = vmatpush1.msra.mxu0 %v6970
        %6972 = vmatprep.subr.mxu0 0.0
        %v6973 = vand.u32 %v4780, 4294901760
        %6974 = vmatpush1.msra.mxu0 %v6973
        %6975 = vmatprep.subr.mxu0 0.0
        %v6976 = vand.u32 %v4779, 4294901760
        %6977 = vmatpush1.msra.mxu0 %v6976
        %6978 = vmatprep.subr.mxu0 0.0
        %6979 = vmatpush2.msra.mxu0 0.0
        %6980 = vmatprep.subr.mxu0 0.0
        %6981 = vmatpush2.msra.mxu0 0.0
        %6982 = vmatprep.subr.mxu0 0.0
        %6983 = vmatpush2.msra.mxu0 0.0
        %6984 = vmatprep.subr.mxu0 0.0
        %6985 = vmatpush2.msra.mxu0 0.0
        %6986 = vmatprep.subr.mxu0 0.0
        %6987 = vmatpush2.msra.mxu0 0.0
        %6988 = vmatprep.subr.mxu0 0.0
        %6989 = vmatpush2.msra.mxu0 0.0
        %6990 = vmatprep.subr.mxu0 0.0
        %6991 = vmatpush2.msra.mxu0 0.0
        %6992 = vmatprep.subr.mxu0 0.0
        %6993 = vmatpush2.msra.mxu0 0.0
        %6994 = vmatprep.subr.mxu0 0.0
        %6995 = vmatpush2.msra.mxu0 0.0
        %6996 = vmatprep.subr.mxu0 0.0
        %6997 = vmatpush2.msra.mxu0 0.0
        %6998 = vmatprep.subr.mxu0 0.0
        %6999 = vmatpush2.msra.mxu0 0.0
        %7000 = vmatprep.subr.mxu0 0.0
        %7001 = vmatpush2.msra.mxu0 0.0
        %7002 = vmatprep.subr.mxu0 0.0
        %7003 = vmatpush2.msra.mxu0 0.0
        %7004 = vmatprep.subr.mxu0 0.0
        %7005 = vmatpush2.msra.mxu0 0.0
        %7006 = vmatprep.subr.mxu0 0.0
        %7007 = vmatpush2.msra.mxu0 0.0
        %7008 = vmatprep.subr.mxu0 0.0
        %7009 = vmatpush2.msra.mxu0 0.0
        %7010 = vmatprep.mubr.f32.mxu0 0.0
        %v7011 = vand.u32 %v6530, 4294901760
        %7012 = vmatmul.mubr.f32.gmra.mxu0 %v7011
        %v7013 = vpop.f32.mrf.mxu0
        %v7014 = vadd.f32 %v6939, %v7013
        %v7015 = vpop.f32.mrf.mxu0
        %7016 = vdwg.mxu0
        %v7017 = vmul.f32 %v7014, %v4783
        %v7018 = vmul.f32 %v6526, %v7017
        %v7019 = vsub.f32 %v4784, %v7018
        %v7020 = vlaneseq
        %v7021 = vshrl.u32 %v7020, 7
        %v7022 = vsub.s32 0, %v7021
        %v7023 = vrot.slane %v7017, %v7022
        %v7024 = vmul.f32 %v4739, %v7023
        %v7025 = vmul.f32 %v4740, %v7023
        %v7026 = vmul.f32 %v4741, %v7023
        %v7027 = vmul.f32 %v4742, %v7023
        %v7028 = vmul.f32 %v4743, %v7023
        %v7029 = vmul.f32 %v4744, %v7023
        %v7030 = vmul.f32 %v4745, %v7023
        %v7031 = vmul.f32 %v4746, %v7023
        %v7032 = vmul.f32 %v4747, %v7023
        %v7033 = vmul.f32 %v4748, %v7023
        %v7034 = vmul.f32 %v4749, %v7023
        %v7035 = vmul.f32 %v4750, %v7023
        %v7036 = vmul.f32 %v4751, %v7023
        %v7037 = vmul.f32 %v4752, %v7023
        %v7038 = vmul.f32 %v4753, %v7023
        %v7039 = vmul.f32 %v4754, %v7023
        %v7040 = vmul.f32 %v4755, %v7023
        %v7041 = vmul.f32 %v4756, %v7023
        %v7042 = vmul.f32 %v4757, %v7023
        %v7043 = vmul.f32 %v4758, %v7023
        %v7044 = vmul.f32 %v4759, %v7023
        %v7045 = vmul.f32 %v4760, %v7023
        %v7046 = vmul.f32 %v4761, %v7023
        %v7047 = vmul.f32 %v4762, %v7023
        %v7048 = vmul.f32 %v4763, %v7023
        %v7049 = vmul.f32 %v4764, %v7023
        %v7050 = vmul.f32 %v4765, %v7023
        %v7051 = vmul.f32 %v4766, %v7023
        %v7052 = vmul.f32 %v4767, %v7023
        %v7053 = vmul.f32 %v4768, %v7023
        %v7054 = vmul.f32 %v4769, %v7023
        %v7055 = vmul.f32 %v4770, %v7023
        %v7057 = vlaneseq
        %v7058 = vshrl.u32 %v7057, 7
        %v7059 = vsub.s32 0, %v7058
        %v7060 = vrot.slane %v7019, %v7059
        %v7062 = vadd.f32 %v7024, %v7060
        %v7063 = vadd.f32 %v7025, %v7060
        %v7064 = vadd.f32 %v7026, %v7060
        %v7065 = vadd.f32 %v7027, %v7060
        %v7066 = vadd.f32 %v7028, %v7060
        %v7067 = vadd.f32 %v7029, %v7060
        %v7068 = vadd.f32 %v7030, %v7060
        %v7069 = vadd.f32 %v7031, %v7060
        %v7070 = vadd.f32 %v7032, %v7060
        %v7071 = vadd.f32 %v7033, %v7060
        %v7072 = vadd.f32 %v7034, %v7060
        %v7073 = vadd.f32 %v7035, %v7060
        %v7074 = vadd.f32 %v7036, %v7060
        %v7075 = vadd.f32 %v7037, %v7060
        %v7076 = vadd.f32 %v7038, %v7060
        %v7077 = vadd.f32 %v7039, %v7060
        %v7078 = vadd.f32 %v7040, %v7060
        %v7079 = vadd.f32 %v7041, %v7060
        %v7080 = vadd.f32 %v7042, %v7060
        %v7081 = vadd.f32 %v7043, %v7060
        %v7082 = vadd.f32 %v7044, %v7060
        %v7083 = vadd.f32 %v7045, %v7060
        %v7084 = vadd.f32 %v7046, %v7060
        %v7085 = vadd.f32 %v7047, %v7060
        %v7086 = vadd.f32 %v7048, %v7060
        %v7087 = vadd.f32 %v7049, %v7060
        %v7088 = vadd.f32 %v7050, %v7060
        %v7089 = vadd.f32 %v7051, %v7060
        %v7090 = vadd.f32 %v7052, %v7060
        %v7091 = vadd.f32 %v7053, %v7060
        %v7092 = vadd.f32 %v7054, %v7060
        %v7093 = vadd.f32 %v7055, %v7060
        %v7094 = vsub.f32 0.0, %v7062
        %v7095 = vsub.f32 0.0, %v7063
        %v7096 = vsub.f32 0.0, %v7064
        %v7097 = vsub.f32 0.0, %v7065
        %v7098 = vsub.f32 0.0, %v7066
        %v7099 = vsub.f32 0.0, %v7067
        %v7100 = vsub.f32 0.0, %v7068
        %v7101 = vsub.f32 0.0, %v7069
        %v7102 = vsub.f32 0.0, %v7070
        %v7103 = vsub.f32 0.0, %v7071
        %v7104 = vsub.f32 0.0, %v7072
        %v7105 = vsub.f32 0.0, %v7073
        %v7106 = vsub.f32 0.0, %v7074
        %v7107 = vsub.f32 0.0, %v7075
        %v7108 = vsub.f32 0.0, %v7076
        %v7109 = vsub.f32 0.0, %v7077
        %v7110 = vsub.f32 0.0, %v7078
        %v7111 = vsub.f32 0.0, %v7079
        %v7112 = vsub.f32 0.0, %v7080
        %v7113 = vsub.f32 0.0, %v7081
        %v7114 = vsub.f32 0.0, %v7082
        %v7115 = vsub.f32 0.0, %v7083
        %v7116 = vsub.f32 0.0, %v7084
        %v7117 = vsub.f32 0.0, %v7085
        %v7118 = vsub.f32 0.0, %v7086
        %v7119 = vsub.f32 0.0, %v7087
        %v7120 = vsub.f32 0.0, %v7088
        %v7121 = vsub.f32 0.0, %v7089
        %v7122 = vsub.f32 0.0, %v7090
        %v7123 = vsub.f32 0.0, %v7091
        %v7124 = vsub.f32 0.0, %v7092
        %v7125 = vsub.f32 0.0, %v7093
        %v7126 = vmul.f32 %v7094, 1.442695
        %v7127 = vpow.pop %v7126
        %v7128 = vmul.f32 %v7095, 1.442695
        %v7129 = vpow.pop %v7128
        %v7130 = vmul.f32 %v7096, 1.442695
        %v7131 = vpow.pop %v7130
        %v7132 = vmul.f32 %v7097, 1.442695
        %v7133 = vpow.pop %v7132
        %v7134 = vmul.f32 %v7098, 1.442695
        %v7135 = vpow.pop %v7134
        %v7136 = vmul.f32 %v7099, 1.442695
        %v7137 = vpow.pop %v7136
        %v7138 = vmul.f32 %v7100, 1.442695
        %v7139 = vpow.pop %v7138
        %v7140 = vmul.f32 %v7101, 1.442695
        %v7141 = vpow.pop %v7140
        %v7142 = vmul.f32 %v7102, 1.442695
        %v7143 = vpow.pop %v7142
        %v7144 = vmul.f32 %v7103, 1.442695
        %v7145 = vpow.pop %v7144
        %v7146 = vmul.f32 %v7104, 1.442695
        %v7147 = vpow.pop %v7146
        %v7148 = vmul.f32 %v7105, 1.442695
        %v7149 = vpow.pop %v7148
        %v7150 = vmul.f32 %v7106, 1.442695
        %v7151 = vpow.pop %v7150
        %v7152 = vmul.f32 %v7107, 1.442695
        %v7153 = vpow.pop %v7152
        %v7154 = vmul.f32 %v7108, 1.442695
        %v7155 = vpow.pop %v7154
        %v7156 = vmul.f32 %v7109, 1.442695
        %v7157 = vpow.pop %v7156
        %v7158 = vmul.f32 %v7110, 1.442695
        %v7159 = vpow.pop %v7158
        %v7160 = vmul.f32 %v7111, 1.442695
        %v7161 = vpow.pop %v7160
        %v7162 = vmul.f32 %v7112, 1.442695
        %v7163 = vpow.pop %v7162
        %v7164 = vmul.f32 %v7113, 1.442695
        %v7165 = vpow.pop %v7164
        %v7166 = vmul.f32 %v7114, 1.442695
        %v7167 = vpow.pop %v7166
        %v7168 = vmul.f32 %v7115, 1.442695
        %v7169 = vpow.pop %v7168
        %v7170 = vmul.f32 %v7116, 1.442695
        %v7171 = vpow.pop %v7170
        %v7172 = vmul.f32 %v7117, 1.442695
        %v7173 = vpow.pop %v7172
        %v7174 = vmul.f32 %v7118, 1.442695
        %v7175 = vpow.pop %v7174
        %v7176 = vmul.f32 %v7119, 1.442695
        %v7177 = vpow.pop %v7176
        %v7178 = vmul.f32 %v7120, 1.442695
        %v7179 = vpow.pop %v7178
        %v7180 = vmul.f32 %v7121, 1.442695
        %v7181 = vpow.pop %v7180
        %v7182 = vmul.f32 %v7122, 1.442695
        %v7183 = vpow.pop %v7182
        %v7184 = vmul.f32 %v7123, 1.442695
        %v7185 = vpow.pop %v7184
        %v7186 = vmul.f32 %v7124, 1.442695
        %v7187 = vpow.pop %v7186
        %v7188 = vmul.f32 %v7125, 1.442695
        %v7189 = vpow.pop %v7188
        %v7190 = vadd.f32 %v7127, 1.0
        %v7191 = vadd.f32 %v7129, 1.0
        %v7192 = vadd.f32 %v7131, 1.0
        %v7193 = vadd.f32 %v7133, 1.0
        %v7194 = vadd.f32 %v7135, 1.0
        %v7195 = vadd.f32 %v7137, 1.0
        %v7196 = vadd.f32 %v7139, 1.0
        %v7197 = vadd.f32 %v7141, 1.0
        %v7198 = vadd.f32 %v7143, 1.0
        %v7199 = vadd.f32 %v7145, 1.0
        %v7200 = vadd.f32 %v7147, 1.0
        %v7201 = vadd.f32 %v7149, 1.0
        %v7202 = vadd.f32 %v7151, 1.0
        %v7203 = vadd.f32 %v7153, 1.0
        %v7204 = vadd.f32 %v7155, 1.0
        %v7205 = vadd.f32 %v7157, 1.0
        %v7206 = vadd.f32 %v7159, 1.0
        %v7207 = vadd.f32 %v7161, 1.0
        %v7208 = vadd.f32 %v7163, 1.0
        %v7209 = vadd.f32 %v7165, 1.0
        %v7210 = vadd.f32 %v7167, 1.0
        %v7211 = vadd.f32 %v7169, 1.0
        %v7212 = vadd.f32 %v7171, 1.0
        %v7213 = vadd.f32 %v7173, 1.0
        %v7214 = vadd.f32 %v7175, 1.0
        %v7215 = vadd.f32 %v7177, 1.0
        %v7216 = vadd.f32 %v7179, 1.0
        %v7217 = vadd.f32 %v7181, 1.0
        %v7218 = vadd.f32 %v7183, 1.0
        %v7219 = vadd.f32 %v7185, 1.0
        %v7220 = vadd.f32 %v7187, 1.0
        %v7221 = vadd.f32 %v7189, 1.0
        %v7222 = vrcp.pop %v7190
        %v7223 = vrcp.pop %v7191
        %v7224 = vrcp.pop %v7192
        %v7225 = vrcp.pop %v7193
        %v7226 = vrcp.pop %v7194
        %v7227 = vrcp.pop %v7195
        %v7228 = vrcp.pop %v7196
        %v7229 = vrcp.pop %v7197
        %v7230 = vrcp.pop %v7198
        %v7231 = vrcp.pop %v7199
        %v7232 = vrcp.pop %v7200
        %v7233 = vrcp.pop %v7201
        %v7234 = vrcp.pop %v7202
        %v7235 = vrcp.pop %v7203
        %v7236 = vrcp.pop %v7204
        %v7237 = vrcp.pop %v7205
        %v7238 = vrcp.pop %v7206
        %v7239 = vrcp.pop %v7207
        %v7240 = vrcp.pop %v7208
        %v7241 = vrcp.pop %v7209
        %v7242 = vrcp.pop %v7210
        %v7243 = vrcp.pop %v7211
        %v7244 = vrcp.pop %v7212
        %v7245 = vrcp.pop %v7213
        %v7246 = vrcp.pop %v7214
        %v7247 = vrcp.pop %v7215
        %v7248 = vrcp.pop %v7216
        %v7249 = vrcp.pop %v7217
        %v7250 = vrcp.pop %v7218
        %v7251 = vrcp.pop %v7219
        %v7252 = vrcp.pop %v7220
        %v7253 = vrcp.pop %v7221
        %v7254 = vmul.f32 %v7062, %v7222
        %v7255 = vmul.f32 %v7063, %v7223
        %v7256 = vmul.f32 %v7064, %v7224
        %v7257 = vmul.f32 %v7065, %v7225
        %v7258 = vmul.f32 %v7066, %v7226
        %v7259 = vmul.f32 %v7067, %v7227
        %v7260 = vmul.f32 %v7068, %v7228
        %v7261 = vmul.f32 %v7069, %v7229
        %v7262 = vmul.f32 %v7070, %v7230
        %v7263 = vmul.f32 %v7071, %v7231
        %v7264 = vmul.f32 %v7072, %v7232
        %v7265 = vmul.f32 %v7073, %v7233
        %v7266 = vmul.f32 %v7074, %v7234
        %v7267 = vmul.f32 %v7075, %v7235
        %v7268 = vmul.f32 %v7076, %v7236
        %v7269 = vmul.f32 %v7077, %v7237
        %v7270 = vmul.f32 %v7078, %v7238
        %v7271 = vmul.f32 %v7079, %v7239
        %v7272 = vmul.f32 %v7080, %v7240
        %v7273 = vmul.f32 %v7081, %v7241
        %v7274 = vmul.f32 %v7082, %v7242
        %v7275 = vmul.f32 %v7083, %v7243
        %v7276 = vmul.f32 %v7084, %v7244
        %v7277 = vmul.f32 %v7085, %v7245
        %v7278 = vmul.f32 %v7086, %v7246
        %v7279 = vmul.f32 %v7087, %v7247
        %v7280 = vmul.f32 %v7088, %v7248
        %v7281 = vmul.f32 %v7089, %v7249
        %v7282 = vmul.f32 %v7090, %v7250
        %v7283 = vmul.f32 %v7091, %v7251
        %v7284 = vmul.f32 %v7092, %v7252
        %v7285 = vmul.f32 %v7093, %v7253
        %v7286 = vld [vmem:[%s12] sm:$0x1]
        %7287 = vst.msk [vmem:[#allocation4 + $0x8] sm:$0xff] %vm3390, %v7254
        %7288 = vst.msk [vmem:[#allocation4 + $0x10] sm:$0xff] %vm3390, %v7255
        %7289 = vst.msk [vmem:[#allocation4 + $0x28] sm:$0xff] %vm3390, %v7256
        %7290 = vst.msk [vmem:[#allocation4 + $0x30] sm:$0xff] %vm3390, %v7257
        %7291 = vst.msk [vmem:[#allocation4 + $0x48] sm:$0xff] %vm3390, %v7258
        %7292 = vst.msk [vmem:[#allocation4 + $0x50] sm:$0xff] %vm3390, %v7259
        %7293 = vst.msk [vmem:[#allocation4 + $0x68] sm:$0xff] %vm3390, %v7260
        %7294 = vst.msk [vmem:[#allocation4 + $0x70] sm:$0xff] %vm3390, %v7261
        %7295 = vst.msk [vmem:[#allocation4 + $0x88] sm:$0xff] %vm3390, %v7262
        %7296 = vst.msk [vmem:[#allocation4 + $0x90] sm:$0xff] %vm3390, %v7263
        %7297 = vst.msk [vmem:[#allocation4 + $0xa8] sm:$0xff] %vm3390, %v7264
        %7298 = vst.msk [vmem:[#allocation4 + $0xb0] sm:$0xff] %vm3390, %v7265
        %7299 = vst.msk [vmem:[#allocation4 + $0xc8] sm:$0xff] %vm3390, %v7266
        %7300 = vst.msk [vmem:[#allocation4 + $0xd0] sm:$0xff] %vm3390, %v7267
        %7301 = vst.msk [vmem:[#allocation4 + $0xe8] sm:$0xff] %vm3390, %v7268
        %7302 = vst.msk [vmem:[#allocation4 + $0xf0] sm:$0xff] %vm3390, %v7269
        %7303 = vst.msk [vmem:[#allocation4 + $0x108] sm:$0xff] %vm3390, %v7270
        %7304 = vst.msk [vmem:[#allocation4 + $0x110] sm:$0xff] %vm3390, %v7271
        %7305 = vst.msk [vmem:[#allocation4 + $0x128] sm:$0xff] %vm3390, %v7272
        %7306 = vst.msk [vmem:[#allocation4 + $0x130] sm:$0xff] %vm3390, %v7273
        %7307 = vst.msk [vmem:[#allocation4 + $0x148] sm:$0xff] %vm3390, %v7274
        %7308 = vst.msk [vmem:[#allocation4 + $0x150] sm:$0xff] %vm3390, %v7275
        %7309 = vst.msk [vmem:[#allocation4 + $0x168] sm:$0xff] %vm3390, %v7276
        %7310 = vst.msk [vmem:[#allocation4 + $0x170] sm:$0xff] %vm3390, %v7277
        %7311 = vst.msk [vmem:[#allocation4 + $0x188] sm:$0xff] %vm3390, %v7278
        %7312 = vst.msk [vmem:[#allocation4 + $0x190] sm:$0xff] %vm3390, %v7279
        %7313 = vst.msk [vmem:[#allocation4 + $0x1a8] sm:$0xff] %vm3390, %v7280
        %7314 = vst.msk [vmem:[#allocation4 + $0x1b0] sm:$0xff] %vm3390, %v7281
        %7315 = vst.msk [vmem:[#allocation4 + $0x1c8] sm:$0xff] %vm3390, %v7282
        %7316 = vst.msk [vmem:[#allocation4 + $0x1d0] sm:$0xff] %vm3390, %v7283
        %7317 = vst.msk [vmem:[#allocation4 + $0x1e8] sm:$0xff] %vm3390, %v7284
        %7318 = vst.msk [vmem:[#allocation4 + $0x1f0] sm:$0xff] %vm3390, %v7285
        %v7319 = vld [vmem:[#allocation4 + $0x7] sm:$0xff]
        %v7320 = vld [vmem:[#allocation4 + $0xf] sm:$0xff]
        %v7321 = vld [vmem:[#allocation4 + $0x27] sm:$0xff]
        %v7322 = vld [vmem:[#allocation4 + $0x2f] sm:$0xff]
        %v7323 = vld [vmem:[#allocation4 + $0x47] sm:$0xff]
        %v7324 = vld [vmem:[#allocation4 + $0x4f] sm:$0xff]
        %v7325 = vld [vmem:[#allocation4 + $0x67] sm:$0xff]
        %v7326 = vld [vmem:[#allocation4 + $0x6f] sm:$0xff]
        %v7327 = vld [vmem:[#allocation4 + $0x87] sm:$0xff]
        %v7328 = vld [vmem:[#allocation4 + $0x8f] sm:$0xff]
        %v7329 = vld [vmem:[#allocation4 + $0xa7] sm:$0xff]
        %v7330 = vld [vmem:[#allocation4 + $0xaf] sm:$0xff]
        %v7331 = vld [vmem:[#allocation4 + $0xc7] sm:$0xff]
        %v7332 = vld [vmem:[#allocation4 + $0xcf] sm:$0xff]
        %v7333 = vld [vmem:[#allocation4 + $0xe7] sm:$0xff]
        %v7334 = vld [vmem:[#allocation4 + $0xef] sm:$0xff]
        %v7335 = vld [vmem:[#allocation4 + $0x107] sm:$0xff]
        %v7336 = vld [vmem:[#allocation4 + $0x10f] sm:$0xff]
        %v7337 = vld [vmem:[#allocation4 + $0x127] sm:$0xff]
        %v7338 = vld [vmem:[#allocation4 + $0x12f] sm:$0xff]
        %v7339 = vld [vmem:[#allocation4 + $0x147] sm:$0xff]
        %v7340 = vld [vmem:[#allocation4 + $0x14f] sm:$0xff]
        %v7341 = vld [vmem:[#allocation4 + $0x167] sm:$0xff]
        %v7342 = vld [vmem:[#allocation4 + $0x16f] sm:$0xff]
        %v7343 = vld [vmem:[#allocation4 + $0x187] sm:$0xff]
        %v7344 = vld [vmem:[#allocation4 + $0x18f] sm:$0xff]
        %v7345 = vld [vmem:[#allocation4 + $0x1a7] sm:$0xff]
        %v7346 = vld [vmem:[#allocation4 + $0x1af] sm:$0xff]
        %v7347 = vld [vmem:[#allocation4 + $0x1c7] sm:$0xff]
        %v7348 = vld [vmem:[#allocation4 + $0x1cf] sm:$0xff]
        %v7349 = vld [vmem:[#allocation4 + $0x1e7] sm:$0xff]
        %v7350 = vld [vmem:[#allocation4 + $0x1ef] sm:$0xff]
        %v7351 = vsel %vm2970, %v7319, 0.0
        %v7352 = vsel %vm2971, %v7320, 0.0
        %v7353 = vsel %vm2970, %v7321, 0.0
        %v7354 = vsel %vm2971, %v7322, 0.0
        %v7355 = vsel %vm2970, %v7323, 0.0
        %v7356 = vsel %vm2971, %v7324, 0.0
        %v7357 = vsel %vm2970, %v7325, 0.0
        %v7358 = vsel %vm2971, %v7326, 0.0
        %v7359 = vsel %vm2970, %v7327, 0.0
        %v7360 = vsel %vm2971, %v7328, 0.0
        %v7361 = vsel %vm2970, %v7329, 0.0
        %v7362 = vsel %vm2971, %v7330, 0.0
        %v7363 = vsel %vm2970, %v7331, 0.0
        %v7364 = vsel %vm2971, %v7332, 0.0
        %v7365 = vsel %vm2970, %v7333, 0.0
        %v7366 = vsel %vm2971, %v7334, 0.0
        %v7367 = vsel %vm2970, %v7335, 0.0
        %v7368 = vsel %vm2971, %v7336, 0.0
        %v7369 = vsel %vm2970, %v7337, 0.0
        %v7370 = vsel %vm2971, %v7338, 0.0
        %v7371 = vsel %vm2970, %v7339, 0.0
        %v7372 = vsel %vm2971, %v7340, 0.0
        %v7373 = vsel %vm2970, %v7341, 0.0
        %v7374 = vsel %vm2971, %v7342, 0.0
        %v7375 = vsel %vm2970, %v7343, 0.0
        %v7376 = vsel %vm2971, %v7344, 0.0
        %v7377 = vsel %vm2970, %v7345, 0.0
        %v7378 = vsel %vm2971, %v7346, 0.0
        %v7379 = vsel %vm2970, %v7347, 0.0
        %v7380 = vsel %vm2971, %v7348, 0.0
        %v7381 = vsel %vm2970, %v7349, 0.0
        %v7382 = vsel %vm2971, %v7350, 0.0
        %v7383 = vld [vmem:[#allocation4 + $0x9] sm:$0xff]
        %v7384 = vld [vmem:[#allocation4 + $0x11] sm:$0xff]
        %v7385 = vld [vmem:[#allocation4 + $0x29] sm:$0xff]
        %v7386 = vld [vmem:[#allocation4 + $0x31] sm:$0xff]
        %v7387 = vld [vmem:[#allocation4 + $0x49] sm:$0xff]
        %v7388 = vld [vmem:[#allocation4 + $0x51] sm:$0xff]
        %v7389 = vld [vmem:[#allocation4 + $0x69] sm:$0xff]
        %v7390 = vld [vmem:[#allocation4 + $0x71] sm:$0xff]
        %v7391 = vld [vmem:[#allocation4 + $0x89] sm:$0xff]
        %v7392 = vld [vmem:[#allocation4 + $0x91] sm:$0xff]
        %v7393 = vld [vmem:[#allocation4 + $0xa9] sm:$0xff]
        %v7394 = vld [vmem:[#allocation4 + $0xb1] sm:$0xff]
        %v7395 = vld [vmem:[#allocation4 + $0xc9] sm:$0xff]
        %v7396 = vld [vmem:[#allocation4 + $0xd1] sm:$0xff]
        %v7397 = vld [vmem:[#allocation4 + $0xe9] sm:$0xff]
        %v7398 = vld [vmem:[#allocation4 + $0xf1] sm:$0xff]
        %v7399 = vld [vmem:[#allocation4 + $0x109] sm:$0xff]
        %v7400 = vld [vmem:[#allocation4 + $0x111] sm:$0xff]
        %v7401 = vld [vmem:[#allocation4 + $0x129] sm:$0xff]
        %v7402 = vld [vmem:[#allocation4 + $0x131] sm:$0xff]
        %v7403 = vld [vmem:[#allocation4 + $0x149] sm:$0xff]
        %v7404 = vld [vmem:[#allocation4 + $0x151] sm:$0xff]
        %v7405 = vld [vmem:[#allocation4 + $0x169] sm:$0xff]
        %v7406 = vld [vmem:[#allocation4 + $0x171] sm:$0xff]
        %v7407 = vld [vmem:[#allocation4 + $0x189] sm:$0xff]
        %v7408 = vld [vmem:[#allocation4 + $0x191] sm:$0xff]
        %v7409 = vld [vmem:[#allocation4 + $0x1a9] sm:$0xff]
        %v7410 = vld [vmem:[#allocation4 + $0x1b1] sm:$0xff]
        %v7411 = vld [vmem:[#allocation4 + $0x1c9] sm:$0xff]
        %v7412 = vld [vmem:[#allocation4 + $0x1d1] sm:$0xff]
        %v7413 = vld [vmem:[#allocation4 + $0x1e9] sm:$0xff]
        %v7414 = vld [vmem:[#allocation4 + $0x1f1] sm:$0xff]
        %v7415 = vsel %vm3036, %v7383, 0.0
        %v7416 = vsel %vm3037, %v7384, 0.0
        %v7417 = vsel %vm3036, %v7385, 0.0
        %v7418 = vsel %vm3037, %v7386, 0.0
        %v7419 = vsel %vm3036, %v7387, 0.0
        %v7420 = vsel %vm3037, %v7388, 0.0
        %v7421 = vsel %vm3036, %v7389, 0.0
        %v7422 = vsel %vm3037, %v7390, 0.0
        %v7423 = vsel %vm3036, %v7391, 0.0
        %v7424 = vsel %vm3037, %v7392, 0.0
        %v7425 = vsel %vm3036, %v7393, 0.0
        %v7426 = vsel %vm3037, %v7394, 0.0
        %v7427 = vsel %vm3036, %v7395, 0.0
        %v7428 = vsel %vm3037, %v7396, 0.0
        %v7429 = vsel %vm3036, %v7397, 0.0
        %v7430 = vsel %vm3037, %v7398, 0.0
        %v7431 = vsel %vm3036, %v7399, 0.0
        %v7432 = vsel %vm3037, %v7400, 0.0
        %v7433 = vsel %vm3036, %v7401, 0.0
        %v7434 = vsel %vm3037, %v7402, 0.0
        %v7435 = vsel %vm3036, %v7403, 0.0
        %v7436 = vsel %vm3037, %v7404, 0.0
        %v7437 = vsel %vm3036, %v7405, 0.0
        %v7438 = vsel %vm3037, %v7406, 0.0
        %v7439 = vsel %vm3036, %v7407, 0.0
        %v7440 = vsel %vm3037, %v7408, 0.0
        %v7441 = vsel %vm3036, %v7409, 0.0
        %v7442 = vsel %vm3037, %v7410, 0.0
        %v7443 = vsel %vm3036, %v7411, 0.0
        %v7444 = vsel %vm3037, %v7412, 0.0
        %v7445 = vsel %vm3036, %v7413, 0.0
        %v7446 = vsel %vm3037, %v7414, 0.0
        %7479 = vrot.lane.b32.xlu0 %v7254, 64
        %v7480 = vpop.permute.xlu0 %7479
        %7481 = vrot.lane.b32.xlu0 %v7255, 64
        %v7482 = vpop.permute.xlu0 %7481
        %7483 = vrot.lane.b32.xlu0 %v7256, 64
        %v7484 = vpop.permute.xlu0 %7483
        %7485 = vrot.lane.b32.xlu0 %v7257, 64
        %v7486 = vpop.permute.xlu0 %7485
        %7487 = vrot.lane.b32.xlu0 %v7258, 64
        %v7488 = vpop.permute.xlu0 %7487
        %7489 = vrot.lane.b32.xlu0 %v7259, 64
        %v7490 = vpop.permute.xlu0 %7489
        %7491 = vrot.lane.b32.xlu0 %v7260, 64
        %v7492 = vpop.permute.xlu0 %7491
        %7493 = vrot.lane.b32.xlu0 %v7261, 64
        %v7494 = vpop.permute.xlu0 %7493
        %7495 = vrot.lane.b32.xlu0 %v7262, 64
        %v7496 = vpop.permute.xlu0 %7495
        %7497 = vrot.lane.b32.xlu0 %v7263, 64
        %v7498 = vpop.permute.xlu0 %7497
        %7499 = vrot.lane.b32.xlu0 %v7264, 64
        %v7500 = vpop.permute.xlu0 %7499
        %7501 = vrot.lane.b32.xlu0 %v7265, 64
        %v7502 = vpop.permute.xlu0 %7501
        %7503 = vrot.lane.b32.xlu0 %v7266, 64
        %v7504 = vpop.permute.xlu0 %7503
        %7505 = vrot.lane.b32.xlu0 %v7267, 64
        %v7506 = vpop.permute.xlu0 %7505
        %7507 = vrot.lane.b32.xlu0 %v7268, 64
        %v7508 = vpop.permute.xlu0 %7507
        %7509 = vrot.lane.b32.xlu0 %v7269, 64
        %v7510 = vpop.permute.xlu0 %7509
        %7511 = vrot.lane.b32.xlu0 %v7270, 64
        %v7512 = vpop.permute.xlu0 %7511
        %7513 = vrot.lane.b32.xlu0 %v7271, 64
        %v7514 = vpop.permute.xlu0 %7513
        %7515 = vrot.lane.b32.xlu0 %v7272, 64
        %v7516 = vpop.permute.xlu0 %7515
        %7517 = vrot.lane.b32.xlu0 %v7273, 64
        %v7518 = vpop.permute.xlu0 %7517
        %7519 = vrot.lane.b32.xlu0 %v7274, 64
        %v7520 = vpop.permute.xlu0 %7519
        %7521 = vrot.lane.b32.xlu0 %v7275, 64
        %v7522 = vpop.permute.xlu0 %7521
        %7523 = vrot.lane.b32.xlu0 %v7276, 64
        %v7524 = vpop.permute.xlu0 %7523
        %7525 = vrot.lane.b32.xlu0 %v7277, 64
        %v7526 = vpop.permute.xlu0 %7525
        %7527 = vrot.lane.b32.xlu0 %v7278, 64
        %v7528 = vpop.permute.xlu0 %7527
        %7529 = vrot.lane.b32.xlu0 %v7279, 64
        %v7530 = vpop.permute.xlu0 %7529
        %7531 = vrot.lane.b32.xlu0 %v7280, 64
        %v7532 = vpop.permute.xlu0 %7531
        %7533 = vrot.lane.b32.xlu0 %v7281, 64
        %v7534 = vpop.permute.xlu0 %7533
        %7535 = vrot.lane.b32.xlu0 %v7282, 64
        %v7536 = vpop.permute.xlu0 %7535
        %7537 = vrot.lane.b32.xlu0 %v7283, 64
        %v7538 = vpop.permute.xlu0 %7537
        %7539 = vrot.lane.b32.xlu0 %v7284, 64
        %v7540 = vpop.permute.xlu0 %7539
        %7541 = vrot.lane.b32.xlu0 %v7285, 64
        %v7542 = vpop.permute.xlu0 %7541
        %v7575 = vsel %vm3390, %v7351, %v7480
        %v7576 = vsel %vm3390, %v7352, %v7482
        %v7577 = vsel %vm3390, %v7353, %v7484
        %v7578 = vsel %vm3390, %v7354, %v7486
        %v7579 = vsel %vm3390, %v7355, %v7488
        %v7580 = vsel %vm3390, %v7356, %v7490
        %v7581 = vsel %vm3390, %v7357, %v7492
        %v7582 = vsel %vm3390, %v7358, %v7494
        %v7583 = vsel %vm3390, %v7359, %v7496
        %v7584 = vsel %vm3390, %v7360, %v7498
        %v7585 = vsel %vm3390, %v7361, %v7500
        %v7586 = vsel %vm3390, %v7362, %v7502
        %v7587 = vsel %vm3390, %v7363, %v7504
        %v7588 = vsel %vm3390, %v7364, %v7506
        %v7589 = vsel %vm3390, %v7365, %v7508
        %v7590 = vsel %vm3390, %v7366, %v7510
        %v7591 = vsel %vm3390, %v7367, %v7512
        %v7592 = vsel %vm3390, %v7368, %v7514
        %v7593 = vsel %vm3390, %v7369, %v7516
        %v7594 = vsel %vm3390, %v7370, %v7518
        %v7595 = vsel %vm3390, %v7371, %v7520
        %v7596 = vsel %vm3390, %v7372, %v7522
        %v7597 = vsel %vm3390, %v7373, %v7524
        %v7598 = vsel %vm3390, %v7374, %v7526
        %v7599 = vsel %vm3390, %v7375, %v7528
        %v7600 = vsel %vm3390, %v7376, %v7530
        %v7601 = vsel %vm3390, %v7377, %v7532
        %v7602 = vsel %vm3390, %v7378, %v7534
        %v7603 = vsel %vm3390, %v7379, %v7536
        %v7604 = vsel %vm3390, %v7380, %v7538
        %v7605 = vsel %vm3390, %v7381, %v7540
        %v7606 = vsel %vm3390, %v7382, %v7542
        %v7607 = vpack.c.bf16 %v7576, %v7575
        %v7608 = vpack.c.bf16 %v7416, %v7415
        %v7609 = vpack.c.bf16 %v7578, %v7577
        %v7610 = vpack.c.bf16 %v7418, %v7417
        %v7611 = vpack.c.bf16 %v7580, %v7579
        %v7612 = vpack.c.bf16 %v7420, %v7419
        %v7613 = vpack.c.bf16 %v7582, %v7581
        %v7614 = vpack.c.bf16 %v7422, %v7421
        %v7615 = vpack.c.bf16 %v7584, %v7583
        %v7616 = vpack.c.bf16 %v7424, %v7423
        %v7617 = vpack.c.bf16 %v7586, %v7585
        %v7618 = vpack.c.bf16 %v7426, %v7425
        %v7619 = vpack.c.bf16 %v7588, %v7587
        %v7620 = vpack.c.bf16 %v7428, %v7427
        %v7621 = vpack.c.bf16 %v7590, %v7589
        %v7622 = vpack.c.bf16 %v7430, %v7429
        %v7623 = vpack.c.bf16 %v7592, %v7591
        %v7624 = vpack.c.bf16 %v7432, %v7431
        %v7625 = vpack.c.bf16 %v7594, %v7593
        %v7626 = vpack.c.bf16 %v7434, %v7433
        %v7627 = vpack.c.bf16 %v7596, %v7595
        %v7628 = vpack.c.bf16 %v7436, %v7435
        %v7629 = vpack.c.bf16 %v7598, %v7597
        %v7630 = vpack.c.bf16 %v7438, %v7437
        %v7631 = vpack.c.bf16 %v7600, %v7599
        %v7632 = vpack.c.bf16 %v7440, %v7439
        %v7633 = vpack.c.bf16 %v7602, %v7601
        %v7634 = vpack.c.bf16 %v7442, %v7441
        %v7635 = vpack.c.bf16 %v7604, %v7603
        %v7636 = vpack.c.bf16 %v7444, %v7443
        %v7637 = vpack.c.bf16 %v7606, %v7605
        %v7638 = vpack.c.bf16 %v7446, %v7445
        %vm7639 = vcmask 1043456
        %vm7640 = vcmask 523268
        %vm7641 = vmor %vm7640, %vm7639
        %7642 = vst.msk [vmem:[#allocation5] sm:$0xff] %vm7641, 0
        %7643 = vst.msk [vmem:[#allocation5 + $0x8] sm:$0xff] %vm7641, 0
        %s7644 = scalar_lea.vmem [#allocation5], 272
        %7645 = vst.msk [vmem:[%s7644] sm:$0xff] %vm7641, 0
        %7646 = vst.msk [vmem:[%s7644 + $0x8] sm:$0xff] %vm7641, 0
        %v7679 = vunpack.c.l.b16 %v7607
        %v7680 = vunpack.c.l.b16 %v7608
        %v7681 = vunpack.c.h.b16 %v7607
        %v7682 = vunpack.c.h.b16 %v7608
        %v7683 = vunpack.c.l.b16 %v7609
        %v7684 = vunpack.c.l.b16 %v7610
        %v7685 = vunpack.c.h.b16 %v7609
        %v7686 = vunpack.c.h.b16 %v7610
        %v7687 = vunpack.c.l.b16 %v7611
        %v7688 = vunpack.c.l.b16 %v7612
        %v7689 = vunpack.c.h.b16 %v7611
        %v7690 = vunpack.c.h.b16 %v7612
        %v7691 = vunpack.c.l.b16 %v7613
        %v7692 = vunpack.c.l.b16 %v7614
        %v7693 = vunpack.c.h.b16 %v7613
        %v7694 = vunpack.c.h.b16 %v7614
        %v7695 = vunpack.c.l.b16 %v7615
        %v7696 = vunpack.c.l.b16 %v7616
        %v7697 = vunpack.c.h.b16 %v7615
        %v7698 = vunpack.c.h.b16 %v7616
        %v7699 = vunpack.c.l.b16 %v7617
        %v7700 = vunpack.c.l.b16 %v7618
        %v7701 = vunpack.c.h.b16 %v7617
        %v7702 = vunpack.c.h.b16 %v7618
        %v7703 = vunpack.c.l.b16 %v7619
        %v7704 = vunpack.c.l.b16 %v7620
        %v7705 = vunpack.c.h.b16 %v7619
        %v7706 = vunpack.c.h.b16 %v7620
        %v7707 = vunpack.c.l.b16 %v7621
        %v7708 = vunpack.c.l.b16 %v7622
        %v7709 = vunpack.c.h.b16 %v7621
        %v7710 = vunpack.c.h.b16 %v7622
        %v7711 = vunpack.c.l.b16 %v7623
        %v7712 = vunpack.c.l.b16 %v7624
        %v7713 = vunpack.c.h.b16 %v7623
        %v7714 = vunpack.c.h.b16 %v7624
        %v7715 = vunpack.c.l.b16 %v7625
        %v7716 = vunpack.c.l.b16 %v7626
        %v7717 = vunpack.c.h.b16 %v7625
        %v7718 = vunpack.c.h.b16 %v7626
        %v7719 = vunpack.c.l.b16 %v7627
        %v7720 = vunpack.c.l.b16 %v7628
        %v7721 = vunpack.c.h.b16 %v7627
        %v7722 = vunpack.c.h.b16 %v7628
        %v7723 = vunpack.c.l.b16 %v7629
        %v7724 = vunpack.c.l.b16 %v7630
        %v7725 = vunpack.c.h.b16 %v7629
        %v7726 = vunpack.c.h.b16 %v7630
        %v7727 = vunpack.c.l.b16 %v7631
        %v7728 = vunpack.c.l.b16 %v7632
        %v7729 = vunpack.c.h.b16 %v7631
        %v7730 = vunpack.c.h.b16 %v7632
        %v7731 = vunpack.c.l.b16 %v7633
        %v7732 = vunpack.c.l.b16 %v7634
        %v7733 = vunpack.c.h.b16 %v7633
        %v7734 = vunpack.c.h.b16 %v7634
        %v7735 = vunpack.c.l.b16 %v7635
        %v7736 = vunpack.c.l.b16 %v7636
        %v7737 = vunpack.c.h.b16 %v7635
        %v7738 = vunpack.c.h.b16 %v7636
        %v7739 = vunpack.c.l.b16 %v7637
        %v7740 = vunpack.c.l.b16 %v7638
        %v7741 = vunpack.c.h.b16 %v7637
        %v7742 = vunpack.c.h.b16 %v7638
        %v7743 = vpack.c.b16 %v7680, %v7679
        %v7744 = vpack.c.b16 %v7682, %v7681
        %v7745 = vpack.c.b16 %v7684, %v7683
        %v7746 = vpack.c.b16 %v7686, %v7685
        %v7747 = vpack.c.b16 %v7688, %v7687
        %v7748 = vpack.c.b16 %v7690, %v7689
        %v7749 = vpack.c.b16 %v7692, %v7691
        %v7750 = vpack.c.b16 %v7694, %v7693
        %v7751 = vpack.c.b16 %v7696, %v7695
        %v7752 = vpack.c.b16 %v7698, %v7697
        %v7753 = vpack.c.b16 %v7700, %v7699
        %v7754 = vpack.c.b16 %v7702, %v7701
        %v7755 = vpack.c.b16 %v7704, %v7703
        %v7756 = vpack.c.b16 %v7706, %v7705
        %v7757 = vpack.c.b16 %v7708, %v7707
        %v7758 = vpack.c.b16 %v7710, %v7709
        %v7759 = vpack.c.b16 %v7712, %v7711
        %v7760 = vpack.c.b16 %v7714, %v7713
        %v7761 = vpack.c.b16 %v7716, %v7715
        %v7762 = vpack.c.b16 %v7718, %v7717
        %v7763 = vpack.c.b16 %v7720, %v7719
        %v7764 = vpack.c.b16 %v7722, %v7721
        %v7765 = vpack.c.b16 %v7724, %v7723
        %v7766 = vpack.c.b16 %v7726, %v7725
        %v7767 = vpack.c.b16 %v7728, %v7727
        %v7768 = vpack.c.b16 %v7730, %v7729
        %v7769 = vpack.c.b16 %v7732, %v7731
        %v7770 = vpack.c.b16 %v7734, %v7733
        %v7771 = vpack.c.b16 %v7736, %v7735
        %v7772 = vpack.c.b16 %v7738, %v7737
        %v7773 = vpack.c.b16 %v7740, %v7739
        %v7774 = vpack.c.b16 %v7742, %v7741
        %s7807 = scalar_lea.vmem [#allocation5], 16
        %7808 = vst.msk [vmem:[%s7807] sm:$0xff] %vm7641, %v7743
        %7809 = vst.msk [vmem:[%s7807 + $0x8] sm:$0xff] %vm7641, %v7744
        %7810 = vst.msk [vmem:[%s7807 + $0x10] sm:$0xff] %vm7641, %v7745
        %7811 = vst.msk [vmem:[%s7807 + $0x18] sm:$0xff] %vm7641, %v7746
        %7812 = vst.msk [vmem:[%s7807 + $0x20] sm:$0xff] %vm7641, %v7747
        %7813 = vst.msk [vmem:[%s7807 + $0x28] sm:$0xff] %vm7641, %v7748
        %7814 = vst.msk [vmem:[%s7807 + $0x30] sm:$0xff] %vm7641, %v7749
        %7815 = vst.msk [vmem:[%s7807 + $0x38] sm:$0xff] %vm7641, %v7750
        %7816 = vst.msk [vmem:[%s7807 + $0x40] sm:$0xff] %vm7641, %v7751
        %7817 = vst.msk [vmem:[%s7807 + $0x48] sm:$0xff] %vm7641, %v7752
        %7818 = vst.msk [vmem:[%s7807 + $0x50] sm:$0xff] %vm7641, %v7753
        %7819 = vst.msk [vmem:[%s7807 + $0x58] sm:$0xff] %vm7641, %v7754
        %7820 = vst.msk [vmem:[%s7807 + $0x60] sm:$0xff] %vm7641, %v7755
        %7821 = vst.msk [vmem:[%s7807 + $0x68] sm:$0xff] %vm7641, %v7756
        %7822 = vst.msk [vmem:[%s7807 + $0x70] sm:$0xff] %vm7641, %v7757
        %7823 = vst.msk [vmem:[%s7807 + $0x78] sm:$0xff] %vm7641, %v7758
        %7824 = vst.msk [vmem:[%s7807 + $0x80] sm:$0xff] %vm7641, %v7759
        %7825 = vst.msk [vmem:[%s7807 + $0x88] sm:$0xff] %vm7641, %v7760
        %7826 = vst.msk [vmem:[%s7807 + $0x90] sm:$0xff] %vm7641, %v7761
        %7827 = vst.msk [vmem:[%s7807 + $0x98] sm:$0xff] %vm7641, %v7762
        %7828 = vst.msk [vmem:[%s7807 + $0xa0] sm:$0xff] %vm7641, %v7763
        %7829 = vst.msk [vmem:[%s7807 + $0xa8] sm:$0xff] %vm7641, %v7764
        %7830 = vst.msk [vmem:[%s7807 + $0xb0] sm:$0xff] %vm7641, %v7765
        %7831 = vst.msk [vmem:[%s7807 + $0xb8] sm:$0xff] %vm7641, %v7766
        %7832 = vst.msk [vmem:[%s7807 + $0xc0] sm:$0xff] %vm7641, %v7767
        %7833 = vst.msk [vmem:[%s7807 + $0xc8] sm:$0xff] %vm7641, %v7768
        %7834 = vst.msk [vmem:[%s7807 + $0xd0] sm:$0xff] %vm7641, %v7769
        %7835 = vst.msk [vmem:[%s7807 + $0xd8] sm:$0xff] %vm7641, %v7770
        %7836 = vst.msk [vmem:[%s7807 + $0xe0] sm:$0xff] %vm7641, %v7771
        %7837 = vst.msk [vmem:[%s7807 + $0xe8] sm:$0xff] %vm7641, %v7772
        %7838 = vst.msk [vmem:[%s7807 + $0xf0] sm:$0xff] %vm7641, %v7773
        %7839 = vst.msk [vmem:[%s7807 + $0xf8] sm:$0xff] %vm7641, %v7774
        %v7840 = vld [vmem:[#allocation5] sm:$0xff]
        %v7841 = vld [vmem:[#allocation5 + $0x8] sm:$0xff]
        %v7842 = vld [vmem:[#allocation5 + $0x10] sm:$0xff]
        %v7843 = vld [vmem:[#allocation5 + $0x18] sm:$0xff]
        %v7844 = vld [vmem:[#allocation5 + $0x20] sm:$0xff]
        %v7845 = vld [vmem:[#allocation5 + $0x28] sm:$0xff]
        %v7846 = vld [vmem:[#allocation5 + $0x30] sm:$0xff]
        %v7847 = vld [vmem:[#allocation5 + $0x38] sm:$0xff]
        %v7848 = vld [vmem:[#allocation5 + $0x40] sm:$0xff]
        %v7849 = vld [vmem:[#allocation5 + $0x48] sm:$0xff]
        %v7850 = vld [vmem:[#allocation5 + $0x50] sm:$0xff]
        %v7851 = vld [vmem:[#allocation5 + $0x58] sm:$0xff]
        %v7852 = vld [vmem:[#allocation5 + $0x60] sm:$0xff]
        %v7853 = vld [vmem:[#allocation5 + $0x68] sm:$0xff]
        %v7854 = vld [vmem:[#allocation5 + $0x70] sm:$0xff]
        %v7855 = vld [vmem:[#allocation5 + $0x78] sm:$0xff]
        %v7856 = vld [vmem:[#allocation5 + $0x80] sm:$0xff]
        %v7857 = vld [vmem:[#allocation5 + $0x88] sm:$0xff]
        %v7858 = vld [vmem:[#allocation5 + $0x90] sm:$0xff]
        %v7859 = vld [vmem:[#allocation5 + $0x98] sm:$0xff]
        %v7860 = vld [vmem:[#allocation5 + $0xa0] sm:$0xff]
        %v7861 = vld [vmem:[#allocation5 + $0xa8] sm:$0xff]
        %v7862 = vld [vmem:[#allocation5 + $0xb0] sm:$0xff]
        %v7863 = vld [vmem:[#allocation5 + $0xb8] sm:$0xff]
        %v7864 = vld [vmem:[#allocation5 + $0xc0] sm:$0xff]
        %v7865 = vld [vmem:[#allocation5 + $0xc8] sm:$0xff]
        %v7866 = vld [vmem:[#allocation5 + $0xd0] sm:$0xff]
        %v7867 = vld [vmem:[#allocation5 + $0xd8] sm:$0xff]
        %v7868 = vld [vmem:[#allocation5 + $0xe0] sm:$0xff]
        %v7869 = vld [vmem:[#allocation5 + $0xe8] sm:$0xff]
        %v7870 = vld [vmem:[#allocation5 + $0xf0] sm:$0xff]
        %v7871 = vld [vmem:[#allocation5 + $0xf8] sm:$0xff]
        %v7872 = vld [vmem:[%s11] sm:$0xf]
        %v7873 = vld [vmem:[%s11 + $0x4] sm:$0xf]
        %v7874 = vld [vmem:[%s11 + $0x8] sm:$0xf]
        %v7875 = vld [vmem:[%s11 + $0xc] sm:$0xf]
        %v7876 = vld [vmem:[%s11 + $0x10] sm:$0xf]
        %v7877 = vld [vmem:[%s11 + $0x14] sm:$0xf]
        %v7878 = vld [vmem:[%s11 + $0x18] sm:$0xf]
        %v7879 = vld [vmem:[%s11 + $0x1c] sm:$0xf]
        %v7880 = vld [vmem:[%s11 + $0x20] sm:$0xf]
        %v7881 = vld [vmem:[%s11 + $0x24] sm:$0xf]
        %v7882 = vld [vmem:[%s11 + $0x28] sm:$0xf]
        %v7883 = vld [vmem:[%s11 + $0x2c] sm:$0xf]
        %v7884 = vld [vmem:[%s11 + $0x30] sm:$0xf]
        %v7885 = vld [vmem:[%s11 + $0x34] sm:$0xf]
        %v7886 = vld [vmem:[%s11 + $0x38] sm:$0xf]
        %v7887 = vld [vmem:[%s11 + $0x3c] sm:$0xf]
        %v7888 = vld [vmem:[%s11 + $0x40] sm:$0xf]
        %v7889 = vld [vmem:[%s11 + $0x44] sm:$0xf]
        %v7890 = vld [vmem:[%s11 + $0x48] sm:$0xf]
        %v7891 = vld [vmem:[%s11 + $0x4c] sm:$0xf]
        %v7892 = vld [vmem:[%s11 + $0x50] sm:$0xf]
        %v7893 = vld [vmem:[%s11 + $0x54] sm:$0xf]
        %v7894 = vld [vmem:[%s11 + $0x58] sm:$0xf]
        %v7895 = vld [vmem:[%s11 + $0x5c] sm:$0xf]
        %v7896 = vld [vmem:[%s7807] sm:$0xff]
        %v7897 = vld [vmem:[%s7807 + $0x8] sm:$0xff]
        %v7898 = vld [vmem:[%s7807 + $0x10] sm:$0xff]
        %v7899 = vld [vmem:[%s7807 + $0x18] sm:$0xff]
        %v7900 = vld [vmem:[%s7807 + $0x20] sm:$0xff]
        %v7901 = vld [vmem:[%s7807 + $0x28] sm:$0xff]
        %v7902 = vld [vmem:[%s7807 + $0x30] sm:$0xff]
        %v7903 = vld [vmem:[%s7807 + $0x38] sm:$0xff]
        %v7904 = vld [vmem:[%s7807 + $0x40] sm:$0xff]
        %v7905 = vld [vmem:[%s7807 + $0x48] sm:$0xff]
        %v7906 = vld [vmem:[%s7807 + $0x50] sm:$0xff]
        %v7907 = vld [vmem:[%s7807 + $0x58] sm:$0xff]
        %v7908 = vld [vmem:[%s7807 + $0x60] sm:$0xff]
        %v7909 = vld [vmem:[%s7807 + $0x68] sm:$0xff]
        %v7910 = vld [vmem:[%s7807 + $0x70] sm:$0xff]
        %v7911 = vld [vmem:[%s7807 + $0x78] sm:$0xff]
        %v7912 = vld [vmem:[%s7807 + $0x80] sm:$0xff]
        %v7913 = vld [vmem:[%s7807 + $0x88] sm:$0xff]
        %v7914 = vld [vmem:[%s7807 + $0x90] sm:$0xff]
        %v7915 = vld [vmem:[%s7807 + $0x98] sm:$0xff]
        %v7916 = vld [vmem:[%s7807 + $0xa0] sm:$0xff]
        %v7917 = vld [vmem:[%s7807 + $0xa8] sm:$0xff]
        %v7918 = vld [vmem:[%s7807 + $0xb0] sm:$0xff]
        %v7919 = vld [vmem:[%s7807 + $0xb8] sm:$0xff]
        %v7920 = vld [vmem:[%s7807 + $0xc0] sm:$0xff]
        %v7921 = vld [vmem:[%s7807 + $0xc8] sm:$0xff]
        %v7922 = vld [vmem:[%s7807 + $0xd0] sm:$0xff]
        %v7923 = vld [vmem:[%s7807 + $0xd8] sm:$0xff]
        %v7924 = vld [vmem:[%s7807 + $0xe0] sm:$0xff]
        %v7925 = vld [vmem:[%s7807 + $0xe8] sm:$0xff]
        %v7926 = vld [vmem:[%s7807 + $0xf0] sm:$0xff]
        %v7927 = vld [vmem:[%s7807 + $0xf8] sm:$0xff]
        %s7928 = scalar_lea.vmem %s11, 96
        %v7929 = vld [vmem:[%s7928] sm:$0xf]
        %v7930 = vld [vmem:[%s7928 + $0x4] sm:$0xf]
        %v7931 = vld [vmem:[%s7928 + $0x8] sm:$0xf]
        %v7932 = vld [vmem:[%s7928 + $0xc] sm:$0xf]
        %v7933 = vld [vmem:[%s7928 + $0x10] sm:$0xf]
        %v7934 = vld [vmem:[%s7928 + $0x14] sm:$0xf]
        %v7935 = vld [vmem:[%s7928 + $0x18] sm:$0xf]
        %v7936 = vld [vmem:[%s7928 + $0x1c] sm:$0xf]
        %v7937 = vld [vmem:[%s7928 + $0x20] sm:$0xf]
        %v7938 = vld [vmem:[%s7928 + $0x24] sm:$0xf]
        %v7939 = vld [vmem:[%s7928 + $0x28] sm:$0xf]
        %v7940 = vld [vmem:[%s7928 + $0x2c] sm:$0xf]
        %v7941 = vld [vmem:[%s7928 + $0x30] sm:$0xf]
        %v7942 = vld [vmem:[%s7928 + $0x34] sm:$0xf]
        %v7943 = vld [vmem:[%s7928 + $0x38] sm:$0xf]
        %v7944 = vld [vmem:[%s7928 + $0x3c] sm:$0xf]
        %v7945 = vld [vmem:[%s7928 + $0x40] sm:$0xf]
        %v7946 = vld [vmem:[%s7928 + $0x44] sm:$0xf]
        %v7947 = vld [vmem:[%s7928 + $0x48] sm:$0xf]
        %v7948 = vld [vmem:[%s7928 + $0x4c] sm:$0xf]
        %v7949 = vld [vmem:[%s7928 + $0x50] sm:$0xf]
        %v7950 = vld [vmem:[%s7928 + $0x54] sm:$0xf]
        %v7951 = vld [vmem:[%s7928 + $0x58] sm:$0xf]
        %v7952 = vld [vmem:[%s7928 + $0x5c] sm:$0xf]
        %v7985 = vunpack.c.l.b16 %v7896
        %v7986 = vunpack.c.h.b16 %v7896
        %v7987 = vunpack.c.l.b16 %v7897
        %v7988 = vunpack.c.h.b16 %v7897
        %v7989 = vunpack.c.l.b16 %v7898
        %v7990 = vunpack.c.h.b16 %v7898
        %v7991 = vunpack.c.l.b16 %v7899
        %v7992 = vunpack.c.h.b16 %v7899
        %v7993 = vunpack.c.l.b16 %v7900
        %v7994 = vunpack.c.h.b16 %v7900
        %v7995 = vunpack.c.l.b16 %v7901
        %v7996 = vunpack.c.h.b16 %v7901
        %v7997 = vunpack.c.l.b16 %v7902
        %v7998 = vunpack.c.h.b16 %v7902
        %v7999 = vunpack.c.l.b16 %v7903
        %v8000 = vunpack.c.h.b16 %v7903
        %v8001 = vunpack.c.l.b16 %v7904
        %v8002 = vunpack.c.h.b16 %v7904
        %v8003 = vunpack.c.l.b16 %v7905
        %v8004 = vunpack.c.h.b16 %v7905
        %v8005 = vunpack.c.l.b16 %v7906
        %v8006 = vunpack.c.h.b16 %v7906
        %v8007 = vunpack.c.l.b16 %v7907
        %v8008 = vunpack.c.h.b16 %v7907
        %v8009 = vunpack.c.l.b16 %v7908
        %v8010 = vunpack.c.h.b16 %v7908
        %v8011 = vunpack.c.l.b16 %v7909
        %v8012 = vunpack.c.h.b16 %v7909
        %v8013 = vunpack.c.l.b16 %v7910
        %v8014 = vunpack.c.h.b16 %v7910
        %v8015 = vunpack.c.l.b16 %v7911
        %v8016 = vunpack.c.h.b16 %v7911
        %v8017 = vunpack.c.l.b16 %v7912
        %v8018 = vunpack.c.h.b16 %v7912
        %v8019 = vunpack.c.l.b16 %v7913
        %v8020 = vunpack.c.h.b16 %v7913
        %v8021 = vunpack.c.l.b16 %v7914
        %v8022 = vunpack.c.h.b16 %v7914
        %v8023 = vunpack.c.l.b16 %v7915
        %v8024 = vunpack.c.h.b16 %v7915
        %v8025 = vunpack.c.l.b16 %v7916
        %v8026 = vunpack.c.h.b16 %v7916
        %v8027 = vunpack.c.l.b16 %v7917
        %v8028 = vunpack.c.h.b16 %v7917
        %v8029 = vunpack.c.l.b16 %v7918
        %v8030 = vunpack.c.h.b16 %v7918
        %v8031 = vunpack.c.l.b16 %v7919
        %v8032 = vunpack.c.h.b16 %v7919
        %v8033 = vunpack.c.l.b16 %v7920
        %v8034 = vunpack.c.h.b16 %v7920
        %v8035 = vunpack.c.l.b16 %v7921
        %v8036 = vunpack.c.h.b16 %v7921
        %v8037 = vunpack.c.l.b16 %v7922
        %v8038 = vunpack.c.h.b16 %v7922
        %v8039 = vunpack.c.l.b16 %v7923
        %v8040 = vunpack.c.h.b16 %v7923
        %v8041 = vunpack.c.l.b16 %v7924
        %v8042 = vunpack.c.h.b16 %v7924
        %v8043 = vunpack.c.l.b16 %v7925
        %v8044 = vunpack.c.h.b16 %v7925
        %v8045 = vunpack.c.l.b16 %v7926
        %v8046 = vunpack.c.h.b16 %v7926
        %v8047 = vunpack.c.l.b16 %v7927
        %v8048 = vunpack.c.h.b16 %v7927
        %v8049 = vpack.c.b16 %v7987, %v7985
        %v8050 = vpack.c.b16 %v7988, %v7986
        %v8051 = vpack.c.b16 %v7991, %v7989
        %v8052 = vpack.c.b16 %v7992, %v7990
        %v8053 = vpack.c.b16 %v7995, %v7993
        %v8054 = vpack.c.b16 %v7996, %v7994
        %v8055 = vpack.c.b16 %v7999, %v7997
        %v8056 = vpack.c.b16 %v8000, %v7998
        %v8057 = vpack.c.b16 %v8003, %v8001
        %v8058 = vpack.c.b16 %v8004, %v8002
        %v8059 = vpack.c.b16 %v8007, %v8005
        %v8060 = vpack.c.b16 %v8008, %v8006
        %v8061 = vpack.c.b16 %v8011, %v8009
        %v8062 = vpack.c.b16 %v8012, %v8010
        %v8063 = vpack.c.b16 %v8015, %v8013
        %v8064 = vpack.c.b16 %v8016, %v8014
        %v8065 = vpack.c.b16 %v8019, %v8017
        %v8066 = vpack.c.b16 %v8020, %v8018
        %v8067 = vpack.c.b16 %v8023, %v8021
        %v8068 = vpack.c.b16 %v8024, %v8022
        %v8069 = vpack.c.b16 %v8027, %v8025
        %v8070 = vpack.c.b16 %v8028, %v8026
        %v8071 = vpack.c.b16 %v8031, %v8029
        %v8072 = vpack.c.b16 %v8032, %v8030
        %v8073 = vpack.c.b16 %v8035, %v8033
        %v8074 = vpack.c.b16 %v8036, %v8034
        %v8075 = vpack.c.b16 %v8039, %v8037
        %v8076 = vpack.c.b16 %v8040, %v8038
        %v8077 = vpack.c.b16 %v8043, %v8041
        %v8078 = vpack.c.b16 %v8044, %v8042
        %v8079 = vpack.c.b16 %v8047, %v8045
        %v8080 = vpack.c.b16 %v8048, %v8046
        %v8121 = vunpack.c.l.b16 %v7929
        %v8122 = vunpack.c.l.b16 %v7930
        %v8123 = vunpack.c.l.b16 %v7931
        %v8124 = vunpack.c.l.b16 %v7932
        %v8125 = vunpack.c.l.b16 %v7933
        %v8126 = vunpack.c.l.b16 %v7934
        %v8127 = vunpack.c.l.b16 %v7935
        %v8128 = vunpack.c.l.b16 %v7936
        %v8129 = vunpack.c.l.b16 %v7937
        %v8130 = vunpack.c.l.b16 %v7938
        %v8131 = vunpack.c.l.b16 %v7939
        %v8132 = vunpack.c.l.b16 %v7940
        %v8133 = vunpack.c.l.b16 %v7941
        %v8134 = vunpack.c.l.b16 %v7942
        %v8135 = vunpack.c.l.b16 %v7943
        %v8136 = vunpack.c.l.b16 %v7944
        %v8137 = vunpack.c.l.b16 %v7945
        %v8138 = vunpack.c.l.b16 %v7946
        %v8139 = vunpack.c.l.b16 %v7947
        %v8140 = vunpack.c.l.b16 %v7948
        %v8141 = vunpack.c.l.b16 %v7949
        %v8142 = vunpack.c.l.b16 %v7950
        %v8143 = vunpack.c.l.b16 %v7951
        %v8144 = vunpack.c.l.b16 %v7952
        %v8145 = vpack.c.b16 %v8122, %v8121
        %v8146 = vpack.c.b16 %v8124, %v8123
        %v8147 = vpack.c.b16 %v8126, %v8125
        %v8148 = vpack.c.b16 %v8128, %v8127
        %v8149 = vpack.c.b16 %v8130, %v8129
        %v8150 = vpack.c.b16 %v8132, %v8131
        %v8151 = vpack.c.b16 %v8134, %v8133
        %v8152 = vpack.c.b16 %v8136, %v8135
        %v8153 = vpack.c.b16 %v8138, %v8137
        %v8154 = vpack.c.b16 %v8140, %v8139
        %v8155 = vpack.c.b16 %v8142, %v8141
        %v8156 = vpack.c.b16 %v8144, %v8143
        %v8170 = vsel %vm3390, %v8050, 0
        %v8173 = vsel %vm3390, %v8052, 0
        %v8176 = vsel %vm3390, %v8054, 0
        %v8179 = vsel %vm3390, %v8056, 0
        %v8182 = vsel %vm3390, %v8058, 0
        %v8185 = vsel %vm3390, %v8060, 0
        %v8188 = vsel %vm3390, %v8062, 0
        %v8191 = vsel %vm3390, %v8064, 0
        %v8194 = vsel %vm3390, %v8066, 0
        %v8197 = vsel %vm3390, %v8068, 0
        %v8200 = vsel %vm3390, %v8070, 0
        %v8203 = vsel %vm3390, %v8072, 0
        %v8206 = vsel %vm3390, %v8074, 0
        %v8209 = vsel %vm3390, %v8076, 0
        %v8212 = vsel %vm3390, %v8078, 0
        %v8215 = vsel %vm3390, %v8080, 0
        %8217 = vmatprep.subr.bf16.mxu0 0
        %8218 = vmatpush1.bf16.msra.mxu0 %v8152
        %8219 = vmatprep.subr.bf16.mxu0 0
        %8220 = vmatpush1.bf16.msra.mxu0 %v8151
        %8221 = vmatprep.subr.bf16.mxu0 0
        %8222 = vmatpush1.bf16.msra.mxu0 %v8150
        %8223 = vmatprep.subr.bf16.mxu0 0
        %8224 = vmatpush1.bf16.msra.mxu0 %v8149
        %8225 = vmatprep.subr.bf16.mxu0 0
        %8226 = vmatpush1.bf16.msra.mxu0 %v8148
        %8227 = vmatprep.subr.bf16.mxu0 0
        %8228 = vmatpush1.bf16.msra.mxu0 %v8147
        %8229 = vmatprep.subr.bf16.mxu0 0
        %8230 = vmatpush1.bf16.msra.mxu0 %v8146
        %8231 = vmatprep.subr.bf16.mxu0 0
        %8232 = vmatpush1.bf16.msra.mxu0 %v8145
        %8233 = vmatprep.subr.bf16.mxu0 0
        %8234 = vmatpush2.bf16.msra.mxu0 0
        %8235 = vmatprep.subr.bf16.mxu0 0
        %8236 = vmatpush2.bf16.msra.mxu0 0
        %8237 = vmatprep.subr.bf16.mxu0 0
        %8238 = vmatpush2.bf16.msra.mxu0 0
        %8239 = vmatprep.subr.bf16.mxu0 0
        %8240 = vmatpush2.bf16.msra.mxu0 0
        %8241 = vmatprep.subr.bf16.mxu0 0
        %8242 = vmatpush2.bf16.msra.mxu0 %v8156
        %8243 = vmatprep.subr.bf16.mxu0 0
        %8244 = vmatpush2.bf16.msra.mxu0 %v8155
        %8245 = vmatprep.subr.bf16.mxu0 0
        %8246 = vmatpush2.bf16.msra.mxu0 %v8154
        %8247 = vmatprep.subr.bf16.mxu0 0
        %8248 = vmatpush2.bf16.msra.mxu0 %v8153
        %8249 = vmatprep.mubr.bf16.mxu0 %v8170
        %8250 = vmatmul.mubr.bf16.gmra.mxu0 %v8049
        %v8251 = vpop.f32.mrf.mxu0
        %v8252 = vadd.f32 0.0, %v8251
        %v8253 = vpop.f32.mrf.mxu0
        %v8254 = vpop.f32.mrf.mxu0
        %v8255 = vadd.f32 0.0, %v8254
        %v8256 = vpop.f32.mrf.mxu0
        %8257 = vmatprep.mubr.bf16.mxu0 %v8173
        %8258 = vmatmul.mubr.bf16.gmra.mxu0 %v8051
        %v8259 = vpop.f32.mrf.mxu0
        %v8260 = vadd.f32 0.0, %v8259
        %v8261 = vpop.f32.mrf.mxu0
        %v8262 = vpop.f32.mrf.mxu0
        %v8263 = vadd.f32 0.0, %v8262
        %v8264 = vpop.f32.mrf.mxu0
        %8265 = vmatprep.mubr.bf16.mxu0 %v8176
        %8266 = vmatmul.mubr.bf16.gmra.mxu0 %v8053
        %v8267 = vpop.f32.mrf.mxu0
        %v8268 = vadd.f32 0.0, %v8267
        %v8269 = vpop.f32.mrf.mxu0
        %v8270 = vpop.f32.mrf.mxu0
        %v8271 = vadd.f32 0.0, %v8270
        %v8272 = vpop.f32.mrf.mxu0
        %8273 = vmatprep.mubr.bf16.mxu0 %v8179
        %8274 = vmatmul.mubr.bf16.gmra.mxu0 %v8055
        %v8275 = vpop.f32.mrf.mxu0
        %v8276 = vadd.f32 0.0, %v8275
        %v8277 = vpop.f32.mrf.mxu0
        %v8278 = vpop.f32.mrf.mxu0
        %v8279 = vadd.f32 0.0, %v8278
        %v8280 = vpop.f32.mrf.mxu0
        %8281 = vmatprep.mubr.bf16.mxu0 %v8182
        %8282 = vmatmul.mubr.bf16.gmra.mxu0 %v8057
        %v8283 = vpop.f32.mrf.mxu0
        %v8284 = vadd.f32 0.0, %v8283
        %v8285 = vpop.f32.mrf.mxu0
        %v8286 = vpop.f32.mrf.mxu0
        %v8287 = vadd.f32 0.0, %v8286
        %v8288 = vpop.f32.mrf.mxu0
        %8289 = vmatprep.mubr.bf16.mxu0 %v8185
        %8290 = vmatmul.mubr.bf16.gmra.mxu0 %v8059
        %v8291 = vpop.f32.mrf.mxu0
        %v8292 = vadd.f32 0.0, %v8291
        %v8293 = vpop.f32.mrf.mxu0
        %v8294 = vpop.f32.mrf.mxu0
        %v8295 = vadd.f32 0.0, %v8294
        %v8296 = vpop.f32.mrf.mxu0
        %8297 = vmatprep.mubr.bf16.mxu0 %v8188
        %8298 = vmatmul.mubr.bf16.gmra.mxu0 %v8061
        %v8299 = vpop.f32.mrf.mxu0
        %v8300 = vadd.f32 0.0, %v8299
        %v8301 = vpop.f32.mrf.mxu0
        %v8302 = vpop.f32.mrf.mxu0
        %v8303 = vadd.f32 0.0, %v8302
        %v8304 = vpop.f32.mrf.mxu0
        %8305 = vmatprep.mubr.bf16.mxu0 %v8191
        %8306 = vmatmul.mubr.bf16.gmra.mxu0 %v8063
        %v8307 = vpop.f32.mrf.mxu0
        %v8308 = vadd.f32 0.0, %v8307
        %v8309 = vpop.f32.mrf.mxu0
        %v8310 = vpop.f32.mrf.mxu0
        %v8311 = vadd.f32 0.0, %v8310
        %v8312 = vpop.f32.mrf.mxu0
        %8313 = vmatprep.mubr.bf16.mxu0 %v8194
        %8314 = vmatmul.mubr.bf16.gmra.mxu0 %v8065
        %v8315 = vpop.f32.mrf.mxu0
        %v8316 = vadd.f32 0.0, %v8315
        %v8317 = vpop.f32.mrf.mxu0
        %v8318 = vpop.f32.mrf.mxu0
        %v8319 = vadd.f32 0.0, %v8318
        %v8320 = vpop.f32.mrf.mxu0
        %8321 = vmatprep.mubr.bf16.mxu0 %v8197
        %8322 = vmatmul.mubr.bf16.gmra.mxu0 %v8067
        %v8323 = vpop.f32.mrf.mxu0
        %v8324 = vadd.f32 0.0, %v8323
        %v8325 = vpop.f32.mrf.mxu0
        %v8326 = vpop.f32.mrf.mxu0
        %v8327 = vadd.f32 0.0, %v8326
        %v8328 = vpop.f32.mrf.mxu0
        %8329 = vmatprep.mubr.bf16.mxu0 %v8200
        %8330 = vmatmul.mubr.bf16.gmra.mxu0 %v8069
        %v8331 = vpop.f32.mrf.mxu0
        %v8332 = vadd.f32 0.0, %v8331
        %v8333 = vpop.f32.mrf.mxu0
        %v8334 = vpop.f32.mrf.mxu0
        %v8335 = vadd.f32 0.0, %v8334
        %v8336 = vpop.f32.mrf.mxu0
        %8337 = vmatprep.mubr.bf16.mxu0 %v8203
        %8338 = vmatmul.mubr.bf16.gmra.mxu0 %v8071
        %v8339 = vpop.f32.mrf.mxu0
        %v8340 = vadd.f32 0.0, %v8339
        %v8341 = vpop.f32.mrf.mxu0
        %v8342 = vpop.f32.mrf.mxu0
        %v8343 = vadd.f32 0.0, %v8342
        %v8344 = vpop.f32.mrf.mxu0
        %8345 = vmatprep.mubr.bf16.mxu0 %v8206
        %8346 = vmatmul.mubr.bf16.gmra.mxu0 %v8073
        %v8347 = vpop.f32.mrf.mxu0
        %v8348 = vadd.f32 0.0, %v8347
        %v8349 = vpop.f32.mrf.mxu0
        %v8350 = vpop.f32.mrf.mxu0
        %v8351 = vadd.f32 0.0, %v8350
        %v8352 = vpop.f32.mrf.mxu0
        %8353 = vmatprep.mubr.bf16.mxu0 %v8209
        %8354 = vmatmul.mubr.bf16.gmra.mxu0 %v8075
        %v8355 = vpop.f32.mrf.mxu0
        %v8356 = vadd.f32 0.0, %v8355
        %v8357 = vpop.f32.mrf.mxu0
        %v8358 = vpop.f32.mrf.mxu0
        %v8359 = vadd.f32 0.0, %v8358
        %v8360 = vpop.f32.mrf.mxu0
        %8361 = vmatprep.mubr.bf16.mxu0 %v8212
        %8362 = vmatmul.mubr.bf16.gmra.mxu0 %v8077
        %v8363 = vpop.f32.mrf.mxu0
        %v8364 = vadd.f32 0.0, %v8363
        %v8365 = vpop.f32.mrf.mxu0
        %v8366 = vpop.f32.mrf.mxu0
        %v8367 = vadd.f32 0.0, %v8366
        %v8368 = vpop.f32.mrf.mxu0
        %8369 = vmatprep.mubr.bf16.mxu0 %v8215
        %8370 = vmatmul.mubr.bf16.gmra.mxu0 %v8079
        %v8371 = vpop.f32.mrf.mxu0
        %v8372 = vadd.f32 0.0, %v8371
        %v8373 = vpop.f32.mrf.mxu0
        %v8374 = vpop.f32.mrf.mxu0
        %v8375 = vadd.f32 0.0, %v8374
        %v8376 = vpop.f32.mrf.mxu0
        %8377 = vdwg.mxu0
        %v8410 = vunpack.c.l.b16 %v7840
        %v8411 = vunpack.c.h.b16 %v7840
        %v8412 = vunpack.c.l.b16 %v7841
        %v8413 = vunpack.c.h.b16 %v7841
        %v8414 = vunpack.c.l.b16 %v7842
        %v8415 = vunpack.c.h.b16 %v7842
        %v8416 = vunpack.c.l.b16 %v7843
        %v8417 = vunpack.c.h.b16 %v7843
        %v8418 = vunpack.c.l.b16 %v7844
        %v8419 = vunpack.c.h.b16 %v7844
        %v8420 = vunpack.c.l.b16 %v7845
        %v8421 = vunpack.c.h.b16 %v7845
        %v8422 = vunpack.c.l.b16 %v7846
        %v8423 = vunpack.c.h.b16 %v7846
        %v8424 = vunpack.c.l.b16 %v7847
        %v8425 = vunpack.c.h.b16 %v7847
        %v8426 = vunpack.c.l.b16 %v7848
        %v8427 = vunpack.c.h.b16 %v7848
        %v8428 = vunpack.c.l.b16 %v7849
        %v8429 = vunpack.c.h.b16 %v7849
        %v8430 = vunpack.c.l.b16 %v7850
        %v8431 = vunpack.c.h.b16 %v7850
        %v8432 = vunpack.c.l.b16 %v7851
        %v8433 = vunpack.c.h.b16 %v7851
        %v8434 = vunpack.c.l.b16 %v7852
        %v8435 = vunpack.c.h.b16 %v7852
        %v8436 = vunpack.c.l.b16 %v7853
        %v8437 = vunpack.c.h.b16 %v7853
        %v8438 = vunpack.c.l.b16 %v7854
        %v8439 = vunpack.c.h.b16 %v7854
        %v8440 = vunpack.c.l.b16 %v7855
        %v8441 = vunpack.c.h.b16 %v7855
        %v8442 = vunpack.c.l.b16 %v7856
        %v8443 = vunpack.c.h.b16 %v7856
        %v8444 = vunpack.c.l.b16 %v7857
        %v8445 = vunpack.c.h.b16 %v7857
        %v8446 = vunpack.c.l.b16 %v7858
        %v8447 = vunpack.c.h.b16 %v7858
        %v8448 = vunpack.c.l.b16 %v7859
        %v8449 = vunpack.c.h.b16 %v7859
        %v8450 = vunpack.c.l.b16 %v7860
        %v8451 = vunpack.c.h.b16 %v7860
        %v8452 = vunpack.c.l.b16 %v7861
        %v8453 = vunpack.c.h.b16 %v7861
        %v8454 = vunpack.c.l.b16 %v7862
        %v8455 = vunpack.c.h.b16 %v7862
        %v8456 = vunpack.c.l.b16 %v7863
        %v8457 = vunpack.c.h.b16 %v7863
        %v8458 = vunpack.c.l.b16 %v7864
        %v8459 = vunpack.c.h.b16 %v7864
        %v8460 = vunpack.c.l.b16 %v7865
        %v8461 = vunpack.c.h.b16 %v7865
        %v8462 = vunpack.c.l.b16 %v7866
        %v8463 = vunpack.c.h.b16 %v7866
        %v8464 = vunpack.c.l.b16 %v7867
        %v8465 = vunpack.c.h.b16 %v7867
        %v8466 = vunpack.c.l.b16 %v7868
        %v8467 = vunpack.c.h.b16 %v7868
        %v8468 = vunpack.c.l.b16 %v7869
        %v8469 = vunpack.c.h.b16 %v7869
        %v8470 = vunpack.c.l.b16 %v7870
        %v8471 = vunpack.c.h.b16 %v7870
        %v8472 = vunpack.c.l.b16 %v7871
        %v8473 = vunpack.c.h.b16 %v7871
        %v8474 = vpack.c.b16 %v8412, %v8410
        %v8475 = vpack.c.b16 %v8413, %v8411
        %v8476 = vpack.c.b16 %v8416, %v8414
        %v8477 = vpack.c.b16 %v8417, %v8415
        %v8478 = vpack.c.b16 %v8420, %v8418
        %v8479 = vpack.c.b16 %v8421, %v8419
        %v8480 = vpack.c.b16 %v8424, %v8422
        %v8481 = vpack.c.b16 %v8425, %v8423
        %v8482 = vpack.c.b16 %v8428, %v8426
        %v8483 = vpack.c.b16 %v8429, %v8427
        %v8484 = vpack.c.b16 %v8432, %v8430
        %v8485 = vpack.c.b16 %v8433, %v8431
        %v8486 = vpack.c.b16 %v8436, %v8434
        %v8487 = vpack.c.b16 %v8437, %v8435
        %v8488 = vpack.c.b16 %v8440, %v8438
        %v8489 = vpack.c.b16 %v8441, %v8439
        %v8490 = vpack.c.b16 %v8444, %v8442
        %v8491 = vpack.c.b16 %v8445, %v8443
        %v8492 = vpack.c.b16 %v8448, %v8446
        %v8493 = vpack.c.b16 %v8449, %v8447
        %v8494 = vpack.c.b16 %v8452, %v8450
        %v8495 = vpack.c.b16 %v8453, %v8451
        %v8496 = vpack.c.b16 %v8456, %v8454
        %v8497 = vpack.c.b16 %v8457, %v8455
        %v8498 = vpack.c.b16 %v8460, %v8458
        %v8499 = vpack.c.b16 %v8461, %v8459
        %v8500 = vpack.c.b16 %v8464, %v8462
        %v8501 = vpack.c.b16 %v8465, %v8463
        %v8502 = vpack.c.b16 %v8468, %v8466
        %v8503 = vpack.c.b16 %v8469, %v8467
        %v8504 = vpack.c.b16 %v8472, %v8470
        %v8505 = vpack.c.b16 %v8473, %v8471
        %v8546 = vunpack.c.l.b16 %v7872
        %v8547 = vunpack.c.l.b16 %v7873
        %v8548 = vunpack.c.l.b16 %v7874
        %v8549 = vunpack.c.l.b16 %v7875
        %v8550 = vunpack.c.l.b16 %v7876
        %v8551 = vunpack.c.l.b16 %v7877
        %v8552 = vunpack.c.l.b16 %v7878
        %v8553 = vunpack.c.l.b16 %v7879
        %v8554 = vunpack.c.l.b16 %v7880
        %v8555 = vunpack.c.l.b16 %v7881
        %v8556 = vunpack.c.l.b16 %v7882
        %v8557 = vunpack.c.l.b16 %v7883
        %v8558 = vunpack.c.l.b16 %v7884
        %v8559 = vunpack.c.l.b16 %v7885
        %v8560 = vunpack.c.l.b16 %v7886
        %v8561 = vunpack.c.l.b16 %v7887
        %v8562 = vunpack.c.l.b16 %v7888
        %v8563 = vunpack.c.l.b16 %v7889
        %v8564 = vunpack.c.l.b16 %v7890
        %v8565 = vunpack.c.l.b16 %v7891
        %v8566 = vunpack.c.l.b16 %v7892
        %v8567 = vunpack.c.l.b16 %v7893
        %v8568 = vunpack.c.l.b16 %v7894
        %v8569 = vunpack.c.l.b16 %v7895
        %v8570 = vpack.c.b16 %v8547, %v8546
        %v8571 = vpack.c.b16 %v8549, %v8548
        %v8572 = vpack.c.b16 %v8551, %v8550
        %v8573 = vpack.c.b16 %v8553, %v8552
        %v8574 = vpack.c.b16 %v8555, %v8554
        %v8575 = vpack.c.b16 %v8557, %v8556
        %v8576 = vpack.c.b16 %v8559, %v8558
        %v8577 = vpack.c.b16 %v8561, %v8560
        %v8578 = vpack.c.b16 %v8563, %v8562
        %v8579 = vpack.c.b16 %v8565, %v8564
        %v8580 = vpack.c.b16 %v8567, %v8566
        %v8581 = vpack.c.b16 %v8569, %v8568
        %v8595 = vsel %vm3390, %v8475, 0
        %v8598 = vsel %vm3390, %v8477, 0
        %v8601 = vsel %vm3390, %v8479, 0
        %v8604 = vsel %vm3390, %v8481, 0
        %v8607 = vsel %vm3390, %v8483, 0
        %v8610 = vsel %vm3390, %v8485, 0
        %v8613 = vsel %vm3390, %v8487, 0
        %v8616 = vsel %vm3390, %v8489, 0
        %v8619 = vsel %vm3390, %v8491, 0
        %v8622 = vsel %vm3390, %v8493, 0
        %v8625 = vsel %vm3390, %v8495, 0
        %v8628 = vsel %vm3390, %v8497, 0
        %v8631 = vsel %vm3390, %v8499, 0
        %v8634 = vsel %vm3390, %v8501, 0
        %v8637 = vsel %vm3390, %v8503, 0
        %v8640 = vsel %vm3390, %v8505, 0
        %8642 = vmatprep.subr.bf16.mxu0 0
        %8643 = vmatpush1.bf16.msra.mxu0 %v8577
        %8644 = vmatprep.subr.bf16.mxu0 0
        %8645 = vmatpush1.bf16.msra.mxu0 %v8576
        %8646 = vmatprep.subr.bf16.mxu0 0
        %8647 = vmatpush1.bf16.msra.mxu0 %v8575
        %8648 = vmatprep.subr.bf16.mxu0 0
        %8649 = vmatpush1.bf16.msra.mxu0 %v8574
        %8650 = vmatprep.subr.bf16.mxu0 0
        %8651 = vmatpush1.bf16.msra.mxu0 %v8573
        %8652 = vmatprep.subr.bf16.mxu0 0
        %8653 = vmatpush1.bf16.msra.mxu0 %v8572
        %8654 = vmatprep.subr.bf16.mxu0 0
        %8655 = vmatpush1.bf16.msra.mxu0 %v8571
        %8656 = vmatprep.subr.bf16.mxu0 0
        %8657 = vmatpush1.bf16.msra.mxu0 %v8570
        %8658 = vmatprep.subr.bf16.mxu0 0
        %8659 = vmatpush2.bf16.msra.mxu0 0
        %8660 = vmatprep.subr.bf16.mxu0 0
        %8661 = vmatpush2.bf16.msra.mxu0 0
        %8662 = vmatprep.subr.bf16.mxu0 0
        %8663 = vmatpush2.bf16.msra.mxu0 0
        %8664 = vmatprep.subr.bf16.mxu0 0
        %8665 = vmatpush2.bf16.msra.mxu0 0
        %8666 = vmatprep.subr.bf16.mxu0 0
        %8667 = vmatpush2.bf16.msra.mxu0 %v8581
        %8668 = vmatprep.subr.bf16.mxu0 0
        %8669 = vmatpush2.bf16.msra.mxu0 %v8580
        %8670 = vmatprep.subr.bf16.mxu0 0
        %8671 = vmatpush2.bf16.msra.mxu0 %v8579
        %8672 = vmatprep.subr.bf16.mxu0 0
        %8673 = vmatpush2.bf16.msra.mxu0 %v8578
        %8674 = vmatprep.mubr.bf16.mxu0 %v8595
        %8675 = vmatmul.mubr.bf16.gmra.mxu0 %v8474
        %v8676 = vpop.f32.mrf.mxu0
        %v8677 = vadd.f32 %v8252, %v8676
        %v8678 = vpop.f32.mrf.mxu0
        %v8679 = vpop.f32.mrf.mxu0
        %v8680 = vadd.f32 %v8255, %v8679
        %v8681 = vpop.f32.mrf.mxu0
        %8682 = vmatprep.mubr.bf16.mxu0 %v8598
        %8683 = vmatmul.mubr.bf16.gmra.mxu0 %v8476
        %v8684 = vpop.f32.mrf.mxu0
        %v8685 = vadd.f32 %v8260, %v8684
        %v8686 = vpop.f32.mrf.mxu0
        %v8687 = vpop.f32.mrf.mxu0
        %v8688 = vadd.f32 %v8263, %v8687
        %v8689 = vpop.f32.mrf.mxu0
        %8690 = vmatprep.mubr.bf16.mxu0 %v8601
        %8691 = vmatmul.mubr.bf16.gmra.mxu0 %v8478
        %v8692 = vpop.f32.mrf.mxu0
        %v8693 = vadd.f32 %v8268, %v8692
        %v8694 = vpop.f32.mrf.mxu0
        %v8695 = vpop.f32.mrf.mxu0
        %v8696 = vadd.f32 %v8271, %v8695
        %v8697 = vpop.f32.mrf.mxu0
        %8698 = vmatprep.mubr.bf16.mxu0 %v8604
        %8699 = vmatmul.mubr.bf16.gmra.mxu0 %v8480
        %v8700 = vpop.f32.mrf.mxu0
        %v8701 = vadd.f32 %v8276, %v8700
        %v8702 = vpop.f32.mrf.mxu0
        %v8703 = vpop.f32.mrf.mxu0
        %v8704 = vadd.f32 %v8279, %v8703
        %v8705 = vpop.f32.mrf.mxu0
        %8706 = vmatprep.mubr.bf16.mxu0 %v8607
        %8707 = vmatmul.mubr.bf16.gmra.mxu0 %v8482
        %v8708 = vpop.f32.mrf.mxu0
        %v8709 = vadd.f32 %v8284, %v8708
        %v8710 = vpop.f32.mrf.mxu0
        %v8711 = vpop.f32.mrf.mxu0
        %v8712 = vadd.f32 %v8287, %v8711
        %v8713 = vpop.f32.mrf.mxu0
        %8714 = vmatprep.mubr.bf16.mxu0 %v8610
        %8715 = vmatmul.mubr.bf16.gmra.mxu0 %v8484
        %v8716 = vpop.f32.mrf.mxu0
        %v8717 = vadd.f32 %v8292, %v8716
        %v8718 = vpop.f32.mrf.mxu0
        %v8719 = vpop.f32.mrf.mxu0
        %v8720 = vadd.f32 %v8295, %v8719
        %v8721 = vpop.f32.mrf.mxu0
        %8722 = vmatprep.mubr.bf16.mxu0 %v8613
        %8723 = vmatmul.mubr.bf16.gmra.mxu0 %v8486
        %v8724 = vpop.f32.mrf.mxu0
        %v8725 = vadd.f32 %v8300, %v8724
        %v8726 = vpop.f32.mrf.mxu0
        %v8727 = vpop.f32.mrf.mxu0
        %v8728 = vadd.f32 %v8303, %v8727
        %v8729 = vpop.f32.mrf.mxu0
        %8730 = vmatprep.mubr.bf16.mxu0 %v8616
        %8731 = vmatmul.mubr.bf16.gmra.mxu0 %v8488
        %v8732 = vpop.f32.mrf.mxu0
        %v8733 = vadd.f32 %v8308, %v8732
        %v8734 = vpop.f32.mrf.mxu0
        %v8735 = vpop.f32.mrf.mxu0
        %v8736 = vadd.f32 %v8311, %v8735
        %v8737 = vpop.f32.mrf.mxu0
        %8738 = vmatprep.mubr.bf16.mxu0 %v8619
        %8739 = vmatmul.mubr.bf16.gmra.mxu0 %v8490
        %v8740 = vpop.f32.mrf.mxu0
        %v8741 = vadd.f32 %v8316, %v8740
        %v8742 = vpop.f32.mrf.mxu0
        %v8743 = vpop.f32.mrf.mxu0
        %v8744 = vadd.f32 %v8319, %v8743
        %v8745 = vpop.f32.mrf.mxu0
        %8746 = vmatprep.mubr.bf16.mxu0 %v8622
        %8747 = vmatmul.mubr.bf16.gmra.mxu0 %v8492
        %v8748 = vpop.f32.mrf.mxu0
        %v8749 = vadd.f32 %v8324, %v8748
        %v8750 = vpop.f32.mrf.mxu0
        %v8751 = vpop.f32.mrf.mxu0
        %v8752 = vadd.f32 %v8327, %v8751
        %v8753 = vpop.f32.mrf.mxu0
        %8754 = vmatprep.mubr.bf16.mxu0 %v8625
        %8755 = vmatmul.mubr.bf16.gmra.mxu0 %v8494
        %v8756 = vpop.f32.mrf.mxu0
        %v8757 = vadd.f32 %v8332, %v8756
        %v8758 = vpop.f32.mrf.mxu0
        %v8759 = vpop.f32.mrf.mxu0
        %v8760 = vadd.f32 %v8335, %v8759
        %v8761 = vpop.f32.mrf.mxu0
        %8762 = vmatprep.mubr.bf16.mxu0 %v8628
        %8763 = vmatmul.mubr.bf16.gmra.mxu0 %v8496
        %v8764 = vpop.f32.mrf.mxu0
        %v8765 = vadd.f32 %v8340, %v8764
        %v8766 = vpop.f32.mrf.mxu0
        %v8767 = vpop.f32.mrf.mxu0
        %v8768 = vadd.f32 %v8343, %v8767
        %v8769 = vpop.f32.mrf.mxu0
        %8770 = vmatprep.mubr.bf16.mxu0 %v8631
        %8771 = vmatmul.mubr.bf16.gmra.mxu0 %v8498
        %v8772 = vpop.f32.mrf.mxu0
        %v8773 = vadd.f32 %v8348, %v8772
        %v8774 = vpop.f32.mrf.mxu0
        %v8775 = vpop.f32.mrf.mxu0
        %v8776 = vadd.f32 %v8351, %v8775
        %v8777 = vpop.f32.mrf.mxu0
        %8778 = vmatprep.mubr.bf16.mxu0 %v8634
        %8779 = vmatmul.mubr.bf16.gmra.mxu0 %v8500
        %v8780 = vpop.f32.mrf.mxu0
        %v8781 = vadd.f32 %v8356, %v8780
        %v8782 = vpop.f32.mrf.mxu0
        %v8783 = vpop.f32.mrf.mxu0
        %v8784 = vadd.f32 %v8359, %v8783
        %v8785 = vpop.f32.mrf.mxu0
        %8786 = vmatprep.mubr.bf16.mxu0 %v8637
        %8787 = vmatmul.mubr.bf16.gmra.mxu0 %v8502
        %v8788 = vpop.f32.mrf.mxu0
        %v8789 = vadd.f32 %v8364, %v8788
        %v8790 = vpop.f32.mrf.mxu0
        %v8791 = vpop.f32.mrf.mxu0
        %v8792 = vadd.f32 %v8367, %v8791
        %v8793 = vpop.f32.mrf.mxu0
        %8794 = vmatprep.mubr.bf16.mxu0 %v8640
        %8795 = vmatmul.mubr.bf16.gmra.mxu0 %v8504
        %v8796 = vpop.f32.mrf.mxu0
        %v8797 = vadd.f32 %v8372, %v8796
        %v8798 = vpop.f32.mrf.mxu0
        %v8799 = vpop.f32.mrf.mxu0
        %v8800 = vadd.f32 %v8375, %v8799
        %v8801 = vpop.f32.mrf.mxu0
        %8802 = vdwg.mxu0
        %s8803 = scalar_lea.vmem [#allocation5], 32
        %v8804 = vld [vmem:[%s8803] sm:$0xff]
        %v8805 = vld [vmem:[%s8803 + $0x8] sm:$0xff]
        %v8806 = vld [vmem:[%s8803 + $0x10] sm:$0xff]
        %v8807 = vld [vmem:[%s8803 + $0x18] sm:$0xff]
        %v8808 = vld [vmem:[%s8803 + $0x20] sm:$0xff]
        %v8809 = vld [vmem:[%s8803 + $0x28] sm:$0xff]
        %v8810 = vld [vmem:[%s8803 + $0x30] sm:$0xff]
        %v8811 = vld [vmem:[%s8803 + $0x38] sm:$0xff]
        %v8812 = vld [vmem:[%s8803 + $0x40] sm:$0xff]
        %v8813 = vld [vmem:[%s8803 + $0x48] sm:$0xff]
        %v8814 = vld [vmem:[%s8803 + $0x50] sm:$0xff]
        %v8815 = vld [vmem:[%s8803 + $0x58] sm:$0xff]
        %v8816 = vld [vmem:[%s8803 + $0x60] sm:$0xff]
        %v8817 = vld [vmem:[%s8803 + $0x68] sm:$0xff]
        %v8818 = vld [vmem:[%s8803 + $0x70] sm:$0xff]
        %v8819 = vld [vmem:[%s8803 + $0x78] sm:$0xff]
        %v8820 = vld [vmem:[%s8803 + $0x80] sm:$0xff]
        %v8821 = vld [vmem:[%s8803 + $0x88] sm:$0xff]
        %v8822 = vld [vmem:[%s8803 + $0x90] sm:$0xff]
        %v8823 = vld [vmem:[%s8803 + $0x98] sm:$0xff]
        %v8824 = vld [vmem:[%s8803 + $0xa0] sm:$0xff]
        %v8825 = vld [vmem:[%s8803 + $0xa8] sm:$0xff]
        %v8826 = vld [vmem:[%s8803 + $0xb0] sm:$0xff]
        %v8827 = vld [vmem:[%s8803 + $0xb8] sm:$0xff]
        %v8828 = vld [vmem:[%s8803 + $0xc0] sm:$0xff]
        %v8829 = vld [vmem:[%s8803 + $0xc8] sm:$0xff]
        %v8830 = vld [vmem:[%s8803 + $0xd0] sm:$0xff]
        %v8831 = vld [vmem:[%s8803 + $0xd8] sm:$0xff]
        %v8832 = vld [vmem:[%s8803 + $0xe0] sm:$0xff]
        %v8833 = vld [vmem:[%s8803 + $0xe8] sm:$0xff]
        %v8834 = vld [vmem:[%s8803 + $0xf0] sm:$0xff]
        %v8835 = vld [vmem:[%s8803 + $0xf8] sm:$0xff]
        %s8836 = scalar_lea.vmem %s11, 192
        %v8837 = vld [vmem:[%s8836] sm:$0xf]
        %v8838 = vld [vmem:[%s8836 + $0x4] sm:$0xf]
        %v8839 = vld [vmem:[%s8836 + $0x8] sm:$0xf]
        %v8840 = vld [vmem:[%s8836 + $0xc] sm:$0xf]
        %v8841 = vld [vmem:[%s8836 + $0x10] sm:$0xf]
        %v8842 = vld [vmem:[%s8836 + $0x14] sm:$0xf]
        %v8843 = vld [vmem:[%s8836 + $0x18] sm:$0xf]
        %v8844 = vld [vmem:[%s8836 + $0x1c] sm:$0xf]
        %v8845 = vld [vmem:[%s8836 + $0x20] sm:$0xf]
        %v8846 = vld [vmem:[%s8836 + $0x24] sm:$0xf]
        %v8847 = vld [vmem:[%s8836 + $0x28] sm:$0xf]
        %v8848 = vld [vmem:[%s8836 + $0x2c] sm:$0xf]
        %v8849 = vld [vmem:[%s8836 + $0x30] sm:$0xf]
        %v8850 = vld [vmem:[%s8836 + $0x34] sm:$0xf]
        %v8851 = vld [vmem:[%s8836 + $0x38] sm:$0xf]
        %v8852 = vld [vmem:[%s8836 + $0x3c] sm:$0xf]
        %v8853 = vld [vmem:[%s8836 + $0x40] sm:$0xf]
        %v8854 = vld [vmem:[%s8836 + $0x44] sm:$0xf]
        %v8855 = vld [vmem:[%s8836 + $0x48] sm:$0xf]
        %v8856 = vld [vmem:[%s8836 + $0x4c] sm:$0xf]
        %v8857 = vld [vmem:[%s8836 + $0x50] sm:$0xf]
        %v8858 = vld [vmem:[%s8836 + $0x54] sm:$0xf]
        %v8859 = vld [vmem:[%s8836 + $0x58] sm:$0xf]
        %v8860 = vld [vmem:[%s8836 + $0x5c] sm:$0xf]
        %v8893 = vunpack.c.l.b16 %v8804
        %v8894 = vunpack.c.h.b16 %v8804
        %v8895 = vunpack.c.l.b16 %v8805
        %v8896 = vunpack.c.h.b16 %v8805
        %v8897 = vunpack.c.l.b16 %v8806
        %v8898 = vunpack.c.h.b16 %v8806
        %v8899 = vunpack.c.l.b16 %v8807
        %v8900 = vunpack.c.h.b16 %v8807
        %v8901 = vunpack.c.l.b16 %v8808
        %v8902 = vunpack.c.h.b16 %v8808
        %v8903 = vunpack.c.l.b16 %v8809
        %v8904 = vunpack.c.h.b16 %v8809
        %v8905 = vunpack.c.l.b16 %v8810
        %v8906 = vunpack.c.h.b16 %v8810
        %v8907 = vunpack.c.l.b16 %v8811
        %v8908 = vunpack.c.h.b16 %v8811
        %v8909 = vunpack.c.l.b16 %v8812
        %v8910 = vunpack.c.h.b16 %v8812
        %v8911 = vunpack.c.l.b16 %v8813
        %v8912 = vunpack.c.h.b16 %v8813
        %v8913 = vunpack.c.l.b16 %v8814
        %v8914 = vunpack.c.h.b16 %v8814
        %v8915 = vunpack.c.l.b16 %v8815
        %v8916 = vunpack.c.h.b16 %v8815
        %v8917 = vunpack.c.l.b16 %v8816
        %v8918 = vunpack.c.h.b16 %v8816
        %v8919 = vunpack.c.l.b16 %v8817
        %v8920 = vunpack.c.h.b16 %v8817
        %v8921 = vunpack.c.l.b16 %v8818
        %v8922 = vunpack.c.h.b16 %v8818
        %v8923 = vunpack.c.l.b16 %v8819
        %v8924 = vunpack.c.h.b16 %v8819
        %v8925 = vunpack.c.l.b16 %v8820
        %v8926 = vunpack.c.h.b16 %v8820
        %v8927 = vunpack.c.l.b16 %v8821
        %v8928 = vunpack.c.h.b16 %v8821
        %v8929 = vunpack.c.l.b16 %v8822
        %v8930 = vunpack.c.h.b16 %v8822
        %v8931 = vunpack.c.l.b16 %v8823
        %v8932 = vunpack.c.h.b16 %v8823
        %v8933 = vunpack.c.l.b16 %v8824
        %v8934 = vunpack.c.h.b16 %v8824
        %v8935 = vunpack.c.l.b16 %v8825
        %v8936 = vunpack.c.h.b16 %v8825
        %v8937 = vunpack.c.l.b16 %v8826
        %v8938 = vunpack.c.h.b16 %v8826
        %v8939 = vunpack.c.l.b16 %v8827
        %v8940 = vunpack.c.h.b16 %v8827
        %v8941 = vunpack.c.l.b16 %v8828
        %v8942 = vunpack.c.h.b16 %v8828
        %v8943 = vunpack.c.l.b16 %v8829
        %v8944 = vunpack.c.h.b16 %v8829
        %v8945 = vunpack.c.l.b16 %v8830
        %v8946 = vunpack.c.h.b16 %v8830
        %v8947 = vunpack.c.l.b16 %v8831
        %v8948 = vunpack.c.h.b16 %v8831
        %v8949 = vunpack.c.l.b16 %v8832
        %v8950 = vunpack.c.h.b16 %v8832
        %v8951 = vunpack.c.l.b16 %v8833
        %v8952 = vunpack.c.h.b16 %v8833
        %v8953 = vunpack.c.l.b16 %v8834
        %v8954 = vunpack.c.h.b16 %v8834
        %v8955 = vunpack.c.l.b16 %v8835
        %v8956 = vunpack.c.h.b16 %v8835
        %v8957 = vpack.c.b16 %v8895, %v8893
        %v8958 = vpack.c.b16 %v8896, %v8894
        %v8959 = vpack.c.b16 %v8899, %v8897
        %v8960 = vpack.c.b16 %v8900, %v8898
        %v8961 = vpack.c.b16 %v8903, %v8901
        %v8962 = vpack.c.b16 %v8904, %v8902
        %v8963 = vpack.c.b16 %v8907, %v8905
        %v8964 = vpack.c.b16 %v8908, %v8906
        %v8965 = vpack.c.b16 %v8911, %v8909
        %v8966 = vpack.c.b16 %v8912, %v8910
        %v8967 = vpack.c.b16 %v8915, %v8913
        %v8968 = vpack.c.b16 %v8916, %v8914
        %v8969 = vpack.c.b16 %v8919, %v8917
        %v8970 = vpack.c.b16 %v8920, %v8918
        %v8971 = vpack.c.b16 %v8923, %v8921
        %v8972 = vpack.c.b16 %v8924, %v8922
        %v8973 = vpack.c.b16 %v8927, %v8925
        %v8974 = vpack.c.b16 %v8928, %v8926
        %v8975 = vpack.c.b16 %v8931, %v8929
        %v8976 = vpack.c.b16 %v8932, %v8930
        %v8977 = vpack.c.b16 %v8935, %v8933
        %v8978 = vpack.c.b16 %v8936, %v8934
        %v8979 = vpack.c.b16 %v8939, %v8937
        %v8980 = vpack.c.b16 %v8940, %v8938
        %v8981 = vpack.c.b16 %v8943, %v8941
        %v8982 = vpack.c.b16 %v8944, %v8942
        %v8983 = vpack.c.b16 %v8947, %v8945
        %v8984 = vpack.c.b16 %v8948, %v8946
        %v8985 = vpack.c.b16 %v8951, %v8949
        %v8986 = vpack.c.b16 %v8952, %v8950
        %v8987 = vpack.c.b16 %v8955, %v8953
        %v8988 = vpack.c.b16 %v8956, %v8954
        %v9029 = vunpack.c.l.b16 %v8837
        %v9030 = vunpack.c.l.b16 %v8838
        %v9031 = vunpack.c.l.b16 %v8839
        %v9032 = vunpack.c.l.b16 %v8840
        %v9033 = vunpack.c.l.b16 %v8841
        %v9034 = vunpack.c.l.b16 %v8842
        %v9035 = vunpack.c.l.b16 %v8843
        %v9036 = vunpack.c.l.b16 %v8844
        %v9037 = vunpack.c.l.b16 %v8845
        %v9038 = vunpack.c.l.b16 %v8846
        %v9039 = vunpack.c.l.b16 %v8847
        %v9040 = vunpack.c.l.b16 %v8848
        %v9041 = vunpack.c.l.b16 %v8849
        %v9042 = vunpack.c.l.b16 %v8850
        %v9043 = vunpack.c.l.b16 %v8851
        %v9044 = vunpack.c.l.b16 %v8852
        %v9045 = vunpack.c.l.b16 %v8853
        %v9046 = vunpack.c.l.b16 %v8854
        %v9047 = vunpack.c.l.b16 %v8855
        %v9048 = vunpack.c.l.b16 %v8856
        %v9049 = vunpack.c.l.b16 %v8857
        %v9050 = vunpack.c.l.b16 %v8858
        %v9051 = vunpack.c.l.b16 %v8859
        %v9052 = vunpack.c.l.b16 %v8860
        %v9053 = vpack.c.b16 %v9030, %v9029
        %v9054 = vpack.c.b16 %v9032, %v9031
        %v9055 = vpack.c.b16 %v9034, %v9033
        %v9056 = vpack.c.b16 %v9036, %v9035
        %v9057 = vpack.c.b16 %v9038, %v9037
        %v9058 = vpack.c.b16 %v9040, %v9039
        %v9059 = vpack.c.b16 %v9042, %v9041
        %v9060 = vpack.c.b16 %v9044, %v9043
        %v9061 = vpack.c.b16 %v9046, %v9045
        %v9062 = vpack.c.b16 %v9048, %v9047
        %v9063 = vpack.c.b16 %v9050, %v9049
        %v9064 = vpack.c.b16 %v9052, %v9051
        %v9078 = vsel %vm3390, %v8958, 0
        %v9081 = vsel %vm3390, %v8960, 0
        %v9084 = vsel %vm3390, %v8962, 0
        %v9087 = vsel %vm3390, %v8964, 0
        %v9090 = vsel %vm3390, %v8966, 0
        %v9093 = vsel %vm3390, %v8968, 0
        %v9096 = vsel %vm3390, %v8970, 0
        %v9099 = vsel %vm3390, %v8972, 0
        %v9102 = vsel %vm3390, %v8974, 0
        %v9105 = vsel %vm3390, %v8976, 0
        %v9108 = vsel %vm3390, %v8978, 0
        %v9111 = vsel %vm3390, %v8980, 0
        %v9114 = vsel %vm3390, %v8982, 0
        %v9117 = vsel %vm3390, %v8984, 0
        %v9120 = vsel %vm3390, %v8986, 0
        %v9123 = vsel %vm3390, %v8988, 0
        %9125 = vmatprep.subr.bf16.mxu0 0
        %9126 = vmatpush1.bf16.msra.mxu0 %v9060
        %9127 = vmatprep.subr.bf16.mxu0 0
        %9128 = vmatpush1.bf16.msra.mxu0 %v9059
        %9129 = vmatprep.subr.bf16.mxu0 0
        %9130 = vmatpush1.bf16.msra.mxu0 %v9058
        %9131 = vmatprep.subr.bf16.mxu0 0
        %9132 = vmatpush1.bf16.msra.mxu0 %v9057
        %9133 = vmatprep.subr.bf16.mxu0 0
        %9134 = vmatpush1.bf16.msra.mxu0 %v9056
        %9135 = vmatprep.subr.bf16.mxu0 0
        %9136 = vmatpush1.bf16.msra.mxu0 %v9055
        %9137 = vmatprep.subr.bf16.mxu0 0
        %9138 = vmatpush1.bf16.msra.mxu0 %v9054
        %9139 = vmatprep.subr.bf16.mxu0 0
        %9140 = vmatpush1.bf16.msra.mxu0 %v9053
        %9141 = vmatprep.subr.bf16.mxu0 0
        %9142 = vmatpush2.bf16.msra.mxu0 0
        %9143 = vmatprep.subr.bf16.mxu0 0
        %9144 = vmatpush2.bf16.msra.mxu0 0
        %9145 = vmatprep.subr.bf16.mxu0 0
        %9146 = vmatpush2.bf16.msra.mxu0 0
        %9147 = vmatprep.subr.bf16.mxu0 0
        %9148 = vmatpush2.bf16.msra.mxu0 0
        %9149 = vmatprep.subr.bf16.mxu0 0
        %9150 = vmatpush2.bf16.msra.mxu0 %v9064
        %9151 = vmatprep.subr.bf16.mxu0 0
        %9152 = vmatpush2.bf16.msra.mxu0 %v9063
        %9153 = vmatprep.subr.bf16.mxu0 0
        %9154 = vmatpush2.bf16.msra.mxu0 %v9062
        %9155 = vmatprep.subr.bf16.mxu0 0
        %9156 = vmatpush2.bf16.msra.mxu0 %v9061
        %9157 = vmatprep.mubr.bf16.mxu0 %v9078
        %9158 = vmatmul.mubr.bf16.gmra.mxu0 %v8957
        %v9159 = vpop.f32.mrf.mxu0
        %v9160 = vadd.f32 0.0, %v9159
        %v9161 = vpop.f32.mrf.mxu0
        %v9162 = vpop.f32.mrf.mxu0
        %v9163 = vadd.f32 0.0, %v9162
        %v9164 = vpop.f32.mrf.mxu0
        %9165 = vmatprep.mubr.bf16.mxu0 %v9081
        %9166 = vmatmul.mubr.bf16.gmra.mxu0 %v8959
        %v9167 = vpop.f32.mrf.mxu0
        %v9168 = vadd.f32 0.0, %v9167
        %v9169 = vpop.f32.mrf.mxu0
        %v9170 = vpop.f32.mrf.mxu0
        %v9171 = vadd.f32 0.0, %v9170
        %v9172 = vpop.f32.mrf.mxu0
        %9173 = vmatprep.mubr.bf16.mxu0 %v9084
        %9174 = vmatmul.mubr.bf16.gmra.mxu0 %v8961
        %v9175 = vpop.f32.mrf.mxu0
        %v9176 = vadd.f32 0.0, %v9175
        %v9177 = vpop.f32.mrf.mxu0
        %v9178 = vpop.f32.mrf.mxu0
        %v9179 = vadd.f32 0.0, %v9178
        %v9180 = vpop.f32.mrf.mxu0
        %9181 = vmatprep.mubr.bf16.mxu0 %v9087
        %9182 = vmatmul.mubr.bf16.gmra.mxu0 %v8963
        %v9183 = vpop.f32.mrf.mxu0
        %v9184 = vadd.f32 0.0, %v9183
        %v9185 = vpop.f32.mrf.mxu0
        %v9186 = vpop.f32.mrf.mxu0
        %v9187 = vadd.f32 0.0, %v9186
        %v9188 = vpop.f32.mrf.mxu0
        %9189 = vmatprep.mubr.bf16.mxu0 %v9090
        %9190 = vmatmul.mubr.bf16.gmra.mxu0 %v8965
        %v9191 = vpop.f32.mrf.mxu0
        %v9192 = vadd.f32 0.0, %v9191
        %v9193 = vpop.f32.mrf.mxu0
        %v9194 = vpop.f32.mrf.mxu0
        %v9195 = vadd.f32 0.0, %v9194
        %v9196 = vpop.f32.mrf.mxu0
        %9197 = vmatprep.mubr.bf16.mxu0 %v9093
        %9198 = vmatmul.mubr.bf16.gmra.mxu0 %v8967
        %v9199 = vpop.f32.mrf.mxu0
        %v9200 = vadd.f32 0.0, %v9199
        %v9201 = vpop.f32.mrf.mxu0
        %v9202 = vpop.f32.mrf.mxu0
        %v9203 = vadd.f32 0.0, %v9202
        %v9204 = vpop.f32.mrf.mxu0
        %9205 = vmatprep.mubr.bf16.mxu0 %v9096
        %9206 = vmatmul.mubr.bf16.gmra.mxu0 %v8969
        %v9207 = vpop.f32.mrf.mxu0
        %v9208 = vadd.f32 0.0, %v9207
        %v9209 = vpop.f32.mrf.mxu0
        %v9210 = vpop.f32.mrf.mxu0
        %v9211 = vadd.f32 0.0, %v9210
        %v9212 = vpop.f32.mrf.mxu0
        %9213 = vmatprep.mubr.bf16.mxu0 %v9099
        %9214 = vmatmul.mubr.bf16.gmra.mxu0 %v8971
        %v9215 = vpop.f32.mrf.mxu0
        %v9216 = vadd.f32 0.0, %v9215
        %v9217 = vpop.f32.mrf.mxu0
        %v9218 = vpop.f32.mrf.mxu0
        %v9219 = vadd.f32 0.0, %v9218
        %v9220 = vpop.f32.mrf.mxu0
        %9221 = vmatprep.mubr.bf16.mxu0 %v9102
        %9222 = vmatmul.mubr.bf16.gmra.mxu0 %v8973
        %v9223 = vpop.f32.mrf.mxu0
        %v9224 = vadd.f32 0.0, %v9223
        %v9225 = vpop.f32.mrf.mxu0
        %v9226 = vpop.f32.mrf.mxu0
        %v9227 = vadd.f32 0.0, %v9226
        %v9228 = vpop.f32.mrf.mxu0
        %9229 = vmatprep.mubr.bf16.mxu0 %v9105
        %9230 = vmatmul.mubr.bf16.gmra.mxu0 %v8975
        %v9231 = vpop.f32.mrf.mxu0
        %v9232 = vadd.f32 0.0, %v9231
        %v9233 = vpop.f32.mrf.mxu0
        %v9234 = vpop.f32.mrf.mxu0
        %v9235 = vadd.f32 0.0, %v9234
        %v9236 = vpop.f32.mrf.mxu0
        %9237 = vmatprep.mubr.bf16.mxu0 %v9108
        %9238 = vmatmul.mubr.bf16.gmra.mxu0 %v8977
        %v9239 = vpop.f32.mrf.mxu0
        %v9240 = vadd.f32 0.0, %v9239
        %v9241 = vpop.f32.mrf.mxu0
        %v9242 = vpop.f32.mrf.mxu0
        %v9243 = vadd.f32 0.0, %v9242
        %v9244 = vpop.f32.mrf.mxu0
        %9245 = vmatprep.mubr.bf16.mxu0 %v9111
        %9246 = vmatmul.mubr.bf16.gmra.mxu0 %v8979
        %v9247 = vpop.f32.mrf.mxu0
        %v9248 = vadd.f32 0.0, %v9247
        %v9249 = vpop.f32.mrf.mxu0
        %v9250 = vpop.f32.mrf.mxu0
        %v9251 = vadd.f32 0.0, %v9250
        %v9252 = vpop.f32.mrf.mxu0
        %9253 = vmatprep.mubr.bf16.mxu0 %v9114
        %9254 = vmatmul.mubr.bf16.gmra.mxu0 %v8981
        %v9255 = vpop.f32.mrf.mxu0
        %v9256 = vadd.f32 0.0, %v9255
        %v9257 = vpop.f32.mrf.mxu0
        %v9258 = vpop.f32.mrf.mxu0
        %v9259 = vadd.f32 0.0, %v9258
        %v9260 = vpop.f32.mrf.mxu0
        %9261 = vmatprep.mubr.bf16.mxu0 %v9117
        %9262 = vmatmul.mubr.bf16.gmra.mxu0 %v8983
        %v9263 = vpop.f32.mrf.mxu0
        %v9264 = vadd.f32 0.0, %v9263
        %v9265 = vpop.f32.mrf.mxu0
        %v9266 = vpop.f32.mrf.mxu0
        %v9267 = vadd.f32 0.0, %v9266
        %v9268 = vpop.f32.mrf.mxu0
        %9269 = vmatprep.mubr.bf16.mxu0 %v9120
        %9270 = vmatmul.mubr.bf16.gmra.mxu0 %v8985
        %v9271 = vpop.f32.mrf.mxu0
        %v9272 = vadd.f32 0.0, %v9271
        %v9273 = vpop.f32.mrf.mxu0
        %v9274 = vpop.f32.mrf.mxu0
        %v9275 = vadd.f32 0.0, %v9274
        %v9276 = vpop.f32.mrf.mxu0
        %9277 = vmatprep.mubr.bf16.mxu0 %v9123
        %9278 = vmatmul.mubr.bf16.gmra.mxu0 %v8987
        %v9279 = vpop.f32.mrf.mxu0
        %v9280 = vadd.f32 0.0, %v9279
        %v9281 = vpop.f32.mrf.mxu0
        %v9282 = vpop.f32.mrf.mxu0
        %v9283 = vadd.f32 0.0, %v9282
        %v9284 = vpop.f32.mrf.mxu0
        %9285 = vdwg.mxu0
        %v9286 = vadd.f32 %v8677, %v9160
        %v9287 = vadd.f32 %v8680, %v9163
        %v9288 = vadd.f32 %v8685, %v9168
        %v9289 = vadd.f32 %v8688, %v9171
        %v9290 = vadd.f32 %v8693, %v9176
        %v9291 = vadd.f32 %v8696, %v9179
        %v9292 = vadd.f32 %v8701, %v9184
        %v9293 = vadd.f32 %v8704, %v9187
        %v9294 = vadd.f32 %v8709, %v9192
        %v9295 = vadd.f32 %v8712, %v9195
        %v9296 = vadd.f32 %v8717, %v9200
        %v9297 = vadd.f32 %v8720, %v9203
        %v9298 = vadd.f32 %v8725, %v9208
        %v9299 = vadd.f32 %v8728, %v9211
        %v9300 = vadd.f32 %v8733, %v9216
        %v9301 = vadd.f32 %v8736, %v9219
        %v9302 = vadd.f32 %v8741, %v9224
        %v9303 = vadd.f32 %v8744, %v9227
        %v9304 = vadd.f32 %v8749, %v9232
        %v9305 = vadd.f32 %v8752, %v9235
        %v9306 = vadd.f32 %v8757, %v9240
        %v9307 = vadd.f32 %v8760, %v9243
        %v9308 = vadd.f32 %v8765, %v9248
        %v9309 = vadd.f32 %v8768, %v9251
        %v9310 = vadd.f32 %v8773, %v9256
        %v9311 = vadd.f32 %v8776, %v9259
        %v9312 = vadd.f32 %v8781, %v9264
        %v9313 = vadd.f32 %v8784, %v9267
        %v9314 = vadd.f32 %v8789, %v9272
        %v9315 = vadd.f32 %v8792, %v9275
        %v9316 = vadd.f32 %v8797, %v9280
        %v9317 = vadd.f32 %v8800, %v9283
        %v9319 = vlaneseq
        %v9320 = vshrl.u32 %v9319, 7
        %v9321 = vsub.s32 0, %v9320
        %v9322 = vrot.slane %v7286, %v9321
        %v9324 = vadd.f32 %v9286, %v9322
        %v9325 = vadd.f32 %v9287, %v9322
        %v9326 = vadd.f32 %v9288, %v9322
        %v9327 = vadd.f32 %v9289, %v9322
        %v9328 = vadd.f32 %v9290, %v9322
        %v9329 = vadd.f32 %v9291, %v9322
        %v9330 = vadd.f32 %v9292, %v9322
        %v9331 = vadd.f32 %v9293, %v9322
        %v9332 = vadd.f32 %v9294, %v9322
        %v9333 = vadd.f32 %v9295, %v9322
        %v9334 = vadd.f32 %v9296, %v9322
        %v9335 = vadd.f32 %v9297, %v9322
        %v9336 = vadd.f32 %v9298, %v9322
        %v9337 = vadd.f32 %v9299, %v9322
        %v9338 = vadd.f32 %v9300, %v9322
        %v9339 = vadd.f32 %v9301, %v9322
        %v9340 = vadd.f32 %v9302, %v9322
        %v9341 = vadd.f32 %v9303, %v9322
        %v9342 = vadd.f32 %v9304, %v9322
        %v9343 = vadd.f32 %v9305, %v9322
        %v9344 = vadd.f32 %v9306, %v9322
        %v9345 = vadd.f32 %v9307, %v9322
        %v9346 = vadd.f32 %v9308, %v9322
        %v9347 = vadd.f32 %v9309, %v9322
        %v9348 = vadd.f32 %v9310, %v9322
        %v9349 = vadd.f32 %v9311, %v9322
        %v9350 = vadd.f32 %v9312, %v9322
        %v9351 = vadd.f32 %v9313, %v9322
        %v9352 = vadd.f32 %v9314, %v9322
        %v9353 = vadd.f32 %v9315, %v9322
        %v9354 = vadd.f32 %v9316, %v9322
        %v9355 = vadd.f32 %v9317, %v9322
        %v9356 = vpack.c.bf16 %v495, %v494
        %v9357 = vpack.c.bf16 %v497, %v496
        %v9358 = vpack.c.bf16 %v499, %v498
        %v9359 = vpack.c.bf16 %v501, %v500
        %v9360 = vpack.c.bf16 %v503, %v502
        %v9361 = vpack.c.bf16 %v505, %v504
        %v9362 = vpack.c.bf16 %v507, %v506
        %v9363 = vpack.c.bf16 %v509, %v508
        %v9364 = vpack.c.bf16 %v511, %v510
        %v9365 = vpack.c.bf16 %v513, %v512
        %v9366 = vpack.c.bf16 %v515, %v514
        %v9367 = vpack.c.bf16 %v517, %v516
        %v9368 = vpack.c.bf16 %v519, %v518
        %v9369 = vpack.c.bf16 %v521, %v520
        %v9370 = vpack.c.bf16 %v523, %v522
        %v9371 = vpack.c.bf16 %v525, %v524
        %v9372 = vld [vmem:[%s13] sm:$0xf]
        %v9373 = vld [vmem:[%s13 + $0x4] sm:$0xf]
        %v9374 = vld [vmem:[%s13 + $0x8] sm:$0xf]
        %v9375 = vld [vmem:[%s13 + $0xc] sm:$0xf]
        %v9376 = vld [vmem:[%s14] sm:$0x1]
        %v9378 = vlaneseq
        %v9379 = vshrl.u32 %v9378, 7
        %v9380 = vsub.s32 0, %v9379
        %v9381 = vrot.slane %v9376, %v9380
        %v9387 = vunpack.c.l.b16 %v9372
        %v9388 = vunpack.c.l.b16 %v9373
        %v9389 = vunpack.c.l.b16 %v9374
        %v9390 = vunpack.c.l.b16 %v9375
        %v9391 = vpack.c.b16 %v9388, %v9387
        %v9392 = vpack.c.b16 %v9390, %v9389
        %v9396 = vsel %vm536, %v9356, 0
        %v9399 = vsel %vm536, %v9357, 0
        %v9402 = vsel %vm536, %v9358, 0
        %v9405 = vsel %vm536, %v9359, 0
        %v9408 = vsel %vm536, %v9360, 0
        %v9411 = vsel %vm536, %v9361, 0
        %v9414 = vsel %vm536, %v9362, 0
        %v9417 = vsel %vm536, %v9363, 0
        %v9420 = vsel %vm536, %v9364, 0
        %v9423 = vsel %vm536, %v9365, 0
        %v9426 = vsel %vm536, %v9366, 0
        %v9429 = vsel %vm536, %v9367, 0
        %v9432 = vsel %vm536, %v9368, 0
        %v9435 = vsel %vm536, %v9369, 0
        %v9438 = vsel %vm536, %v9370, 0
        %v9441 = vsel %vm536, %v9371, 0
        %9443 = vmatprep.subr.bf16.mxu0 0
        %9444 = vmatpush1.bf16.msra.mxu0 0
        %9445 = vmatprep.subr.bf16.mxu0 0
        %9446 = vmatpush1.bf16.msra.mxu0 0
        %9447 = vmatprep.subr.bf16.mxu0 0
        %9448 = vmatpush1.bf16.msra.mxu0 0
        %9449 = vmatprep.subr.bf16.mxu0 0
        %9450 = vmatpush1.bf16.msra.mxu0 0
        %9451 = vmatprep.subr.bf16.mxu0 0
        %9452 = vmatpush1.bf16.msra.mxu0 0
        %9453 = vmatprep.subr.bf16.mxu0 0
        %9454 = vmatpush1.bf16.msra.mxu0 0
        %9455 = vmatprep.subr.bf16.mxu0 0
        %9456 = vmatpush1.bf16.msra.mxu0 %v9392
        %9457 = vmatprep.subr.bf16.mxu0 0
        %9458 = vmatpush1.bf16.msra.mxu0 %v9391
        %9459 = vmatprep.subr.bf16.mxu0 0
        %9460 = vmatpush2.bf16.msra.mxu0 0
        %9461 = vmatprep.subr.bf16.mxu0 0
        %9462 = vmatpush2.bf16.msra.mxu0 0
        %9463 = vmatprep.subr.bf16.mxu0 0
        %9464 = vmatpush2.bf16.msra.mxu0 0
        %9465 = vmatprep.subr.bf16.mxu0 0
        %9466 = vmatpush2.bf16.msra.mxu0 0
        %9467 = vmatprep.subr.bf16.mxu0 0
        %9468 = vmatpush2.bf16.msra.mxu0 0
        %9469 = vmatprep.subr.bf16.mxu0 0
        %9470 = vmatpush2.bf16.msra.mxu0 0
        %9471 = vmatprep.subr.bf16.mxu0 0
        %9472 = vmatpush2.bf16.msra.mxu0 0
        %9473 = vmatprep.subr.bf16.mxu0 0
        %9474 = vmatpush2.bf16.msra.mxu0 0
        %9475 = vmatprep.mubr.bf16.mxu0 0
        %9476 = vmatmul.mubr.bf16.gmra.mxu0 %v9396
        %v9477 = vpop.f32.mrf.mxu0
        %v9478 = vadd.f32 %v9381, %v9477
        %v9479 = vpop.f32.mrf.mxu0
        %v9480 = vpop.f32.mrf.mxu0
        %v9481 = vadd.f32 %v9381, %v9480
        %v9482 = vpop.f32.mrf.mxu0
        %9483 = vmatprep.mubr.bf16.mxu0 0
        %9484 = vmatmul.mubr.bf16.gmra.mxu0 %v9399
        %v9485 = vpop.f32.mrf.mxu0
        %v9486 = vadd.f32 %v9381, %v9485
        %v9487 = vpop.f32.mrf.mxu0
        %v9488 = vpop.f32.mrf.mxu0
        %v9489 = vadd.f32 %v9381, %v9488
        %v9490 = vpop.f32.mrf.mxu0
        %9491 = vmatprep.mubr.bf16.mxu0 0
        %9492 = vmatmul.mubr.bf16.gmra.mxu0 %v9402
        %v9493 = vpop.f32.mrf.mxu0
        %v9494 = vadd.f32 %v9381, %v9493
        %v9495 = vpop.f32.mrf.mxu0
        %v9496 = vpop.f32.mrf.mxu0
        %v9497 = vadd.f32 %v9381, %v9496
        %v9498 = vpop.f32.mrf.mxu0
        %9499 = vmatprep.mubr.bf16.mxu0 0
        %9500 = vmatmul.mubr.bf16.gmra.mxu0 %v9405
        %v9501 = vpop.f32.mrf.mxu0
        %v9502 = vadd.f32 %v9381, %v9501
        %v9503 = vpop.f32.mrf.mxu0
        %v9504 = vpop.f32.mrf.mxu0
        %v9505 = vadd.f32 %v9381, %v9504
        %v9506 = vpop.f32.mrf.mxu0
        %9507 = vmatprep.mubr.bf16.mxu0 0
        %9508 = vmatmul.mubr.bf16.gmra.mxu0 %v9408
        %v9509 = vpop.f32.mrf.mxu0
        %v9510 = vadd.f32 %v9381, %v9509
        %v9511 = vpop.f32.mrf.mxu0
        %v9512 = vpop.f32.mrf.mxu0
        %v9513 = vadd.f32 %v9381, %v9512
        %v9514 = vpop.f32.mrf.mxu0
        %9515 = vmatprep.mubr.bf16.mxu0 0
        %9516 = vmatmul.mubr.bf16.gmra.mxu0 %v9411
        %v9517 = vpop.f32.mrf.mxu0
        %v9518 = vadd.f32 %v9381, %v9517
        %v9519 = vpop.f32.mrf.mxu0
        %v9520 = vpop.f32.mrf.mxu0
        %v9521 = vadd.f32 %v9381, %v9520
        %v9522 = vpop.f32.mrf.mxu0
        %9523 = vmatprep.mubr.bf16.mxu0 0
        %9524 = vmatmul.mubr.bf16.gmra.mxu0 %v9414
        %v9525 = vpop.f32.mrf.mxu0
        %v9526 = vadd.f32 %v9381, %v9525
        %v9527 = vpop.f32.mrf.mxu0
        %v9528 = vpop.f32.mrf.mxu0
        %v9529 = vadd.f32 %v9381, %v9528
        %v9530 = vpop.f32.mrf.mxu0
        %9531 = vmatprep.mubr.bf16.mxu0 0
        %9532 = vmatmul.mubr.bf16.gmra.mxu0 %v9417
        %v9533 = vpop.f32.mrf.mxu0
        %v9534 = vadd.f32 %v9381, %v9533
        %v9535 = vpop.f32.mrf.mxu0
        %v9536 = vpop.f32.mrf.mxu0
        %v9537 = vadd.f32 %v9381, %v9536
        %v9538 = vpop.f32.mrf.mxu0
        %9539 = vmatprep.mubr.bf16.mxu0 0
        %9540 = vmatmul.mubr.bf16.gmra.mxu0 %v9420
        %v9541 = vpop.f32.mrf.mxu0
        %v9542 = vadd.f32 %v9381, %v9541
        %v9543 = vpop.f32.mrf.mxu0
        %v9544 = vpop.f32.mrf.mxu0
        %v9545 = vadd.f32 %v9381, %v9544
        %v9546 = vpop.f32.mrf.mxu0
        %9547 = vmatprep.mubr.bf16.mxu0 0
        %9548 = vmatmul.mubr.bf16.gmra.mxu0 %v9423
        %v9549 = vpop.f32.mrf.mxu0
        %v9550 = vadd.f32 %v9381, %v9549
        %v9551 = vpop.f32.mrf.mxu0
        %v9552 = vpop.f32.mrf.mxu0
        %v9553 = vadd.f32 %v9381, %v9552
        %v9554 = vpop.f32.mrf.mxu0
        %9555 = vmatprep.mubr.bf16.mxu0 0
        %9556 = vmatmul.mubr.bf16.gmra.mxu0 %v9426
        %v9557 = vpop.f32.mrf.mxu0
        %v9558 = vadd.f32 %v9381, %v9557
        %v9559 = vpop.f32.mrf.mxu0
        %v9560 = vpop.f32.mrf.mxu0
        %v9561 = vadd.f32 %v9381, %v9560
        %v9562 = vpop.f32.mrf.mxu0
        %9563 = vmatprep.mubr.bf16.mxu0 0
        %9564 = vmatmul.mubr.bf16.gmra.mxu0 %v9429
        %v9565 = vpop.f32.mrf.mxu0
        %v9566 = vadd.f32 %v9381, %v9565
        %v9567 = vpop.f32.mrf.mxu0
        %v9568 = vpop.f32.mrf.mxu0
        %v9569 = vadd.f32 %v9381, %v9568
        %v9570 = vpop.f32.mrf.mxu0
        %9571 = vmatprep.mubr.bf16.mxu0 0
        %9572 = vmatmul.mubr.bf16.gmra.mxu0 %v9432
        %v9573 = vpop.f32.mrf.mxu0
        %v9574 = vadd.f32 %v9381, %v9573
        %v9575 = vpop.f32.mrf.mxu0
        %v9576 = vpop.f32.mrf.mxu0
        %v9577 = vadd.f32 %v9381, %v9576
        %v9578 = vpop.f32.mrf.mxu0
        %9579 = vmatprep.mubr.bf16.mxu0 0
        %9580 = vmatmul.mubr.bf16.gmra.mxu0 %v9435
        %v9581 = vpop.f32.mrf.mxu0
        %v9582 = vadd.f32 %v9381, %v9581
        %v9583 = vpop.f32.mrf.mxu0
        %v9584 = vpop.f32.mrf.mxu0
        %v9585 = vadd.f32 %v9381, %v9584
        %v9586 = vpop.f32.mrf.mxu0
        %9587 = vmatprep.mubr.bf16.mxu0 0
        %9588 = vmatmul.mubr.bf16.gmra.mxu0 %v9438
        %v9589 = vpop.f32.mrf.mxu0
        %v9590 = vadd.f32 %v9381, %v9589
        %v9591 = vpop.f32.mrf.mxu0
        %v9592 = vpop.f32.mrf.mxu0
        %v9593 = vadd.f32 %v9381, %v9592
        %v9594 = vpop.f32.mrf.mxu0
        %9595 = vmatprep.mubr.bf16.mxu0 0
        %9596 = vmatmul.mubr.bf16.gmra.mxu0 %v9441
        %v9597 = vpop.f32.mrf.mxu0
        %v9598 = vadd.f32 %v9381, %v9597
        %v9599 = vpop.f32.mrf.mxu0
        %v9600 = vpop.f32.mrf.mxu0
        %v9601 = vadd.f32 %v9381, %v9600
        %v9602 = vpop.f32.mrf.mxu0
        %9603 = vdwg.mxu0
        %v9604 = vadd.f32 %v9324, %v9478
        %v9605 = vadd.f32 %v9325, %v9481
        %v9606 = vadd.f32 %v9326, %v9486
        %v9607 = vadd.f32 %v9327, %v9489
        %v9608 = vadd.f32 %v9328, %v9494
        %v9609 = vadd.f32 %v9329, %v9497
        %v9610 = vadd.f32 %v9330, %v9502
        %v9611 = vadd.f32 %v9331, %v9505
        %v9612 = vadd.f32 %v9332, %v9510
        %v9613 = vadd.f32 %v9333, %v9513
        %v9614 = vadd.f32 %v9334, %v9518
        %v9615 = vadd.f32 %v9335, %v9521
        %v9616 = vadd.f32 %v9336, %v9526
        %v9617 = vadd.f32 %v9337, %v9529
        %v9618 = vadd.f32 %v9338, %v9534
        %v9619 = vadd.f32 %v9339, %v9537
        %v9620 = vadd.f32 %v9340, %v9542
        %v9621 = vadd.f32 %v9341, %v9545
        %v9622 = vadd.f32 %v9342, %v9550
        %v9623 = vadd.f32 %v9343, %v9553
        %v9624 = vadd.f32 %v9344, %v9558
        %v9625 = vadd.f32 %v9345, %v9561
        %v9626 = vadd.f32 %v9346, %v9566
        %v9627 = vadd.f32 %v9347, %v9569
        %v9628 = vadd.f32 %v9348, %v9574
        %v9629 = vadd.f32 %v9349, %v9577
        %v9630 = vadd.f32 %v9350, %v9582
        %v9631 = vadd.f32 %v9351, %v9585
        %v9632 = vadd.f32 %v9352, %v9590
        %v9633 = vadd.f32 %v9353, %v9593
        %v9634 = vadd.f32 %v9354, %v9598
        %v9635 = vadd.f32 %v9355, %v9601
        %9636 = vst.msk [vmem:[%s487] sm:$0xff] %vm3390, %v9604
        %9637 = vst.msk [vmem:[%s487 + $0x8] sm:$0xff] %vm3390, %v9605
        %9638 = vst.msk [vmem:[%s487 + $0x10] sm:$0xff] %vm3390, %v9606
        %9639 = vst.msk [vmem:[%s487 + $0x18] sm:$0xff] %vm3390, %v9607
        %9640 = vst.msk [vmem:[%s487 + $0x20] sm:$0xff] %vm3390, %v9608
        %9641 = vst.msk [vmem:[%s487 + $0x28] sm:$0xff] %vm3390, %v9609
        %9642 = vst.msk [vmem:[%s487 + $0x30] sm:$0xff] %vm3390, %v9610
        %9643 = vst.msk [vmem:[%s487 + $0x38] sm:$0xff] %vm3390, %v9611
        %9644 = vst.msk [vmem:[%s487 + $0x40] sm:$0xff] %vm3390, %v9612
        %9645 = vst.msk [vmem:[%s487 + $0x48] sm:$0xff] %vm3390, %v9613
        %9646 = vst.msk [vmem:[%s487 + $0x50] sm:$0xff] %vm3390, %v9614
        %9647 = vst.msk [vmem:[%s487 + $0x58] sm:$0xff] %vm3390, %v9615
        %9648 = vst.msk [vmem:[%s487 + $0x60] sm:$0xff] %vm3390, %v9616
        %9649 = vst.msk [vmem:[%s487 + $0x68] sm:$0xff] %vm3390, %v9617
        %9650 = vst.msk [vmem:[%s487 + $0x70] sm:$0xff] %vm3390, %v9618
        %9651 = vst.msk [vmem:[%s487 + $0x78] sm:$0xff] %vm3390, %v9619
        %9652 = vst.msk [vmem:[%s487 + $0x80] sm:$0xff] %vm3390, %v9620
        %9653 = vst.msk [vmem:[%s487 + $0x88] sm:$0xff] %vm3390, %v9621
        %9654 = vst.msk [vmem:[%s487 + $0x90] sm:$0xff] %vm3390, %v9622
        %9655 = vst.msk [vmem:[%s487 + $0x98] sm:$0xff] %vm3390, %v9623
        %9656 = vst.msk [vmem:[%s487 + $0xa0] sm:$0xff] %vm3390, %v9624
        %9657 = vst.msk [vmem:[%s487 + $0xa8] sm:$0xff] %vm3390, %v9625
        %9658 = vst.msk [vmem:[%s487 + $0xb0] sm:$0xff] %vm3390, %v9626
        %9659 = vst.msk [vmem:[%s487 + $0xb8] sm:$0xff] %vm3390, %v9627
        %9660 = vst.msk [vmem:[%s487 + $0xc0] sm:$0xff] %vm3390, %v9628
        %9661 = vst.msk [vmem:[%s487 + $0xc8] sm:$0xff] %vm3390, %v9629
        %9662 = vst.msk [vmem:[%s487 + $0xd0] sm:$0xff] %vm3390, %v9630
        %9663 = vst.msk [vmem:[%s487 + $0xd8] sm:$0xff] %vm3390, %v9631
        %9664 = vst.msk [vmem:[%s487 + $0xe0] sm:$0xff] %vm3390, %v9632
        %9665 = vst.msk [vmem:[%s487 + $0xe8] sm:$0xff] %vm3390, %v9633
        %9666 = vst.msk [vmem:[%s487 + $0xf0] sm:$0xff] %vm3390, %v9634
        %9667 = vst.msk [vmem:[%s487 + $0xf8] sm:$0xff] %vm3390, %v9635
        %s9668 = sand.u32 %s357, 1
        %s9669 = scalar_lea.sflag [#allocation7], %s9668
        %s9670 = sand.u32 %s357, 1
        %s9671 = smul.addr %s9670, 256
        %s9672 = scalar_lea.vmem [#allocation6], %s9671
        // Predicated region
        $region81: #{tpu_custom_call.1} parent=79 // pred_check
          %p9673 = pneg %p367
        $region82: #{tpu_custom_call.1} parent=79 // pred_check_branch
          %9675 = sbr.rel (%p9673) target = $region84
        $region83: #{tpu_custom_call.1} parent=79 // pred_region
          %s9677 = ssub.s32 4096, 4096
          %9678 = vsyncadd %s9669, %s9677
          %s9679 = smul.addr %s29, 32
          %s9680 = smul.addr %s9679, 128
          %s9681 = scalar_lea.hbm %s15, %s9680
          %s9682 = sshll.u32 %s9672, 4
          %s9683 = int_to_ptr.vmem [resolvable:$true] %s9682
          %9688 = dma.vmem_to_hbm [thread:$0]  %s9683, 4096, %s9681, %s9669, 128, 128, 8
        $region84: #{tpu_custom_call.1} parent=79 // pred_fallthru
          _
      $region80: #{tpu_custom_call.1} parent=5 // pred_fallthru
        _
      %p9689 = scmp.le.s32.totalorder 2, %s24
      // Predicated region
      $region85: #{tpu_custom_call.1} parent=5 // pred_check
        %p9690 = pneg %p9689
      $region86: #{tpu_custom_call.1} parent=5 // pred_check_branch
        %9692 = sbr.rel (%p9690) target = $region88
      $region87: #{tpu_custom_call.1} parent=5 // pred_region
        %s9693 = ssub.s32 %s24, 2
        // Predicated region
        $region89: #{tpu_custom_call.1} parent=87 // pred_check
          %p9694 = pneg %p373
        $region90: #{tpu_custom_call.1} parent=87 // pred_check_branch
          %9696 = sbr.rel (%p9694) target = $region92
        $region91: #{tpu_custom_call.1} parent=87 // pred_region
          %s9697 = sand.u32 %s358, 1
          %s9698 = scalar_lea.sflag [#allocation7], %s9697
          %s9699 = sand.u32 %s358, 1
          %s9700 = smul.addr %s9699, 256
          %s9701 = scalar_lea.vmem [#allocation6], %s9700
          %9702 = dma.done %s9698, 4096
        $region92: #{tpu_custom_call.1} parent=87 // pred_fallthru
          _
      $region88: #{tpu_custom_call.1} parent=5 // pred_fallthru
        _
    $region6: #{tpu_custom_call.1} parent=1 // loop_footer
      %s28 = sadd.s32 1, %s24
    $region7: #{tpu_custom_call.1} parent=1 // loop_footer_branch
      %23 = sbr.rel target = $region3
    $region8: #{tpu_custom_call.1} parent=1 // loop_exit
      _
    %9703 = vsyncpa [#allocation7], 1
    %s9704 = scalar_lea.sflag [#allocation7], 1
    %9705 = vsyncpa %s9704, 1

</llo_original>
